<compile_context>
chip_gen: v7x
topology: tpu7x:2x2x1
jax: 0.10.0
libtpu: 0.0.40
codegen_flags: <defaults>
</compile_context>

<pallas_src>
import jax
import jax.numpy as jnp
import numpy as np
from jax import lax
from jax.experimental import pallas as pl
from jax.experimental.pallas import tpu as pltpu

_NEG_SLOPE = 0.01   # torch.nn.LeakyReLU() default
_BN_EPS = 1e-5      # torch.nn.BatchNorm3d default


def _triple(v):
    if isinstance(v, (tuple, list)):
        assert len(v) == 3
        return tuple(int(e) for e in v)
    return (int(v),) * 3


def _round_up(x, m):
    return -(-x // m) * m


# --------------------------------------------------------------------------
# Pallas kernel: in-VMEM im2col + single GEMM + folded BN shift + LeakyReLU
# --------------------------------------------------------------------------
def _make_conv_kernel(tap_meta, cpad, n_lanes):
    """Build the kernel body for one Conv3d+BN+LeakyReLU layer.

    tap_meta: static list of (phase_index, lane_offset), one per conv tap
              (kd, kh, kw) in row-major tap order.
    cpad:     input-channel count padded to a multiple of 8 (sublanes).
    n_lanes:  output lanes computed per grid step (multiple of 128).
    """
    def kernel(w_ref, shift_ref, x_ref, o_ref, patches_ref):
        # w_ref:       (Cout, TAPS*cpad)         f32, BN scale pre-folded
        # shift_ref:   (Cout, 1)                 f32, BN shift
        # x_ref:       (1, n_phase, cpad, L_in)  bf16 phase planes (lane-flat)
        # o_ref:       (1, Cout, n_lanes)        bf16 / f32
        # patches_ref: (TAPS*cpad, n_lanes)      f32 VMEM scratch
        for t, (ph, off) in enumerate(tap_meta):
            # constant lane-shifted window of one phase plane == one conv tap
            patch = x_ref[0, ph, :, pl.ds(off, n_lanes)]          # (cpad, n_lanes)
            patches_ref[pl.ds(t * cpad, cpad), :] = patch.astype(jnp.float32)
        acc = jnp.dot(w_ref[...], patches_ref[...],
                      preferred_element_type=jnp.float32)          # (Cout, n_lanes)
        y = acc + shift_ref[...]                                   # folded BN shift
        o_ref[0] = jnp.where(y > 0.0, y, _NEG_SLOPE * y).astype(o_ref.dtype)
    return kernel


def _conv3d_bn_lrelu_pallas(x, layer, *, act_dtype=jnp.bfloat16,
                            out_dtype=jnp.float32):
    """One Conv3d(bias=False) + BatchNorm3d(eval) + LeakyReLU layer."""
    w = layer["w"]                                    # (Cout, Cin, Kd, Kh, Kw)
    sd, sh, sw = layer["stride"]
    pd, ph, pw = layer["padding"]
    B, Cin, D, H, W = x.shape
    Cout, _, Kd, Kh, Kw = w.shape

    Do = (D + 2 * pd - Kd) // sd + 1
    Ho = (H + 2 * ph - Kh) // sh + 1
    Wo = (W + 2 * pw - Kw) // sw + 1

    Dp, Hp, Wp = D + 2 * pd, H + 2 * ph, W + 2 * pw
    U, V, T = -(-Dp // sd), -(-Hp // sh), -(-Wp // sw)   # per-phase grid
    n_phase = sd * sh * sw
    cpad = _round_up(Cin, 8)
    taps = Kd * Kh * Kw

    L = U * V * T                                        # flat phase-grid size
    c_max = ((Kd - 1) // sd) * V * T + ((Kh - 1) // sh) * T + (Kw - 1) // sw
    n_lanes = _round_up(L, 128)                          # lane-dense output width
    l_in = _round_up(n_lanes + c_max, 128)               # phase plane len + halo

    # ---- wrapper: zero-FLOP layout plumbing (pad + phase split + flatten) --
    xp = jnp.pad(x, ((0, 0), (0, cpad - Cin), (pd, pd), (ph, ph), (pw, pw)))
    xp = jnp.pad(xp, ((0, 0), (0, 0),
                      (0, U * sd - Dp), (0, V * sh - Hp), (0, T * sw - Wp)))
    # phase[rd,rh,rw][c,u,v,t] = xpad[c, u*sd+rd, v*sh+rh, t*sw+rw]
    xr = xp.reshape(B, cpad, U, sd, V, sh, T, sw)
    xr = xr.transpose(0, 3, 5, 7, 1, 2, 4, 6).reshape(B, n_phase, cpad, L)
    xr = jnp.pad(xr, ((0, 0), (0, 0), (0, 0), (0, l_in - L))).astype(act_dtype)

    # ---- fold eval-mode BatchNorm into weights (scale) + per-channel shift --
    scale = (layer["gamma"].astype(jnp.float32)
             * lax.rsqrt(layer["var"].astype(jnp.float32) + _BN_EPS))
    shift = (layer["beta"].astype(jnp.float32)
             - layer["mean"].astype(jnp.float32) * scale).reshape(Cout, 1)
    wf = w.astype(jnp.float32) * scale.reshape(Cout, 1, 1, 1, 1)
    wf = jnp.pad(wf, ((0, 0), (0, cpad - Cin), (0, 0), (0, 0), (0, 0)))
    # GEMM row order of the in-kernel patches: k = tap*cpad + channel
    wmat = wf.transpose(0, 2, 3, 4, 1).reshape(Cout, taps * cpad)
    wmat = wmat.astype(jnp.float32)

    # static per-tap (phase index, lane offset) metadata
    tap_meta = []
    for kd in range(Kd):
        for kh in range(Kh):
            for kw in range(Kw):
                phase = (kd % sd) * (sh * sw) + (kh % sh) * sw + (kw % sw)
                off = (kd // sd) * (V * T) + (kh // sh) * T + (kw // sw)
                tap_meta.append((phase, off))

    # VMEM budget: double-buffered blocks + im2col scratch + headroom.
    blk_bytes = (2 * (n_phase * cpad * l_in * jnp.dtype(act_dtype).itemsize
                      + Cout * n_lanes * jnp.dtype(out_dtype).itemsize
                      + wmat.size * 4 + shift.size * 4)
                 + taps * cpad * n_lanes * 4)
    vmem_limit = int(min(64 * 1024 * 1024,
                         max(16 * 1024 * 1024, blk_bytes + (4 << 20))))

    out_big = pl.pallas_call(
        _make_conv_kernel(tap_meta, cpad, n_lanes),
        out_shape=jax.ShapeDtypeStruct((B, Cout, n_lanes), out_dtype),
        grid=(B,),
        in_specs=[
            pl.BlockSpec((Cout, taps * cpad), lambda b: (0, 0)),
            pl.BlockSpec((Cout, 1), lambda b: (0, 0)),
            pl.BlockSpec((1, n_phase, cpad, l_in), lambda b: (b, 0, 0, 0)),
        ],
        out_specs=pl.BlockSpec((1, Cout, n_lanes), lambda b: (b, 0, 0)),
        scratch_shapes=[pltpu.VMEM((taps * cpad, n_lanes), jnp.float32)],
        compiler_params=pltpu.CompilerParams(
            dimension_semantics=("parallel",),
            vmem_limit_bytes=vmem_limit,
        ),
    )(wmat, shift, xr)

    # drop garbage lanes / phase padding, restore NCDHW layout
    out = out_big[:, :, :L].reshape(B, Cout, U, V, T)[:, :, :Do, :Ho, :Wo]
    return out


def vae_encoder3d_forward(x, params):
    """Pallas forward of VAE_Encoder3D.encoder (eval mode)."""
    n = len(params)
    for i, layer in enumerate(params):
        # intermediate activations travel through HBM as bf16; last layer f32
        out_dtype = jnp.float32 if i == n - 1 else jnp.bfloat16
        x = _conv3d_bn_lrelu_pallas(x, layer, act_dtype=jnp.bfloat16,
                                    out_dtype=out_dtype)
    return x


# --------------------------------------------------------------------------
# Parameter construction mirroring the PyTorch __init__
# --------------------------------------------------------------------------
def init_vae_encoder3d_params(key, in_channels, channels, kernel_sizes,
                              strides, paddings):
    params = []
    in_chan = in_channels
    for chan, kern, stri, padd in zip(channels, kernel_sizes, strides, paddings):
        kern, stri, padd = _triple(kern), _triple(stri), _triple(padd)
        key, kw, kg, kb, km, kv = jax.random.split(key, 6)
        fan_in = in_chan * kern[0] * kern[1] * kern[2]
        w = np.sqrt(2.0 / fan_in) * jax.random.normal(
            kw, (chan, in_chan) + kern, jnp.float32)
        params.append(dict(
            w=w,
            gamma=1.0 + 0.1 * jax.random.normal(kg, (chan,), jnp.float32),
            beta=0.1 * jax.random.normal(kb, (chan,), jnp.float32),
            mean=0.1 * jax.random.normal(km, (chan,), jnp.float32),
            var=jax.random.uniform(kv, (chan,), jnp.float32, 0.5, 1.5),
            stride=stri,
            padding=padd,
        ))
        in_chan = chan
    return params


# --------------------------------------------------------------------------
# Pure-JAX reference (independent path: XLA 3-D convolution, f32 / HIGHEST)
# --------------------------------------------------------------------------
def reference_forward(x, params):
    for layer in params:
        y = lax.conv_general_dilated(
            x, layer["w"],
            window_strides=layer["stride"],
            padding=[(p, p) for p in layer["padding"]],
            dimension_numbers=("NCDHW", "OIDHW", "NCDHW"),
            precision=lax.Precision.HIGHEST)
        c = y.shape[1]
        bshape = (1, c, 1, 1, 1)
        inv_std = 1.0 / jnp.sqrt(layer["var"] + _BN_EPS)
        y = ((y - layer["mean"].reshape(bshape))
             * (layer["gamma"] * inv_std).reshape(bshape)
             + layer["beta"].reshape(bshape))
        x = jnp.where(y > 0.0, y, _NEG_SLOPE * y)
    return x


if __name__ == "__main__":
    key = jax.random.PRNGKey(0)
    kx, kp = jax.random.split(key)

    # VAE_Encoder3D(in_channels=4, channels=(8,16), kernel_sizes=(3,3),
    #               strides=(1,2), paddings=(1,1)) in eval mode.
    in_channels = 4
    channels = (8, 16)
    kernel_sizes = (3, 3)
    strides = (1, 2)
    paddings = (1, 1)

    x = jax.random.normal(kx, (2, in_channels, 8, 16, 16), jnp.float32)  # NCDHW
    params = init_vae_encoder3d_params(kp, in_channels, channels,
                                       kernel_sizes, strides, paddings)

    fwd = jax.jit(lambda xx: vae_encoder3d_forward(xx, params))
    out = jax.block_until_ready(fwd(x))
    ref = reference_forward(x, params)

    assert out.shape == ref.shape == (2, 16, 4, 8, 8), (out.shape, ref.shape)
    out_np, ref_np = np.asarray(out), np.asarray(ref)
    # bf16 HBM activations + default-precision MXU vs f32/HIGHEST reference
    if not np.allclose(out_np, ref_np, rtol=2e-2, atol=2e-2):
        raise AssertionError(
            "Pallas kernel does not match reference "
            f"(max abs err {np.max(np.abs(out_np - ref_np)):.3e})")
    print("KERNEL_OK")
</pallas_src>

<mosaic_0001>
module attributes {stable_mosaic.version = 11 : i64} {
  func.func @kernel(%arg0: i32, %arg1: memref<8x216xf32, #tpu.memory_space<vmem>>, %arg2: memref<8x1xf32, #tpu.memory_space<vmem>>, %arg3: memref<1x1x8x4096xbf16, #tpu.memory_space<vmem>>, %arg4: memref<1x8x3328xbf16, #tpu.memory_space<vmem>>, %arg5: memref<216x3328xf32, #tpu.memory_space<vmem>>) attributes {dimension_semantics = [#tpu.dimension_semantics<parallel>], iteration_bounds = array<i64: 2>, scalar_prefetch = 0 : i64, scratch_operands = 1 : i64, tpu.core_type = #tpu.core_type<tc>, window_params = [{pipeline_mode = #tpu.pipeline_mode<synchronous>, transform_indices = @transform_0, window_bounds = array<i64: 8, 216>}, {pipeline_mode = #tpu.pipeline_mode<synchronous>, transform_indices = @transform_1, window_bounds = array<i64: 8, 1>}, {transform_indices = @transform_2, window_bounds = array<i64: 1, 1, 8, 4096>}, {transform_indices = @transform_3, window_bounds = array<i64: 1, 8, 3328>}]} {
    %c0 = arith.constant 0 : index
    %c0_0 = arith.constant 0 : index
    %c0_1 = arith.constant 0 : index
    %c0_2 = arith.constant 0 : index
    %0 = vector.load %arg3[%c0, %c0_0, %c0_1, %c0_2] : memref<1x1x8x4096xbf16, #tpu.memory_space<vmem>>, vector<1x1x8x3328xbf16>
    %1 = vector.shape_cast %0 : vector<1x1x8x3328xbf16> to vector<8x3328xbf16>
    %2 = arith.extf %1 : vector<8x3328xbf16> to vector<8x3328xf32>
    %c0_3 = arith.constant 0 : index
    %c0_4 = arith.constant 0 : index
    %3 = vector.load %arg5[%c0_3, %c0_4] : memref<216x3328xf32, #tpu.memory_space<vmem>>, vector<8x3328xf32>
    tpu.vector_store %arg5[%c0_3, %c0_4], %2 {strides = array<i32>} : memref<216x3328xf32, #tpu.memory_space<vmem>>, vector<8x3328xf32>,
    %c0_5 = arith.constant 0 : index
    %c0_6 = arith.constant 0 : index
    %c0_7 = arith.constant 0 : index
    %c1 = arith.constant 1 : index
    %4 = vector.load %arg3[%c0_5, %c0_6, %c0_7, %c1] : memref<1x1x8x4096xbf16, #tpu.memory_space<vmem>>, vector<1x1x8x3328xbf16>
    %5 = vector.shape_cast %4 : vector<1x1x8x3328xbf16> to vector<8x3328xbf16>
    %6 = arith.extf %5 : vector<8x3328xbf16> to vector<8x3328xf32>
    %c8 = arith.constant 8 : index
    %c0_8 = arith.constant 0 : index
    %7 = vector.load %arg5[%c8, %c0_8] : memref<216x3328xf32, #tpu.memory_space<vmem>>, vector<8x3328xf32>
    tpu.vector_store %arg5[%c8, %c0_8], %6 {strides = array<i32>} : memref<216x3328xf32, #tpu.memory_space<vmem>>, vector<8x3328xf32>,
    %c0_9 = arith.constant 0 : index
    %c0_10 = arith.constant 0 : index
    %c0_11 = arith.constant 0 : index
    %c2 = arith.constant 2 : index
    %8 = vector.load %arg3[%c0_9, %c0_10, %c0_11, %c2] : memref<1x1x8x4096xbf16, #tpu.memory_space<vmem>>, vector<1x1x8x3328xbf16>
    %9 = vector.shape_cast %8 : vector<1x1x8x3328xbf16> to vector<8x3328xbf16>
    %10 = arith.extf %9 : vector<8x3328xbf16> to vector<8x3328xf32>
    %c16 = arith.constant 16 : index
    %c0_12 = arith.constant 0 : index
    %11 = vector.load %arg5[%c16, %c0_12] : memref<216x3328xf32, #tpu.memory_space<vmem>>, vector<8x3328xf32>
    tpu.vector_store %arg5[%c16, %c0_12], %10 {strides = array<i32>} : memref<216x3328xf32, #tpu.memory_space<vmem>>, vector<8x3328xf32>,
    %c0_13 = arith.constant 0 : index
    %c0_14 = arith.constant 0 : index
    %c0_15 = arith.constant 0 : index
    %c18 = arith.constant 18 : index
    %12 = vector.load %arg3[%c0_13, %c0_14, %c0_15, %c18] : memref<1x1x8x4096xbf16, #tpu.memory_space<vmem>>, vector<1x1x8x3328xbf16>
    %13 = vector.shape_cast %12 : vector<1x1x8x3328xbf16> to vector<8x3328xbf16>
    %14 = arith.extf %13 : vector<8x3328xbf16> to vector<8x3328xf32>
    %c24 = arith.constant 24 : index
    %c0_16 = arith.constant 0 : index
    %15 = vector.load %arg5[%c24, %c0_16] : memref<216x3328xf32, #tpu.memory_space<vmem>>, vector<8x3328xf32>
    tpu.vector_store %arg5[%c24, %c0_16], %14 {strides = array<i32>} : memref<216x3328xf32, #tpu.memory_space<vmem>>, vector<8x3328xf32>,
    %c0_17 = arith.constant 0 : index
    %c0_18 = arith.constant 0 : index
    %c0_19 = arith.constant 0 : index
    %c19 = arith.constant 19 : index
    %16 = vector.load %arg3[%c0_17, %c0_18, %c0_19, %c19] : memref<1x1x8x4096xbf16, #tpu.memory_space<vmem>>, vector<1x1x8x3328xbf16>
    %17 = vector.shape_cast %16 : vector<1x1x8x3328xbf16> to vector<8x3328xbf16>
    %18 = arith.extf %17 : vector<8x3328xbf16> to vector<8x3328xf32>
    %c32 = arith.constant 32 : index
    %c0_20 = arith.constant 0 : index
    %19 = vector.load %arg5[%c32, %c0_20] : memref<216x3328xf32, #tpu.memory_space<vmem>>, vector<8x3328xf32>
    tpu.vector_store %arg5[%c32, %c0_20], %18 {strides = array<i32>} : memref<216x3328xf32, #tpu.memory_space<vmem>>, vector<8x3328xf32>,
    %c0_21 = arith.constant 0 : index
    %c0_22 = arith.constant 0 : index
    %c0_23 = arith.constant 0 : index
    %c20 = arith.constant 20 : index
    %20 = vector.load %arg3[%c0_21, %c0_22, %c0_23, %c20] : memref<1x1x8x4096xbf16, #tpu.memory_space<vmem>>, vector<1x1x8x3328xbf16>
    %21 = vector.shape_cast %20 : vector<1x1x8x3328xbf16> to vector<8x3328xbf16>
    %22 = arith.extf %21 : vector<8x3328xbf16> to vector<8x3328xf32>
    %c40 = arith.constant 40 : index
    %c0_24 = arith.constant 0 : index
    %23 = vector.load %arg5[%c40, %c0_24] : memref<216x3328xf32, #tpu.memory_space<vmem>>, vector<8x3328xf32>
    tpu.vector_store %arg5[%c40, %c0_24], %22 {strides = array<i32>} : memref<216x3328xf32, #tpu.memory_space<vmem>>, vector<8x3328xf32>,
    %c0_25 = arith.constant 0 : index
    %c0_26 = arith.constant 0 : index
    %c0_27 = arith.constant 0 : index
    %c36 = arith.constant 36 : index
    %24 = vector.load %arg3[%c0_25, %c0_26, %c0_27, %c36] : memref<1x1x8x4096xbf16, #tpu.memory_space<vmem>>, vector<1x1x8x3328xbf16>
    %25 = vector.shape_cast %24 : vector<1x1x8x3328xbf16> to vector<8x3328xbf16>
    %26 = arith.extf %25 : vector<8x3328xbf16> to vector<8x3328xf32>
    %c48 = arith.constant 48 : index
    %c0_28 = arith.constant 0 : index
    %27 = vector.load %arg5[%c48, %c0_28] : memref<216x3328xf32, #tpu.memory_space<vmem>>, vector<8x3328xf32>
    tpu.vector_store %arg5[%c48, %c0_28], %26 {strides = array<i32>} : memref<216x3328xf32, #tpu.memory_space<vmem>>, vector<8x3328xf32>,
    %c0_29 = arith.constant 0 : index
    %c0_30 = arith.constant 0 : index
    %c0_31 = arith.constant 0 : index
    %c37 = arith.constant 37 : index
    %28 = vector.load %arg3[%c0_29, %c0_30, %c0_31, %c37] : memref<1x1x8x4096xbf16, #tpu.memory_space<vmem>>, vector<1x1x8x3328xbf16>
    %29 = vector.shape_cast %28 : vector<1x1x8x3328xbf16> to vector<8x3328xbf16>
    %30 = arith.extf %29 : vector<8x3328xbf16> to vector<8x3328xf32>
    %c56 = arith.constant 56 : index
    %c0_32 = arith.constant 0 : index
    %31 = vector.load %arg5[%c56, %c0_32] : memref<216x3328xf32, #tpu.memory_space<vmem>>, vector<8x3328xf32>
    tpu.vector_store %arg5[%c56, %c0_32], %30 {strides = array<i32>} : memref<216x3328xf32, #tpu.memory_space<vmem>>, vector<8x3328xf32>,
    %c0_33 = arith.constant 0 : index
    %c0_34 = arith.constant 0 : index
    %c0_35 = arith.constant 0 : index
    %c38 = arith.constant 38 : index
    %32 = vector.load %arg3[%c0_33, %c0_34, %c0_35, %c38] : memref<1x1x8x4096xbf16, #tpu.memory_space<vmem>>, vector<1x1x8x3328xbf16>
    %33 = vector.shape_cast %32 : vector<1x1x8x3328xbf16> to vector<8x3328xbf16>
    %34 = arith.extf %33 : vector<8x3328xbf16> to vector<8x3328xf32>
    %c64 = arith.constant 64 : index
    %c0_36 = arith.constant 0 : index
    %35 = vector.load %arg5[%c64, %c0_36] : memref<216x3328xf32, #tpu.memory_space<vmem>>, vector<8x3328xf32>
    tpu.vector_store %arg5[%c64, %c0_36], %34 {strides = array<i32>} : memref<216x3328xf32, #tpu.memory_space<vmem>>, vector<8x3328xf32>,
    %c0_37 = arith.constant 0 : index
    %c0_38 = arith.constant 0 : index
    %c0_39 = arith.constant 0 : index
    %c324 = arith.constant 324 : index
    %36 = vector.load %arg3[%c0_37, %c0_38, %c0_39, %c324] : memref<1x1x8x4096xbf16, #tpu.memory_space<vmem>>, vector<1x1x8x3328xbf16>
    %37 = vector.shape_cast %36 : vector<1x1x8x3328xbf16> to vector<8x3328xbf16>
    %38 = arith.extf %37 : vector<8x3328xbf16> to vector<8x3328xf32>
    %c72 = arith.constant 72 : index
    %c0_40 = arith.constant 0 : index
    %39 = vector.load %arg5[%c72, %c0_40] : memref<216x3328xf32, #tpu.memory_space<vmem>>, vector<8x3328xf32>
    tpu.vector_store %arg5[%c72, %c0_40], %38 {strides = array<i32>} : memref<216x3328xf32, #tpu.memory_space<vmem>>, vector<8x3328xf32>,
    %c0_41 = arith.constant 0 : index
    %c0_42 = arith.constant 0 : index
    %c0_43 = arith.constant 0 : index
    %c325 = arith.constant 325 : index
    %40 = vector.load %arg3[%c0_41, %c0_42, %c0_43, %c325] : memref<1x1x8x4096xbf16, #tpu.memory_space<vmem>>, vector<1x1x8x3328xbf16>
    %41 = vector.shape_cast %40 : vector<1x1x8x3328xbf16> to vector<8x3328xbf16>
    %42 = arith.extf %41 : vector<8x3328xbf16> to vector<8x3328xf32>
    %c80 = arith.constant 80 : index
    %c0_44 = arith.constant 0 : index
    %43 = vector.load %arg5[%c80, %c0_44] : memref<216x3328xf32, #tpu.memory_space<vmem>>, vector<8x3328xf32>
    tpu.vector_store %arg5[%c80, %c0_44], %42 {strides = array<i32>} : memref<216x3328xf32, #tpu.memory_space<vmem>>, vector<8x3328xf32>,
    %c0_45 = arith.constant 0 : index
    %c0_46 = arith.constant 0 : index
    %c0_47 = arith.constant 0 : index
    %c326 = arith.constant 326 : index
    %44 = vector.load %arg3[%c0_45, %c0_46, %c0_47, %c326] : memref<1x1x8x4096xbf16, #tpu.memory_space<vmem>>, vector<1x1x8x3328xbf16>
    %45 = vector.shape_cast %44 : vector<1x1x8x3328xbf16> to vector<8x3328xbf16>
    %46 = arith.extf %45 : vector<8x3328xbf16> to vector<8x3328xf32>
    %c88 = arith.constant 88 : index
    %c0_48 = arith.constant 0 : index
    %47 = vector.load %arg5[%c88, %c0_48] : memref<216x3328xf32, #tpu.memory_space<vmem>>, vector<8x3328xf32>
    tpu.vector_store %arg5[%c88, %c0_48], %46 {strides = array<i32>} : memref<216x3328xf32, #tpu.memory_space<vmem>>, vector<8x3328xf32>,
    %c0_49 = arith.constant 0 : index
    %c0_50 = arith.constant 0 : index
    %c0_51 = arith.constant 0 : index
    %c342 = arith.constant 342 : index
    %48 = vector.load %arg3[%c0_49, %c0_50, %c0_51, %c342] : memref<1x1x8x4096xbf16, #tpu.memory_space<vmem>>, vector<1x1x8x3328xbf16>
    %49 = vector.shape_cast %48 : vector<1x1x8x3328xbf16> to vector<8x3328xbf16>
    %50 = arith.extf %49 : vector<8x3328xbf16> to vector<8x3328xf32>
    %c96 = arith.constant 96 : index
    %c0_52 = arith.constant 0 : index
    %51 = vector.load %arg5[%c96, %c0_52] : memref<216x3328xf32, #tpu.memory_space<vmem>>, vector<8x3328xf32>
    tpu.vector_store %arg5[%c96, %c0_52], %50 {strides = array<i32>} : memref<216x3328xf32, #tpu.memory_space<vmem>>, vector<8x3328xf32>,
    %c0_53 = arith.constant 0 : index
    %c0_54 = arith.constant 0 : index
    %c0_55 = arith.constant 0 : index
    %c343 = arith.constant 343 : index
    %52 = vector.load %arg3[%c0_53, %c0_54, %c0_55, %c343] : memref<1x1x8x4096xbf16, #tpu.memory_space<vmem>>, vector<1x1x8x3328xbf16>
    %53 = vector.shape_cast %52 : vector<1x1x8x3328xbf16> to vector<8x3328xbf16>
    %54 = arith.extf %53 : vector<8x3328xbf16> to vector<8x3328xf32>
    %c104 = arith.constant 104 : index
    %c0_56 = arith.constant 0 : index
    %55 = vector.load %arg5[%c104, %c0_56] : memref<216x3328xf32, #tpu.memory_space<vmem>>, vector<8x3328xf32>
    tpu.vector_store %arg5[%c104, %c0_56], %54 {strides = array<i32>} : memref<216x3328xf32, #tpu.memory_space<vmem>>, vector<8x3328xf32>,
    %c0_57 = arith.constant 0 : index
    %c0_58 = arith.constant 0 : index
    %c0_59 = arith.constant 0 : index
    %c344 = arith.constant 344 : index
    %56 = vector.load %arg3[%c0_57, %c0_58, %c0_59, %c344] : memref<1x1x8x4096xbf16, #tpu.memory_space<vmem>>, vector<1x1x8x3328xbf16>
    %57 = vector.shape_cast %56 : vector<1x1x8x3328xbf16> to vector<8x3328xbf16>
    %58 = arith.extf %57 : vector<8x3328xbf16> to vector<8x3328xf32>
    %c112 = arith.constant 112 : index
    %c0_60 = arith.constant 0 : index
    %59 = vector.load %arg5[%c112, %c0_60] : memref<216x3328xf32, #tpu.memory_space<vmem>>, vector<8x3328xf32>
    tpu.vector_store %arg5[%c112, %c0_60], %58 {strides = array<i32>} : memref<216x3328xf32, #tpu.memory_space<vmem>>, vector<8x3328xf32>,
    %c0_61 = arith.constant 0 : index
    %c0_62 = arith.constant 0 : index
    %c0_63 = arith.constant 0 : index
    %c360 = arith.constant 360 : index
    %60 = vector.load %arg3[%c0_61, %c0_62, %c0_63, %c360] : memref<1x1x8x4096xbf16, #tpu.memory_space<vmem>>, vector<1x1x8x3328xbf16>
    %61 = vector.shape_cast %60 : vector<1x1x8x3328xbf16> to vector<8x3328xbf16>
    %62 = arith.extf %61 : vector<8x3328xbf16> to vector<8x3328xf32>
    %c120 = arith.constant 120 : index
    %c0_64 = arith.constant 0 : index
    %63 = vector.load %arg5[%c120, %c0_64] : memref<216x3328xf32, #tpu.memory_space<vmem>>, vector<8x3328xf32>
    tpu.vector_store %arg5[%c120, %c0_64], %62 {strides = array<i32>} : memref<216x3328xf32, #tpu.memory_space<vmem>>, vector<8x3328xf32>,
    %c0_65 = arith.constant 0 : index
    %c0_66 = arith.constant 0 : index
    %c0_67 = arith.constant 0 : index
    %c361 = arith.constant 361 : index
    %64 = vector.load %arg3[%c0_65, %c0_66, %c0_67, %c361] : memref<1x1x8x4096xbf16, #tpu.memory_space<vmem>>, vector<1x1x8x3328xbf16>
    %65 = vector.shape_cast %64 : vector<1x1x8x3328xbf16> to vector<8x3328xbf16>
    %66 = arith.extf %65 : vector<8x3328xbf16> to vector<8x3328xf32>
    %c128 = arith.constant 128 : index
    %c0_68 = arith.constant 0 : index
    %67 = vector.load %arg5[%c128, %c0_68] : memref<216x3328xf32, #tpu.memory_space<vmem>>, vector<8x3328xf32>
    tpu.vector_store %arg5[%c128, %c0_68], %66 {strides = array<i32>} : memref<216x3328xf32, #tpu.memory_space<vmem>>, vector<8x3328xf32>,
    %c0_69 = arith.constant 0 : index
    %c0_70 = arith.constant 0 : index
    %c0_71 = arith.constant 0 : index
    %c362 = arith.constant 362 : index
    %68 = vector.load %arg3[%c0_69, %c0_70, %c0_71, %c362] : memref<1x1x8x4096xbf16, #tpu.memory_space<vmem>>, vector<1x1x8x3328xbf16>
    %69 = vector.shape_cast %68 : vector<1x1x8x3328xbf16> to vector<8x3328xbf16>
    %70 = arith.extf %69 : vector<8x3328xbf16> to vector<8x3328xf32>
    %c136 = arith.constant 136 : index
    %c0_72 = arith.constant 0 : index
    %71 = vector.load %arg5[%c136, %c0_72] : memref<216x3328xf32, #tpu.memory_space<vmem>>, vector<8x3328xf32>
    tpu.vector_store %arg5[%c136, %c0_72], %70 {strides = array<i32>} : memref<216x3328xf32, #tpu.memory_space<vmem>>, vector<8x3328xf32>,
    %c0_73 = arith.constant 0 : index
    %c0_74 = arith.constant 0 : index
    %c0_75 = arith.constant 0 : index
    %c648 = arith.constant 648 : index
    %72 = vector.load %arg3[%c0_73, %c0_74, %c0_75, %c648] : memref<1x1x8x4096xbf16, #tpu.memory_space<vmem>>, vector<1x1x8x3328xbf16>
    %73 = vector.shape_cast %72 : vector<1x1x8x3328xbf16> to vector<8x3328xbf16>
    %74 = arith.extf %73 : vector<8x3328xbf16> to vector<8x3328xf32>
    %c144 = arith.constant 144 : index
    %c0_76 = arith.constant 0 : index
    %75 = vector.load %arg5[%c144, %c0_76] : memref<216x3328xf32, #tpu.memory_space<vmem>>, vector<8x3328xf32>
    tpu.vector_store %arg5[%c144, %c0_76], %74 {strides = array<i32>} : memref<216x3328xf32, #tpu.memory_space<vmem>>, vector<8x3328xf32>,
    %c0_77 = arith.constant 0 : index
    %c0_78 = arith.constant 0 : index
    %c0_79 = arith.constant 0 : index
    %c649 = arith.constant 649 : index
    %76 = vector.load %arg3[%c0_77, %c0_78, %c0_79, %c649] : memref<1x1x8x4096xbf16, #tpu.memory_space<vmem>>, vector<1x1x8x3328xbf16>
    %77 = vector.shape_cast %76 : vector<1x1x8x3328xbf16> to vector<8x3328xbf16>
    %78 = arith.extf %77 : vector<8x3328xbf16> to vector<8x3328xf32>
    %c152 = arith.constant 152 : index
    %c0_80 = arith.constant 0 : index
    %79 = vector.load %arg5[%c152, %c0_80] : memref<216x3328xf32, #tpu.memory_space<vmem>>, vector<8x3328xf32>
    tpu.vector_store %arg5[%c152, %c0_80], %78 {strides = array<i32>} : memref<216x3328xf32, #tpu.memory_space<vmem>>, vector<8x3328xf32>,
    %c0_81 = arith.constant 0 : index
    %c0_82 = arith.constant 0 : index
    %c0_83 = arith.constant 0 : index
    %c650 = arith.constant 650 : index
    %80 = vector.load %arg3[%c0_81, %c0_82, %c0_83, %c650] : memref<1x1x8x4096xbf16, #tpu.memory_space<vmem>>, vector<1x1x8x3328xbf16>
    %81 = vector.shape_cast %80 : vector<1x1x8x3328xbf16> to vector<8x3328xbf16>
    %82 = arith.extf %81 : vector<8x3328xbf16> to vector<8x3328xf32>
    %c160 = arith.constant 160 : index
    %c0_84 = arith.constant 0 : index
    %83 = vector.load %arg5[%c160, %c0_84] : memref<216x3328xf32, #tpu.memory_space<vmem>>, vector<8x3328xf32>
    tpu.vector_store %arg5[%c160, %c0_84], %82 {strides = array<i32>} : memref<216x3328xf32, #tpu.memory_space<vmem>>, vector<8x3328xf32>,
    %c0_85 = arith.constant 0 : index
    %c0_86 = arith.constant 0 : index
    %c0_87 = arith.constant 0 : index
    %c666 = arith.constant 666 : index
    %84 = vector.load %arg3[%c0_85, %c0_86, %c0_87, %c666] : memref<1x1x8x4096xbf16, #tpu.memory_space<vmem>>, vector<1x1x8x3328xbf16>
    %85 = vector.shape_cast %84 : vector<1x1x8x3328xbf16> to vector<8x3328xbf16>
    %86 = arith.extf %85 : vector<8x3328xbf16> to vector<8x3328xf32>
    %c168 = arith.constant 168 : index
    %c0_88 = arith.constant 0 : index
    %87 = vector.load %arg5[%c168, %c0_88] : memref<216x3328xf32, #tpu.memory_space<vmem>>, vector<8x3328xf32>
    tpu.vector_store %arg5[%c168, %c0_88], %86 {strides = array<i32>} : memref<216x3328xf32, #tpu.memory_space<vmem>>, vector<8x3328xf32>,
    %c0_89 = arith.constant 0 : index
    %c0_90 = arith.constant 0 : index
    %c0_91 = arith.constant 0 : index
    %c667 = arith.constant 667 : index
    %88 = vector.load %arg3[%c0_89, %c0_90, %c0_91, %c667] : memref<1x1x8x4096xbf16, #tpu.memory_space<vmem>>, vector<1x1x8x3328xbf16>
    %89 = vector.shape_cast %88 : vector<1x1x8x3328xbf16> to vector<8x3328xbf16>
    %90 = arith.extf %89 : vector<8x3328xbf16> to vector<8x3328xf32>
    %c176 = arith.constant 176 : index
    %c0_92 = arith.constant 0 : index
    %91 = vector.load %arg5[%c176, %c0_92] : memref<216x3328xf32, #tpu.memory_space<vmem>>, vector<8x3328xf32>
    tpu.vector_store %arg5[%c176, %c0_92], %90 {strides = array<i32>} : memref<216x3328xf32, #tpu.memory_space<vmem>>, vector<8x3328xf32>,
    %c0_93 = arith.constant 0 : index
    %c0_94 = arith.constant 0 : index
    %c0_95 = arith.constant 0 : index
    %c668 = arith.constant 668 : index
    %92 = vector.load %arg3[%c0_93, %c0_94, %c0_95, %c668] : memref<1x1x8x4096xbf16, #tpu.memory_space<vmem>>, vector<1x1x8x3328xbf16>
    %93 = vector.shape_cast %92 : vector<1x1x8x3328xbf16> to vector<8x3328xbf16>
    %94 = arith.extf %93 : vector<8x3328xbf16> to vector<8x3328xf32>
    %c184 = arith.constant 184 : index
    %c0_96 = arith.constant 0 : index
    %95 = vector.load %arg5[%c184, %c0_96] : memref<216x3328xf32, #tpu.memory_space<vmem>>, vector<8x3328xf32>
    tpu.vector_store %arg5[%c184, %c0_96], %94 {strides = array<i32>} : memref<216x3328xf32, #tpu.memory_space<vmem>>, vector<8x3328xf32>,
    %c0_97 = arith.constant 0 : index
    %c0_98 = arith.constant 0 : index
    %c0_99 = arith.constant 0 : index
    %c684 = arith.constant 684 : index
    %96 = vector.load %arg3[%c0_97, %c0_98, %c0_99, %c684] : memref<1x1x8x4096xbf16, #tpu.memory_space<vmem>>, vector<1x1x8x3328xbf16>
    %97 = vector.shape_cast %96 : vector<1x1x8x3328xbf16> to vector<8x3328xbf16>
    %98 = arith.extf %97 : vector<8x3328xbf16> to vector<8x3328xf32>
    %c192 = arith.constant 192 : index
    %c0_100 = arith.constant 0 : index
    %99 = vector.load %arg5[%c192, %c0_100] : memref<216x3328xf32, #tpu.memory_space<vmem>>, vector<8x3328xf32>
    tpu.vector_store %arg5[%c192, %c0_100], %98 {strides = array<i32>} : memref<216x3328xf32, #tpu.memory_space<vmem>>, vector<8x3328xf32>,
    %c0_101 = arith.constant 0 : index
    %c0_102 = arith.constant 0 : index
    %c0_103 = arith.constant 0 : index
    %c685 = arith.constant 685 : index
    %100 = vector.load %arg3[%c0_101, %c0_102, %c0_103, %c685] : memref<1x1x8x4096xbf16, #tpu.memory_space<vmem>>, vector<1x1x8x3328xbf16>
    %101 = vector.shape_cast %100 : vector<1x1x8x3328xbf16> to vector<8x3328xbf16>
    %102 = arith.extf %101 : vector<8x3328xbf16> to vector<8x3328xf32>
    %c200 = arith.constant 200 : index
    %c0_104 = arith.constant 0 : index
    %103 = vector.load %arg5[%c200, %c0_104] : memref<216x3328xf32, #tpu.memory_space<vmem>>, vector<8x3328xf32>
    tpu.vector_store %arg5[%c200, %c0_104], %102 {strides = array<i32>} : memref<216x3328xf32, #tpu.memory_space<vmem>>, vector<8x3328xf32>,
    %c0_105 = arith.constant 0 : index
    %c0_106 = arith.constant 0 : index
    %c0_107 = arith.constant 0 : index
    %c686 = arith.constant 686 : index
    %104 = vector.load %arg3[%c0_105, %c0_106, %c0_107, %c686] : memref<1x1x8x4096xbf16, #tpu.memory_space<vmem>>, vector<1x1x8x3328xbf16>
    %105 = vector.shape_cast %104 : vector<1x1x8x3328xbf16> to vector<8x3328xbf16>
    %106 = arith.extf %105 : vector<8x3328xbf16> to vector<8x3328xf32>
    %c208 = arith.constant 208 : index
    %c0_108 = arith.constant 0 : index
    %107 = vector.load %arg5[%c208, %c0_108] : memref<216x3328xf32, #tpu.memory_space<vmem>>, vector<8x3328xf32>
    tpu.vector_store %arg5[%c208, %c0_108], %106 {strides = array<i32>} : memref<216x3328xf32, #tpu.memory_space<vmem>>, vector<8x3328xf32>,
    %c0_109 = arith.constant 0 : index
    %c0_110 = arith.constant 0 : index
    %108 = vector.load %arg1[%c0_109, %c0_110] : memref<8x216xf32, #tpu.memory_space<vmem>>, vector<8x216xf32>
    %c0_111 = arith.constant 0 : index
    %c0_112 = arith.constant 0 : index
    %109 = vector.load %arg5[%c0_111, %c0_112] : memref<216x3328xf32, #tpu.memory_space<vmem>>, vector<216x3328xf32>
    %cst = arith.constant dense<0.000000e+00> : vector<8x3328xf32>
    %110 = tpu.matmul %108, %109, %cst {dimension_numbers = #tpu.dot_dimension_numbers<[1], [0], [0], [1], [0, 0, 1, 1], [], []>} : vector<8x216xf32>, vector<216x3328xf32>, vector<8x3328xf32> -> vector<8x3328xf32>
    %c0_113 = arith.constant 0 : index
    %c0_114 = arith.constant 0 : index
    %111 = vector.load %arg2[%c0_113, %c0_114] : memref<8x1xf32, #tpu.memory_space<vmem>>, vector<8x1xf32>
    %112 = vector.broadcast %111 : vector<8x1xf32> to vector<8x3328xf32>
    %113 = arith.addf %110, %112 : vector<8x3328xf32>
    %cst_115 = arith.constant 0.000000e+00 : f32
    %114 = vector.broadcast %cst_115 : f32 to vector<8x3328xf32>
    %115 = arith.cmpf ogt, %113, %114 : vector<8x3328xf32>
    %cst_116 = arith.constant 0.00999999977 : f32
    %116 = vector.broadcast %cst_116 : f32 to vector<8x3328xf32>
    %117 = arith.mulf %116, %113 : vector<8x3328xf32>
    %118 = arith.select %115, %113, %117 : vector<8x3328xi1>, vector<8x3328xf32>
    %119 = arith.truncf %118 : vector<8x3328xf32> to vector<8x3328xbf16>
    %c0_117 = arith.constant 0 : index
    %c0_118 = arith.constant 0 : index
    %c0_119 = arith.constant 0 : index
    %120 = vector.load %arg4[%c0_117, %c0_118, %c0_119] : memref<1x8x3328xbf16, #tpu.memory_space<vmem>>, vector<1x8x3328xbf16>
    %121 = vector.shape_cast %120 : vector<1x8x3328xbf16> to vector<8x3328xbf16>
    %122 = vector.shape_cast %119 : vector<8x3328xbf16> to vector<1x8x3328xbf16>
    tpu.vector_store %arg4[%c0_117, %c0_118, %c0_119], %122 {strides = array<i32>} : memref<1x8x3328xbf16, #tpu.memory_space<vmem>>, vector<1x8x3328xbf16>,
    return
  }
  func.func @transform_0(%arg0: i32) -> (i32, i32) {
    %c0_i32 = arith.constant 0 : i32
    %c0_i32_0 = arith.constant 0 : i32
    %c0_i32_1 = arith.constant 0 : i32
    return %c0_i32, %c0_i32_0 : i32, i32
  }
  func.func @transform_1(%arg0: i32) -> (i32, i32) {
    %c0_i32 = arith.constant 0 : i32
    %c0_i32_0 = arith.constant 0 : i32
    %c0_i32_1 = arith.constant 0 : i32
    return %c0_i32, %c0_i32_0 : i32, i32
  }
  func.func @transform_2(%arg0: i32) -> (i32, i32, i32, i32) {
    %c0_i32 = arith.constant 0 : i32
    %c0_i32_0 = arith.constant 0 : i32
    %c0_i32_1 = arith.constant 0 : i32
    %c0_i32_2 = arith.constant 0 : i32
    return %arg0, %c0_i32, %c0_i32_0, %c0_i32_1 : i32, i32, i32, i32
  }
  func.func @transform_3(%arg0: i32) -> (i32, i32, i32) {
    %c0_i32 = arith.constant 0 : i32
    %c0_i32_0 = arith.constant 0 : i32
    %c0_i32_1 = arith.constant 0 : i32
    return %arg0, %c0_i32, %c0_i32_0 : i32, i32, i32
  }
}

module attributes {stable_mosaic.version = 11 : i64} {
  func.func @kernel(%arg0: i32, %arg1: memref<16x216xf32, #tpu.memory_space<vmem>>, %arg2: memref<16x1xf32, #tpu.memory_space<vmem>>, %arg3: memref<1x8x8x640xbf16, #tpu.memory_space<vmem>>, %arg4: memref<1x16x512xf32, #tpu.memory_space<vmem>>, %arg5: memref<216x512xf32, #tpu.memory_space<vmem>>) attributes {dimension_semantics = [#tpu.dimension_semantics<parallel>], iteration_bounds = array<i64: 2>, scalar_prefetch = 0 : i64, scratch_operands = 1 : i64, tpu.core_type = #tpu.core_type<tc>, window_params = [{pipeline_mode = #tpu.pipeline_mode<synchronous>, transform_indices = @transform_0, window_bounds = array<i64: 16, 216>}, {pipeline_mode = #tpu.pipeline_mode<synchronous>, transform_indices = @transform_1, window_bounds = array<i64: 16, 1>}, {transform_indices = @transform_2, window_bounds = array<i64: 1, 8, 8, 640>}, {transform_indices = @transform_3, window_bounds = array<i64: 1, 16, 512>}]} {
    %c0 = arith.constant 0 : index
    %c0_0 = arith.constant 0 : index
    %c0_1 = arith.constant 0 : index
    %c0_2 = arith.constant 0 : index
    %0 = vector.load %arg3[%c0, %c0_0, %c0_1, %c0_2] : memref<1x8x8x640xbf16, #tpu.memory_space<vmem>>, vector<1x1x8x512xbf16>
    %1 = vector.shape_cast %0 : vector<1x1x8x512xbf16> to vector<8x512xbf16>
    %2 = arith.extf %1 : vector<8x512xbf16> to vector<8x512xf32>
    %c0_3 = arith.constant 0 : index
    %c0_4 = arith.constant 0 : index
    %3 = vector.load %arg5[%c0_3, %c0_4] : memref<216x512xf32, #tpu.memory_space<vmem>>, vector<8x512xf32>
    tpu.vector_store %arg5[%c0_3, %c0_4], %2 {strides = array<i32>} : memref<216x512xf32, #tpu.memory_space<vmem>>, vector<8x512xf32>,
    %c0_5 = arith.constant 0 : index
    %c1 = arith.constant 1 : index
    %c0_6 = arith.constant 0 : index
    %c0_7 = arith.constant 0 : index
    %4 = vector.load %arg3[%c0_5, %c1, %c0_6, %c0_7] : memref<1x8x8x640xbf16, #tpu.memory_space<vmem>>, vector<1x1x8x512xbf16>
    %5 = vector.shape_cast %4 : vector<1x1x8x512xbf16> to vector<8x512xbf16>
    %6 = arith.extf %5 : vector<8x512xbf16> to vector<8x512xf32>
    %c8 = arith.constant 8 : index
    %c0_8 = arith.constant 0 : index
    %7 = vector.load %arg5[%c8, %c0_8] : memref<216x512xf32, #tpu.memory_space<vmem>>, vector<8x512xf32>
    tpu.vector_store %arg5[%c8, %c0_8], %6 {strides = array<i32>} : memref<216x512xf32, #tpu.memory_space<vmem>>, vector<8x512xf32>,
    %c0_9 = arith.constant 0 : index
    %c0_10 = arith.constant 0 : index
    %c0_11 = arith.constant 0 : index
    %c1_12 = arith.constant 1 : index
    %8 = vector.load %arg3[%c0_9, %c0_10, %c0_11, %c1_12] : memref<1x8x8x640xbf16, #tpu.memory_space<vmem>>, vector<1x1x8x512xbf16>
    %9 = vector.shape_cast %8 : vector<1x1x8x512xbf16> to vector<8x512xbf16>
    %10 = arith.extf %9 : vector<8x512xbf16> to vector<8x512xf32>
    %c16 = arith.constant 16 : index
    %c0_13 = arith.constant 0 : index
    %11 = vector.load %arg5[%c16, %c0_13] : memref<216x512xf32, #tpu.memory_space<vmem>>, vector<8x512xf32>
    tpu.vector_store %arg5[%c16, %c0_13], %10 {strides = array<i32>} : memref<216x512xf32, #tpu.memory_space<vmem>>, vector<8x512xf32>,
    %c0_14 = arith.constant 0 : index
    %c2 = arith.constant 2 : index
    %c0_15 = arith.constant 0 : index
    %c0_16 = arith.constant 0 : index
    %12 = vector.load %arg3[%c0_14, %c2, %c0_15, %c0_16] : memref<1x8x8x640xbf16, #tpu.memory_space<vmem>>, vector<1x1x8x512xbf16>
    %13 = vector.shape_cast %12 : vector<1x1x8x512xbf16> to vector<8x512xbf16>
    %14 = arith.extf %13 : vector<8x512xbf16> to vector<8x512xf32>
    %c24 = arith.constant 24 : index
    %c0_17 = arith.constant 0 : index
    %15 = vector.load %arg5[%c24, %c0_17] : memref<216x512xf32, #tpu.memory_space<vmem>>, vector<8x512xf32>
    tpu.vector_store %arg5[%c24, %c0_17], %14 {strides = array<i32>} : memref<216x512xf32, #tpu.memory_space<vmem>>, vector<8x512xf32>,
    %c0_18 = arith.constant 0 : index
    %c3 = arith.constant 3 : index
    %c0_19 = arith.constant 0 : index
    %c0_20 = arith.constant 0 : index
    %16 = vector.load %arg3[%c0_18, %c3, %c0_19, %c0_20] : memref<1x8x8x640xbf16, #tpu.memory_space<vmem>>, vector<1x1x8x512xbf16>
    %17 = vector.shape_cast %16 : vector<1x1x8x512xbf16> to vector<8x512xbf16>
    %18 = arith.extf %17 : vector<8x512xbf16> to vector<8x512xf32>
    %c32 = arith.constant 32 : index
    %c0_21 = arith.constant 0 : index
    %19 = vector.load %arg5[%c32, %c0_21] : memref<216x512xf32, #tpu.memory_space<vmem>>, vector<8x512xf32>
    tpu.vector_store %arg5[%c32, %c0_21], %18 {strides = array<i32>} : memref<216x512xf32, #tpu.memory_space<vmem>>, vector<8x512xf32>,
    %c0_22 = arith.constant 0 : index
    %c2_23 = arith.constant 2 : index
    %c0_24 = arith.constant 0 : index
    %c1_25 = arith.constant 1 : index
    %20 = vector.load %arg3[%c0_22, %c2_23, %c0_24, %c1_25] : memref<1x8x8x640xbf16, #tpu.memory_space<vmem>>, vector<1x1x8x512xbf16>
    %21 = vector.shape_cast %20 : vector<1x1x8x512xbf16> to vector<8x512xbf16>
    %22 = arith.extf %21 : vector<8x512xbf16> to vector<8x512xf32>
    %c40 = arith.constant 40 : index
    %c0_26 = arith.constant 0 : index
    %23 = vector.load %arg5[%c40, %c0_26] : memref<216x512xf32, #tpu.memory_space<vmem>>, vector<8x512xf32>
    tpu.vector_store %arg5[%c40, %c0_26], %22 {strides = array<i32>} : memref<216x512xf32, #tpu.memory_space<vmem>>, vector<8x512xf32>,
    %c0_27 = arith.constant 0 : index
    %c0_28 = arith.constant 0 : index
    %c0_29 = arith.constant 0 : index
    %c9 = arith.constant 9 : index
    %24 = vector.load %arg3[%c0_27, %c0_28, %c0_29, %c9] : memref<1x8x8x640xbf16, #tpu.memory_space<vmem>>, vector<1x1x8x512xbf16>
    %25 = vector.shape_cast %24 : vector<1x1x8x512xbf16> to vector<8x512xbf16>
    %26 = arith.extf %25 : vector<8x512xbf16> to vector<8x512xf32>
    %c48 = arith.constant 48 : index
    %c0_30 = arith.constant 0 : index
    %27 = vector.load %arg5[%c48, %c0_30] : memref<216x512xf32, #tpu.memory_space<vmem>>, vector<8x512xf32>
    tpu.vector_store %arg5[%c48, %c0_30], %26 {strides = array<i32>} : memref<216x512xf32, #tpu.memory_space<vmem>>, vector<8x512xf32>,
    %c0_31 = arith.constant 0 : index
    %c1_32 = arith.constant 1 : index
    %c0_33 = arith.constant 0 : index
    %c9_34 = arith.constant 9 : index
    %28 = vector.load %arg3[%c0_31, %c1_32, %c0_33, %c9_34] : memref<1x8x8x640xbf16, #tpu.memory_space<vmem>>, vector<1x1x8x512xbf16>
    %29 = vector.shape_cast %28 : vector<1x1x8x512xbf16> to vector<8x512xbf16>
    %30 = arith.extf %29 : vector<8x512xbf16> to vector<8x512xf32>
    %c56 = arith.constant 56 : index
    %c0_35 = arith.constant 0 : index
    %31 = vector.load %arg5[%c56, %c0_35] : memref<216x512xf32, #tpu.memory_space<vmem>>, vector<8x512xf32>
    tpu.vector_store %arg5[%c56, %c0_35], %30 {strides = array<i32>} : memref<216x512xf32, #tpu.memory_space<vmem>>, vector<8x512xf32>,
    %c0_36 = arith.constant 0 : index
    %c0_37 = arith.constant 0 : index
    %c0_38 = arith.constant 0 : index
    %c10 = arith.constant 10 : index
    %32 = vector.load %arg3[%c0_36, %c0_37, %c0_38, %c10] : memref<1x8x8x640xbf16, #tpu.memory_space<vmem>>, vector<1x1x8x512xbf16>
    %33 = vector.shape_cast %32 : vector<1x1x8x512xbf16> to vector<8x512xbf16>
    %34 = arith.extf %33 : vector<8x512xbf16> to vector<8x512xf32>
    %c64 = arith.constant 64 : index
    %c0_39 = arith.constant 0 : index
    %35 = vector.load %arg5[%c64, %c0_39] : memref<216x512xf32, #tpu.memory_space<vmem>>, vector<8x512xf32>
    tpu.vector_store %arg5[%c64, %c0_39], %34 {strides = array<i32>} : memref<216x512xf32, #tpu.memory_space<vmem>>, vector<8x512xf32>,
    %c0_40 = arith.constant 0 : index
    %c4 = arith.constant 4 : index
    %c0_41 = arith.constant 0 : index
    %c0_42 = arith.constant 0 : index
    %36 = vector.load %arg3[%c0_40, %c4, %c0_41, %c0_42] : memref<1x8x8x640xbf16, #tpu.memory_space<vmem>>, vector<1x1x8x512xbf16>
    %37 = vector.shape_cast %36 : vector<1x1x8x512xbf16> to vector<8x512xbf16>
    %38 = arith.extf %37 : vector<8x512xbf16> to vector<8x512xf32>
    %c72 = arith.constant 72 : index
    %c0_43 = arith.constant 0 : index
    %39 = vector.load %arg5[%c72, %c0_43] : memref<216x512xf32, #tpu.memory_space<vmem>>, vector<8x512xf32>
    tpu.vector_store %arg5[%c72, %c0_43], %38 {strides = array<i32>} : memref<216x512xf32, #tpu.memory_space<vmem>>, vector<8x512xf32>,
    %c0_44 = arith.constant 0 : index
    %c5 = arith.constant 5 : index
    %c0_45 = arith.constant 0 : index
    %c0_46 = arith.constant 0 : index
    %40 = vector.load %arg3[%c0_44, %c5, %c0_45, %c0_46] : memref<1x8x8x640xbf16, #tpu.memory_space<vmem>>, vector<1x1x8x512xbf16>
    %41 = vector.shape_cast %40 : vector<1x1x8x512xbf16> to vector<8x512xbf16>
    %42 = arith.extf %41 : vector<8x512xbf16> to vector<8x512xf32>
    %c80 = arith.constant 80 : index
    %c0_47 = arith.constant 0 : index
    %43 = vector.load %arg5[%c80, %c0_47] : memref<216x512xf32, #tpu.memory_space<vmem>>, vector<8x512xf32>
    tpu.vector_store %arg5[%c80, %c0_47], %42 {strides = array<i32>} : memref<216x512xf32, #tpu.memory_space<vmem>>, vector<8x512xf32>,
    %c0_48 = arith.constant 0 : index
    %c4_49 = arith.constant 4 : index
    %c0_50 = arith.constant 0 : index
    %c1_51 = arith.constant 1 : index
    %44 = vector.load %arg3[%c0_48, %c4_49, %c0_50, %c1_51] : memref<1x8x8x640xbf16, #tpu.memory_space<vmem>>, vector<1x1x8x512xbf16>
    %45 = vector.shape_cast %44 : vector<1x1x8x512xbf16> to vector<8x512xbf16>
    %46 = arith.extf %45 : vector<8x512xbf16> to vector<8x512xf32>
    %c88 = arith.constant 88 : index
    %c0_52 = arith.constant 0 : index
    %47 = vector.load %arg5[%c88, %c0_52] : memref<216x512xf32, #tpu.memory_space<vmem>>, vector<8x512xf32>
    tpu.vector_store %arg5[%c88, %c0_52], %46 {strides = array<i32>} : memref<216x512xf32, #tpu.memory_space<vmem>>, vector<8x512xf32>,
    %c0_53 = arith.constant 0 : index
    %c6 = arith.constant 6 : index
    %c0_54 = arith.constant 0 : index
    %c0_55 = arith.constant 0 : index
    %48 = vector.load %arg3[%c0_53, %c6, %c0_54, %c0_55] : memref<1x8x8x640xbf16, #tpu.memory_space<vmem>>, vector<1x1x8x512xbf16>
    %49 = vector.shape_cast %48 : vector<1x1x8x512xbf16> to vector<8x512xbf16>
    %50 = arith.extf %49 : vector<8x512xbf16> to vector<8x512xf32>
    %c96 = arith.constant 96 : index
    %c0_56 = arith.constant 0 : index
    %51 = vector.load %arg5[%c96, %c0_56] : memref<216x512xf32, #tpu.memory_space<vmem>>, vector<8x512xf32>
    tpu.vector_store %arg5[%c96, %c0_56], %50 {strides = array<i32>} : memref<216x512xf32, #tpu.memory_space<vmem>>, vector<8x512xf32>,
    %c0_57 = arith.constant 0 : index
    %c7 = arith.constant 7 : index
    %c0_58 = arith.constant 0 : index
    %c0_59 = arith.constant 0 : index
    %52 = vector.load %arg3[%c0_57, %c7, %c0_58, %c0_59] : memref<1x8x8x640xbf16, #tpu.memory_space<vmem>>, vector<1x1x8x512xbf16>
    %53 = vector.shape_cast %52 : vector<1x1x8x512xbf16> to vector<8x512xbf16>
    %54 = arith.extf %53 : vector<8x512xbf16> to vector<8x512xf32>
    %c104 = arith.constant 104 : index
    %c0_60 = arith.constant 0 : index
    %55 = vector.load %arg5[%c104, %c0_60] : memref<216x512xf32, #tpu.memory_space<vmem>>, vector<8x512xf32>
    tpu.vector_store %arg5[%c104, %c0_60], %54 {strides = array<i32>} : memref<216x512xf32, #tpu.memory_space<vmem>>, vector<8x512xf32>,
    %c0_61 = arith.constant 0 : index
    %c6_62 = arith.constant 6 : index
    %c0_63 = arith.constant 0 : index
    %c1_64 = arith.constant 1 : index
    %56 = vector.load %arg3[%c0_61, %c6_62, %c0_63, %c1_64] : memref<1x8x8x640xbf16, #tpu.memory_space<vmem>>, vector<1x1x8x512xbf16>
    %57 = vector.shape_cast %56 : vector<1x1x8x512xbf16> to vector<8x512xbf16>
    %58 = arith.extf %57 : vector<8x512xbf16> to vector<8x512xf32>
    %c112 = arith.constant 112 : index
    %c0_65 = arith.constant 0 : index
    %59 = vector.load %arg5[%c112, %c0_65] : memref<216x512xf32, #tpu.memory_space<vmem>>, vector<8x512xf32>
    tpu.vector_store %arg5[%c112, %c0_65], %58 {strides = array<i32>} : memref<216x512xf32, #tpu.memory_space<vmem>>, vector<8x512xf32>,
    %c0_66 = arith.constant 0 : index
    %c4_67 = arith.constant 4 : index
    %c0_68 = arith.constant 0 : index
    %c9_69 = arith.constant 9 : index
    %60 = vector.load %arg3[%c0_66, %c4_67, %c0_68, %c9_69] : memref<1x8x8x640xbf16, #tpu.memory_space<vmem>>, vector<1x1x8x512xbf16>
    %61 = vector.shape_cast %60 : vector<1x1x8x512xbf16> to vector<8x512xbf16>
    %62 = arith.extf %61 : vector<8x512xbf16> to vector<8x512xf32>
    %c120 = arith.constant 120 : index
    %c0_70 = arith.constant 0 : index
    %63 = vector.load %arg5[%c120, %c0_70] : memref<216x512xf32, #tpu.memory_space<vmem>>, vector<8x512xf32>
    tpu.vector_store %arg5[%c120, %c0_70], %62 {strides = array<i32>} : memref<216x512xf32, #tpu.memory_space<vmem>>, vector<8x512xf32>,
    %c0_71 = arith.constant 0 : index
    %c5_72 = arith.constant 5 : index
    %c0_73 = arith.constant 0 : index
    %c9_74 = arith.constant 9 : index
    %64 = vector.load %arg3[%c0_71, %c5_72, %c0_73, %c9_74] : memref<1x8x8x640xbf16, #tpu.memory_space<vmem>>, vector<1x1x8x512xbf16>
    %65 = vector.shape_cast %64 : vector<1x1x8x512xbf16> to vector<8x512xbf16>
    %66 = arith.extf %65 : vector<8x512xbf16> to vector<8x512xf32>
    %c128 = arith.constant 128 : index
    %c0_75 = arith.constant 0 : index
    %67 = vector.load %arg5[%c128, %c0_75] : memref<216x512xf32, #tpu.memory_space<vmem>>, vector<8x512xf32>
    tpu.vector_store %arg5[%c128, %c0_75], %66 {strides = array<i32>} : memref<216x512xf32, #tpu.memory_space<vmem>>, vector<8x512xf32>,
    %c0_76 = arith.constant 0 : index
    %c4_77 = arith.constant 4 : index
    %c0_78 = arith.constant 0 : index
    %c10_79 = arith.constant 10 : index
    %68 = vector.load %arg3[%c0_76, %c4_77, %c0_78, %c10_79] : memref<1x8x8x640xbf16, #tpu.memory_space<vmem>>, vector<1x1x8x512xbf16>
    %69 = vector.shape_cast %68 : vector<1x1x8x512xbf16> to vector<8x512xbf16>
    %70 = arith.extf %69 : vector<8x512xbf16> to vector<8x512xf32>
    %c136 = arith.constant 136 : index
    %c0_80 = arith.constant 0 : index
    %71 = vector.load %arg5[%c136, %c0_80] : memref<216x512xf32, #tpu.memory_space<vmem>>, vector<8x512xf32>
    tpu.vector_store %arg5[%c136, %c0_80], %70 {strides = array<i32>} : memref<216x512xf32, #tpu.memory_space<vmem>>, vector<8x512xf32>,
    %c0_81 = arith.constant 0 : index
    %c0_82 = arith.constant 0 : index
    %c0_83 = arith.constant 0 : index
    %c81 = arith.constant 81 : index
    %72 = vector.load %arg3[%c0_81, %c0_82, %c0_83, %c81] : memref<1x8x8x640xbf16, #tpu.memory_space<vmem>>, vector<1x1x8x512xbf16>
    %73 = vector.shape_cast %72 : vector<1x1x8x512xbf16> to vector<8x512xbf16>
    %74 = arith.extf %73 : vector<8x512xbf16> to vector<8x512xf32>
    %c144 = arith.constant 144 : index
    %c0_84 = arith.constant 0 : index
    %75 = vector.load %arg5[%c144, %c0_84] : memref<216x512xf32, #tpu.memory_space<vmem>>, vector<8x512xf32>
    tpu.vector_store %arg5[%c144, %c0_84], %74 {strides = array<i32>} : memref<216x512xf32, #tpu.memory_space<vmem>>, vector<8x512xf32>,
    %c0_85 = arith.constant 0 : index
    %c1_86 = arith.constant 1 : index
    %c0_87 = arith.constant 0 : index
    %c81_88 = arith.constant 81 : index
    %76 = vector.load %arg3[%c0_85, %c1_86, %c0_87, %c81_88] : memref<1x8x8x640xbf16, #tpu.memory_space<vmem>>, vector<1x1x8x512xbf16>
    %77 = vector.shape_cast %76 : vector<1x1x8x512xbf16> to vector<8x512xbf16>
    %78 = arith.extf %77 : vector<8x512xbf16> to vector<8x512xf32>
    %c152 = arith.constant 152 : index
    %c0_89 = arith.constant 0 : index
    %79 = vector.load %arg5[%c152, %c0_89] : memref<216x512xf32, #tpu.memory_space<vmem>>, vector<8x512xf32>
    tpu.vector_store %arg5[%c152, %c0_89], %78 {strides = array<i32>} : memref<216x512xf32, #tpu.memory_space<vmem>>, vector<8x512xf32>,
    %c0_90 = arith.constant 0 : index
    %c0_91 = arith.constant 0 : index
    %c0_92 = arith.constant 0 : index
    %c82 = arith.constant 82 : index
    %80 = vector.load %arg3[%c0_90, %c0_91, %c0_92, %c82] : memref<1x8x8x640xbf16, #tpu.memory_space<vmem>>, vector<1x1x8x512xbf16>
    %81 = vector.shape_cast %80 : vector<1x1x8x512xbf16> to vector<8x512xbf16>
    %82 = arith.extf %81 : vector<8x512xbf16> to vector<8x512xf32>
    %c160 = arith.constant 160 : index
    %c0_93 = arith.constant 0 : index
    %83 = vector.load %arg5[%c160, %c0_93] : memref<216x512xf32, #tpu.memory_space<vmem>>, vector<8x512xf32>
    tpu.vector_store %arg5[%c160, %c0_93], %82 {strides = array<i32>} : memref<216x512xf32, #tpu.memory_space<vmem>>, vector<8x512xf32>,
    %c0_94 = arith.constant 0 : index
    %c2_95 = arith.constant 2 : index
    %c0_96 = arith.constant 0 : index
    %c81_97 = arith.constant 81 : index
    %84 = vector.load %arg3[%c0_94, %c2_95, %c0_96, %c81_97] : memref<1x8x8x640xbf16, #tpu.memory_space<vmem>>, vector<1x1x8x512xbf16>
    %85 = vector.shape_cast %84 : vector<1x1x8x512xbf16> to vector<8x512xbf16>
    %86 = arith.extf %85 : vector<8x512xbf16> to vector<8x512xf32>
    %c168 = arith.constant 168 : index
    %c0_98 = arith.constant 0 : index
    %87 = vector.load %arg5[%c168, %c0_98] : memref<216x512xf32, #tpu.memory_space<vmem>>, vector<8x512xf32>
    tpu.vector_store %arg5[%c168, %c0_98], %86 {strides = array<i32>} : memref<216x512xf32, #tpu.memory_space<vmem>>, vector<8x512xf32>,
    %c0_99 = arith.constant 0 : index
    %c3_100 = arith.constant 3 : index
    %c0_101 = arith.constant 0 : index
    %c81_102 = arith.constant 81 : index
    %88 = vector.load %arg3[%c0_99, %c3_100, %c0_101, %c81_102] : memref<1x8x8x640xbf16, #tpu.memory_space<vmem>>, vector<1x1x8x512xbf16>
    %89 = vector.shape_cast %88 : vector<1x1x8x512xbf16> to vector<8x512xbf16>
    %90 = arith.extf %89 : vector<8x512xbf16> to vector<8x512xf32>
    %c176 = arith.constant 176 : index
    %c0_103 = arith.constant 0 : index
    %91 = vector.load %arg5[%c176, %c0_103] : memref<216x512xf32, #tpu.memory_space<vmem>>, vector<8x512xf32>
    tpu.vector_store %arg5[%c176, %c0_103], %90 {strides = array<i32>} : memref<216x512xf32, #tpu.memory_space<vmem>>, vector<8x512xf32>,
    %c0_104 = arith.constant 0 : index
    %c2_105 = arith.constant 2 : index
    %c0_106 = arith.constant 0 : index
    %c82_107 = arith.constant 82 : index
    %92 = vector.load %arg3[%c0_104, %c2_105, %c0_106, %c82_107] : memref<1x8x8x640xbf16, #tpu.memory_space<vmem>>, vector<1x1x8x512xbf16>
    %93 = vector.shape_cast %92 : vector<1x1x8x512xbf16> to vector<8x512xbf16>
    %94 = arith.extf %93 : vector<8x512xbf16> to vector<8x512xf32>
    %c184 = arith.constant 184 : index
    %c0_108 = arith.constant 0 : index
    %95 = vector.load %arg5[%c184, %c0_108] : memref<216x512xf32, #tpu.memory_space<vmem>>, vector<8x512xf32>
    tpu.vector_store %arg5[%c184, %c0_108], %94 {strides = array<i32>} : memref<216x512xf32, #tpu.memory_space<vmem>>, vector<8x512xf32>,
    %c0_109 = arith.constant 0 : index
    %c0_110 = arith.constant 0 : index
    %c0_111 = arith.constant 0 : index
    %c90 = arith.constant 90 : index
    %96 = vector.load %arg3[%c0_109, %c0_110, %c0_111, %c90] : memref<1x8x8x640xbf16, #tpu.memory_space<vmem>>, vector<1x1x8x512xbf16>
    %97 = vector.shape_cast %96 : vector<1x1x8x512xbf16> to vector<8x512xbf16>
    %98 = arith.extf %97 : vector<8x512xbf16> to vector<8x512xf32>
    %c192 = arith.constant 192 : index
    %c0_112 = arith.constant 0 : index
    %99 = vector.load %arg5[%c192, %c0_112] : memref<216x512xf32, #tpu.memory_space<vmem>>, vector<8x512xf32>
    tpu.vector_store %arg5[%c192, %c0_112], %98 {strides = array<i32>} : memref<216x512xf32, #tpu.memory_space<vmem>>, vector<8x512xf32>,
    %c0_113 = arith.constant 0 : index
    %c1_114 = arith.constant 1 : index
    %c0_115 = arith.constant 0 : index
    %c90_116 = arith.constant 90 : index
    %100 = vector.load %arg3[%c0_113, %c1_114, %c0_115, %c90_116] : memref<1x8x8x640xbf16, #tpu.memory_space<vmem>>, vector<1x1x8x512xbf16>
    %101 = vector.shape_cast %100 : vector<1x1x8x512xbf16> to vector<8x512xbf16>
    %102 = arith.extf %101 : vector<8x512xbf16> to vector<8x512xf32>
    %c200 = arith.constant 200 : index
    %c0_117 = arith.constant 0 : index
    %103 = vector.load %arg5[%c200, %c0_117] : memref<216x512xf32, #tpu.memory_space<vmem>>, vector<8x512xf32>
    tpu.vector_store %arg5[%c200, %c0_117], %102 {strides = array<i32>} : memref<216x512xf32, #tpu.memory_space<vmem>>, vector<8x512xf32>,
    %c0_118 = arith.constant 0 : index
    %c0_119 = arith.constant 0 : index
    %c0_120 = arith.constant 0 : index
    %c91 = arith.constant 91 : index
    %104 = vector.load %arg3[%c0_118, %c0_119, %c0_120, %c91] : memref<1x8x8x640xbf16, #tpu.memory_space<vmem>>, vector<1x1x8x512xbf16>
    %105 = vector.shape_cast %104 : vector<1x1x8x512xbf16> to vector<8x512xbf16>
    %106 = arith.extf %105 : vector<8x512xbf16> to vector<8x512xf32>
    %c208 = arith.constant 208 : index
    %c0_121 = arith.constant 0 : index
    %107 = vector.load %arg5[%c208, %c0_121] : memref<216x512xf32, #tpu.memory_space<vmem>>, vector<8x512xf32>
    tpu.vector_store %arg5[%c208, %c0_121], %106 {strides = array<i32>} : memref<216x512xf32, #tpu.memory_space<vmem>>, vector<8x512xf32>,
    %c0_122 = arith.constant 0 : index
    %c0_123 = arith.constant 0 : index
    %108 = vector.load %arg1[%c0_122, %c0_123] : memref<16x216xf32, #tpu.memory_space<vmem>>, vector<16x216xf32>
    %c0_124 = arith.constant 0 : index
    %c0_125 = arith.constant 0 : index
    %109 = vector.load %arg5[%c0_124, %c0_125] : memref<216x512xf32, #tpu.memory_space<vmem>>, vector<216x512xf32>
    %cst = arith.constant dense<0.000000e+00> : vector<16x512xf32>
    %110 = tpu.matmul %108, %109, %cst {dimension_numbers = #tpu.dot_dimension_numbers<[1], [0], [0], [1], [0, 0, 1, 1], [], []>} : vector<16x216xf32>, vector<216x512xf32>, vector<16x512xf32> -> vector<16x512xf32>
    %c0_126 = arith.constant 0 : index
    %c0_127 = arith.constant 0 : index
    %111 = vector.load %arg2[%c0_126, %c0_127] : memref<16x1xf32, #tpu.memory_space<vmem>>, vector<16x1xf32>
    %112 = vector.broadcast %111 : vector<16x1xf32> to vector<16x512xf32>
    %113 = arith.addf %110, %112 : vector<16x512xf32>
    %cst_128 = arith.constant 0.000000e+00 : f32
    %114 = vector.broadcast %cst_128 : f32 to vector<16x512xf32>
    %115 = arith.cmpf ogt, %113, %114 : vector<16x512xf32>
    %cst_129 = arith.constant 0.00999999977 : f32
    %116 = vector.broadcast %cst_129 : f32 to vector<16x512xf32>
    %117 = arith.mulf %116, %113 : vector<16x512xf32>
    %118 = arith.select %115, %113, %117 : vector<16x512xi1>, vector<16x512xf32>
    %c0_130 = arith.constant 0 : index
    %c0_131 = arith.constant 0 : index
    %c0_132 = arith.constant 0 : index
    %119 = vector.load %arg4[%c0_130, %c0_131, %c0_132] : memref<1x16x512xf32, #tpu.memory_space<vmem>>, vector<1x16x512xf32>
    %120 = vector.shape_cast %119 : vector<1x16x512xf32> to vector<16x512xf32>
    %121 = vector.shape_cast %118 : vector<16x512xf32> to vector<1x16x512xf32>
    tpu.vector_store %arg4[%c0_130, %c0_131, %c0_132], %121 {strides = array<i32>} : memref<1x16x512xf32, #tpu.memory_space<vmem>>, vector<1x16x512xf32>,
    return
  }
  func.func @transform_0(%arg0: i32) -> (i32, i32) {
    %c0_i32 = arith.constant 0 : i32
    %c0_i32_0 = arith.constant 0 : i32
    %c0_i32_1 = arith.constant 0 : i32
    return %c0_i32, %c0_i32_0 : i32, i32
  }
  func.func @transform_1(%arg0: i32) -> (i32, i32) {
    %c0_i32 = arith.constant 0 : i32
    %c0_i32_0 = arith.constant 0 : i32
    %c0_i32_1 = arith.constant 0 : i32
    return %c0_i32, %c0_i32_0 : i32, i32
  }
  func.func @transform_2(%arg0: i32) -> (i32, i32, i32, i32) {
    %c0_i32 = arith.constant 0 : i32
    %c0_i32_0 = arith.constant 0 : i32
    %c0_i32_1 = arith.constant 0 : i32
    %c0_i32_2 = arith.constant 0 : i32
    return %arg0, %c0_i32, %c0_i32_0, %c0_i32_1 : i32, i32, i32, i32
  }
  func.func @transform_3(%arg0: i32) -> (i32, i32, i32) {
    %c0_i32 = arith.constant 0 : i32
    %c0_i32_0 = arith.constant 0 : i32
    %c0_i32_1 = arith.constant 0 : i32
    return %arg0, %c0_i32, %c0_i32_0 : i32, i32, i32
  }
}

</mosaic_0001>

<llo_original>
// kernel: _lambda_.2
$region0: #{_lambda_.2}
  #allocation0 [shape = 'u32[]', space=smem, size = 0x4, offset = 0x4, fixed_abs, tag = 'smem constant byte address 0x4 - core index']
  #allocation1 [shape = 'u32[144,128]{1,0:T(1,128)}', space=vmem, size = 0x12000, scoped, tag = 'internal scratch']
  #allocation2 [shape = 'f32[216,3328]{1,0:T(8,128)}', space=vmem, size = 0x2be000, scoped, tag = 'scratch operand']
  %s0 = inlined_call_operand.vmem [shape: f32[8,216], index: 0, kind: input, shape index: {}]
  %s1 = inlined_call_operand.vmem [shape: f32[8,1], index: 1, kind: input, shape index: {}]
  %s2 = inlined_call_operand.vmem [shape: bf16[2,1,8,4096], index: 2, kind: input, shape index: {}]
  %s3 = inlined_call_operand.vmem [shape: bf16[2,8,3328], index: 3, kind: output, shape index: {}]
  %s4 = sld [smem:[#allocation0]]
  $region45: #{_lambda_.2} parent=0
    _
  %s6 = ssub.s32 1, %s4
  %s7 = scalar_select 0, %s6, %s4
  loop: start=0, step=1, limit=4
  $region2: #{_lambda_.2} parent=0 // loop_pre_header
    _
  $region3: #{_lambda_.2} parent=0 // loop_header
    %s9 = sphi 0, %s13
    %p10 = scmp.ge.s32.totalorder %s9, 4
    %s17 = sphi 0, %s17
    %s19 = sphi 0, %s17
    %s20 = sphi 0, %s19
    %s34 = sphi 0, %s20
    %s38 = sphi 0, %s38
    %s40 = sphi 0, %s38
    %s41 = sphi 0, %s40
    %s55 = sphi 0, %s41
    %s61 = sphi 0, %s63
    %s64 = sphi 0, %s61
    %s65 = sphi 0, %s64
    %s81 = sphi 0, %s65
    %s87 = sphi 0, %s89
    %s90 = sphi 0, %s87
    %s91 = sphi 0, %s90
    %s107 = sphi 0, %s91
  $region4: #{_lambda_.2} parent=0 // loop_header_branch
    %12 = sbr.rel (%p10) target = $region8
  $region5: #{_lambda_.2} parent=0 // loop_body
    %s14 = ssub.s32 %s9, 1
    %s15 = ssub.s32 %s9, 2
    %s16 = sadd.s32 %s9, 1
    %s18 = sadd.s32 %s17, 1
    %p21 = scmp.eq.s32.totalorder %s9, 1
    %p22 = scmp.ne.s32.totalorder %s17, %s19
    %p23 = scmp.eq.s32.totalorder %s9, 0
    %p24 = por %p22, %p23
    %p25 = scmp.ne.s32.totalorder %s17, %s19
    %p26 = scmp.eq.s32.totalorder %s14, 1
    %p27 = por %p25, %p26
    %p28 = scmp.ne.s32.totalorder %s19, %s20
    %p29 = scmp.eq.s32.totalorder %s14, 0
    %p30 = por %p28, %p29
    %p31 = scmp.ne.s32.totalorder %s19, %s20
    %p32 = scmp.eq.s32.totalorder %s15, 1
    %p33 = por %p31, %p32
    %p35 = scmp.ne.s32.totalorder %s20, %s34
    %p36 = scmp.eq.s32.totalorder %s15, 0
    %p37 = por %p35, %p36
    %s39 = sadd.s32 %s38, 1
    %p42 = scmp.eq.s32.totalorder %s9, 1
    %p43 = scmp.ne.s32.totalorder %s38, %s40
    %p44 = scmp.eq.s32.totalorder %s9, 0
    %p45 = por %p43, %p44
    %p46 = scmp.ne.s32.totalorder %s38, %s40
    %p47 = scmp.eq.s32.totalorder %s14, 1
    %p48 = por %p46, %p47
    %p49 = scmp.ne.s32.totalorder %s40, %s41
    %p50 = scmp.eq.s32.totalorder %s14, 0
    %p51 = por %p49, %p50
    %p52 = scmp.ne.s32.totalorder %s40, %s41
    %p53 = scmp.eq.s32.totalorder %s15, 1
    %p54 = por %p52, %p53
    %p56 = scmp.ne.s32.totalorder %s41, %s55
    %p57 = scmp.eq.s32.totalorder %s15, 0
    %p58 = por %p56, %p57
    %s59 = ssub.s32 %s9, %s16
    %p60 = scmp.eq.s32.totalorder %s59, 0
    %s62 = sadd.s32 %s61, 1
    %s63 = scalar_select %p60, %s61, %s62
    %p66 = pneg %p60
    %p67 = scmp.eq.s32.totalorder %s9, 1
    %p68 = por %p66, %p67
    %p69 = scmp.ne.s32.totalorder %s61, %s64
    %p70 = scmp.eq.s32.totalorder %s9, 0
    %p71 = por %p69, %p70
    %p72 = scmp.ne.s32.totalorder %s61, %s64
    %p73 = scmp.eq.s32.totalorder %s14, 1
    %p74 = por %p72, %p73
    %p75 = scmp.ne.s32.totalorder %s64, %s65
    %p76 = scmp.eq.s32.totalorder %s14, 0
    %p77 = por %p75, %p76
    %p78 = scmp.ne.s32.totalorder %s64, %s65
    %p79 = scmp.eq.s32.totalorder %s15, 1
    %p80 = por %p78, %p79
    %p82 = scmp.ne.s32.totalorder %s65, %s81
    %p83 = scmp.eq.s32.totalorder %s15, 0
    %p84 = por %p82, %p83
    %s85 = ssub.s32 %s9, %s16
    %p86 = scmp.eq.s32.totalorder %s85, 0
    %s88 = sadd.s32 %s87, 1
    %s89 = scalar_select %p86, %s87, %s88
    %p92 = pneg %p86
    %p93 = scmp.eq.s32.totalorder %s9, 1
    %p94 = por %p92, %p93
    %p95 = scmp.ne.s32.totalorder %s87, %s90
    %p96 = scmp.eq.s32.totalorder %s9, 0
    %p97 = por %p95, %p96
    %p98 = scmp.ne.s32.totalorder %s87, %s90
    %p99 = scmp.eq.s32.totalorder %s14, 1
    %p100 = por %p98, %p99
    %p101 = scmp.ne.s32.totalorder %s90, %s91
    %p102 = scmp.eq.s32.totalorder %s14, 0
    %p103 = por %p101, %p102
    %p104 = scmp.ne.s32.totalorder %s90, %s91
    %p105 = scmp.eq.s32.totalorder %s15, 1
    %p106 = por %p104, %p105
    %p108 = scmp.ne.s32.totalorder %s91, %s107
    %p109 = scmp.eq.s32.totalorder %s15, 0
    %p110 = por %p108, %p109
    %p111 = scmp.le.s32.totalorder 1, %s9
    %p112 = scmp.lt.s32.totalorder %s9, 3
    %p113 = pnand %p111, %p112
    %p114 = pneg %p113
    // Predicated region
    $region9: #{_lambda_.2} parent=5 // pred_check
      _
    $region10: #{_lambda_.2} parent=5 // pred_check_branch
      %116 = sbr.rel (%p113) target = $region12
    $region11: #{_lambda_.2} parent=5 // pred_region
      %s117 = ssub.s32 %s9, 1
      // Predicated region
      $region13: #{_lambda_.2} parent=11 // pred_check
        %p118 = pneg %p30
      $region14: #{_lambda_.2} parent=11 // pred_check_branch
        %120 = sbr.rel (%p118) target = $region16
      $region15: #{_lambda_.2} parent=11 // pred_region
        _
      $region16: #{_lambda_.2} parent=11 // pred_fallthru
        _
      // Predicated region
      $region17: #{_lambda_.2} parent=11 // pred_check
        %p121 = pneg %p51
      $region18: #{_lambda_.2} parent=11 // pred_check_branch
        %123 = sbr.rel (%p121) target = $region20
      $region19: #{_lambda_.2} parent=11 // pred_region
        _
      $region20: #{_lambda_.2} parent=11 // pred_fallthru
        _
    $region12: #{_lambda_.2} parent=5 // pred_fallthru
      _
    %p124 = scmp.lt.s32.totalorder %s9, 2
    // Predicated region
    $region21: #{_lambda_.2} parent=5 // pred_check
      %p125 = pneg %p124
    $region22: #{_lambda_.2} parent=5 // pred_check_branch
      %127 = sbr.rel (%p125) target = $region24
    $region23: #{_lambda_.2} parent=5 // pred_region
      // Predicated region
      $region25: #{_lambda_.2} parent=23 // pred_check
        %p128 = pneg %p71
      $region26: #{_lambda_.2} parent=23 // pred_check_branch
        %130 = sbr.rel (%p128) target = $region28
      $region27: #{_lambda_.2} parent=23 // pred_region
        %p131 = scmp.lt.s32.totalorder %s9, 1
        %s132 = scalar_select %p131, %s9, 1
        %s133 = smul.addr %s132, 32
        %s134 = smul.addr %s133, 4
        %s135 = scalar_lea.vmem %s2, %s134
      $region28: #{_lambda_.2} parent=23 // pred_fallthru
        _
    $region24: #{_lambda_.2} parent=5 // pred_fallthru
      _
    %p136 = scmp.le.s32.totalorder 1, %s9
    %p137 = scmp.lt.s32.totalorder %s9, 3
    %p138 = pnand %p136, %p137
    %p139 = pneg %p138
    // Predicated region
    $region29: #{_lambda_.2} parent=5 // pred_check
      _
    $region30: #{_lambda_.2} parent=5 // pred_check_branch
      %141 = sbr.rel (%p138) target = $region32
    $region31: #{_lambda_.2} parent=5 // pred_region
      %s142 = ssub.s32 %s9, 1
      %p143 = pneg %p30
      %p144 = pneg %p27
      %p145 = pneg %p51
      %p146 = pneg %p48
      %p147 = scmp.lt.s32.totalorder %s14, 1
      %s148 = scalar_select %p147, %s14, 1
      %s149 = smul.addr %s148, 32
      %s150 = smul.addr %s149, 4
      %s151 = scalar_lea.vmem %s2, %s150
      %p152 = pneg %p77
      %p153 = pneg %p74
      %p154 = pneg %p103
      %p155 = pneg %p100
      %p156 = scmp.lt.s32.totalorder %s14, 1
      %s157 = scalar_select %p156, %s14, 1
      %s158 = smul.addr %s157, 26
      %s159 = smul.addr %s158, 4
      %s160 = scalar_lea.vmem %s3, %s159
      %p161 = scmp.lt.s32.totalorder %s14, 1
      %s162 = scalar_select %p161, %s14, 1
      %s163 = smul.addr %s162, 32
      %s164 = smul.addr %s163, 4
      %s165 = scalar_lea.vmem %s2, %s164
      %p166 = scmp.lt.s32.totalorder %s14, 1
      %s167 = scalar_select %p166, %s14, 1
      %s168 = smul.addr %s167, 26
      %s169 = smul.addr %s168, 4
      %s170 = scalar_lea.vmem %s3, %s169
      %v171 = vld [vmem:[%s165] sm:$0xff]
      %v172 = vld [vmem:[%s165 + $0x8] sm:$0xff]
      %v173 = vld [vmem:[%s165 + $0x10] sm:$0xff]
      %v174 = vld [vmem:[%s165 + $0x18] sm:$0xff]
      %v175 = vld [vmem:[%s165 + $0x20] sm:$0xff]
      %v176 = vld [vmem:[%s165 + $0x28] sm:$0xff]
      %v177 = vld [vmem:[%s165 + $0x30] sm:$0xff]
      %v178 = vld [vmem:[%s165 + $0x38] sm:$0xff]
      %v179 = vld [vmem:[%s165 + $0x40] sm:$0xff]
      %v180 = vld [vmem:[%s165 + $0x48] sm:$0xff]
      %v181 = vld [vmem:[%s165 + $0x50] sm:$0xff]
      %v182 = vld [vmem:[%s165 + $0x58] sm:$0xff]
      %v183 = vld [vmem:[%s165 + $0x60] sm:$0xff]
      %v184 = vunpack.c.l.bf16 %v171
      %v185 = vunpack.c.h.bf16 %v171
      %v186 = vunpack.c.l.bf16 %v172
      %v187 = vunpack.c.h.bf16 %v172
      %v188 = vunpack.c.l.bf16 %v173
      %v189 = vunpack.c.h.bf16 %v173
      %v190 = vunpack.c.l.bf16 %v174
      %v191 = vunpack.c.h.bf16 %v174
      %v192 = vunpack.c.l.bf16 %v175
      %v193 = vunpack.c.h.bf16 %v175
      %v194 = vunpack.c.l.bf16 %v176
      %v195 = vunpack.c.h.bf16 %v176
      %v196 = vunpack.c.l.bf16 %v177
      %v197 = vunpack.c.h.bf16 %v177
      %v198 = vunpack.c.l.bf16 %v178
      %v199 = vunpack.c.h.bf16 %v178
      %v200 = vunpack.c.l.bf16 %v179
      %v201 = vunpack.c.h.bf16 %v179
      %v202 = vunpack.c.l.bf16 %v180
      %v203 = vunpack.c.h.bf16 %v180
      %v204 = vunpack.c.l.bf16 %v181
      %v205 = vunpack.c.h.bf16 %v181
      %v206 = vunpack.c.l.bf16 %v182
      %v207 = vunpack.c.h.bf16 %v182
      %v208 = vunpack.c.l.bf16 %v183
      %v209 = vunpack.c.h.bf16 %v183
      %210 = vst [vmem:[#allocation2] sm:$0xff] %v184
      %211 = vst [vmem:[#allocation2 + $0x8] sm:$0xff] %v185
      %212 = vst [vmem:[#allocation2 + $0x10] sm:$0xff] %v186
      %213 = vst [vmem:[#allocation2 + $0x18] sm:$0xff] %v187
      %214 = vst [vmem:[#allocation2 + $0x20] sm:$0xff] %v188
      %215 = vst [vmem:[#allocation2 + $0x28] sm:$0xff] %v189
      %216 = vst [vmem:[#allocation2 + $0x30] sm:$0xff] %v190
      %217 = vst [vmem:[#allocation2 + $0x38] sm:$0xff] %v191
      %218 = vst [vmem:[#allocation2 + $0x40] sm:$0xff] %v192
      %219 = vst [vmem:[#allocation2 + $0x48] sm:$0xff] %v193
      %220 = vst [vmem:[#allocation2 + $0x50] sm:$0xff] %v194
      %221 = vst [vmem:[#allocation2 + $0x58] sm:$0xff] %v195
      %222 = vst [vmem:[#allocation2 + $0x60] sm:$0xff] %v196
      %223 = vst [vmem:[#allocation2 + $0x68] sm:$0xff] %v197
      %224 = vst [vmem:[#allocation2 + $0x70] sm:$0xff] %v198
      %225 = vst [vmem:[#allocation2 + $0x78] sm:$0xff] %v199
      %226 = vst [vmem:[#allocation2 + $0x80] sm:$0xff] %v200
      %227 = vst [vmem:[#allocation2 + $0x88] sm:$0xff] %v201
      %228 = vst [vmem:[#allocation2 + $0x90] sm:$0xff] %v202
      %229 = vst [vmem:[#allocation2 + $0x98] sm:$0xff] %v203
      %230 = vst [vmem:[#allocation2 + $0xa0] sm:$0xff] %v204
      %231 = vst [vmem:[#allocation2 + $0xa8] sm:$0xff] %v205
      %232 = vst [vmem:[#allocation2 + $0xb0] sm:$0xff] %v206
      %233 = vst [vmem:[#allocation2 + $0xb8] sm:$0xff] %v207
      %234 = vst [vmem:[#allocation2 + $0xc0] sm:$0xff] %v208
      %235 = vst [vmem:[#allocation2 + $0xc8] sm:$0xff] %v209
      %v236 = vld [vmem:[%s165] sm:$0xff]
      %v237 = vld [vmem:[%s165 + $0x8] sm:$0xff]
      %v238 = vld [vmem:[%s165 + $0x10] sm:$0xff]
      %v239 = vld [vmem:[%s165 + $0x18] sm:$0xff]
      %v240 = vld [vmem:[%s165 + $0x20] sm:$0xff]
      %v241 = vld [vmem:[%s165 + $0x28] sm:$0xff]
      %v242 = vld [vmem:[%s165 + $0x30] sm:$0xff]
      %v243 = vld [vmem:[%s165 + $0x38] sm:$0xff]
      %v244 = vld [vmem:[%s165 + $0x40] sm:$0xff]
      %v245 = vld [vmem:[%s165 + $0x48] sm:$0xff]
      %v246 = vld [vmem:[%s165 + $0x50] sm:$0xff]
      %v247 = vld [vmem:[%s165 + $0x58] sm:$0xff]
      %v248 = vld [vmem:[%s165 + $0x60] sm:$0xff]
      %v249 = vld [vmem:[%s165 + $0x68] sm:$0xf]
      %v250 = vunpack.c.l.bf16 %v236
      %v251 = vunpack.c.h.bf16 %v236
      %v252 = vunpack.c.l.bf16 %v237
      %v253 = vunpack.c.h.bf16 %v237
      %v254 = vunpack.c.l.bf16 %v238
      %v255 = vunpack.c.h.bf16 %v238
      %v256 = vunpack.c.l.bf16 %v239
      %v257 = vunpack.c.h.bf16 %v239
      %v258 = vunpack.c.l.bf16 %v240
      %v259 = vunpack.c.h.bf16 %v240
      %v260 = vunpack.c.l.bf16 %v241
      %v261 = vunpack.c.h.bf16 %v241
      %v262 = vunpack.c.l.bf16 %v242
      %v263 = vunpack.c.h.bf16 %v242
      %v264 = vunpack.c.l.bf16 %v243
      %v265 = vunpack.c.h.bf16 %v243
      %v266 = vunpack.c.l.bf16 %v244
      %v267 = vunpack.c.h.bf16 %v244
      %v268 = vunpack.c.l.bf16 %v245
      %v269 = vunpack.c.h.bf16 %v245
      %v270 = vunpack.c.l.bf16 %v246
      %v271 = vunpack.c.h.bf16 %v246
      %v272 = vunpack.c.l.bf16 %v247
      %v273 = vunpack.c.h.bf16 %v247
      %v274 = vunpack.c.l.bf16 %v248
      %v275 = vunpack.c.h.bf16 %v248
      %v276 = vunpack.c.l.bf16 %v249
      %304 = vrot.lane.b32.xlu0 %v250, 127
      %v305 = vpop.permute.xlu0 %304
      %306 = vrot.lane.b32.xlu0 %v251, 127
      %v307 = vpop.permute.xlu0 %306
      %308 = vrot.lane.b32.xlu0 %v252, 127
      %v309 = vpop.permute.xlu0 %308
      %310 = vrot.lane.b32.xlu0 %v253, 127
      %v311 = vpop.permute.xlu0 %310
      %312 = vrot.lane.b32.xlu0 %v254, 127
      %v313 = vpop.permute.xlu0 %312
      %314 = vrot.lane.b32.xlu0 %v255, 127
      %v315 = vpop.permute.xlu0 %314
      %316 = vrot.lane.b32.xlu0 %v256, 127
      %v317 = vpop.permute.xlu0 %316
      %318 = vrot.lane.b32.xlu0 %v257, 127
      %v319 = vpop.permute.xlu0 %318
      %320 = vrot.lane.b32.xlu0 %v258, 127
      %v321 = vpop.permute.xlu0 %320
      %322 = vrot.lane.b32.xlu0 %v259, 127
      %v323 = vpop.permute.xlu0 %322
      %324 = vrot.lane.b32.xlu0 %v260, 127
      %v325 = vpop.permute.xlu0 %324
      %326 = vrot.lane.b32.xlu0 %v261, 127
      %v327 = vpop.permute.xlu0 %326
      %328 = vrot.lane.b32.xlu0 %v262, 127
      %v329 = vpop.permute.xlu0 %328
      %330 = vrot.lane.b32.xlu0 %v263, 127
      %v331 = vpop.permute.xlu0 %330
      %332 = vrot.lane.b32.xlu0 %v264, 127
      %v333 = vpop.permute.xlu0 %332
      %334 = vrot.lane.b32.xlu0 %v265, 127
      %v335 = vpop.permute.xlu0 %334
      %336 = vrot.lane.b32.xlu0 %v266, 127
      %v337 = vpop.permute.xlu0 %336
      %338 = vrot.lane.b32.xlu0 %v267, 127
      %v339 = vpop.permute.xlu0 %338
      %340 = vrot.lane.b32.xlu0 %v268, 127
      %v341 = vpop.permute.xlu0 %340
      %342 = vrot.lane.b32.xlu0 %v269, 127
      %v343 = vpop.permute.xlu0 %342
      %344 = vrot.lane.b32.xlu0 %v270, 127
      %v345 = vpop.permute.xlu0 %344
      %346 = vrot.lane.b32.xlu0 %v271, 127
      %v347 = vpop.permute.xlu0 %346
      %348 = vrot.lane.b32.xlu0 %v272, 127
      %v349 = vpop.permute.xlu0 %348
      %350 = vrot.lane.b32.xlu0 %v273, 127
      %v351 = vpop.permute.xlu0 %350
      %352 = vrot.lane.b32.xlu0 %v274, 127
      %v353 = vpop.permute.xlu0 %352
      %354 = vrot.lane.b32.xlu0 %v275, 127
      %v355 = vpop.permute.xlu0 %354
      %356 = vrot.lane.b32.xlu0 %v276, 127
      %v357 = vpop.permute.xlu0 %356
      %vm358 = vcmask 1039360
      %v359 = vsel %vm358, %v305, %v307
      %v360 = vsel %vm358, %v307, %v309
      %v361 = vsel %vm358, %v309, %v311
      %v362 = vsel %vm358, %v311, %v313
      %v363 = vsel %vm358, %v313, %v315
      %v364 = vsel %vm358, %v315, %v317
      %v365 = vsel %vm358, %v317, %v319
      %v366 = vsel %vm358, %v319, %v321
      %v367 = vsel %vm358, %v321, %v323
      %v368 = vsel %vm358, %v323, %v325
      %v369 = vsel %vm358, %v325, %v327
      %v370 = vsel %vm358, %v327, %v329
      %v371 = vsel %vm358, %v329, %v331
      %v372 = vsel %vm358, %v331, %v333
      %v373 = vsel %vm358, %v333, %v335
      %v374 = vsel %vm358, %v335, %v337
      %v375 = vsel %vm358, %v337, %v339
      %v376 = vsel %vm358, %v339, %v341
      %v377 = vsel %vm358, %v341, %v343
      %v378 = vsel %vm358, %v343, %v345
      %v379 = vsel %vm358, %v345, %v347
      %v380 = vsel %vm358, %v347, %v349
      %v381 = vsel %vm358, %v349, %v351
      %v382 = vsel %vm358, %v351, %v353
      %v383 = vsel %vm358, %v353, %v355
      %v384 = vsel %vm358, %v355, %v357
      %411 = vst [vmem:[#allocation2 + $0xd0] sm:$0xff] %v359
      %412 = vst [vmem:[#allocation2 + $0xd8] sm:$0xff] %v360
      %413 = vst [vmem:[#allocation2 + $0xe0] sm:$0xff] %v361
      %414 = vst [vmem:[#allocation2 + $0xe8] sm:$0xff] %v362
      %415 = vst [vmem:[#allocation2 + $0xf0] sm:$0xff] %v363
      %416 = vst [vmem:[#allocation2 + $0xf8] sm:$0xff] %v364
      %417 = vst [vmem:[#allocation2 + $0x100] sm:$0xff] %v365
      %418 = vst [vmem:[#allocation2 + $0x108] sm:$0xff] %v366
      %419 = vst [vmem:[#allocation2 + $0x110] sm:$0xff] %v367
      %420 = vst [vmem:[#allocation2 + $0x118] sm:$0xff] %v368
      %421 = vst [vmem:[#allocation2 + $0x120] sm:$0xff] %v369
      %422 = vst [vmem:[#allocation2 + $0x128] sm:$0xff] %v370
      %423 = vst [vmem:[#allocation2 + $0x130] sm:$0xff] %v371
      %424 = vst [vmem:[#allocation2 + $0x138] sm:$0xff] %v372
      %425 = vst [vmem:[#allocation2 + $0x140] sm:$0xff] %v373
      %426 = vst [vmem:[#allocation2 + $0x148] sm:$0xff] %v374
      %427 = vst [vmem:[#allocation2 + $0x150] sm:$0xff] %v375
      %428 = vst [vmem:[#allocation2 + $0x158] sm:$0xff] %v376
      %429 = vst [vmem:[#allocation2 + $0x160] sm:$0xff] %v377
      %430 = vst [vmem:[#allocation2 + $0x168] sm:$0xff] %v378
      %431 = vst [vmem:[#allocation2 + $0x170] sm:$0xff] %v379
      %432 = vst [vmem:[#allocation2 + $0x178] sm:$0xff] %v380
      %433 = vst [vmem:[#allocation2 + $0x180] sm:$0xff] %v381
      %434 = vst [vmem:[#allocation2 + $0x188] sm:$0xff] %v382
      %435 = vst [vmem:[#allocation2 + $0x190] sm:$0xff] %v383
      %436 = vst [vmem:[#allocation2 + $0x198] sm:$0xff] %v384
      %v437 = vld [vmem:[%s165] sm:$0xff]
      %v438 = vld [vmem:[%s165 + $0x8] sm:$0xff]
      %v439 = vld [vmem:[%s165 + $0x10] sm:$0xff]
      %v440 = vld [vmem:[%s165 + $0x18] sm:$0xff]
      %v441 = vld [vmem:[%s165 + $0x20] sm:$0xff]
      %v442 = vld [vmem:[%s165 + $0x28] sm:$0xff]
      %v443 = vld [vmem:[%s165 + $0x30] sm:$0xff]
      %v444 = vld [vmem:[%s165 + $0x38] sm:$0xff]
      %v445 = vld [vmem:[%s165 + $0x40] sm:$0xff]
      %v446 = vld [vmem:[%s165 + $0x48] sm:$0xff]
      %v447 = vld [vmem:[%s165 + $0x50] sm:$0xff]
      %v448 = vld [vmem:[%s165 + $0x58] sm:$0xff]
      %v449 = vld [vmem:[%s165 + $0x60] sm:$0xff]
      %v450 = vld [vmem:[%s165 + $0x68] sm:$0xf]
      %v451 = vunpack.c.l.bf16 %v437
      %v452 = vunpack.c.h.bf16 %v437
      %v453 = vunpack.c.l.bf16 %v438
      %v454 = vunpack.c.h.bf16 %v438
      %v455 = vunpack.c.l.bf16 %v439
      %v456 = vunpack.c.h.bf16 %v439
      %v457 = vunpack.c.l.bf16 %v440
      %v458 = vunpack.c.h.bf16 %v440
      %v459 = vunpack.c.l.bf16 %v441
      %v460 = vunpack.c.h.bf16 %v441
      %v461 = vunpack.c.l.bf16 %v442
      %v462 = vunpack.c.h.bf16 %v442
      %v463 = vunpack.c.l.bf16 %v443
      %v464 = vunpack.c.h.bf16 %v443
      %v465 = vunpack.c.l.bf16 %v444
      %v466 = vunpack.c.h.bf16 %v444
      %v467 = vunpack.c.l.bf16 %v445
      %v468 = vunpack.c.h.bf16 %v445
      %v469 = vunpack.c.l.bf16 %v446
      %v470 = vunpack.c.h.bf16 %v446
      %v471 = vunpack.c.l.bf16 %v447
      %v472 = vunpack.c.h.bf16 %v447
      %v473 = vunpack.c.l.bf16 %v448
      %v474 = vunpack.c.h.bf16 %v448
      %v475 = vunpack.c.l.bf16 %v449
      %v476 = vunpack.c.h.bf16 %v449
      %v477 = vunpack.c.l.bf16 %v450
      %505 = vrot.lane.b32.xlu0 %v451, 126
      %v506 = vpop.permute.xlu0 %505
      %507 = vrot.lane.b32.xlu0 %v452, 126
      %v508 = vpop.permute.xlu0 %507
      %509 = vrot.lane.b32.xlu0 %v453, 126
      %v510 = vpop.permute.xlu0 %509
      %511 = vrot.lane.b32.xlu0 %v454, 126
      %v512 = vpop.permute.xlu0 %511
      %513 = vrot.lane.b32.xlu0 %v455, 126
      %v514 = vpop.permute.xlu0 %513
      %515 = vrot.lane.b32.xlu0 %v456, 126
      %v516 = vpop.permute.xlu0 %515
      %517 = vrot.lane.b32.xlu0 %v457, 126
      %v518 = vpop.permute.xlu0 %517
      %519 = vrot.lane.b32.xlu0 %v458, 126
      %v520 = vpop.permute.xlu0 %519
      %521 = vrot.lane.b32.xlu0 %v459, 126
      %v522 = vpop.permute.xlu0 %521
      %523 = vrot.lane.b32.xlu0 %v460, 126
      %v524 = vpop.permute.xlu0 %523
      %525 = vrot.lane.b32.xlu0 %v461, 126
      %v526 = vpop.permute.xlu0 %525
      %527 = vrot.lane.b32.xlu0 %v462, 126
      %v528 = vpop.permute.xlu0 %527
      %529 = vrot.lane.b32.xlu0 %v463, 126
      %v530 = vpop.permute.xlu0 %529
      %531 = vrot.lane.b32.xlu0 %v464, 126
      %v532 = vpop.permute.xlu0 %531
      %533 = vrot.lane.b32.xlu0 %v465, 126
      %v534 = vpop.permute.xlu0 %533
      %535 = vrot.lane.b32.xlu0 %v466, 126
      %v536 = vpop.permute.xlu0 %535
      %537 = vrot.lane.b32.xlu0 %v467, 126
      %v538 = vpop.permute.xlu0 %537
      %539 = vrot.lane.b32.xlu0 %v468, 126
      %v540 = vpop.permute.xlu0 %539
      %541 = vrot.lane.b32.xlu0 %v469, 126
      %v542 = vpop.permute.xlu0 %541
      %543 = vrot.lane.b32.xlu0 %v470, 126
      %v544 = vpop.permute.xlu0 %543
      %545 = vrot.lane.b32.xlu0 %v471, 126
      %v546 = vpop.permute.xlu0 %545
      %547 = vrot.lane.b32.xlu0 %v472, 126
      %v548 = vpop.permute.xlu0 %547
      %549 = vrot.lane.b32.xlu0 %v473, 126
      %v550 = vpop.permute.xlu0 %549
      %551 = vrot.lane.b32.xlu0 %v474, 126
      %v552 = vpop.permute.xlu0 %551
      %553 = vrot.lane.b32.xlu0 %v475, 126
      %v554 = vpop.permute.xlu0 %553
      %555 = vrot.lane.b32.xlu0 %v476, 126
      %v556 = vpop.permute.xlu0 %555
      %557 = vrot.lane.b32.xlu0 %v477, 126
      %v558 = vpop.permute.xlu0 %557
      %vm559 = vcmask 1031168
      %v560 = vsel %vm559, %v506, %v508
      %v561 = vsel %vm559, %v508, %v510
      %v562 = vsel %vm559, %v510, %v512
      %v563 = vsel %vm559, %v512, %v514
      %v564 = vsel %vm559, %v514, %v516
      %v565 = vsel %vm559, %v516, %v518
      %v566 = vsel %vm559, %v518, %v520
      %v567 = vsel %vm559, %v520, %v522
      %v568 = vsel %vm559, %v522, %v524
      %v569 = vsel %vm559, %v524, %v526
      %v570 = vsel %vm559, %v526, %v528
      %v571 = vsel %vm559, %v528, %v530
      %v572 = vsel %vm559, %v530, %v532
      %v573 = vsel %vm559, %v532, %v534
      %v574 = vsel %vm559, %v534, %v536
      %v575 = vsel %vm559, %v536, %v538
      %v576 = vsel %vm559, %v538, %v540
      %v577 = vsel %vm559, %v540, %v542
      %v578 = vsel %vm559, %v542, %v544
      %v579 = vsel %vm559, %v544, %v546
      %v580 = vsel %vm559, %v546, %v548
      %v581 = vsel %vm559, %v548, %v550
      %v582 = vsel %vm559, %v550, %v552
      %v583 = vsel %vm559, %v552, %v554
      %v584 = vsel %vm559, %v554, %v556
      %v585 = vsel %vm559, %v556, %v558
      %612 = vst [vmem:[#allocation2 + $0x1a0] sm:$0xff] %v560
      %613 = vst [vmem:[#allocation2 + $0x1a8] sm:$0xff] %v561
      %614 = vst [vmem:[#allocation2 + $0x1b0] sm:$0xff] %v562
      %615 = vst [vmem:[#allocation2 + $0x1b8] sm:$0xff] %v563
      %616 = vst [vmem:[#allocation2 + $0x1c0] sm:$0xff] %v564
      %617 = vst [vmem:[#allocation2 + $0x1c8] sm:$0xff] %v565
      %618 = vst [vmem:[#allocation2 + $0x1d0] sm:$0xff] %v566
      %619 = vst [vmem:[#allocation2 + $0x1d8] sm:$0xff] %v567
      %620 = vst [vmem:[#allocation2 + $0x1e0] sm:$0xff] %v568
      %621 = vst [vmem:[#allocation2 + $0x1e8] sm:$0xff] %v569
      %622 = vst [vmem:[#allocation2 + $0x1f0] sm:$0xff] %v570
      %623 = vst [vmem:[#allocation2 + $0x1f8] sm:$0xff] %v571
      %624 = vst [vmem:[#allocation2 + $0x200] sm:$0xff] %v572
      %625 = vst [vmem:[#allocation2 + $0x208] sm:$0xff] %v573
      %626 = vst [vmem:[#allocation2 + $0x210] sm:$0xff] %v574
      %627 = vst [vmem:[#allocation2 + $0x218] sm:$0xff] %v575
      %628 = vst [vmem:[#allocation2 + $0x220] sm:$0xff] %v576
      %629 = vst [vmem:[#allocation2 + $0x228] sm:$0xff] %v577
      %630 = vst [vmem:[#allocation2 + $0x230] sm:$0xff] %v578
      %631 = vst [vmem:[#allocation2 + $0x238] sm:$0xff] %v579
      %632 = vst [vmem:[#allocation2 + $0x240] sm:$0xff] %v580
      %633 = vst [vmem:[#allocation2 + $0x248] sm:$0xff] %v581
      %634 = vst [vmem:[#allocation2 + $0x250] sm:$0xff] %v582
      %635 = vst [vmem:[#allocation2 + $0x258] sm:$0xff] %v583
      %636 = vst [vmem:[#allocation2 + $0x260] sm:$0xff] %v584
      %637 = vst [vmem:[#allocation2 + $0x268] sm:$0xff] %v585
      %v638 = vld [vmem:[%s165] sm:$0xff]
      %v639 = vld [vmem:[%s165 + $0x8] sm:$0xff]
      %v640 = vld [vmem:[%s165 + $0x10] sm:$0xff]
      %v641 = vld [vmem:[%s165 + $0x18] sm:$0xff]
      %v642 = vld [vmem:[%s165 + $0x20] sm:$0xff]
      %v643 = vld [vmem:[%s165 + $0x28] sm:$0xff]
      %v644 = vld [vmem:[%s165 + $0x30] sm:$0xff]
      %v645 = vld [vmem:[%s165 + $0x38] sm:$0xff]
      %v646 = vld [vmem:[%s165 + $0x40] sm:$0xff]
      %v647 = vld [vmem:[%s165 + $0x48] sm:$0xff]
      %v648 = vld [vmem:[%s165 + $0x50] sm:$0xff]
      %v649 = vld [vmem:[%s165 + $0x58] sm:$0xff]
      %v650 = vld [vmem:[%s165 + $0x60] sm:$0xff]
      %v651 = vld [vmem:[%s165 + $0x68] sm:$0xf]
      %v652 = vunpack.c.l.bf16 %v638
      %v653 = vunpack.c.h.bf16 %v638
      %v654 = vunpack.c.l.bf16 %v639
      %v655 = vunpack.c.h.bf16 %v639
      %v656 = vunpack.c.l.bf16 %v640
      %v657 = vunpack.c.h.bf16 %v640
      %v658 = vunpack.c.l.bf16 %v641
      %v659 = vunpack.c.h.bf16 %v641
      %v660 = vunpack.c.l.bf16 %v642
      %v661 = vunpack.c.h.bf16 %v642
      %v662 = vunpack.c.l.bf16 %v643
      %v663 = vunpack.c.h.bf16 %v643
      %v664 = vunpack.c.l.bf16 %v644
      %v665 = vunpack.c.h.bf16 %v644
      %v666 = vunpack.c.l.bf16 %v645
      %v667 = vunpack.c.h.bf16 %v645
      %v668 = vunpack.c.l.bf16 %v646
      %v669 = vunpack.c.h.bf16 %v646
      %v670 = vunpack.c.l.bf16 %v647
      %v671 = vunpack.c.h.bf16 %v647
      %v672 = vunpack.c.l.bf16 %v648
      %v673 = vunpack.c.h.bf16 %v648
      %v674 = vunpack.c.l.bf16 %v649
      %v675 = vunpack.c.h.bf16 %v649
      %v676 = vunpack.c.l.bf16 %v650
      %v677 = vunpack.c.h.bf16 %v650
      %v678 = vunpack.c.l.bf16 %v651
      %706 = vrot.lane.b32.xlu0 %v652, 110
      %v707 = vpop.permute.xlu0 %706
      %708 = vrot.lane.b32.xlu0 %v653, 110
      %v709 = vpop.permute.xlu0 %708
      %710 = vrot.lane.b32.xlu0 %v654, 110
      %v711 = vpop.permute.xlu0 %710
      %712 = vrot.lane.b32.xlu0 %v655, 110
      %v713 = vpop.permute.xlu0 %712
      %714 = vrot.lane.b32.xlu0 %v656, 110
      %v715 = vpop.permute.xlu0 %714
      %716 = vrot.lane.b32.xlu0 %v657, 110
      %v717 = vpop.permute.xlu0 %716
      %718 = vrot.lane.b32.xlu0 %v658, 110
      %v719 = vpop.permute.xlu0 %718
      %720 = vrot.lane.b32.xlu0 %v659, 110
      %v721 = vpop.permute.xlu0 %720
      %722 = vrot.lane.b32.xlu0 %v660, 110
      %v723 = vpop.permute.xlu0 %722
      %724 = vrot.lane.b32.xlu0 %v661, 110
      %v725 = vpop.permute.xlu0 %724
      %726 = vrot.lane.b32.xlu0 %v662, 110
      %v727 = vpop.permute.xlu0 %726
      %728 = vrot.lane.b32.xlu0 %v663, 110
      %v729 = vpop.permute.xlu0 %728
      %730 = vrot.lane.b32.xlu0 %v664, 110
      %v731 = vpop.permute.xlu0 %730
      %732 = vrot.lane.b32.xlu0 %v665, 110
      %v733 = vpop.permute.xlu0 %732
      %734 = vrot.lane.b32.xlu0 %v666, 110
      %v735 = vpop.permute.xlu0 %734
      %736 = vrot.lane.b32.xlu0 %v667, 110
      %v737 = vpop.permute.xlu0 %736
      %738 = vrot.lane.b32.xlu0 %v668, 110
      %v739 = vpop.permute.xlu0 %738
      %740 = vrot.lane.b32.xlu0 %v669, 110
      %v741 = vpop.permute.xlu0 %740
      %742 = vrot.lane.b32.xlu0 %v670, 110
      %v743 = vpop.permute.xlu0 %742
      %744 = vrot.lane.b32.xlu0 %v671, 110
      %v745 = vpop.permute.xlu0 %744
      %746 = vrot.lane.b32.xlu0 %v672, 110
      %v747 = vpop.permute.xlu0 %746
      %748 = vrot.lane.b32.xlu0 %v673, 110
      %v749 = vpop.permute.xlu0 %748
      %750 = vrot.lane.b32.xlu0 %v674, 110
      %v751 = vpop.permute.xlu0 %750
      %752 = vrot.lane.b32.xlu0 %v675, 110
      %v753 = vpop.permute.xlu0 %752
      %754 = vrot.lane.b32.xlu0 %v676, 110
      %v755 = vpop.permute.xlu0 %754
      %756 = vrot.lane.b32.xlu0 %v677, 110
      %v757 = vpop.permute.xlu0 %756
      %758 = vrot.lane.b32.xlu0 %v678, 110
      %v759 = vpop.permute.xlu0 %758
      %vm760 = vcmask 900096
      %v761 = vsel %vm760, %v707, %v709
      %v762 = vsel %vm760, %v709, %v711
      %v763 = vsel %vm760, %v711, %v713
      %v764 = vsel %vm760, %v713, %v715
      %v765 = vsel %vm760, %v715, %v717
      %v766 = vsel %vm760, %v717, %v719
      %v767 = vsel %vm760, %v719, %v721
      %v768 = vsel %vm760, %v721, %v723
      %v769 = vsel %vm760, %v723, %v725
      %v770 = vsel %vm760, %v725, %v727
      %v771 = vsel %vm760, %v727, %v729
      %v772 = vsel %vm760, %v729, %v731
      %v773 = vsel %vm760, %v731, %v733
      %v774 = vsel %vm760, %v733, %v735
      %v775 = vsel %vm760, %v735, %v737
      %v776 = vsel %vm760, %v737, %v739
      %v777 = vsel %vm760, %v739, %v741
      %v778 = vsel %vm760, %v741, %v743
      %v779 = vsel %vm760, %v743, %v745
      %v780 = vsel %vm760, %v745, %v747
      %v781 = vsel %vm760, %v747, %v749
      %v782 = vsel %vm760, %v749, %v751
      %v783 = vsel %vm760, %v751, %v753
      %v784 = vsel %vm760, %v753, %v755
      %v785 = vsel %vm760, %v755, %v757
      %v786 = vsel %vm760, %v757, %v759
      %813 = vst [vmem:[#allocation2 + $0x270] sm:$0xff] %v761
      %814 = vst [vmem:[#allocation2 + $0x278] sm:$0xff] %v762
      %815 = vst [vmem:[#allocation2 + $0x280] sm:$0xff] %v763
      %816 = vst [vmem:[#allocation2 + $0x288] sm:$0xff] %v764
      %817 = vst [vmem:[#allocation2 + $0x290] sm:$0xff] %v765
      %818 = vst [vmem:[#allocation2 + $0x298] sm:$0xff] %v766
      %819 = vst [vmem:[#allocation2 + $0x2a0] sm:$0xff] %v767
      %820 = vst [vmem:[#allocation2 + $0x2a8] sm:$0xff] %v768
      %821 = vst [vmem:[#allocation2 + $0x2b0] sm:$0xff] %v769
      %822 = vst [vmem:[#allocation2 + $0x2b8] sm:$0xff] %v770
      %823 = vst [vmem:[#allocation2 + $0x2c0] sm:$0xff] %v771
      %824 = vst [vmem:[#allocation2 + $0x2c8] sm:$0xff] %v772
      %825 = vst [vmem:[#allocation2 + $0x2d0] sm:$0xff] %v773
      %826 = vst [vmem:[#allocation2 + $0x2d8] sm:$0xff] %v774
      %827 = vst [vmem:[#allocation2 + $0x2e0] sm:$0xff] %v775
      %828 = vst [vmem:[#allocation2 + $0x2e8] sm:$0xff] %v776
      %829 = vst [vmem:[#allocation2 + $0x2f0] sm:$0xff] %v777
      %830 = vst [vmem:[#allocation2 + $0x2f8] sm:$0xff] %v778
      %831 = vst [vmem:[#allocation2 + $0x300] sm:$0xff] %v779
      %832 = vst [vmem:[#allocation2 + $0x308] sm:$0xff] %v780
      %833 = vst [vmem:[#allocation2 + $0x310] sm:$0xff] %v781
      %834 = vst [vmem:[#allocation2 + $0x318] sm:$0xff] %v782
      %835 = vst [vmem:[#allocation2 + $0x320] sm:$0xff] %v783
      %836 = vst [vmem:[#allocation2 + $0x328] sm:$0xff] %v784
      %837 = vst [vmem:[#allocation2 + $0x330] sm:$0xff] %v785
      %838 = vst [vmem:[#allocation2 + $0x338] sm:$0xff] %v786
      %v839 = vld [vmem:[%s165] sm:$0xff]
      %v840 = vld [vmem:[%s165 + $0x8] sm:$0xff]
      %v841 = vld [vmem:[%s165 + $0x10] sm:$0xff]
      %v842 = vld [vmem:[%s165 + $0x18] sm:$0xff]
      %v843 = vld [vmem:[%s165 + $0x20] sm:$0xff]
      %v844 = vld [vmem:[%s165 + $0x28] sm:$0xff]
      %v845 = vld [vmem:[%s165 + $0x30] sm:$0xff]
      %v846 = vld [vmem:[%s165 + $0x38] sm:$0xff]
      %v847 = vld [vmem:[%s165 + $0x40] sm:$0xff]
      %v848 = vld [vmem:[%s165 + $0x48] sm:$0xff]
      %v849 = vld [vmem:[%s165 + $0x50] sm:$0xff]
      %v850 = vld [vmem:[%s165 + $0x58] sm:$0xff]
      %v851 = vld [vmem:[%s165 + $0x60] sm:$0xff]
      %v852 = vld [vmem:[%s165 + $0x68] sm:$0xf]
      %v853 = vunpack.c.l.bf16 %v839
      %v854 = vunpack.c.h.bf16 %v839
      %v855 = vunpack.c.l.bf16 %v840
      %v856 = vunpack.c.h.bf16 %v840
      %v857 = vunpack.c.l.bf16 %v841
      %v858 = vunpack.c.h.bf16 %v841
      %v859 = vunpack.c.l.bf16 %v842
      %v860 = vunpack.c.h.bf16 %v842
      %v861 = vunpack.c.l.bf16 %v843
      %v862 = vunpack.c.h.bf16 %v843
      %v863 = vunpack.c.l.bf16 %v844
      %v864 = vunpack.c.h.bf16 %v844
      %v865 = vunpack.c.l.bf16 %v845
      %v866 = vunpack.c.h.bf16 %v845
      %v867 = vunpack.c.l.bf16 %v846
      %v868 = vunpack.c.h.bf16 %v846
      %v869 = vunpack.c.l.bf16 %v847
      %v870 = vunpack.c.h.bf16 %v847
      %v871 = vunpack.c.l.bf16 %v848
      %v872 = vunpack.c.h.bf16 %v848
      %v873 = vunpack.c.l.bf16 %v849
      %v874 = vunpack.c.h.bf16 %v849
      %v875 = vunpack.c.l.bf16 %v850
      %v876 = vunpack.c.h.bf16 %v850
      %v877 = vunpack.c.l.bf16 %v851
      %v878 = vunpack.c.h.bf16 %v851
      %v879 = vunpack.c.l.bf16 %v852
      %907 = vrot.lane.b32.xlu0 %v853, 109
      %v908 = vpop.permute.xlu0 %907
      %909 = vrot.lane.b32.xlu0 %v854, 109
      %v910 = vpop.permute.xlu0 %909
      %911 = vrot.lane.b32.xlu0 %v855, 109
      %v912 = vpop.permute.xlu0 %911
      %913 = vrot.lane.b32.xlu0 %v856, 109
      %v914 = vpop.permute.xlu0 %913
      %915 = vrot.lane.b32.xlu0 %v857, 109
      %v916 = vpop.permute.xlu0 %915
      %917 = vrot.lane.b32.xlu0 %v858, 109
      %v918 = vpop.permute.xlu0 %917
      %919 = vrot.lane.b32.xlu0 %v859, 109
      %v920 = vpop.permute.xlu0 %919
      %921 = vrot.lane.b32.xlu0 %v860, 109
      %v922 = vpop.permute.xlu0 %921
      %923 = vrot.lane.b32.xlu0 %v861, 109
      %v924 = vpop.permute.xlu0 %923
      %925 = vrot.lane.b32.xlu0 %v862, 109
      %v926 = vpop.permute.xlu0 %925
      %927 = vrot.lane.b32.xlu0 %v863, 109
      %v928 = vpop.permute.xlu0 %927
      %929 = vrot.lane.b32.xlu0 %v864, 109
      %v930 = vpop.permute.xlu0 %929
      %931 = vrot.lane.b32.xlu0 %v865, 109
      %v932 = vpop.permute.xlu0 %931
      %933 = vrot.lane.b32.xlu0 %v866, 109
      %v934 = vpop.permute.xlu0 %933
      %935 = vrot.lane.b32.xlu0 %v867, 109
      %v936 = vpop.permute.xlu0 %935
      %937 = vrot.lane.b32.xlu0 %v868, 109
      %v938 = vpop.permute.xlu0 %937
      %939 = vrot.lane.b32.xlu0 %v869, 109
      %v940 = vpop.permute.xlu0 %939
      %941 = vrot.lane.b32.xlu0 %v870, 109
      %v942 = vpop.permute.xlu0 %941
      %943 = vrot.lane.b32.xlu0 %v871, 109
      %v944 = vpop.permute.xlu0 %943
      %945 = vrot.lane.b32.xlu0 %v872, 109
      %v946 = vpop.permute.xlu0 %945
      %947 = vrot.lane.b32.xlu0 %v873, 109
      %v948 = vpop.permute.xlu0 %947
      %949 = vrot.lane.b32.xlu0 %v874, 109
      %v950 = vpop.permute.xlu0 %949
      %951 = vrot.lane.b32.xlu0 %v875, 109
      %v952 = vpop.permute.xlu0 %951
      %953 = vrot.lane.b32.xlu0 %v876, 109
      %v954 = vpop.permute.xlu0 %953
      %955 = vrot.lane.b32.xlu0 %v877, 109
      %v956 = vpop.permute.xlu0 %955
      %957 = vrot.lane.b32.xlu0 %v878, 109
      %v958 = vpop.permute.xlu0 %957
      %959 = vrot.lane.b32.xlu0 %v879, 109
      %v960 = vpop.permute.xlu0 %959
      %vm961 = vcmask 891904
      %v962 = vsel %vm961, %v908, %v910
      %v963 = vsel %vm961, %v910, %v912
      %v964 = vsel %vm961, %v912, %v914
      %v965 = vsel %vm961, %v914, %v916
      %v966 = vsel %vm961, %v916, %v918
      %v967 = vsel %vm961, %v918, %v920
      %v968 = vsel %vm961, %v920, %v922
      %v969 = vsel %vm961, %v922, %v924
      %v970 = vsel %vm961, %v924, %v926
      %v971 = vsel %vm961, %v926, %v928
      %v972 = vsel %vm961, %v928, %v930
      %v973 = vsel %vm961, %v930, %v932
      %v974 = vsel %vm961, %v932, %v934
      %v975 = vsel %vm961, %v934, %v936
      %v976 = vsel %vm961, %v936, %v938
      %v977 = vsel %vm961, %v938, %v940
      %v978 = vsel %vm961, %v940, %v942
      %v979 = vsel %vm961, %v942, %v944
      %v980 = vsel %vm961, %v944, %v946
      %v981 = vsel %vm961, %v946, %v948
      %v982 = vsel %vm961, %v948, %v950
      %v983 = vsel %vm961, %v950, %v952
      %v984 = vsel %vm961, %v952, %v954
      %v985 = vsel %vm961, %v954, %v956
      %v986 = vsel %vm961, %v956, %v958
      %v987 = vsel %vm961, %v958, %v960
      %1014 = vst [vmem:[#allocation2 + $0x340] sm:$0xff] %v962
      %1015 = vst [vmem:[#allocation2 + $0x348] sm:$0xff] %v963
      %1016 = vst [vmem:[#allocation2 + $0x350] sm:$0xff] %v964
      %1017 = vst [vmem:[#allocation2 + $0x358] sm:$0xff] %v965
      %1018 = vst [vmem:[#allocation2 + $0x360] sm:$0xff] %v966
      %1019 = vst [vmem:[#allocation2 + $0x368] sm:$0xff] %v967
      %1020 = vst [vmem:[#allocation2 + $0x370] sm:$0xff] %v968
      %1021 = vst [vmem:[#allocation2 + $0x378] sm:$0xff] %v969
      %1022 = vst [vmem:[#allocation2 + $0x380] sm:$0xff] %v970
      %1023 = vst [vmem:[#allocation2 + $0x388] sm:$0xff] %v971
      %1024 = vst [vmem:[#allocation2 + $0x390] sm:$0xff] %v972
      %1025 = vst [vmem:[#allocation2 + $0x398] sm:$0xff] %v973
      %1026 = vst [vmem:[#allocation2 + $0x3a0] sm:$0xff] %v974
      %1027 = vst [vmem:[#allocation2 + $0x3a8] sm:$0xff] %v975
      %1028 = vst [vmem:[#allocation2 + $0x3b0] sm:$0xff] %v976
      %1029 = vst [vmem:[#allocation2 + $0x3b8] sm:$0xff] %v977
      %1030 = vst [vmem:[#allocation2 + $0x3c0] sm:$0xff] %v978
      %1031 = vst [vmem:[#allocation2 + $0x3c8] sm:$0xff] %v979
      %1032 = vst [vmem:[#allocation2 + $0x3d0] sm:$0xff] %v980
      %1033 = vst [vmem:[#allocation2 + $0x3d8] sm:$0xff] %v981
      %1034 = vst [vmem:[#allocation2 + $0x3e0] sm:$0xff] %v982
      %1035 = vst [vmem:[#allocation2 + $0x3e8] sm:$0xff] %v983
      %1036 = vst [vmem:[#allocation2 + $0x3f0] sm:$0xff] %v984
      %1037 = vst [vmem:[#allocation2 + $0x3f8] sm:$0xff] %v985
      %1038 = vst [vmem:[#allocation2 + $0x400] sm:$0xff] %v986
      %1039 = vst [vmem:[#allocation2 + $0x408] sm:$0xff] %v987
      %v1040 = vld [vmem:[%s165] sm:$0xff]
      %v1041 = vld [vmem:[%s165 + $0x8] sm:$0xff]
      %v1042 = vld [vmem:[%s165 + $0x10] sm:$0xff]
      %v1043 = vld [vmem:[%s165 + $0x18] sm:$0xff]
      %v1044 = vld [vmem:[%s165 + $0x20] sm:$0xff]
      %v1045 = vld [vmem:[%s165 + $0x28] sm:$0xff]
      %v1046 = vld [vmem:[%s165 + $0x30] sm:$0xff]
      %v1047 = vld [vmem:[%s165 + $0x38] sm:$0xff]
      %v1048 = vld [vmem:[%s165 + $0x40] sm:$0xff]
      %v1049 = vld [vmem:[%s165 + $0x48] sm:$0xff]
      %v1050 = vld [vmem:[%s165 + $0x50] sm:$0xff]
      %v1051 = vld [vmem:[%s165 + $0x58] sm:$0xff]
      %v1052 = vld [vmem:[%s165 + $0x60] sm:$0xff]
      %v1053 = vld [vmem:[%s165 + $0x68] sm:$0xf]
      %v1054 = vunpack.c.l.bf16 %v1040
      %v1055 = vunpack.c.h.bf16 %v1040
      %v1056 = vunpack.c.l.bf16 %v1041
      %v1057 = vunpack.c.h.bf16 %v1041
      %v1058 = vunpack.c.l.bf16 %v1042
      %v1059 = vunpack.c.h.bf16 %v1042
      %v1060 = vunpack.c.l.bf16 %v1043
      %v1061 = vunpack.c.h.bf16 %v1043
      %v1062 = vunpack.c.l.bf16 %v1044
      %v1063 = vunpack.c.h.bf16 %v1044
      %v1064 = vunpack.c.l.bf16 %v1045
      %v1065 = vunpack.c.h.bf16 %v1045
      %v1066 = vunpack.c.l.bf16 %v1046
      %v1067 = vunpack.c.h.bf16 %v1046
      %v1068 = vunpack.c.l.bf16 %v1047
      %v1069 = vunpack.c.h.bf16 %v1047
      %v1070 = vunpack.c.l.bf16 %v1048
      %v1071 = vunpack.c.h.bf16 %v1048
      %v1072 = vunpack.c.l.bf16 %v1049
      %v1073 = vunpack.c.h.bf16 %v1049
      %v1074 = vunpack.c.l.bf16 %v1050
      %v1075 = vunpack.c.h.bf16 %v1050
      %v1076 = vunpack.c.l.bf16 %v1051
      %v1077 = vunpack.c.h.bf16 %v1051
      %v1078 = vunpack.c.l.bf16 %v1052
      %v1079 = vunpack.c.h.bf16 %v1052
      %v1080 = vunpack.c.l.bf16 %v1053
      %1108 = vrot.lane.b32.xlu0 %v1054, 108
      %v1109 = vpop.permute.xlu0 %1108
      %1110 = vrot.lane.b32.xlu0 %v1055, 108
      %v1111 = vpop.permute.xlu0 %1110
      %1112 = vrot.lane.b32.xlu0 %v1056, 108
      %v1113 = vpop.permute.xlu0 %1112
      %1114 = vrot.lane.b32.xlu0 %v1057, 108
      %v1115 = vpop.permute.xlu0 %1114
      %1116 = vrot.lane.b32.xlu0 %v1058, 108
      %v1117 = vpop.permute.xlu0 %1116
      %1118 = vrot.lane.b32.xlu0 %v1059, 108
      %v1119 = vpop.permute.xlu0 %1118
      %1120 = vrot.lane.b32.xlu0 %v1060, 108
      %v1121 = vpop.permute.xlu0 %1120
      %1122 = vrot.lane.b32.xlu0 %v1061, 108
      %v1123 = vpop.permute.xlu0 %1122
      %1124 = vrot.lane.b32.xlu0 %v1062, 108
      %v1125 = vpop.permute.xlu0 %1124
      %1126 = vrot.lane.b32.xlu0 %v1063, 108
      %v1127 = vpop.permute.xlu0 %1126
      %1128 = vrot.lane.b32.xlu0 %v1064, 108
      %v1129 = vpop.permute.xlu0 %1128
      %1130 = vrot.lane.b32.xlu0 %v1065, 108
      %v1131 = vpop.permute.xlu0 %1130
      %1132 = vrot.lane.b32.xlu0 %v1066, 108
      %v1133 = vpop.permute.xlu0 %1132
      %1134 = vrot.lane.b32.xlu0 %v1067, 108
      %v1135 = vpop.permute.xlu0 %1134
      %1136 = vrot.lane.b32.xlu0 %v1068, 108
      %v1137 = vpop.permute.xlu0 %1136
      %1138 = vrot.lane.b32.xlu0 %v1069, 108
      %v1139 = vpop.permute.xlu0 %1138
      %1140 = vrot.lane.b32.xlu0 %v1070, 108
      %v1141 = vpop.permute.xlu0 %1140
      %1142 = vrot.lane.b32.xlu0 %v1071, 108
      %v1143 = vpop.permute.xlu0 %1142
      %1144 = vrot.lane.b32.xlu0 %v1072, 108
      %v1145 = vpop.permute.xlu0 %1144
      %1146 = vrot.lane.b32.xlu0 %v1073, 108
      %v1147 = vpop.permute.xlu0 %1146
      %1148 = vrot.lane.b32.xlu0 %v1074, 108
      %v1149 = vpop.permute.xlu0 %1148
      %1150 = vrot.lane.b32.xlu0 %v1075, 108
      %v1151 = vpop.permute.xlu0 %1150
      %1152 = vrot.lane.b32.xlu0 %v1076, 108
      %v1153 = vpop.permute.xlu0 %1152
      %1154 = vrot.lane.b32.xlu0 %v1077, 108
      %v1155 = vpop.permute.xlu0 %1154
      %1156 = vrot.lane.b32.xlu0 %v1078, 108
      %v1157 = vpop.permute.xlu0 %1156
      %1158 = vrot.lane.b32.xlu0 %v1079, 108
      %v1159 = vpop.permute.xlu0 %1158
      %1160 = vrot.lane.b32.xlu0 %v1080, 108
      %v1161 = vpop.permute.xlu0 %1160
      %vm1162 = vcmask 883712
      %v1163 = vsel %vm1162, %v1109, %v1111
      %v1164 = vsel %vm1162, %v1111, %v1113
      %v1165 = vsel %vm1162, %v1113, %v1115
      %v1166 = vsel %vm1162, %v1115, %v1117
      %v1167 = vsel %vm1162, %v1117, %v1119
      %v1168 = vsel %vm1162, %v1119, %v1121
      %v1169 = vsel %vm1162, %v1121, %v1123
      %v1170 = vsel %vm1162, %v1123, %v1125
      %v1171 = vsel %vm1162, %v1125, %v1127
      %v1172 = vsel %vm1162, %v1127, %v1129
      %v1173 = vsel %vm1162, %v1129, %v1131
      %v1174 = vsel %vm1162, %v1131, %v1133
      %v1175 = vsel %vm1162, %v1133, %v1135
      %v1176 = vsel %vm1162, %v1135, %v1137
      %v1177 = vsel %vm1162, %v1137, %v1139
      %v1178 = vsel %vm1162, %v1139, %v1141
      %v1179 = vsel %vm1162, %v1141, %v1143
      %v1180 = vsel %vm1162, %v1143, %v1145
      %v1181 = vsel %vm1162, %v1145, %v1147
      %v1182 = vsel %vm1162, %v1147, %v1149
      %v1183 = vsel %vm1162, %v1149, %v1151
      %v1184 = vsel %vm1162, %v1151, %v1153
      %v1185 = vsel %vm1162, %v1153, %v1155
      %v1186 = vsel %vm1162, %v1155, %v1157
      %v1187 = vsel %vm1162, %v1157, %v1159
      %v1188 = vsel %vm1162, %v1159, %v1161
      %1215 = vst [vmem:[#allocation2 + $0x410] sm:$0xff] %v1163
      %1216 = vst [vmem:[#allocation2 + $0x418] sm:$0xff] %v1164
      %1217 = vst [vmem:[#allocation2 + $0x420] sm:$0xff] %v1165
      %1218 = vst [vmem:[#allocation2 + $0x428] sm:$0xff] %v1166
      %1219 = vst [vmem:[#allocation2 + $0x430] sm:$0xff] %v1167
      %1220 = vst [vmem:[#allocation2 + $0x438] sm:$0xff] %v1168
      %1221 = vst [vmem:[#allocation2 + $0x440] sm:$0xff] %v1169
      %1222 = vst [vmem:[#allocation2 + $0x448] sm:$0xff] %v1170
      %1223 = vst [vmem:[#allocation2 + $0x450] sm:$0xff] %v1171
      %1224 = vst [vmem:[#allocation2 + $0x458] sm:$0xff] %v1172
      %1225 = vst [vmem:[#allocation2 + $0x460] sm:$0xff] %v1173
      %1226 = vst [vmem:[#allocation2 + $0x468] sm:$0xff] %v1174
      %1227 = vst [vmem:[#allocation2 + $0x470] sm:$0xff] %v1175
      %1228 = vst [vmem:[#allocation2 + $0x478] sm:$0xff] %v1176
      %1229 = vst [vmem:[#allocation2 + $0x480] sm:$0xff] %v1177
      %1230 = vst [vmem:[#allocation2 + $0x488] sm:$0xff] %v1178
      %1231 = vst [vmem:[#allocation2 + $0x490] sm:$0xff] %v1179
      %1232 = vst [vmem:[#allocation2 + $0x498] sm:$0xff] %v1180
      %1233 = vst [vmem:[#allocation2 + $0x4a0] sm:$0xff] %v1181
      %1234 = vst [vmem:[#allocation2 + $0x4a8] sm:$0xff] %v1182
      %1235 = vst [vmem:[#allocation2 + $0x4b0] sm:$0xff] %v1183
      %1236 = vst [vmem:[#allocation2 + $0x4b8] sm:$0xff] %v1184
      %1237 = vst [vmem:[#allocation2 + $0x4c0] sm:$0xff] %v1185
      %1238 = vst [vmem:[#allocation2 + $0x4c8] sm:$0xff] %v1186
      %1239 = vst [vmem:[#allocation2 + $0x4d0] sm:$0xff] %v1187
      %1240 = vst [vmem:[#allocation2 + $0x4d8] sm:$0xff] %v1188
      %v1241 = vld [vmem:[%s165] sm:$0xff]
      %v1242 = vld [vmem:[%s165 + $0x8] sm:$0xff]
      %v1243 = vld [vmem:[%s165 + $0x10] sm:$0xff]
      %v1244 = vld [vmem:[%s165 + $0x18] sm:$0xff]
      %v1245 = vld [vmem:[%s165 + $0x20] sm:$0xff]
      %v1246 = vld [vmem:[%s165 + $0x28] sm:$0xff]
      %v1247 = vld [vmem:[%s165 + $0x30] sm:$0xff]
      %v1248 = vld [vmem:[%s165 + $0x38] sm:$0xff]
      %v1249 = vld [vmem:[%s165 + $0x40] sm:$0xff]
      %v1250 = vld [vmem:[%s165 + $0x48] sm:$0xff]
      %v1251 = vld [vmem:[%s165 + $0x50] sm:$0xff]
      %v1252 = vld [vmem:[%s165 + $0x58] sm:$0xff]
      %v1253 = vld [vmem:[%s165 + $0x60] sm:$0xff]
      %v1254 = vld [vmem:[%s165 + $0x68] sm:$0xf]
      %v1255 = vunpack.c.l.bf16 %v1241
      %v1256 = vunpack.c.h.bf16 %v1241
      %v1257 = vunpack.c.l.bf16 %v1242
      %v1258 = vunpack.c.h.bf16 %v1242
      %v1259 = vunpack.c.l.bf16 %v1243
      %v1260 = vunpack.c.h.bf16 %v1243
      %v1261 = vunpack.c.l.bf16 %v1244
      %v1262 = vunpack.c.h.bf16 %v1244
      %v1263 = vunpack.c.l.bf16 %v1245
      %v1264 = vunpack.c.h.bf16 %v1245
      %v1265 = vunpack.c.l.bf16 %v1246
      %v1266 = vunpack.c.h.bf16 %v1246
      %v1267 = vunpack.c.l.bf16 %v1247
      %v1268 = vunpack.c.h.bf16 %v1247
      %v1269 = vunpack.c.l.bf16 %v1248
      %v1270 = vunpack.c.h.bf16 %v1248
      %v1271 = vunpack.c.l.bf16 %v1249
      %v1272 = vunpack.c.h.bf16 %v1249
      %v1273 = vunpack.c.l.bf16 %v1250
      %v1274 = vunpack.c.h.bf16 %v1250
      %v1275 = vunpack.c.l.bf16 %v1251
      %v1276 = vunpack.c.h.bf16 %v1251
      %v1277 = vunpack.c.l.bf16 %v1252
      %v1278 = vunpack.c.h.bf16 %v1252
      %v1279 = vunpack.c.l.bf16 %v1253
      %v1280 = vunpack.c.h.bf16 %v1253
      %v1281 = vunpack.c.l.bf16 %v1254
      %1309 = vrot.lane.b32.xlu0 %v1255, 92
      %v1310 = vpop.permute.xlu0 %1309
      %1311 = vrot.lane.b32.xlu0 %v1256, 92
      %v1312 = vpop.permute.xlu0 %1311
      %1313 = vrot.lane.b32.xlu0 %v1257, 92
      %v1314 = vpop.permute.xlu0 %1313
      %1315 = vrot.lane.b32.xlu0 %v1258, 92
      %v1316 = vpop.permute.xlu0 %1315
      %1317 = vrot.lane.b32.xlu0 %v1259, 92
      %v1318 = vpop.permute.xlu0 %1317
      %1319 = vrot.lane.b32.xlu0 %v1260, 92
      %v1320 = vpop.permute.xlu0 %1319
      %1321 = vrot.lane.b32.xlu0 %v1261, 92
      %v1322 = vpop.permute.xlu0 %1321
      %1323 = vrot.lane.b32.xlu0 %v1262, 92
      %v1324 = vpop.permute.xlu0 %1323
      %1325 = vrot.lane.b32.xlu0 %v1263, 92
      %v1326 = vpop.permute.xlu0 %1325
      %1327 = vrot.lane.b32.xlu0 %v1264, 92
      %v1328 = vpop.permute.xlu0 %1327
      %1329 = vrot.lane.b32.xlu0 %v1265, 92
      %v1330 = vpop.permute.xlu0 %1329
      %1331 = vrot.lane.b32.xlu0 %v1266, 92
      %v1332 = vpop.permute.xlu0 %1331
      %1333 = vrot.lane.b32.xlu0 %v1267, 92
      %v1334 = vpop.permute.xlu0 %1333
      %1335 = vrot.lane.b32.xlu0 %v1268, 92
      %v1336 = vpop.permute.xlu0 %1335
      %1337 = vrot.lane.b32.xlu0 %v1269, 92
      %v1338 = vpop.permute.xlu0 %1337
      %1339 = vrot.lane.b32.xlu0 %v1270, 92
      %v1340 = vpop.permute.xlu0 %1339
      %1341 = vrot.lane.b32.xlu0 %v1271, 92
      %v1342 = vpop.permute.xlu0 %1341
      %1343 = vrot.lane.b32.xlu0 %v1272, 92
      %v1344 = vpop.permute.xlu0 %1343
      %1345 = vrot.lane.b32.xlu0 %v1273, 92
      %v1346 = vpop.permute.xlu0 %1345
      %1347 = vrot.lane.b32.xlu0 %v1274, 92
      %v1348 = vpop.permute.xlu0 %1347
      %1349 = vrot.lane.b32.xlu0 %v1275, 92
      %v1350 = vpop.permute.xlu0 %1349
      %1351 = vrot.lane.b32.xlu0 %v1276, 92
      %v1352 = vpop.permute.xlu0 %1351
      %1353 = vrot.lane.b32.xlu0 %v1277, 92
      %v1354 = vpop.permute.xlu0 %1353
      %1355 = vrot.lane.b32.xlu0 %v1278, 92
      %v1356 = vpop.permute.xlu0 %1355
      %1357 = vrot.lane.b32.xlu0 %v1279, 92
      %v1358 = vpop.permute.xlu0 %1357
      %1359 = vrot.lane.b32.xlu0 %v1280, 92
      %v1360 = vpop.permute.xlu0 %1359
      %1361 = vrot.lane.b32.xlu0 %v1281, 92
      %v1362 = vpop.permute.xlu0 %1361
      %vm1363 = vcmask 752640
      %v1364 = vsel %vm1363, %v1310, %v1312
      %v1365 = vsel %vm1363, %v1312, %v1314
      %v1366 = vsel %vm1363, %v1314, %v1316
      %v1367 = vsel %vm1363, %v1316, %v1318
      %v1368 = vsel %vm1363, %v1318, %v1320
      %v1369 = vsel %vm1363, %v1320, %v1322
      %v1370 = vsel %vm1363, %v1322, %v1324
      %v1371 = vsel %vm1363, %v1324, %v1326
      %v1372 = vsel %vm1363, %v1326, %v1328
      %v1373 = vsel %vm1363, %v1328, %v1330
      %v1374 = vsel %vm1363, %v1330, %v1332
      %v1375 = vsel %vm1363, %v1332, %v1334
      %v1376 = vsel %vm1363, %v1334, %v1336
      %v1377 = vsel %vm1363, %v1336, %v1338
      %v1378 = vsel %vm1363, %v1338, %v1340
      %v1379 = vsel %vm1363, %v1340, %v1342
      %v1380 = vsel %vm1363, %v1342, %v1344
      %v1381 = vsel %vm1363, %v1344, %v1346
      %v1382 = vsel %vm1363, %v1346, %v1348
      %v1383 = vsel %vm1363, %v1348, %v1350
      %v1384 = vsel %vm1363, %v1350, %v1352
      %v1385 = vsel %vm1363, %v1352, %v1354
      %v1386 = vsel %vm1363, %v1354, %v1356
      %v1387 = vsel %vm1363, %v1356, %v1358
      %v1388 = vsel %vm1363, %v1358, %v1360
      %v1389 = vsel %vm1363, %v1360, %v1362
      %1416 = vst [vmem:[#allocation2 + $0x4e0] sm:$0xff] %v1364
      %1417 = vst [vmem:[#allocation2 + $0x4e8] sm:$0xff] %v1365
      %1418 = vst [vmem:[#allocation2 + $0x4f0] sm:$0xff] %v1366
      %1419 = vst [vmem:[#allocation2 + $0x4f8] sm:$0xff] %v1367
      %1420 = vst [vmem:[#allocation2 + $0x500] sm:$0xff] %v1368
      %1421 = vst [vmem:[#allocation2 + $0x508] sm:$0xff] %v1369
      %1422 = vst [vmem:[#allocation2 + $0x510] sm:$0xff] %v1370
      %1423 = vst [vmem:[#allocation2 + $0x518] sm:$0xff] %v1371
      %1424 = vst [vmem:[#allocation2 + $0x520] sm:$0xff] %v1372
      %1425 = vst [vmem:[#allocation2 + $0x528] sm:$0xff] %v1373
      %1426 = vst [vmem:[#allocation2 + $0x530] sm:$0xff] %v1374
      %1427 = vst [vmem:[#allocation2 + $0x538] sm:$0xff] %v1375
      %1428 = vst [vmem:[#allocation2 + $0x540] sm:$0xff] %v1376
      %1429 = vst [vmem:[#allocation2 + $0x548] sm:$0xff] %v1377
      %1430 = vst [vmem:[#allocation2 + $0x550] sm:$0xff] %v1378
      %1431 = vst [vmem:[#allocation2 + $0x558] sm:$0xff] %v1379
      %1432 = vst [vmem:[#allocation2 + $0x560] sm:$0xff] %v1380
      %1433 = vst [vmem:[#allocation2 + $0x568] sm:$0xff] %v1381
      %1434 = vst [vmem:[#allocation2 + $0x570] sm:$0xff] %v1382
      %1435 = vst [vmem:[#allocation2 + $0x578] sm:$0xff] %v1383
      %1436 = vst [vmem:[#allocation2 + $0x580] sm:$0xff] %v1384
      %1437 = vst [vmem:[#allocation2 + $0x588] sm:$0xff] %v1385
      %1438 = vst [vmem:[#allocation2 + $0x590] sm:$0xff] %v1386
      %1439 = vst [vmem:[#allocation2 + $0x598] sm:$0xff] %v1387
      %1440 = vst [vmem:[#allocation2 + $0x5a0] sm:$0xff] %v1388
      %1441 = vst [vmem:[#allocation2 + $0x5a8] sm:$0xff] %v1389
      %v1442 = vld [vmem:[%s165] sm:$0xff]
      %v1443 = vld [vmem:[%s165 + $0x8] sm:$0xff]
      %v1444 = vld [vmem:[%s165 + $0x10] sm:$0xff]
      %v1445 = vld [vmem:[%s165 + $0x18] sm:$0xff]
      %v1446 = vld [vmem:[%s165 + $0x20] sm:$0xff]
      %v1447 = vld [vmem:[%s165 + $0x28] sm:$0xff]
      %v1448 = vld [vmem:[%s165 + $0x30] sm:$0xff]
      %v1449 = vld [vmem:[%s165 + $0x38] sm:$0xff]
      %v1450 = vld [vmem:[%s165 + $0x40] sm:$0xff]
      %v1451 = vld [vmem:[%s165 + $0x48] sm:$0xff]
      %v1452 = vld [vmem:[%s165 + $0x50] sm:$0xff]
      %v1453 = vld [vmem:[%s165 + $0x58] sm:$0xff]
      %v1454 = vld [vmem:[%s165 + $0x60] sm:$0xff]
      %v1455 = vld [vmem:[%s165 + $0x68] sm:$0xf]
      %v1456 = vunpack.c.l.bf16 %v1442
      %v1457 = vunpack.c.h.bf16 %v1442
      %v1458 = vunpack.c.l.bf16 %v1443
      %v1459 = vunpack.c.h.bf16 %v1443
      %v1460 = vunpack.c.l.bf16 %v1444
      %v1461 = vunpack.c.h.bf16 %v1444
      %v1462 = vunpack.c.l.bf16 %v1445
      %v1463 = vunpack.c.h.bf16 %v1445
      %v1464 = vunpack.c.l.bf16 %v1446
      %v1465 = vunpack.c.h.bf16 %v1446
      %v1466 = vunpack.c.l.bf16 %v1447
      %v1467 = vunpack.c.h.bf16 %v1447
      %v1468 = vunpack.c.l.bf16 %v1448
      %v1469 = vunpack.c.h.bf16 %v1448
      %v1470 = vunpack.c.l.bf16 %v1449
      %v1471 = vunpack.c.h.bf16 %v1449
      %v1472 = vunpack.c.l.bf16 %v1450
      %v1473 = vunpack.c.h.bf16 %v1450
      %v1474 = vunpack.c.l.bf16 %v1451
      %v1475 = vunpack.c.h.bf16 %v1451
      %v1476 = vunpack.c.l.bf16 %v1452
      %v1477 = vunpack.c.h.bf16 %v1452
      %v1478 = vunpack.c.l.bf16 %v1453
      %v1479 = vunpack.c.h.bf16 %v1453
      %v1480 = vunpack.c.l.bf16 %v1454
      %v1481 = vunpack.c.h.bf16 %v1454
      %v1482 = vunpack.c.l.bf16 %v1455
      %1510 = vrot.lane.b32.xlu0 %v1456, 91
      %v1511 = vpop.permute.xlu0 %1510
      %1512 = vrot.lane.b32.xlu0 %v1457, 91
      %v1513 = vpop.permute.xlu0 %1512
      %1514 = vrot.lane.b32.xlu0 %v1458, 91
      %v1515 = vpop.permute.xlu0 %1514
      %1516 = vrot.lane.b32.xlu0 %v1459, 91
      %v1517 = vpop.permute.xlu0 %1516
      %1518 = vrot.lane.b32.xlu0 %v1460, 91
      %v1519 = vpop.permute.xlu0 %1518
      %1520 = vrot.lane.b32.xlu0 %v1461, 91
      %v1521 = vpop.permute.xlu0 %1520
      %1522 = vrot.lane.b32.xlu0 %v1462, 91
      %v1523 = vpop.permute.xlu0 %1522
      %1524 = vrot.lane.b32.xlu0 %v1463, 91
      %v1525 = vpop.permute.xlu0 %1524
      %1526 = vrot.lane.b32.xlu0 %v1464, 91
      %v1527 = vpop.permute.xlu0 %1526
      %1528 = vrot.lane.b32.xlu0 %v1465, 91
      %v1529 = vpop.permute.xlu0 %1528
      %1530 = vrot.lane.b32.xlu0 %v1466, 91
      %v1531 = vpop.permute.xlu0 %1530
      %1532 = vrot.lane.b32.xlu0 %v1467, 91
      %v1533 = vpop.permute.xlu0 %1532
      %1534 = vrot.lane.b32.xlu0 %v1468, 91
      %v1535 = vpop.permute.xlu0 %1534
      %1536 = vrot.lane.b32.xlu0 %v1469, 91
      %v1537 = vpop.permute.xlu0 %1536
      %1538 = vrot.lane.b32.xlu0 %v1470, 91
      %v1539 = vpop.permute.xlu0 %1538
      %1540 = vrot.lane.b32.xlu0 %v1471, 91
      %v1541 = vpop.permute.xlu0 %1540
      %1542 = vrot.lane.b32.xlu0 %v1472, 91
      %v1543 = vpop.permute.xlu0 %1542
      %1544 = vrot.lane.b32.xlu0 %v1473, 91
      %v1545 = vpop.permute.xlu0 %1544
      %1546 = vrot.lane.b32.xlu0 %v1474, 91
      %v1547 = vpop.permute.xlu0 %1546
      %1548 = vrot.lane.b32.xlu0 %v1475, 91
      %v1549 = vpop.permute.xlu0 %1548
      %1550 = vrot.lane.b32.xlu0 %v1476, 91
      %v1551 = vpop.permute.xlu0 %1550
      %1552 = vrot.lane.b32.xlu0 %v1477, 91
      %v1553 = vpop.permute.xlu0 %1552
      %1554 = vrot.lane.b32.xlu0 %v1478, 91
      %v1555 = vpop.permute.xlu0 %1554
      %1556 = vrot.lane.b32.xlu0 %v1479, 91
      %v1557 = vpop.permute.xlu0 %1556
      %1558 = vrot.lane.b32.xlu0 %v1480, 91
      %v1559 = vpop.permute.xlu0 %1558
      %1560 = vrot.lane.b32.xlu0 %v1481, 91
      %v1561 = vpop.permute.xlu0 %1560
      %1562 = vrot.lane.b32.xlu0 %v1482, 91
      %v1563 = vpop.permute.xlu0 %1562
      %vm1564 = vcmask 744448
      %v1565 = vsel %vm1564, %v1511, %v1513
      %v1566 = vsel %vm1564, %v1513, %v1515
      %v1567 = vsel %vm1564, %v1515, %v1517
      %v1568 = vsel %vm1564, %v1517, %v1519
      %v1569 = vsel %vm1564, %v1519, %v1521
      %v1570 = vsel %vm1564, %v1521, %v1523
      %v1571 = vsel %vm1564, %v1523, %v1525
      %v1572 = vsel %vm1564, %v1525, %v1527
      %v1573 = vsel %vm1564, %v1527, %v1529
      %v1574 = vsel %vm1564, %v1529, %v1531
      %v1575 = vsel %vm1564, %v1531, %v1533
      %v1576 = vsel %vm1564, %v1533, %v1535
      %v1577 = vsel %vm1564, %v1535, %v1537
      %v1578 = vsel %vm1564, %v1537, %v1539
      %v1579 = vsel %vm1564, %v1539, %v1541
      %v1580 = vsel %vm1564, %v1541, %v1543
      %v1581 = vsel %vm1564, %v1543, %v1545
      %v1582 = vsel %vm1564, %v1545, %v1547
      %v1583 = vsel %vm1564, %v1547, %v1549
      %v1584 = vsel %vm1564, %v1549, %v1551
      %v1585 = vsel %vm1564, %v1551, %v1553
      %v1586 = vsel %vm1564, %v1553, %v1555
      %v1587 = vsel %vm1564, %v1555, %v1557
      %v1588 = vsel %vm1564, %v1557, %v1559
      %v1589 = vsel %vm1564, %v1559, %v1561
      %v1590 = vsel %vm1564, %v1561, %v1563
      %1617 = vst [vmem:[#allocation2 + $0x5b0] sm:$0xff] %v1565
      %1618 = vst [vmem:[#allocation2 + $0x5b8] sm:$0xff] %v1566
      %1619 = vst [vmem:[#allocation2 + $0x5c0] sm:$0xff] %v1567
      %1620 = vst [vmem:[#allocation2 + $0x5c8] sm:$0xff] %v1568
      %1621 = vst [vmem:[#allocation2 + $0x5d0] sm:$0xff] %v1569
      %1622 = vst [vmem:[#allocation2 + $0x5d8] sm:$0xff] %v1570
      %1623 = vst [vmem:[#allocation2 + $0x5e0] sm:$0xff] %v1571
      %1624 = vst [vmem:[#allocation2 + $0x5e8] sm:$0xff] %v1572
      %1625 = vst [vmem:[#allocation2 + $0x5f0] sm:$0xff] %v1573
      %1626 = vst [vmem:[#allocation2 + $0x5f8] sm:$0xff] %v1574
      %1627 = vst [vmem:[#allocation2 + $0x600] sm:$0xff] %v1575
      %1628 = vst [vmem:[#allocation2 + $0x608] sm:$0xff] %v1576
      %1629 = vst [vmem:[#allocation2 + $0x610] sm:$0xff] %v1577
      %1630 = vst [vmem:[#allocation2 + $0x618] sm:$0xff] %v1578
      %1631 = vst [vmem:[#allocation2 + $0x620] sm:$0xff] %v1579
      %1632 = vst [vmem:[#allocation2 + $0x628] sm:$0xff] %v1580
      %1633 = vst [vmem:[#allocation2 + $0x630] sm:$0xff] %v1581
      %1634 = vst [vmem:[#allocation2 + $0x638] sm:$0xff] %v1582
      %1635 = vst [vmem:[#allocation2 + $0x640] sm:$0xff] %v1583
      %1636 = vst [vmem:[#allocation2 + $0x648] sm:$0xff] %v1584
      %1637 = vst [vmem:[#allocation2 + $0x650] sm:$0xff] %v1585
      %1638 = vst [vmem:[#allocation2 + $0x658] sm:$0xff] %v1586
      %1639 = vst [vmem:[#allocation2 + $0x660] sm:$0xff] %v1587
      %1640 = vst [vmem:[#allocation2 + $0x668] sm:$0xff] %v1588
      %1641 = vst [vmem:[#allocation2 + $0x670] sm:$0xff] %v1589
      %1642 = vst [vmem:[#allocation2 + $0x678] sm:$0xff] %v1590
      %v1643 = vld [vmem:[%s165] sm:$0xff]
      %v1644 = vld [vmem:[%s165 + $0x8] sm:$0xff]
      %v1645 = vld [vmem:[%s165 + $0x10] sm:$0xff]
      %v1646 = vld [vmem:[%s165 + $0x18] sm:$0xff]
      %v1647 = vld [vmem:[%s165 + $0x20] sm:$0xff]
      %v1648 = vld [vmem:[%s165 + $0x28] sm:$0xff]
      %v1649 = vld [vmem:[%s165 + $0x30] sm:$0xff]
      %v1650 = vld [vmem:[%s165 + $0x38] sm:$0xff]
      %v1651 = vld [vmem:[%s165 + $0x40] sm:$0xff]
      %v1652 = vld [vmem:[%s165 + $0x48] sm:$0xff]
      %v1653 = vld [vmem:[%s165 + $0x50] sm:$0xff]
      %v1654 = vld [vmem:[%s165 + $0x58] sm:$0xff]
      %v1655 = vld [vmem:[%s165 + $0x60] sm:$0xff]
      %v1656 = vld [vmem:[%s165 + $0x68] sm:$0xf]
      %v1657 = vunpack.c.l.bf16 %v1643
      %v1658 = vunpack.c.h.bf16 %v1643
      %v1659 = vunpack.c.l.bf16 %v1644
      %v1660 = vunpack.c.h.bf16 %v1644
      %v1661 = vunpack.c.l.bf16 %v1645
      %v1662 = vunpack.c.h.bf16 %v1645
      %v1663 = vunpack.c.l.bf16 %v1646
      %v1664 = vunpack.c.h.bf16 %v1646
      %v1665 = vunpack.c.l.bf16 %v1647
      %v1666 = vunpack.c.h.bf16 %v1647
      %v1667 = vunpack.c.l.bf16 %v1648
      %v1668 = vunpack.c.h.bf16 %v1648
      %v1669 = vunpack.c.l.bf16 %v1649
      %v1670 = vunpack.c.h.bf16 %v1649
      %v1671 = vunpack.c.l.bf16 %v1650
      %v1672 = vunpack.c.h.bf16 %v1650
      %v1673 = vunpack.c.l.bf16 %v1651
      %v1674 = vunpack.c.h.bf16 %v1651
      %v1675 = vunpack.c.l.bf16 %v1652
      %v1676 = vunpack.c.h.bf16 %v1652
      %v1677 = vunpack.c.l.bf16 %v1653
      %v1678 = vunpack.c.h.bf16 %v1653
      %v1679 = vunpack.c.l.bf16 %v1654
      %v1680 = vunpack.c.h.bf16 %v1654
      %v1681 = vunpack.c.l.bf16 %v1655
      %v1682 = vunpack.c.h.bf16 %v1655
      %v1683 = vunpack.c.l.bf16 %v1656
      %1711 = vrot.lane.b32.xlu0 %v1657, 90
      %v1712 = vpop.permute.xlu0 %1711
      %1713 = vrot.lane.b32.xlu0 %v1658, 90
      %v1714 = vpop.permute.xlu0 %1713
      %1715 = vrot.lane.b32.xlu0 %v1659, 90
      %v1716 = vpop.permute.xlu0 %1715
      %1717 = vrot.lane.b32.xlu0 %v1660, 90
      %v1718 = vpop.permute.xlu0 %1717
      %1719 = vrot.lane.b32.xlu0 %v1661, 90
      %v1720 = vpop.permute.xlu0 %1719
      %1721 = vrot.lane.b32.xlu0 %v1662, 90
      %v1722 = vpop.permute.xlu0 %1721
      %1723 = vrot.lane.b32.xlu0 %v1663, 90
      %v1724 = vpop.permute.xlu0 %1723
      %1725 = vrot.lane.b32.xlu0 %v1664, 90
      %v1726 = vpop.permute.xlu0 %1725
      %1727 = vrot.lane.b32.xlu0 %v1665, 90
      %v1728 = vpop.permute.xlu0 %1727
      %1729 = vrot.lane.b32.xlu0 %v1666, 90
      %v1730 = vpop.permute.xlu0 %1729
      %1731 = vrot.lane.b32.xlu0 %v1667, 90
      %v1732 = vpop.permute.xlu0 %1731
      %1733 = vrot.lane.b32.xlu0 %v1668, 90
      %v1734 = vpop.permute.xlu0 %1733
      %1735 = vrot.lane.b32.xlu0 %v1669, 90
      %v1736 = vpop.permute.xlu0 %1735
      %1737 = vrot.lane.b32.xlu0 %v1670, 90
      %v1738 = vpop.permute.xlu0 %1737
      %1739 = vrot.lane.b32.xlu0 %v1671, 90
      %v1740 = vpop.permute.xlu0 %1739
      %1741 = vrot.lane.b32.xlu0 %v1672, 90
      %v1742 = vpop.permute.xlu0 %1741
      %1743 = vrot.lane.b32.xlu0 %v1673, 90
      %v1744 = vpop.permute.xlu0 %1743
      %1745 = vrot.lane.b32.xlu0 %v1674, 90
      %v1746 = vpop.permute.xlu0 %1745
      %1747 = vrot.lane.b32.xlu0 %v1675, 90
      %v1748 = vpop.permute.xlu0 %1747
      %1749 = vrot.lane.b32.xlu0 %v1676, 90
      %v1750 = vpop.permute.xlu0 %1749
      %1751 = vrot.lane.b32.xlu0 %v1677, 90
      %v1752 = vpop.permute.xlu0 %1751
      %1753 = vrot.lane.b32.xlu0 %v1678, 90
      %v1754 = vpop.permute.xlu0 %1753
      %1755 = vrot.lane.b32.xlu0 %v1679, 90
      %v1756 = vpop.permute.xlu0 %1755
      %1757 = vrot.lane.b32.xlu0 %v1680, 90
      %v1758 = vpop.permute.xlu0 %1757
      %1759 = vrot.lane.b32.xlu0 %v1681, 90
      %v1760 = vpop.permute.xlu0 %1759
      %1761 = vrot.lane.b32.xlu0 %v1682, 90
      %v1762 = vpop.permute.xlu0 %1761
      %1763 = vrot.lane.b32.xlu0 %v1683, 90
      %v1764 = vpop.permute.xlu0 %1763
      %vm1765 = vcmask 736256
      %v1766 = vsel %vm1765, %v1712, %v1714
      %v1767 = vsel %vm1765, %v1714, %v1716
      %v1768 = vsel %vm1765, %v1716, %v1718
      %v1769 = vsel %vm1765, %v1718, %v1720
      %v1770 = vsel %vm1765, %v1720, %v1722
      %v1771 = vsel %vm1765, %v1722, %v1724
      %v1772 = vsel %vm1765, %v1724, %v1726
      %v1773 = vsel %vm1765, %v1726, %v1728
      %v1774 = vsel %vm1765, %v1728, %v1730
      %v1775 = vsel %vm1765, %v1730, %v1732
      %v1776 = vsel %vm1765, %v1732, %v1734
      %v1777 = vsel %vm1765, %v1734, %v1736
      %v1778 = vsel %vm1765, %v1736, %v1738
      %v1779 = vsel %vm1765, %v1738, %v1740
      %v1780 = vsel %vm1765, %v1740, %v1742
      %v1781 = vsel %vm1765, %v1742, %v1744
      %v1782 = vsel %vm1765, %v1744, %v1746
      %v1783 = vsel %vm1765, %v1746, %v1748
      %v1784 = vsel %vm1765, %v1748, %v1750
      %v1785 = vsel %vm1765, %v1750, %v1752
      %v1786 = vsel %vm1765, %v1752, %v1754
      %v1787 = vsel %vm1765, %v1754, %v1756
      %v1788 = vsel %vm1765, %v1756, %v1758
      %v1789 = vsel %vm1765, %v1758, %v1760
      %v1790 = vsel %vm1765, %v1760, %v1762
      %v1791 = vsel %vm1765, %v1762, %v1764
      %1818 = vst [vmem:[#allocation2 + $0x680] sm:$0xff] %v1766
      %1819 = vst [vmem:[#allocation2 + $0x688] sm:$0xff] %v1767
      %1820 = vst [vmem:[#allocation2 + $0x690] sm:$0xff] %v1768
      %1821 = vst [vmem:[#allocation2 + $0x698] sm:$0xff] %v1769
      %1822 = vst [vmem:[#allocation2 + $0x6a0] sm:$0xff] %v1770
      %1823 = vst [vmem:[#allocation2 + $0x6a8] sm:$0xff] %v1771
      %1824 = vst [vmem:[#allocation2 + $0x6b0] sm:$0xff] %v1772
      %1825 = vst [vmem:[#allocation2 + $0x6b8] sm:$0xff] %v1773
      %1826 = vst [vmem:[#allocation2 + $0x6c0] sm:$0xff] %v1774
      %1827 = vst [vmem:[#allocation2 + $0x6c8] sm:$0xff] %v1775
      %1828 = vst [vmem:[#allocation2 + $0x6d0] sm:$0xff] %v1776
      %1829 = vst [vmem:[#allocation2 + $0x6d8] sm:$0xff] %v1777
      %1830 = vst [vmem:[#allocation2 + $0x6e0] sm:$0xff] %v1778
      %1831 = vst [vmem:[#allocation2 + $0x6e8] sm:$0xff] %v1779
      %1832 = vst [vmem:[#allocation2 + $0x6f0] sm:$0xff] %v1780
      %1833 = vst [vmem:[#allocation2 + $0x6f8] sm:$0xff] %v1781
      %1834 = vst [vmem:[#allocation2 + $0x700] sm:$0xff] %v1782
      %1835 = vst [vmem:[#allocation2 + $0x708] sm:$0xff] %v1783
      %1836 = vst [vmem:[#allocation2 + $0x710] sm:$0xff] %v1784
      %1837 = vst [vmem:[#allocation2 + $0x718] sm:$0xff] %v1785
      %1838 = vst [vmem:[#allocation2 + $0x720] sm:$0xff] %v1786
      %1839 = vst [vmem:[#allocation2 + $0x728] sm:$0xff] %v1787
      %1840 = vst [vmem:[#allocation2 + $0x730] sm:$0xff] %v1788
      %1841 = vst [vmem:[#allocation2 + $0x738] sm:$0xff] %v1789
      %1842 = vst [vmem:[#allocation2 + $0x740] sm:$0xff] %v1790
      %1843 = vst [vmem:[#allocation2 + $0x748] sm:$0xff] %v1791
      %v1844 = vld [vmem:[%s165 + $0x8] sm:$0xff]
      %v1845 = vld [vmem:[%s165 + $0x10] sm:$0xff]
      %v1846 = vld [vmem:[%s165 + $0x18] sm:$0xff]
      %v1847 = vld [vmem:[%s165 + $0x20] sm:$0xff]
      %v1848 = vld [vmem:[%s165 + $0x28] sm:$0xff]
      %v1849 = vld [vmem:[%s165 + $0x30] sm:$0xff]
      %v1850 = vld [vmem:[%s165 + $0x38] sm:$0xff]
      %v1851 = vld [vmem:[%s165 + $0x40] sm:$0xff]
      %v1852 = vld [vmem:[%s165 + $0x48] sm:$0xff]
      %v1853 = vld [vmem:[%s165 + $0x50] sm:$0xff]
      %v1854 = vld [vmem:[%s165 + $0x58] sm:$0xff]
      %v1855 = vld [vmem:[%s165 + $0x60] sm:$0xff]
      %v1856 = vld [vmem:[%s165 + $0x68] sm:$0xff]
      %v1857 = vld [vmem:[%s165 + $0x70] sm:$0xf]
      %v1858 = vunpack.c.l.bf16 %v1844
      %v1859 = vunpack.c.h.bf16 %v1844
      %v1860 = vunpack.c.l.bf16 %v1845
      %v1861 = vunpack.c.h.bf16 %v1845
      %v1862 = vunpack.c.l.bf16 %v1846
      %v1863 = vunpack.c.h.bf16 %v1846
      %v1864 = vunpack.c.l.bf16 %v1847
      %v1865 = vunpack.c.h.bf16 %v1847
      %v1866 = vunpack.c.l.bf16 %v1848
      %v1867 = vunpack.c.h.bf16 %v1848
      %v1868 = vunpack.c.l.bf16 %v1849
      %v1869 = vunpack.c.h.bf16 %v1849
      %v1870 = vunpack.c.l.bf16 %v1850
      %v1871 = vunpack.c.h.bf16 %v1850
      %v1872 = vunpack.c.l.bf16 %v1851
      %v1873 = vunpack.c.h.bf16 %v1851
      %v1874 = vunpack.c.l.bf16 %v1852
      %v1875 = vunpack.c.h.bf16 %v1852
      %v1876 = vunpack.c.l.bf16 %v1853
      %v1877 = vunpack.c.h.bf16 %v1853
      %v1878 = vunpack.c.l.bf16 %v1854
      %v1879 = vunpack.c.h.bf16 %v1854
      %v1880 = vunpack.c.l.bf16 %v1855
      %v1881 = vunpack.c.h.bf16 %v1855
      %v1882 = vunpack.c.l.bf16 %v1856
      %v1883 = vunpack.c.h.bf16 %v1856
      %v1884 = vunpack.c.l.bf16 %v1857
      %1912 = vrot.lane.b32.xlu0 %v1858, 60
      %v1913 = vpop.permute.xlu0 %1912
      %1914 = vrot.lane.b32.xlu0 %v1859, 60
      %v1915 = vpop.permute.xlu0 %1914
      %1916 = vrot.lane.b32.xlu0 %v1860, 60
      %v1917 = vpop.permute.xlu0 %1916
      %1918 = vrot.lane.b32.xlu0 %v1861, 60
      %v1919 = vpop.permute.xlu0 %1918
      %1920 = vrot.lane.b32.xlu0 %v1862, 60
      %v1921 = vpop.permute.xlu0 %1920
      %1922 = vrot.lane.b32.xlu0 %v1863, 60
      %v1923 = vpop.permute.xlu0 %1922
      %1924 = vrot.lane.b32.xlu0 %v1864, 60
      %v1925 = vpop.permute.xlu0 %1924
      %1926 = vrot.lane.b32.xlu0 %v1865, 60
      %v1927 = vpop.permute.xlu0 %1926
      %1928 = vrot.lane.b32.xlu0 %v1866, 60
      %v1929 = vpop.permute.xlu0 %1928
      %1930 = vrot.lane.b32.xlu0 %v1867, 60
      %v1931 = vpop.permute.xlu0 %1930
      %1932 = vrot.lane.b32.xlu0 %v1868, 60
      %v1933 = vpop.permute.xlu0 %1932
      %1934 = vrot.lane.b32.xlu0 %v1869, 60
      %v1935 = vpop.permute.xlu0 %1934
      %1936 = vrot.lane.b32.xlu0 %v1870, 60
      %v1937 = vpop.permute.xlu0 %1936
      %1938 = vrot.lane.b32.xlu0 %v1871, 60
      %v1939 = vpop.permute.xlu0 %1938
      %1940 = vrot.lane.b32.xlu0 %v1872, 60
      %v1941 = vpop.permute.xlu0 %1940
      %1942 = vrot.lane.b32.xlu0 %v1873, 60
      %v1943 = vpop.permute.xlu0 %1942
      %1944 = vrot.lane.b32.xlu0 %v1874, 60
      %v1945 = vpop.permute.xlu0 %1944
      %1946 = vrot.lane.b32.xlu0 %v1875, 60
      %v1947 = vpop.permute.xlu0 %1946
      %1948 = vrot.lane.b32.xlu0 %v1876, 60
      %v1949 = vpop.permute.xlu0 %1948
      %1950 = vrot.lane.b32.xlu0 %v1877, 60
      %v1951 = vpop.permute.xlu0 %1950
      %1952 = vrot.lane.b32.xlu0 %v1878, 60
      %v1953 = vpop.permute.xlu0 %1952
      %1954 = vrot.lane.b32.xlu0 %v1879, 60
      %v1955 = vpop.permute.xlu0 %1954
      %1956 = vrot.lane.b32.xlu0 %v1880, 60
      %v1957 = vpop.permute.xlu0 %1956
      %1958 = vrot.lane.b32.xlu0 %v1881, 60
      %v1959 = vpop.permute.xlu0 %1958
      %1960 = vrot.lane.b32.xlu0 %v1882, 60
      %v1961 = vpop.permute.xlu0 %1960
      %1962 = vrot.lane.b32.xlu0 %v1883, 60
      %v1963 = vpop.permute.xlu0 %1962
      %1964 = vrot.lane.b32.xlu0 %v1884, 60
      %v1965 = vpop.permute.xlu0 %1964
      %vm1966 = vcmask 490496
      %v1967 = vsel %vm1966, %v1913, %v1915
      %v1968 = vsel %vm1966, %v1915, %v1917
      %v1969 = vsel %vm1966, %v1917, %v1919
      %v1970 = vsel %vm1966, %v1919, %v1921
      %v1971 = vsel %vm1966, %v1921, %v1923
      %v1972 = vsel %vm1966, %v1923, %v1925
      %v1973 = vsel %vm1966, %v1925, %v1927
      %v1974 = vsel %vm1966, %v1927, %v1929
      %v1975 = vsel %vm1966, %v1929, %v1931
      %v1976 = vsel %vm1966, %v1931, %v1933
      %v1977 = vsel %vm1966, %v1933, %v1935
      %v1978 = vsel %vm1966, %v1935, %v1937
      %v1979 = vsel %vm1966, %v1937, %v1939
      %v1980 = vsel %vm1966, %v1939, %v1941
      %v1981 = vsel %vm1966, %v1941, %v1943
      %v1982 = vsel %vm1966, %v1943, %v1945
      %v1983 = vsel %vm1966, %v1945, %v1947
      %v1984 = vsel %vm1966, %v1947, %v1949
      %v1985 = vsel %vm1966, %v1949, %v1951
      %v1986 = vsel %vm1966, %v1951, %v1953
      %v1987 = vsel %vm1966, %v1953, %v1955
      %v1988 = vsel %vm1966, %v1955, %v1957
      %v1989 = vsel %vm1966, %v1957, %v1959
      %v1990 = vsel %vm1966, %v1959, %v1961
      %v1991 = vsel %vm1966, %v1961, %v1963
      %v1992 = vsel %vm1966, %v1963, %v1965
      %2019 = vst [vmem:[#allocation2 + $0x750] sm:$0xff] %v1967
      %2020 = vst [vmem:[#allocation2 + $0x758] sm:$0xff] %v1968
      %2021 = vst [vmem:[#allocation2 + $0x760] sm:$0xff] %v1969
      %2022 = vst [vmem:[#allocation2 + $0x768] sm:$0xff] %v1970
      %2023 = vst [vmem:[#allocation2 + $0x770] sm:$0xff] %v1971
      %2024 = vst [vmem:[#allocation2 + $0x778] sm:$0xff] %v1972
      %2025 = vst [vmem:[#allocation2 + $0x780] sm:$0xff] %v1973
      %2026 = vst [vmem:[#allocation2 + $0x788] sm:$0xff] %v1974
      %2027 = vst [vmem:[#allocation2 + $0x790] sm:$0xff] %v1975
      %2028 = vst [vmem:[#allocation2 + $0x798] sm:$0xff] %v1976
      %2029 = vst [vmem:[#allocation2 + $0x7a0] sm:$0xff] %v1977
      %2030 = vst [vmem:[#allocation2 + $0x7a8] sm:$0xff] %v1978
      %2031 = vst [vmem:[#allocation2 + $0x7b0] sm:$0xff] %v1979
      %2032 = vst [vmem:[#allocation2 + $0x7b8] sm:$0xff] %v1980
      %2033 = vst [vmem:[#allocation2 + $0x7c0] sm:$0xff] %v1981
      %2034 = vst [vmem:[#allocation2 + $0x7c8] sm:$0xff] %v1982
      %2035 = vst [vmem:[#allocation2 + $0x7d0] sm:$0xff] %v1983
      %2036 = vst [vmem:[#allocation2 + $0x7d8] sm:$0xff] %v1984
      %2037 = vst [vmem:[#allocation2 + $0x7e0] sm:$0xff] %v1985
      %2038 = vst [vmem:[#allocation2 + $0x7e8] sm:$0xff] %v1986
      %2039 = vst [vmem:[#allocation2 + $0x7f0] sm:$0xff] %v1987
      %2040 = vst [vmem:[#allocation2 + $0x7f8] sm:$0xff] %v1988
      %2041 = vst [vmem:[#allocation2 + $0x800] sm:$0xff] %v1989
      %2042 = vst [vmem:[#allocation2 + $0x808] sm:$0xff] %v1990
      %2043 = vst [vmem:[#allocation2 + $0x810] sm:$0xff] %v1991
      %2044 = vst [vmem:[#allocation2 + $0x818] sm:$0xff] %v1992
      %v2045 = vld [vmem:[%s165 + $0x8] sm:$0xff]
      %v2046 = vld [vmem:[%s165 + $0x10] sm:$0xff]
      %v2047 = vld [vmem:[%s165 + $0x18] sm:$0xff]
      %v2048 = vld [vmem:[%s165 + $0x20] sm:$0xff]
      %v2049 = vld [vmem:[%s165 + $0x28] sm:$0xff]
      %v2050 = vld [vmem:[%s165 + $0x30] sm:$0xff]
      %v2051 = vld [vmem:[%s165 + $0x38] sm:$0xff]
      %v2052 = vld [vmem:[%s165 + $0x40] sm:$0xff]
      %v2053 = vld [vmem:[%s165 + $0x48] sm:$0xff]
      %v2054 = vld [vmem:[%s165 + $0x50] sm:$0xff]
      %v2055 = vld [vmem:[%s165 + $0x58] sm:$0xff]
      %v2056 = vld [vmem:[%s165 + $0x60] sm:$0xff]
      %v2057 = vld [vmem:[%s165 + $0x68] sm:$0xff]
      %v2058 = vld [vmem:[%s165 + $0x70] sm:$0xf]
      %v2059 = vunpack.c.l.bf16 %v2045
      %v2060 = vunpack.c.h.bf16 %v2045
      %v2061 = vunpack.c.l.bf16 %v2046
      %v2062 = vunpack.c.h.bf16 %v2046
      %v2063 = vunpack.c.l.bf16 %v2047
      %v2064 = vunpack.c.h.bf16 %v2047
      %v2065 = vunpack.c.l.bf16 %v2048
      %v2066 = vunpack.c.h.bf16 %v2048
      %v2067 = vunpack.c.l.bf16 %v2049
      %v2068 = vunpack.c.h.bf16 %v2049
      %v2069 = vunpack.c.l.bf16 %v2050
      %v2070 = vunpack.c.h.bf16 %v2050
      %v2071 = vunpack.c.l.bf16 %v2051
      %v2072 = vunpack.c.h.bf16 %v2051
      %v2073 = vunpack.c.l.bf16 %v2052
      %v2074 = vunpack.c.h.bf16 %v2052
      %v2075 = vunpack.c.l.bf16 %v2053
      %v2076 = vunpack.c.h.bf16 %v2053
      %v2077 = vunpack.c.l.bf16 %v2054
      %v2078 = vunpack.c.h.bf16 %v2054
      %v2079 = vunpack.c.l.bf16 %v2055
      %v2080 = vunpack.c.h.bf16 %v2055
      %v2081 = vunpack.c.l.bf16 %v2056
      %v2082 = vunpack.c.h.bf16 %v2056
      %v2083 = vunpack.c.l.bf16 %v2057
      %v2084 = vunpack.c.h.bf16 %v2057
      %v2085 = vunpack.c.l.bf16 %v2058
      %2113 = vrot.lane.b32.xlu0 %v2059, 59
      %v2114 = vpop.permute.xlu0 %2113
      %2115 = vrot.lane.b32.xlu0 %v2060, 59
      %v2116 = vpop.permute.xlu0 %2115
      %2117 = vrot.lane.b32.xlu0 %v2061, 59
      %v2118 = vpop.permute.xlu0 %2117
      %2119 = vrot.lane.b32.xlu0 %v2062, 59
      %v2120 = vpop.permute.xlu0 %2119
      %2121 = vrot.lane.b32.xlu0 %v2063, 59
      %v2122 = vpop.permute.xlu0 %2121
      %2123 = vrot.lane.b32.xlu0 %v2064, 59
      %v2124 = vpop.permute.xlu0 %2123
      %2125 = vrot.lane.b32.xlu0 %v2065, 59
      %v2126 = vpop.permute.xlu0 %2125
      %2127 = vrot.lane.b32.xlu0 %v2066, 59
      %v2128 = vpop.permute.xlu0 %2127
      %2129 = vrot.lane.b32.xlu0 %v2067, 59
      %v2130 = vpop.permute.xlu0 %2129
      %2131 = vrot.lane.b32.xlu0 %v2068, 59
      %v2132 = vpop.permute.xlu0 %2131
      %2133 = vrot.lane.b32.xlu0 %v2069, 59
      %v2134 = vpop.permute.xlu0 %2133
      %2135 = vrot.lane.b32.xlu0 %v2070, 59
      %v2136 = vpop.permute.xlu0 %2135
      %2137 = vrot.lane.b32.xlu0 %v2071, 59
      %v2138 = vpop.permute.xlu0 %2137
      %2139 = vrot.lane.b32.xlu0 %v2072, 59
      %v2140 = vpop.permute.xlu0 %2139
      %2141 = vrot.lane.b32.xlu0 %v2073, 59
      %v2142 = vpop.permute.xlu0 %2141
      %2143 = vrot.lane.b32.xlu0 %v2074, 59
      %v2144 = vpop.permute.xlu0 %2143
      %2145 = vrot.lane.b32.xlu0 %v2075, 59
      %v2146 = vpop.permute.xlu0 %2145
      %2147 = vrot.lane.b32.xlu0 %v2076, 59
      %v2148 = vpop.permute.xlu0 %2147
      %2149 = vrot.lane.b32.xlu0 %v2077, 59
      %v2150 = vpop.permute.xlu0 %2149
      %2151 = vrot.lane.b32.xlu0 %v2078, 59
      %v2152 = vpop.permute.xlu0 %2151
      %2153 = vrot.lane.b32.xlu0 %v2079, 59
      %v2154 = vpop.permute.xlu0 %2153
      %2155 = vrot.lane.b32.xlu0 %v2080, 59
      %v2156 = vpop.permute.xlu0 %2155
      %2157 = vrot.lane.b32.xlu0 %v2081, 59
      %v2158 = vpop.permute.xlu0 %2157
      %2159 = vrot.lane.b32.xlu0 %v2082, 59
      %v2160 = vpop.permute.xlu0 %2159
      %2161 = vrot.lane.b32.xlu0 %v2083, 59
      %v2162 = vpop.permute.xlu0 %2161
      %2163 = vrot.lane.b32.xlu0 %v2084, 59
      %v2164 = vpop.permute.xlu0 %2163
      %2165 = vrot.lane.b32.xlu0 %v2085, 59
      %v2166 = vpop.permute.xlu0 %2165
      %vm2167 = vcmask 482304
      %v2168 = vsel %vm2167, %v2114, %v2116
      %v2169 = vsel %vm2167, %v2116, %v2118
      %v2170 = vsel %vm2167, %v2118, %v2120
      %v2171 = vsel %vm2167, %v2120, %v2122
      %v2172 = vsel %vm2167, %v2122, %v2124
      %v2173 = vsel %vm2167, %v2124, %v2126
      %v2174 = vsel %vm2167, %v2126, %v2128
      %v2175 = vsel %vm2167, %v2128, %v2130
      %v2176 = vsel %vm2167, %v2130, %v2132
      %v2177 = vsel %vm2167, %v2132, %v2134
      %v2178 = vsel %vm2167, %v2134, %v2136
      %v2179 = vsel %vm2167, %v2136, %v2138
      %v2180 = vsel %vm2167, %v2138, %v2140
      %v2181 = vsel %vm2167, %v2140, %v2142
      %v2182 = vsel %vm2167, %v2142, %v2144
      %v2183 = vsel %vm2167, %v2144, %v2146
      %v2184 = vsel %vm2167, %v2146, %v2148
      %v2185 = vsel %vm2167, %v2148, %v2150
      %v2186 = vsel %vm2167, %v2150, %v2152
      %v2187 = vsel %vm2167, %v2152, %v2154
      %v2188 = vsel %vm2167, %v2154, %v2156
      %v2189 = vsel %vm2167, %v2156, %v2158
      %v2190 = vsel %vm2167, %v2158, %v2160
      %v2191 = vsel %vm2167, %v2160, %v2162
      %v2192 = vsel %vm2167, %v2162, %v2164
      %v2193 = vsel %vm2167, %v2164, %v2166
      %2220 = vst [vmem:[#allocation2 + $0x820] sm:$0xff] %v2168
      %2221 = vst [vmem:[#allocation2 + $0x828] sm:$0xff] %v2169
      %2222 = vst [vmem:[#allocation2 + $0x830] sm:$0xff] %v2170
      %2223 = vst [vmem:[#allocation2 + $0x838] sm:$0xff] %v2171
      %2224 = vst [vmem:[#allocation2 + $0x840] sm:$0xff] %v2172
      %2225 = vst [vmem:[#allocation2 + $0x848] sm:$0xff] %v2173
      %2226 = vst [vmem:[#allocation2 + $0x850] sm:$0xff] %v2174
      %2227 = vst [vmem:[#allocation2 + $0x858] sm:$0xff] %v2175
      %2228 = vst [vmem:[#allocation2 + $0x860] sm:$0xff] %v2176
      %2229 = vst [vmem:[#allocation2 + $0x868] sm:$0xff] %v2177
      %2230 = vst [vmem:[#allocation2 + $0x870] sm:$0xff] %v2178
      %2231 = vst [vmem:[#allocation2 + $0x878] sm:$0xff] %v2179
      %2232 = vst [vmem:[#allocation2 + $0x880] sm:$0xff] %v2180
      %2233 = vst [vmem:[#allocation2 + $0x888] sm:$0xff] %v2181
      %2234 = vst [vmem:[#allocation2 + $0x890] sm:$0xff] %v2182
      %2235 = vst [vmem:[#allocation2 + $0x898] sm:$0xff] %v2183
      %2236 = vst [vmem:[#allocation2 + $0x8a0] sm:$0xff] %v2184
      %2237 = vst [vmem:[#allocation2 + $0x8a8] sm:$0xff] %v2185
      %2238 = vst [vmem:[#allocation2 + $0x8b0] sm:$0xff] %v2186
      %2239 = vst [vmem:[#allocation2 + $0x8b8] sm:$0xff] %v2187
      %2240 = vst [vmem:[#allocation2 + $0x8c0] sm:$0xff] %v2188
      %2241 = vst [vmem:[#allocation2 + $0x8c8] sm:$0xff] %v2189
      %2242 = vst [vmem:[#allocation2 + $0x8d0] sm:$0xff] %v2190
      %2243 = vst [vmem:[#allocation2 + $0x8d8] sm:$0xff] %v2191
      %2244 = vst [vmem:[#allocation2 + $0x8e0] sm:$0xff] %v2192
      %2245 = vst [vmem:[#allocation2 + $0x8e8] sm:$0xff] %v2193
      %v2246 = vld [vmem:[%s165 + $0x8] sm:$0xff]
      %v2247 = vld [vmem:[%s165 + $0x10] sm:$0xff]
      %v2248 = vld [vmem:[%s165 + $0x18] sm:$0xff]
      %v2249 = vld [vmem:[%s165 + $0x20] sm:$0xff]
      %v2250 = vld [vmem:[%s165 + $0x28] sm:$0xff]
      %v2251 = vld [vmem:[%s165 + $0x30] sm:$0xff]
      %v2252 = vld [vmem:[%s165 + $0x38] sm:$0xff]
      %v2253 = vld [vmem:[%s165 + $0x40] sm:$0xff]
      %v2254 = vld [vmem:[%s165 + $0x48] sm:$0xff]
      %v2255 = vld [vmem:[%s165 + $0x50] sm:$0xff]
      %v2256 = vld [vmem:[%s165 + $0x58] sm:$0xff]
      %v2257 = vld [vmem:[%s165 + $0x60] sm:$0xff]
      %v2258 = vld [vmem:[%s165 + $0x68] sm:$0xff]
      %v2259 = vld [vmem:[%s165 + $0x70] sm:$0xf]
      %v2260 = vunpack.c.l.bf16 %v2246
      %v2261 = vunpack.c.h.bf16 %v2246
      %v2262 = vunpack.c.l.bf16 %v2247
      %v2263 = vunpack.c.h.bf16 %v2247
      %v2264 = vunpack.c.l.bf16 %v2248
      %v2265 = vunpack.c.h.bf16 %v2248
      %v2266 = vunpack.c.l.bf16 %v2249
      %v2267 = vunpack.c.h.bf16 %v2249
      %v2268 = vunpack.c.l.bf16 %v2250
      %v2269 = vunpack.c.h.bf16 %v2250
      %v2270 = vunpack.c.l.bf16 %v2251
      %v2271 = vunpack.c.h.bf16 %v2251
      %v2272 = vunpack.c.l.bf16 %v2252
      %v2273 = vunpack.c.h.bf16 %v2252
      %v2274 = vunpack.c.l.bf16 %v2253
      %v2275 = vunpack.c.h.bf16 %v2253
      %v2276 = vunpack.c.l.bf16 %v2254
      %v2277 = vunpack.c.h.bf16 %v2254
      %v2278 = vunpack.c.l.bf16 %v2255
      %v2279 = vunpack.c.h.bf16 %v2255
      %v2280 = vunpack.c.l.bf16 %v2256
      %v2281 = vunpack.c.h.bf16 %v2256
      %v2282 = vunpack.c.l.bf16 %v2257
      %v2283 = vunpack.c.h.bf16 %v2257
      %v2284 = vunpack.c.l.bf16 %v2258
      %v2285 = vunpack.c.h.bf16 %v2258
      %v2286 = vunpack.c.l.bf16 %v2259
      %2314 = vrot.lane.b32.xlu0 %v2260, 58
      %v2315 = vpop.permute.xlu0 %2314
      %2316 = vrot.lane.b32.xlu0 %v2261, 58
      %v2317 = vpop.permute.xlu0 %2316
      %2318 = vrot.lane.b32.xlu0 %v2262, 58
      %v2319 = vpop.permute.xlu0 %2318
      %2320 = vrot.lane.b32.xlu0 %v2263, 58
      %v2321 = vpop.permute.xlu0 %2320
      %2322 = vrot.lane.b32.xlu0 %v2264, 58
      %v2323 = vpop.permute.xlu0 %2322
      %2324 = vrot.lane.b32.xlu0 %v2265, 58
      %v2325 = vpop.permute.xlu0 %2324
      %2326 = vrot.lane.b32.xlu0 %v2266, 58
      %v2327 = vpop.permute.xlu0 %2326
      %2328 = vrot.lane.b32.xlu0 %v2267, 58
      %v2329 = vpop.permute.xlu0 %2328
      %2330 = vrot.lane.b32.xlu0 %v2268, 58
      %v2331 = vpop.permute.xlu0 %2330
      %2332 = vrot.lane.b32.xlu0 %v2269, 58
      %v2333 = vpop.permute.xlu0 %2332
      %2334 = vrot.lane.b32.xlu0 %v2270, 58
      %v2335 = vpop.permute.xlu0 %2334
      %2336 = vrot.lane.b32.xlu0 %v2271, 58
      %v2337 = vpop.permute.xlu0 %2336
      %2338 = vrot.lane.b32.xlu0 %v2272, 58
      %v2339 = vpop.permute.xlu0 %2338
      %2340 = vrot.lane.b32.xlu0 %v2273, 58
      %v2341 = vpop.permute.xlu0 %2340
      %2342 = vrot.lane.b32.xlu0 %v2274, 58
      %v2343 = vpop.permute.xlu0 %2342
      %2344 = vrot.lane.b32.xlu0 %v2275, 58
      %v2345 = vpop.permute.xlu0 %2344
      %2346 = vrot.lane.b32.xlu0 %v2276, 58
      %v2347 = vpop.permute.xlu0 %2346
      %2348 = vrot.lane.b32.xlu0 %v2277, 58
      %v2349 = vpop.permute.xlu0 %2348
      %2350 = vrot.lane.b32.xlu0 %v2278, 58
      %v2351 = vpop.permute.xlu0 %2350
      %2352 = vrot.lane.b32.xlu0 %v2279, 58
      %v2353 = vpop.permute.xlu0 %2352
      %2354 = vrot.lane.b32.xlu0 %v2280, 58
      %v2355 = vpop.permute.xlu0 %2354
      %2356 = vrot.lane.b32.xlu0 %v2281, 58
      %v2357 = vpop.permute.xlu0 %2356
      %2358 = vrot.lane.b32.xlu0 %v2282, 58
      %v2359 = vpop.permute.xlu0 %2358
      %2360 = vrot.lane.b32.xlu0 %v2283, 58
      %v2361 = vpop.permute.xlu0 %2360
      %2362 = vrot.lane.b32.xlu0 %v2284, 58
      %v2363 = vpop.permute.xlu0 %2362
      %2364 = vrot.lane.b32.xlu0 %v2285, 58
      %v2365 = vpop.permute.xlu0 %2364
      %2366 = vrot.lane.b32.xlu0 %v2286, 58
      %v2367 = vpop.permute.xlu0 %2366
      %vm2368 = vcmask 474112
      %v2369 = vsel %vm2368, %v2315, %v2317
      %v2370 = vsel %vm2368, %v2317, %v2319
      %v2371 = vsel %vm2368, %v2319, %v2321
      %v2372 = vsel %vm2368, %v2321, %v2323
      %v2373 = vsel %vm2368, %v2323, %v2325
      %v2374 = vsel %vm2368, %v2325, %v2327
      %v2375 = vsel %vm2368, %v2327, %v2329
      %v2376 = vsel %vm2368, %v2329, %v2331
      %v2377 = vsel %vm2368, %v2331, %v2333
      %v2378 = vsel %vm2368, %v2333, %v2335
      %v2379 = vsel %vm2368, %v2335, %v2337
      %v2380 = vsel %vm2368, %v2337, %v2339
      %v2381 = vsel %vm2368, %v2339, %v2341
      %v2382 = vsel %vm2368, %v2341, %v2343
      %v2383 = vsel %vm2368, %v2343, %v2345
      %v2384 = vsel %vm2368, %v2345, %v2347
      %v2385 = vsel %vm2368, %v2347, %v2349
      %v2386 = vsel %vm2368, %v2349, %v2351
      %v2387 = vsel %vm2368, %v2351, %v2353
      %v2388 = vsel %vm2368, %v2353, %v2355
      %v2389 = vsel %vm2368, %v2355, %v2357
      %v2390 = vsel %vm2368, %v2357, %v2359
      %v2391 = vsel %vm2368, %v2359, %v2361
      %v2392 = vsel %vm2368, %v2361, %v2363
      %v2393 = vsel %vm2368, %v2363, %v2365
      %v2394 = vsel %vm2368, %v2365, %v2367
      %2421 = vst [vmem:[#allocation2 + $0x8f0] sm:$0xff] %v2369
      %2422 = vst [vmem:[#allocation2 + $0x8f8] sm:$0xff] %v2370
      %2423 = vst [vmem:[#allocation2 + $0x900] sm:$0xff] %v2371
      %2424 = vst [vmem:[#allocation2 + $0x908] sm:$0xff] %v2372
      %2425 = vst [vmem:[#allocation2 + $0x910] sm:$0xff] %v2373
      %2426 = vst [vmem:[#allocation2 + $0x918] sm:$0xff] %v2374
      %2427 = vst [vmem:[#allocation2 + $0x920] sm:$0xff] %v2375
      %2428 = vst [vmem:[#allocation2 + $0x928] sm:$0xff] %v2376
      %2429 = vst [vmem:[#allocation2 + $0x930] sm:$0xff] %v2377
      %2430 = vst [vmem:[#allocation2 + $0x938] sm:$0xff] %v2378
      %2431 = vst [vmem:[#allocation2 + $0x940] sm:$0xff] %v2379
      %2432 = vst [vmem:[#allocation2 + $0x948] sm:$0xff] %v2380
      %2433 = vst [vmem:[#allocation2 + $0x950] sm:$0xff] %v2381
      %2434 = vst [vmem:[#allocation2 + $0x958] sm:$0xff] %v2382
      %2435 = vst [vmem:[#allocation2 + $0x960] sm:$0xff] %v2383
      %2436 = vst [vmem:[#allocation2 + $0x968] sm:$0xff] %v2384
      %2437 = vst [vmem:[#allocation2 + $0x970] sm:$0xff] %v2385
      %2438 = vst [vmem:[#allocation2 + $0x978] sm:$0xff] %v2386
      %2439 = vst [vmem:[#allocation2 + $0x980] sm:$0xff] %v2387
      %2440 = vst [vmem:[#allocation2 + $0x988] sm:$0xff] %v2388
      %2441 = vst [vmem:[#allocation2 + $0x990] sm:$0xff] %v2389
      %2442 = vst [vmem:[#allocation2 + $0x998] sm:$0xff] %v2390
      %2443 = vst [vmem:[#allocation2 + $0x9a0] sm:$0xff] %v2391
      %2444 = vst [vmem:[#allocation2 + $0x9a8] sm:$0xff] %v2392
      %2445 = vst [vmem:[#allocation2 + $0x9b0] sm:$0xff] %v2393
      %2446 = vst [vmem:[#allocation2 + $0x9b8] sm:$0xff] %v2394
      %v2447 = vld [vmem:[%s165 + $0x8] sm:$0xff]
      %v2448 = vld [vmem:[%s165 + $0x10] sm:$0xff]
      %v2449 = vld [vmem:[%s165 + $0x18] sm:$0xff]
      %v2450 = vld [vmem:[%s165 + $0x20] sm:$0xff]
      %v2451 = vld [vmem:[%s165 + $0x28] sm:$0xff]
      %v2452 = vld [vmem:[%s165 + $0x30] sm:$0xff]
      %v2453 = vld [vmem:[%s165 + $0x38] sm:$0xff]
      %v2454 = vld [vmem:[%s165 + $0x40] sm:$0xff]
      %v2455 = vld [vmem:[%s165 + $0x48] sm:$0xff]
      %v2456 = vld [vmem:[%s165 + $0x50] sm:$0xff]
      %v2457 = vld [vmem:[%s165 + $0x58] sm:$0xff]
      %v2458 = vld [vmem:[%s165 + $0x60] sm:$0xff]
      %v2459 = vld [vmem:[%s165 + $0x68] sm:$0xff]
      %v2460 = vld [vmem:[%s165 + $0x70] sm:$0xf]
      %v2461 = vunpack.c.l.bf16 %v2447
      %v2462 = vunpack.c.h.bf16 %v2447
      %v2463 = vunpack.c.l.bf16 %v2448
      %v2464 = vunpack.c.h.bf16 %v2448
      %v2465 = vunpack.c.l.bf16 %v2449
      %v2466 = vunpack.c.h.bf16 %v2449
      %v2467 = vunpack.c.l.bf16 %v2450
      %v2468 = vunpack.c.h.bf16 %v2450
      %v2469 = vunpack.c.l.bf16 %v2451
      %v2470 = vunpack.c.h.bf16 %v2451
      %v2471 = vunpack.c.l.bf16 %v2452
      %v2472 = vunpack.c.h.bf16 %v2452
      %v2473 = vunpack.c.l.bf16 %v2453
      %v2474 = vunpack.c.h.bf16 %v2453
      %v2475 = vunpack.c.l.bf16 %v2454
      %v2476 = vunpack.c.h.bf16 %v2454
      %v2477 = vunpack.c.l.bf16 %v2455
      %v2478 = vunpack.c.h.bf16 %v2455
      %v2479 = vunpack.c.l.bf16 %v2456
      %v2480 = vunpack.c.h.bf16 %v2456
      %v2481 = vunpack.c.l.bf16 %v2457
      %v2482 = vunpack.c.h.bf16 %v2457
      %v2483 = vunpack.c.l.bf16 %v2458
      %v2484 = vunpack.c.h.bf16 %v2458
      %v2485 = vunpack.c.l.bf16 %v2459
      %v2486 = vunpack.c.h.bf16 %v2459
      %v2487 = vunpack.c.l.bf16 %v2460
      %2515 = vrot.lane.b32.xlu0 %v2461, 42
      %v2516 = vpop.permute.xlu0 %2515
      %2517 = vrot.lane.b32.xlu0 %v2462, 42
      %v2518 = vpop.permute.xlu0 %2517
      %2519 = vrot.lane.b32.xlu0 %v2463, 42
      %v2520 = vpop.permute.xlu0 %2519
      %2521 = vrot.lane.b32.xlu0 %v2464, 42
      %v2522 = vpop.permute.xlu0 %2521
      %2523 = vrot.lane.b32.xlu0 %v2465, 42
      %v2524 = vpop.permute.xlu0 %2523
      %2525 = vrot.lane.b32.xlu0 %v2466, 42
      %v2526 = vpop.permute.xlu0 %2525
      %2527 = vrot.lane.b32.xlu0 %v2467, 42
      %v2528 = vpop.permute.xlu0 %2527
      %2529 = vrot.lane.b32.xlu0 %v2468, 42
      %v2530 = vpop.permute.xlu0 %2529
      %2531 = vrot.lane.b32.xlu0 %v2469, 42
      %v2532 = vpop.permute.xlu0 %2531
      %2533 = vrot.lane.b32.xlu0 %v2470, 42
      %v2534 = vpop.permute.xlu0 %2533
      %2535 = vrot.lane.b32.xlu0 %v2471, 42
      %v2536 = vpop.permute.xlu0 %2535
      %2537 = vrot.lane.b32.xlu0 %v2472, 42
      %v2538 = vpop.permute.xlu0 %2537
      %2539 = vrot.lane.b32.xlu0 %v2473, 42
      %v2540 = vpop.permute.xlu0 %2539
      %2541 = vrot.lane.b32.xlu0 %v2474, 42
      %v2542 = vpop.permute.xlu0 %2541
      %2543 = vrot.lane.b32.xlu0 %v2475, 42
      %v2544 = vpop.permute.xlu0 %2543
      %2545 = vrot.lane.b32.xlu0 %v2476, 42
      %v2546 = vpop.permute.xlu0 %2545
      %2547 = vrot.lane.b32.xlu0 %v2477, 42
      %v2548 = vpop.permute.xlu0 %2547
      %2549 = vrot.lane.b32.xlu0 %v2478, 42
      %v2550 = vpop.permute.xlu0 %2549
      %2551 = vrot.lane.b32.xlu0 %v2479, 42
      %v2552 = vpop.permute.xlu0 %2551
      %2553 = vrot.lane.b32.xlu0 %v2480, 42
      %v2554 = vpop.permute.xlu0 %2553
      %2555 = vrot.lane.b32.xlu0 %v2481, 42
      %v2556 = vpop.permute.xlu0 %2555
      %2557 = vrot.lane.b32.xlu0 %v2482, 42
      %v2558 = vpop.permute.xlu0 %2557
      %2559 = vrot.lane.b32.xlu0 %v2483, 42
      %v2560 = vpop.permute.xlu0 %2559
      %2561 = vrot.lane.b32.xlu0 %v2484, 42
      %v2562 = vpop.permute.xlu0 %2561
      %2563 = vrot.lane.b32.xlu0 %v2485, 42
      %v2564 = vpop.permute.xlu0 %2563
      %2565 = vrot.lane.b32.xlu0 %v2486, 42
      %v2566 = vpop.permute.xlu0 %2565
      %2567 = vrot.lane.b32.xlu0 %v2487, 42
      %v2568 = vpop.permute.xlu0 %2567
      %vm2569 = vcmask 343040
      %v2570 = vsel %vm2569, %v2516, %v2518
      %v2571 = vsel %vm2569, %v2518, %v2520
      %v2572 = vsel %vm2569, %v2520, %v2522
      %v2573 = vsel %vm2569, %v2522, %v2524
      %v2574 = vsel %vm2569, %v2524, %v2526
      %v2575 = vsel %vm2569, %v2526, %v2528
      %v2576 = vsel %vm2569, %v2528, %v2530
      %v2577 = vsel %vm2569, %v2530, %v2532
      %v2578 = vsel %vm2569, %v2532, %v2534
      %v2579 = vsel %vm2569, %v2534, %v2536
      %v2580 = vsel %vm2569, %v2536, %v2538
      %v2581 = vsel %vm2569, %v2538, %v2540
      %v2582 = vsel %vm2569, %v2540, %v2542
      %v2583 = vsel %vm2569, %v2542, %v2544
      %v2584 = vsel %vm2569, %v2544, %v2546
      %v2585 = vsel %vm2569, %v2546, %v2548
      %v2586 = vsel %vm2569, %v2548, %v2550
      %v2587 = vsel %vm2569, %v2550, %v2552
      %v2588 = vsel %vm2569, %v2552, %v2554
      %v2589 = vsel %vm2569, %v2554, %v2556
      %v2590 = vsel %vm2569, %v2556, %v2558
      %v2591 = vsel %vm2569, %v2558, %v2560
      %v2592 = vsel %vm2569, %v2560, %v2562
      %v2593 = vsel %vm2569, %v2562, %v2564
      %v2594 = vsel %vm2569, %v2564, %v2566
      %v2595 = vsel %vm2569, %v2566, %v2568
      %2622 = vst [vmem:[#allocation2 + $0x9c0] sm:$0xff] %v2570
      %2623 = vst [vmem:[#allocation2 + $0x9c8] sm:$0xff] %v2571
      %2624 = vst [vmem:[#allocation2 + $0x9d0] sm:$0xff] %v2572
      %2625 = vst [vmem:[#allocation2 + $0x9d8] sm:$0xff] %v2573
      %2626 = vst [vmem:[#allocation2 + $0x9e0] sm:$0xff] %v2574
      %2627 = vst [vmem:[#allocation2 + $0x9e8] sm:$0xff] %v2575
      %2628 = vst [vmem:[#allocation2 + $0x9f0] sm:$0xff] %v2576
      %2629 = vst [vmem:[#allocation2 + $0x9f8] sm:$0xff] %v2577
      %2630 = vst [vmem:[#allocation2 + $0xa00] sm:$0xff] %v2578
      %2631 = vst [vmem:[#allocation2 + $0xa08] sm:$0xff] %v2579
      %2632 = vst [vmem:[#allocation2 + $0xa10] sm:$0xff] %v2580
      %2633 = vst [vmem:[#allocation2 + $0xa18] sm:$0xff] %v2581
      %2634 = vst [vmem:[#allocation2 + $0xa20] sm:$0xff] %v2582
      %2635 = vst [vmem:[#allocation2 + $0xa28] sm:$0xff] %v2583
      %2636 = vst [vmem:[#allocation2 + $0xa30] sm:$0xff] %v2584
      %2637 = vst [vmem:[#allocation2 + $0xa38] sm:$0xff] %v2585
      %2638 = vst [vmem:[#allocation2 + $0xa40] sm:$0xff] %v2586
      %2639 = vst [vmem:[#allocation2 + $0xa48] sm:$0xff] %v2587
      %2640 = vst [vmem:[#allocation2 + $0xa50] sm:$0xff] %v2588
      %2641 = vst [vmem:[#allocation2 + $0xa58] sm:$0xff] %v2589
      %2642 = vst [vmem:[#allocation2 + $0xa60] sm:$0xff] %v2590
      %2643 = vst [vmem:[#allocation2 + $0xa68] sm:$0xff] %v2591
      %2644 = vst [vmem:[#allocation2 + $0xa70] sm:$0xff] %v2592
      %2645 = vst [vmem:[#allocation2 + $0xa78] sm:$0xff] %v2593
      %2646 = vst [vmem:[#allocation2 + $0xa80] sm:$0xff] %v2594
      %2647 = vst [vmem:[#allocation2 + $0xa88] sm:$0xff] %v2595
      %v2648 = vld [vmem:[%s165 + $0x8] sm:$0xff]
      %v2649 = vld [vmem:[%s165 + $0x10] sm:$0xff]
      %v2650 = vld [vmem:[%s165 + $0x18] sm:$0xff]
      %v2651 = vld [vmem:[%s165 + $0x20] sm:$0xff]
      %v2652 = vld [vmem:[%s165 + $0x28] sm:$0xff]
      %v2653 = vld [vmem:[%s165 + $0x30] sm:$0xff]
      %v2654 = vld [vmem:[%s165 + $0x38] sm:$0xff]
      %v2655 = vld [vmem:[%s165 + $0x40] sm:$0xff]
      %v2656 = vld [vmem:[%s165 + $0x48] sm:$0xff]
      %v2657 = vld [vmem:[%s165 + $0x50] sm:$0xff]
      %v2658 = vld [vmem:[%s165 + $0x58] sm:$0xff]
      %v2659 = vld [vmem:[%s165 + $0x60] sm:$0xff]
      %v2660 = vld [vmem:[%s165 + $0x68] sm:$0xff]
      %v2661 = vld [vmem:[%s165 + $0x70] sm:$0xf]
      %v2662 = vunpack.c.l.bf16 %v2648
      %v2663 = vunpack.c.h.bf16 %v2648
      %v2664 = vunpack.c.l.bf16 %v2649
      %v2665 = vunpack.c.h.bf16 %v2649
      %v2666 = vunpack.c.l.bf16 %v2650
      %v2667 = vunpack.c.h.bf16 %v2650
      %v2668 = vunpack.c.l.bf16 %v2651
      %v2669 = vunpack.c.h.bf16 %v2651
      %v2670 = vunpack.c.l.bf16 %v2652
      %v2671 = vunpack.c.h.bf16 %v2652
      %v2672 = vunpack.c.l.bf16 %v2653
      %v2673 = vunpack.c.h.bf16 %v2653
      %v2674 = vunpack.c.l.bf16 %v2654
      %v2675 = vunpack.c.h.bf16 %v2654
      %v2676 = vunpack.c.l.bf16 %v2655
      %v2677 = vunpack.c.h.bf16 %v2655
      %v2678 = vunpack.c.l.bf16 %v2656
      %v2679 = vunpack.c.h.bf16 %v2656
      %v2680 = vunpack.c.l.bf16 %v2657
      %v2681 = vunpack.c.h.bf16 %v2657
      %v2682 = vunpack.c.l.bf16 %v2658
      %v2683 = vunpack.c.h.bf16 %v2658
      %v2684 = vunpack.c.l.bf16 %v2659
      %v2685 = vunpack.c.h.bf16 %v2659
      %v2686 = vunpack.c.l.bf16 %v2660
      %v2687 = vunpack.c.h.bf16 %v2660
      %v2688 = vunpack.c.l.bf16 %v2661
      %2716 = vrot.lane.b32.xlu0 %v2662, 41
      %v2717 = vpop.permute.xlu0 %2716
      %2718 = vrot.lane.b32.xlu0 %v2663, 41
      %v2719 = vpop.permute.xlu0 %2718
      %2720 = vrot.lane.b32.xlu0 %v2664, 41
      %v2721 = vpop.permute.xlu0 %2720
      %2722 = vrot.lane.b32.xlu0 %v2665, 41
      %v2723 = vpop.permute.xlu0 %2722
      %2724 = vrot.lane.b32.xlu0 %v2666, 41
      %v2725 = vpop.permute.xlu0 %2724
      %2726 = vrot.lane.b32.xlu0 %v2667, 41
      %v2727 = vpop.permute.xlu0 %2726
      %2728 = vrot.lane.b32.xlu0 %v2668, 41
      %v2729 = vpop.permute.xlu0 %2728
      %2730 = vrot.lane.b32.xlu0 %v2669, 41
      %v2731 = vpop.permute.xlu0 %2730
      %2732 = vrot.lane.b32.xlu0 %v2670, 41
      %v2733 = vpop.permute.xlu0 %2732
      %2734 = vrot.lane.b32.xlu0 %v2671, 41
      %v2735 = vpop.permute.xlu0 %2734
      %2736 = vrot.lane.b32.xlu0 %v2672, 41
      %v2737 = vpop.permute.xlu0 %2736
      %2738 = vrot.lane.b32.xlu0 %v2673, 41
      %v2739 = vpop.permute.xlu0 %2738
      %2740 = vrot.lane.b32.xlu0 %v2674, 41
      %v2741 = vpop.permute.xlu0 %2740
      %2742 = vrot.lane.b32.xlu0 %v2675, 41
      %v2743 = vpop.permute.xlu0 %2742
      %2744 = vrot.lane.b32.xlu0 %v2676, 41
      %v2745 = vpop.permute.xlu0 %2744
      %2746 = vrot.lane.b32.xlu0 %v2677, 41
      %v2747 = vpop.permute.xlu0 %2746
      %2748 = vrot.lane.b32.xlu0 %v2678, 41
      %v2749 = vpop.permute.xlu0 %2748
      %2750 = vrot.lane.b32.xlu0 %v2679, 41
      %v2751 = vpop.permute.xlu0 %2750
      %2752 = vrot.lane.b32.xlu0 %v2680, 41
      %v2753 = vpop.permute.xlu0 %2752
      %2754 = vrot.lane.b32.xlu0 %v2681, 41
      %v2755 = vpop.permute.xlu0 %2754
      %2756 = vrot.lane.b32.xlu0 %v2682, 41
      %v2757 = vpop.permute.xlu0 %2756
      %2758 = vrot.lane.b32.xlu0 %v2683, 41
      %v2759 = vpop.permute.xlu0 %2758
      %2760 = vrot.lane.b32.xlu0 %v2684, 41
      %v2761 = vpop.permute.xlu0 %2760
      %2762 = vrot.lane.b32.xlu0 %v2685, 41
      %v2763 = vpop.permute.xlu0 %2762
      %2764 = vrot.lane.b32.xlu0 %v2686, 41
      %v2765 = vpop.permute.xlu0 %2764
      %2766 = vrot.lane.b32.xlu0 %v2687, 41
      %v2767 = vpop.permute.xlu0 %2766
      %2768 = vrot.lane.b32.xlu0 %v2688, 41
      %v2769 = vpop.permute.xlu0 %2768
      %vm2770 = vcmask 334848
      %v2771 = vsel %vm2770, %v2717, %v2719
      %v2772 = vsel %vm2770, %v2719, %v2721
      %v2773 = vsel %vm2770, %v2721, %v2723
      %v2774 = vsel %vm2770, %v2723, %v2725
      %v2775 = vsel %vm2770, %v2725, %v2727
      %v2776 = vsel %vm2770, %v2727, %v2729
      %v2777 = vsel %vm2770, %v2729, %v2731
      %v2778 = vsel %vm2770, %v2731, %v2733
      %v2779 = vsel %vm2770, %v2733, %v2735
      %v2780 = vsel %vm2770, %v2735, %v2737
      %v2781 = vsel %vm2770, %v2737, %v2739
      %v2782 = vsel %vm2770, %v2739, %v2741
      %v2783 = vsel %vm2770, %v2741, %v2743
      %v2784 = vsel %vm2770, %v2743, %v2745
      %v2785 = vsel %vm2770, %v2745, %v2747
      %v2786 = vsel %vm2770, %v2747, %v2749
      %v2787 = vsel %vm2770, %v2749, %v2751
      %v2788 = vsel %vm2770, %v2751, %v2753
      %v2789 = vsel %vm2770, %v2753, %v2755
      %v2790 = vsel %vm2770, %v2755, %v2757
      %v2791 = vsel %vm2770, %v2757, %v2759
      %v2792 = vsel %vm2770, %v2759, %v2761
      %v2793 = vsel %vm2770, %v2761, %v2763
      %v2794 = vsel %vm2770, %v2763, %v2765
      %v2795 = vsel %vm2770, %v2765, %v2767
      %v2796 = vsel %vm2770, %v2767, %v2769
      %2823 = vst [vmem:[#allocation2 + $0xa90] sm:$0xff] %v2771
      %2824 = vst [vmem:[#allocation2 + $0xa98] sm:$0xff] %v2772
      %2825 = vst [vmem:[#allocation2 + $0xaa0] sm:$0xff] %v2773
      %2826 = vst [vmem:[#allocation2 + $0xaa8] sm:$0xff] %v2774
      %2827 = vst [vmem:[#allocation2 + $0xab0] sm:$0xff] %v2775
      %2828 = vst [vmem:[#allocation2 + $0xab8] sm:$0xff] %v2776
      %2829 = vst [vmem:[#allocation2 + $0xac0] sm:$0xff] %v2777
      %2830 = vst [vmem:[#allocation2 + $0xac8] sm:$0xff] %v2778
      %2831 = vst [vmem:[#allocation2 + $0xad0] sm:$0xff] %v2779
      %2832 = vst [vmem:[#allocation2 + $0xad8] sm:$0xff] %v2780
      %2833 = vst [vmem:[#allocation2 + $0xae0] sm:$0xff] %v2781
      %2834 = vst [vmem:[#allocation2 + $0xae8] sm:$0xff] %v2782
      %2835 = vst [vmem:[#allocation2 + $0xaf0] sm:$0xff] %v2783
      %2836 = vst [vmem:[#allocation2 + $0xaf8] sm:$0xff] %v2784
      %2837 = vst [vmem:[#allocation2 + $0xb00] sm:$0xff] %v2785
      %2838 = vst [vmem:[#allocation2 + $0xb08] sm:$0xff] %v2786
      %2839 = vst [vmem:[#allocation2 + $0xb10] sm:$0xff] %v2787
      %2840 = vst [vmem:[#allocation2 + $0xb18] sm:$0xff] %v2788
      %2841 = vst [vmem:[#allocation2 + $0xb20] sm:$0xff] %v2789
      %2842 = vst [vmem:[#allocation2 + $0xb28] sm:$0xff] %v2790
      %2843 = vst [vmem:[#allocation2 + $0xb30] sm:$0xff] %v2791
      %2844 = vst [vmem:[#allocation2 + $0xb38] sm:$0xff] %v2792
      %2845 = vst [vmem:[#allocation2 + $0xb40] sm:$0xff] %v2793
      %2846 = vst [vmem:[#allocation2 + $0xb48] sm:$0xff] %v2794
      %2847 = vst [vmem:[#allocation2 + $0xb50] sm:$0xff] %v2795
      %2848 = vst [vmem:[#allocation2 + $0xb58] sm:$0xff] %v2796
      %v2849 = vld [vmem:[%s165 + $0x8] sm:$0xff]
      %v2850 = vld [vmem:[%s165 + $0x10] sm:$0xff]
      %v2851 = vld [vmem:[%s165 + $0x18] sm:$0xff]
      %v2852 = vld [vmem:[%s165 + $0x20] sm:$0xff]
      %v2853 = vld [vmem:[%s165 + $0x28] sm:$0xff]
      %v2854 = vld [vmem:[%s165 + $0x30] sm:$0xff]
      %v2855 = vld [vmem:[%s165 + $0x38] sm:$0xff]
      %v2856 = vld [vmem:[%s165 + $0x40] sm:$0xff]
      %v2857 = vld [vmem:[%s165 + $0x48] sm:$0xff]
      %v2858 = vld [vmem:[%s165 + $0x50] sm:$0xff]
      %v2859 = vld [vmem:[%s165 + $0x58] sm:$0xff]
      %v2860 = vld [vmem:[%s165 + $0x60] sm:$0xff]
      %v2861 = vld [vmem:[%s165 + $0x68] sm:$0xff]
      %v2862 = vld [vmem:[%s165 + $0x70] sm:$0xf]
      %v2863 = vunpack.c.l.bf16 %v2849
      %v2864 = vunpack.c.h.bf16 %v2849
      %v2865 = vunpack.c.l.bf16 %v2850
      %v2866 = vunpack.c.h.bf16 %v2850
      %v2867 = vunpack.c.l.bf16 %v2851
      %v2868 = vunpack.c.h.bf16 %v2851
      %v2869 = vunpack.c.l.bf16 %v2852
      %v2870 = vunpack.c.h.bf16 %v2852
      %v2871 = vunpack.c.l.bf16 %v2853
      %v2872 = vunpack.c.h.bf16 %v2853
      %v2873 = vunpack.c.l.bf16 %v2854
      %v2874 = vunpack.c.h.bf16 %v2854
      %v2875 = vunpack.c.l.bf16 %v2855
      %v2876 = vunpack.c.h.bf16 %v2855
      %v2877 = vunpack.c.l.bf16 %v2856
      %v2878 = vunpack.c.h.bf16 %v2856
      %v2879 = vunpack.c.l.bf16 %v2857
      %v2880 = vunpack.c.h.bf16 %v2857
      %v2881 = vunpack.c.l.bf16 %v2858
      %v2882 = vunpack.c.h.bf16 %v2858
      %v2883 = vunpack.c.l.bf16 %v2859
      %v2884 = vunpack.c.h.bf16 %v2859
      %v2885 = vunpack.c.l.bf16 %v2860
      %v2886 = vunpack.c.h.bf16 %v2860
      %v2887 = vunpack.c.l.bf16 %v2861
      %v2888 = vunpack.c.h.bf16 %v2861
      %v2889 = vunpack.c.l.bf16 %v2862
      %2917 = vrot.lane.b32.xlu0 %v2863, 40
      %v2918 = vpop.permute.xlu0 %2917
      %2919 = vrot.lane.b32.xlu0 %v2864, 40
      %v2920 = vpop.permute.xlu0 %2919
      %2921 = vrot.lane.b32.xlu0 %v2865, 40
      %v2922 = vpop.permute.xlu0 %2921
      %2923 = vrot.lane.b32.xlu0 %v2866, 40
      %v2924 = vpop.permute.xlu0 %2923
      %2925 = vrot.lane.b32.xlu0 %v2867, 40
      %v2926 = vpop.permute.xlu0 %2925
      %2927 = vrot.lane.b32.xlu0 %v2868, 40
      %v2928 = vpop.permute.xlu0 %2927
      %2929 = vrot.lane.b32.xlu0 %v2869, 40
      %v2930 = vpop.permute.xlu0 %2929
      %2931 = vrot.lane.b32.xlu0 %v2870, 40
      %v2932 = vpop.permute.xlu0 %2931
      %2933 = vrot.lane.b32.xlu0 %v2871, 40
      %v2934 = vpop.permute.xlu0 %2933
      %2935 = vrot.lane.b32.xlu0 %v2872, 40
      %v2936 = vpop.permute.xlu0 %2935
      %2937 = vrot.lane.b32.xlu0 %v2873, 40
      %v2938 = vpop.permute.xlu0 %2937
      %2939 = vrot.lane.b32.xlu0 %v2874, 40
      %v2940 = vpop.permute.xlu0 %2939
      %2941 = vrot.lane.b32.xlu0 %v2875, 40
      %v2942 = vpop.permute.xlu0 %2941
      %2943 = vrot.lane.b32.xlu0 %v2876, 40
      %v2944 = vpop.permute.xlu0 %2943
      %2945 = vrot.lane.b32.xlu0 %v2877, 40
      %v2946 = vpop.permute.xlu0 %2945
      %2947 = vrot.lane.b32.xlu0 %v2878, 40
      %v2948 = vpop.permute.xlu0 %2947
      %2949 = vrot.lane.b32.xlu0 %v2879, 40
      %v2950 = vpop.permute.xlu0 %2949
      %2951 = vrot.lane.b32.xlu0 %v2880, 40
      %v2952 = vpop.permute.xlu0 %2951
      %2953 = vrot.lane.b32.xlu0 %v2881, 40
      %v2954 = vpop.permute.xlu0 %2953
      %2955 = vrot.lane.b32.xlu0 %v2882, 40
      %v2956 = vpop.permute.xlu0 %2955
      %2957 = vrot.lane.b32.xlu0 %v2883, 40
      %v2958 = vpop.permute.xlu0 %2957
      %2959 = vrot.lane.b32.xlu0 %v2884, 40
      %v2960 = vpop.permute.xlu0 %2959
      %2961 = vrot.lane.b32.xlu0 %v2885, 40
      %v2962 = vpop.permute.xlu0 %2961
      %2963 = vrot.lane.b32.xlu0 %v2886, 40
      %v2964 = vpop.permute.xlu0 %2963
      %2965 = vrot.lane.b32.xlu0 %v2887, 40
      %v2966 = vpop.permute.xlu0 %2965
      %2967 = vrot.lane.b32.xlu0 %v2888, 40
      %v2968 = vpop.permute.xlu0 %2967
      %2969 = vrot.lane.b32.xlu0 %v2889, 40
      %v2970 = vpop.permute.xlu0 %2969
      %vm2971 = vcmask 326656
      %v2972 = vsel %vm2971, %v2918, %v2920
      %v2973 = vsel %vm2971, %v2920, %v2922
      %v2974 = vsel %vm2971, %v2922, %v2924
      %v2975 = vsel %vm2971, %v2924, %v2926
      %v2976 = vsel %vm2971, %v2926, %v2928
      %v2977 = vsel %vm2971, %v2928, %v2930
      %v2978 = vsel %vm2971, %v2930, %v2932
      %v2979 = vsel %vm2971, %v2932, %v2934
      %v2980 = vsel %vm2971, %v2934, %v2936
      %v2981 = vsel %vm2971, %v2936, %v2938
      %v2982 = vsel %vm2971, %v2938, %v2940
      %v2983 = vsel %vm2971, %v2940, %v2942
      %v2984 = vsel %vm2971, %v2942, %v2944
      %v2985 = vsel %vm2971, %v2944, %v2946
      %v2986 = vsel %vm2971, %v2946, %v2948
      %v2987 = vsel %vm2971, %v2948, %v2950
      %v2988 = vsel %vm2971, %v2950, %v2952
      %v2989 = vsel %vm2971, %v2952, %v2954
      %v2990 = vsel %vm2971, %v2954, %v2956
      %v2991 = vsel %vm2971, %v2956, %v2958
      %v2992 = vsel %vm2971, %v2958, %v2960
      %v2993 = vsel %vm2971, %v2960, %v2962
      %v2994 = vsel %vm2971, %v2962, %v2964
      %v2995 = vsel %vm2971, %v2964, %v2966
      %v2996 = vsel %vm2971, %v2966, %v2968
      %v2997 = vsel %vm2971, %v2968, %v2970
      %3024 = vst [vmem:[#allocation2 + $0xb60] sm:$0xff] %v2972
      %3025 = vst [vmem:[#allocation2 + $0xb68] sm:$0xff] %v2973
      %3026 = vst [vmem:[#allocation2 + $0xb70] sm:$0xff] %v2974
      %3027 = vst [vmem:[#allocation2 + $0xb78] sm:$0xff] %v2975
      %3028 = vst [vmem:[#allocation2 + $0xb80] sm:$0xff] %v2976
      %3029 = vst [vmem:[#allocation2 + $0xb88] sm:$0xff] %v2977
      %3030 = vst [vmem:[#allocation2 + $0xb90] sm:$0xff] %v2978
      %3031 = vst [vmem:[#allocation2 + $0xb98] sm:$0xff] %v2979
      %3032 = vst [vmem:[#allocation2 + $0xba0] sm:$0xff] %v2980
      %3033 = vst [vmem:[#allocation2 + $0xba8] sm:$0xff] %v2981
      %3034 = vst [vmem:[#allocation2 + $0xbb0] sm:$0xff] %v2982
      %3035 = vst [vmem:[#allocation2 + $0xbb8] sm:$0xff] %v2983
      %3036 = vst [vmem:[#allocation2 + $0xbc0] sm:$0xff] %v2984
      %3037 = vst [vmem:[#allocation2 + $0xbc8] sm:$0xff] %v2985
      %3038 = vst [vmem:[#allocation2 + $0xbd0] sm:$0xff] %v2986
      %3039 = vst [vmem:[#allocation2 + $0xbd8] sm:$0xff] %v2987
      %3040 = vst [vmem:[#allocation2 + $0xbe0] sm:$0xff] %v2988
      %3041 = vst [vmem:[#allocation2 + $0xbe8] sm:$0xff] %v2989
      %3042 = vst [vmem:[#allocation2 + $0xbf0] sm:$0xff] %v2990
      %3043 = vst [vmem:[#allocation2 + $0xbf8] sm:$0xff] %v2991
      %3044 = vst [vmem:[#allocation2 + $0xc00] sm:$0xff] %v2992
      %3045 = vst [vmem:[#allocation2 + $0xc08] sm:$0xff] %v2993
      %3046 = vst [vmem:[#allocation2 + $0xc10] sm:$0xff] %v2994
      %3047 = vst [vmem:[#allocation2 + $0xc18] sm:$0xff] %v2995
      %3048 = vst [vmem:[#allocation2 + $0xc20] sm:$0xff] %v2996
      %3049 = vst [vmem:[#allocation2 + $0xc28] sm:$0xff] %v2997
      %v3050 = vld [vmem:[%s165 + $0x8] sm:$0xff]
      %v3051 = vld [vmem:[%s165 + $0x10] sm:$0xff]
      %v3052 = vld [vmem:[%s165 + $0x18] sm:$0xff]
      %v3053 = vld [vmem:[%s165 + $0x20] sm:$0xff]
      %v3054 = vld [vmem:[%s165 + $0x28] sm:$0xff]
      %v3055 = vld [vmem:[%s165 + $0x30] sm:$0xff]
      %v3056 = vld [vmem:[%s165 + $0x38] sm:$0xff]
      %v3057 = vld [vmem:[%s165 + $0x40] sm:$0xff]
      %v3058 = vld [vmem:[%s165 + $0x48] sm:$0xff]
      %v3059 = vld [vmem:[%s165 + $0x50] sm:$0xff]
      %v3060 = vld [vmem:[%s165 + $0x58] sm:$0xff]
      %v3061 = vld [vmem:[%s165 + $0x60] sm:$0xff]
      %v3062 = vld [vmem:[%s165 + $0x68] sm:$0xff]
      %v3063 = vld [vmem:[%s165 + $0x70] sm:$0xf]
      %v3064 = vunpack.c.l.bf16 %v3050
      %v3065 = vunpack.c.h.bf16 %v3050
      %v3066 = vunpack.c.l.bf16 %v3051
      %v3067 = vunpack.c.h.bf16 %v3051
      %v3068 = vunpack.c.l.bf16 %v3052
      %v3069 = vunpack.c.h.bf16 %v3052
      %v3070 = vunpack.c.l.bf16 %v3053
      %v3071 = vunpack.c.h.bf16 %v3053
      %v3072 = vunpack.c.l.bf16 %v3054
      %v3073 = vunpack.c.h.bf16 %v3054
      %v3074 = vunpack.c.l.bf16 %v3055
      %v3075 = vunpack.c.h.bf16 %v3055
      %v3076 = vunpack.c.l.bf16 %v3056
      %v3077 = vunpack.c.h.bf16 %v3056
      %v3078 = vunpack.c.l.bf16 %v3057
      %v3079 = vunpack.c.h.bf16 %v3057
      %v3080 = vunpack.c.l.bf16 %v3058
      %v3081 = vunpack.c.h.bf16 %v3058
      %v3082 = vunpack.c.l.bf16 %v3059
      %v3083 = vunpack.c.h.bf16 %v3059
      %v3084 = vunpack.c.l.bf16 %v3060
      %v3085 = vunpack.c.h.bf16 %v3060
      %v3086 = vunpack.c.l.bf16 %v3061
      %v3087 = vunpack.c.h.bf16 %v3061
      %v3088 = vunpack.c.l.bf16 %v3062
      %v3089 = vunpack.c.h.bf16 %v3062
      %v3090 = vunpack.c.l.bf16 %v3063
      %3118 = vrot.lane.b32.xlu0 %v3064, 24
      %v3119 = vpop.permute.xlu0 %3118
      %3120 = vrot.lane.b32.xlu0 %v3065, 24
      %v3121 = vpop.permute.xlu0 %3120
      %3122 = vrot.lane.b32.xlu0 %v3066, 24
      %v3123 = vpop.permute.xlu0 %3122
      %3124 = vrot.lane.b32.xlu0 %v3067, 24
      %v3125 = vpop.permute.xlu0 %3124
      %3126 = vrot.lane.b32.xlu0 %v3068, 24
      %v3127 = vpop.permute.xlu0 %3126
      %3128 = vrot.lane.b32.xlu0 %v3069, 24
      %v3129 = vpop.permute.xlu0 %3128
      %3130 = vrot.lane.b32.xlu0 %v3070, 24
      %v3131 = vpop.permute.xlu0 %3130
      %3132 = vrot.lane.b32.xlu0 %v3071, 24
      %v3133 = vpop.permute.xlu0 %3132
      %3134 = vrot.lane.b32.xlu0 %v3072, 24
      %v3135 = vpop.permute.xlu0 %3134
      %3136 = vrot.lane.b32.xlu0 %v3073, 24
      %v3137 = vpop.permute.xlu0 %3136
      %3138 = vrot.lane.b32.xlu0 %v3074, 24
      %v3139 = vpop.permute.xlu0 %3138
      %3140 = vrot.lane.b32.xlu0 %v3075, 24
      %v3141 = vpop.permute.xlu0 %3140
      %3142 = vrot.lane.b32.xlu0 %v3076, 24
      %v3143 = vpop.permute.xlu0 %3142
      %3144 = vrot.lane.b32.xlu0 %v3077, 24
      %v3145 = vpop.permute.xlu0 %3144
      %3146 = vrot.lane.b32.xlu0 %v3078, 24
      %v3147 = vpop.permute.xlu0 %3146
      %3148 = vrot.lane.b32.xlu0 %v3079, 24
      %v3149 = vpop.permute.xlu0 %3148
      %3150 = vrot.lane.b32.xlu0 %v3080, 24
      %v3151 = vpop.permute.xlu0 %3150
      %3152 = vrot.lane.b32.xlu0 %v3081, 24
      %v3153 = vpop.permute.xlu0 %3152
      %3154 = vrot.lane.b32.xlu0 %v3082, 24
      %v3155 = vpop.permute.xlu0 %3154
      %3156 = vrot.lane.b32.xlu0 %v3083, 24
      %v3157 = vpop.permute.xlu0 %3156
      %3158 = vrot.lane.b32.xlu0 %v3084, 24
      %v3159 = vpop.permute.xlu0 %3158
      %3160 = vrot.lane.b32.xlu0 %v3085, 24
      %v3161 = vpop.permute.xlu0 %3160
      %3162 = vrot.lane.b32.xlu0 %v3086, 24
      %v3163 = vpop.permute.xlu0 %3162
      %3164 = vrot.lane.b32.xlu0 %v3087, 24
      %v3165 = vpop.permute.xlu0 %3164
      %3166 = vrot.lane.b32.xlu0 %v3088, 24
      %v3167 = vpop.permute.xlu0 %3166
      %3168 = vrot.lane.b32.xlu0 %v3089, 24
      %v3169 = vpop.permute.xlu0 %3168
      %3170 = vrot.lane.b32.xlu0 %v3090, 24
      %v3171 = vpop.permute.xlu0 %3170
      %vm3172 = vcmask 195584
      %v3173 = vsel %vm3172, %v3119, %v3121
      %v3174 = vsel %vm3172, %v3121, %v3123
      %v3175 = vsel %vm3172, %v3123, %v3125
      %v3176 = vsel %vm3172, %v3125, %v3127
      %v3177 = vsel %vm3172, %v3127, %v3129
      %v3178 = vsel %vm3172, %v3129, %v3131
      %v3179 = vsel %vm3172, %v3131, %v3133
      %v3180 = vsel %vm3172, %v3133, %v3135
      %v3181 = vsel %vm3172, %v3135, %v3137
      %v3182 = vsel %vm3172, %v3137, %v3139
      %v3183 = vsel %vm3172, %v3139, %v3141
      %v3184 = vsel %vm3172, %v3141, %v3143
      %v3185 = vsel %vm3172, %v3143, %v3145
      %v3186 = vsel %vm3172, %v3145, %v3147
      %v3187 = vsel %vm3172, %v3147, %v3149
      %v3188 = vsel %vm3172, %v3149, %v3151
      %v3189 = vsel %vm3172, %v3151, %v3153
      %v3190 = vsel %vm3172, %v3153, %v3155
      %v3191 = vsel %vm3172, %v3155, %v3157
      %v3192 = vsel %vm3172, %v3157, %v3159
      %v3193 = vsel %vm3172, %v3159, %v3161
      %v3194 = vsel %vm3172, %v3161, %v3163
      %v3195 = vsel %vm3172, %v3163, %v3165
      %v3196 = vsel %vm3172, %v3165, %v3167
      %v3197 = vsel %vm3172, %v3167, %v3169
      %v3198 = vsel %vm3172, %v3169, %v3171
      %3225 = vst [vmem:[#allocation2 + $0xc30] sm:$0xff] %v3173
      %3226 = vst [vmem:[#allocation2 + $0xc38] sm:$0xff] %v3174
      %3227 = vst [vmem:[#allocation2 + $0xc40] sm:$0xff] %v3175
      %3228 = vst [vmem:[#allocation2 + $0xc48] sm:$0xff] %v3176
      %3229 = vst [vmem:[#allocation2 + $0xc50] sm:$0xff] %v3177
      %3230 = vst [vmem:[#allocation2 + $0xc58] sm:$0xff] %v3178
      %3231 = vst [vmem:[#allocation2 + $0xc60] sm:$0xff] %v3179
      %3232 = vst [vmem:[#allocation2 + $0xc68] sm:$0xff] %v3180
      %3233 = vst [vmem:[#allocation2 + $0xc70] sm:$0xff] %v3181
      %3234 = vst [vmem:[#allocation2 + $0xc78] sm:$0xff] %v3182
      %3235 = vst [vmem:[#allocation2 + $0xc80] sm:$0xff] %v3183
      %3236 = vst [vmem:[#allocation2 + $0xc88] sm:$0xff] %v3184
      %3237 = vst [vmem:[#allocation2 + $0xc90] sm:$0xff] %v3185
      %3238 = vst [vmem:[#allocation2 + $0xc98] sm:$0xff] %v3186
      %3239 = vst [vmem:[#allocation2 + $0xca0] sm:$0xff] %v3187
      %3240 = vst [vmem:[#allocation2 + $0xca8] sm:$0xff] %v3188
      %3241 = vst [vmem:[#allocation2 + $0xcb0] sm:$0xff] %v3189
      %3242 = vst [vmem:[#allocation2 + $0xcb8] sm:$0xff] %v3190
      %3243 = vst [vmem:[#allocation2 + $0xcc0] sm:$0xff] %v3191
      %3244 = vst [vmem:[#allocation2 + $0xcc8] sm:$0xff] %v3192
      %3245 = vst [vmem:[#allocation2 + $0xcd0] sm:$0xff] %v3193
      %3246 = vst [vmem:[#allocation2 + $0xcd8] sm:$0xff] %v3194
      %3247 = vst [vmem:[#allocation2 + $0xce0] sm:$0xff] %v3195
      %3248 = vst [vmem:[#allocation2 + $0xce8] sm:$0xff] %v3196
      %3249 = vst [vmem:[#allocation2 + $0xcf0] sm:$0xff] %v3197
      %3250 = vst [vmem:[#allocation2 + $0xcf8] sm:$0xff] %v3198
      %v3251 = vld [vmem:[%s165 + $0x8] sm:$0xff]
      %v3252 = vld [vmem:[%s165 + $0x10] sm:$0xff]
      %v3253 = vld [vmem:[%s165 + $0x18] sm:$0xff]
      %v3254 = vld [vmem:[%s165 + $0x20] sm:$0xff]
      %v3255 = vld [vmem:[%s165 + $0x28] sm:$0xff]
      %v3256 = vld [vmem:[%s165 + $0x30] sm:$0xff]
      %v3257 = vld [vmem:[%s165 + $0x38] sm:$0xff]
      %v3258 = vld [vmem:[%s165 + $0x40] sm:$0xff]
      %v3259 = vld [vmem:[%s165 + $0x48] sm:$0xff]
      %v3260 = vld [vmem:[%s165 + $0x50] sm:$0xff]
      %v3261 = vld [vmem:[%s165 + $0x58] sm:$0xff]
      %v3262 = vld [vmem:[%s165 + $0x60] sm:$0xff]
      %v3263 = vld [vmem:[%s165 + $0x68] sm:$0xff]
      %v3264 = vld [vmem:[%s165 + $0x70] sm:$0xf]
      %v3265 = vunpack.c.l.bf16 %v3251
      %v3266 = vunpack.c.h.bf16 %v3251
      %v3267 = vunpack.c.l.bf16 %v3252
      %v3268 = vunpack.c.h.bf16 %v3252
      %v3269 = vunpack.c.l.bf16 %v3253
      %v3270 = vunpack.c.h.bf16 %v3253
      %v3271 = vunpack.c.l.bf16 %v3254
      %v3272 = vunpack.c.h.bf16 %v3254
      %v3273 = vunpack.c.l.bf16 %v3255
      %v3274 = vunpack.c.h.bf16 %v3255
      %v3275 = vunpack.c.l.bf16 %v3256
      %v3276 = vunpack.c.h.bf16 %v3256
      %v3277 = vunpack.c.l.bf16 %v3257
      %v3278 = vunpack.c.h.bf16 %v3257
      %v3279 = vunpack.c.l.bf16 %v3258
      %v3280 = vunpack.c.h.bf16 %v3258
      %v3281 = vunpack.c.l.bf16 %v3259
      %v3282 = vunpack.c.h.bf16 %v3259
      %v3283 = vunpack.c.l.bf16 %v3260
      %v3284 = vunpack.c.h.bf16 %v3260
      %v3285 = vunpack.c.l.bf16 %v3261
      %v3286 = vunpack.c.h.bf16 %v3261
      %v3287 = vunpack.c.l.bf16 %v3262
      %v3288 = vunpack.c.h.bf16 %v3262
      %v3289 = vunpack.c.l.bf16 %v3263
      %v3290 = vunpack.c.h.bf16 %v3263
      %v3291 = vunpack.c.l.bf16 %v3264
      %3319 = vrot.lane.b32.xlu0 %v3265, 23
      %v3320 = vpop.permute.xlu0 %3319
      %3321 = vrot.lane.b32.xlu0 %v3266, 23
      %v3322 = vpop.permute.xlu0 %3321
      %3323 = vrot.lane.b32.xlu0 %v3267, 23
      %v3324 = vpop.permute.xlu0 %3323
      %3325 = vrot.lane.b32.xlu0 %v3268, 23
      %v3326 = vpop.permute.xlu0 %3325
      %3327 = vrot.lane.b32.xlu0 %v3269, 23
      %v3328 = vpop.permute.xlu0 %3327
      %3329 = vrot.lane.b32.xlu0 %v3270, 23
      %v3330 = vpop.permute.xlu0 %3329
      %3331 = vrot.lane.b32.xlu0 %v3271, 23
      %v3332 = vpop.permute.xlu0 %3331
      %3333 = vrot.lane.b32.xlu0 %v3272, 23
      %v3334 = vpop.permute.xlu0 %3333
      %3335 = vrot.lane.b32.xlu0 %v3273, 23
      %v3336 = vpop.permute.xlu0 %3335
      %3337 = vrot.lane.b32.xlu0 %v3274, 23
      %v3338 = vpop.permute.xlu0 %3337
      %3339 = vrot.lane.b32.xlu0 %v3275, 23
      %v3340 = vpop.permute.xlu0 %3339
      %3341 = vrot.lane.b32.xlu0 %v3276, 23
      %v3342 = vpop.permute.xlu0 %3341
      %3343 = vrot.lane.b32.xlu0 %v3277, 23
      %v3344 = vpop.permute.xlu0 %3343
      %3345 = vrot.lane.b32.xlu0 %v3278, 23
      %v3346 = vpop.permute.xlu0 %3345
      %3347 = vrot.lane.b32.xlu0 %v3279, 23
      %v3348 = vpop.permute.xlu0 %3347
      %3349 = vrot.lane.b32.xlu0 %v3280, 23
      %v3350 = vpop.permute.xlu0 %3349
      %3351 = vrot.lane.b32.xlu0 %v3281, 23
      %v3352 = vpop.permute.xlu0 %3351
      %3353 = vrot.lane.b32.xlu0 %v3282, 23
      %v3354 = vpop.permute.xlu0 %3353
      %3355 = vrot.lane.b32.xlu0 %v3283, 23
      %v3356 = vpop.permute.xlu0 %3355
      %3357 = vrot.lane.b32.xlu0 %v3284, 23
      %v3358 = vpop.permute.xlu0 %3357
      %3359 = vrot.lane.b32.xlu0 %v3285, 23
      %v3360 = vpop.permute.xlu0 %3359
      %3361 = vrot.lane.b32.xlu0 %v3286, 23
      %v3362 = vpop.permute.xlu0 %3361
      %3363 = vrot.lane.b32.xlu0 %v3287, 23
      %v3364 = vpop.permute.xlu0 %3363
      %3365 = vrot.lane.b32.xlu0 %v3288, 23
      %v3366 = vpop.permute.xlu0 %3365
      %3367 = vrot.lane.b32.xlu0 %v3289, 23
      %v3368 = vpop.permute.xlu0 %3367
      %3369 = vrot.lane.b32.xlu0 %v3290, 23
      %v3370 = vpop.permute.xlu0 %3369
      %3371 = vrot.lane.b32.xlu0 %v3291, 23
      %v3372 = vpop.permute.xlu0 %3371
      %vm3373 = vcmask 187392
      %v3374 = vsel %vm3373, %v3320, %v3322
      %v3375 = vsel %vm3373, %v3322, %v3324
      %v3376 = vsel %vm3373, %v3324, %v3326
      %v3377 = vsel %vm3373, %v3326, %v3328
      %v3378 = vsel %vm3373, %v3328, %v3330
      %v3379 = vsel %vm3373, %v3330, %v3332
      %v3380 = vsel %vm3373, %v3332, %v3334
      %v3381 = vsel %vm3373, %v3334, %v3336
      %v3382 = vsel %vm3373, %v3336, %v3338
      %v3383 = vsel %vm3373, %v3338, %v3340
      %v3384 = vsel %vm3373, %v3340, %v3342
      %v3385 = vsel %vm3373, %v3342, %v3344
      %v3386 = vsel %vm3373, %v3344, %v3346
      %v3387 = vsel %vm3373, %v3346, %v3348
      %v3388 = vsel %vm3373, %v3348, %v3350
      %v3389 = vsel %vm3373, %v3350, %v3352
      %v3390 = vsel %vm3373, %v3352, %v3354
      %v3391 = vsel %vm3373, %v3354, %v3356
      %v3392 = vsel %vm3373, %v3356, %v3358
      %v3393 = vsel %vm3373, %v3358, %v3360
      %v3394 = vsel %vm3373, %v3360, %v3362
      %v3395 = vsel %vm3373, %v3362, %v3364
      %v3396 = vsel %vm3373, %v3364, %v3366
      %v3397 = vsel %vm3373, %v3366, %v3368
      %v3398 = vsel %vm3373, %v3368, %v3370
      %v3399 = vsel %vm3373, %v3370, %v3372
      %3426 = vst [vmem:[#allocation2 + $0xd00] sm:$0xff] %v3374
      %3427 = vst [vmem:[#allocation2 + $0xd08] sm:$0xff] %v3375
      %3428 = vst [vmem:[#allocation2 + $0xd10] sm:$0xff] %v3376
      %3429 = vst [vmem:[#allocation2 + $0xd18] sm:$0xff] %v3377
      %3430 = vst [vmem:[#allocation2 + $0xd20] sm:$0xff] %v3378
      %3431 = vst [vmem:[#allocation2 + $0xd28] sm:$0xff] %v3379
      %3432 = vst [vmem:[#allocation2 + $0xd30] sm:$0xff] %v3380
      %3433 = vst [vmem:[#allocation2 + $0xd38] sm:$0xff] %v3381
      %3434 = vst [vmem:[#allocation2 + $0xd40] sm:$0xff] %v3382
      %3435 = vst [vmem:[#allocation2 + $0xd48] sm:$0xff] %v3383
      %3436 = vst [vmem:[#allocation2 + $0xd50] sm:$0xff] %v3384
      %3437 = vst [vmem:[#allocation2 + $0xd58] sm:$0xff] %v3385
      %3438 = vst [vmem:[#allocation2 + $0xd60] sm:$0xff] %v3386
      %3439 = vst [vmem:[#allocation2 + $0xd68] sm:$0xff] %v3387
      %3440 = vst [vmem:[#allocation2 + $0xd70] sm:$0xff] %v3388
      %3441 = vst [vmem:[#allocation2 + $0xd78] sm:$0xff] %v3389
      %3442 = vst [vmem:[#allocation2 + $0xd80] sm:$0xff] %v3390
      %3443 = vst [vmem:[#allocation2 + $0xd88] sm:$0xff] %v3391
      %3444 = vst [vmem:[#allocation2 + $0xd90] sm:$0xff] %v3392
      %3445 = vst [vmem:[#allocation2 + $0xd98] sm:$0xff] %v3393
      %3446 = vst [vmem:[#allocation2 + $0xda0] sm:$0xff] %v3394
      %3447 = vst [vmem:[#allocation2 + $0xda8] sm:$0xff] %v3395
      %3448 = vst [vmem:[#allocation2 + $0xdb0] sm:$0xff] %v3396
      %3449 = vst [vmem:[#allocation2 + $0xdb8] sm:$0xff] %v3397
      %3450 = vst [vmem:[#allocation2 + $0xdc0] sm:$0xff] %v3398
      %3451 = vst [vmem:[#allocation2 + $0xdc8] sm:$0xff] %v3399
      %v3452 = vld [vmem:[%s165 + $0x8] sm:$0xff]
      %v3453 = vld [vmem:[%s165 + $0x10] sm:$0xff]
      %v3454 = vld [vmem:[%s165 + $0x18] sm:$0xff]
      %v3455 = vld [vmem:[%s165 + $0x20] sm:$0xff]
      %v3456 = vld [vmem:[%s165 + $0x28] sm:$0xff]
      %v3457 = vld [vmem:[%s165 + $0x30] sm:$0xff]
      %v3458 = vld [vmem:[%s165 + $0x38] sm:$0xff]
      %v3459 = vld [vmem:[%s165 + $0x40] sm:$0xff]
      %v3460 = vld [vmem:[%s165 + $0x48] sm:$0xff]
      %v3461 = vld [vmem:[%s165 + $0x50] sm:$0xff]
      %v3462 = vld [vmem:[%s165 + $0x58] sm:$0xff]
      %v3463 = vld [vmem:[%s165 + $0x60] sm:$0xff]
      %v3464 = vld [vmem:[%s165 + $0x68] sm:$0xff]
      %v3465 = vld [vmem:[%s165 + $0x70] sm:$0xf]
      %v3466 = vunpack.c.l.bf16 %v3452
      %v3467 = vunpack.c.h.bf16 %v3452
      %v3468 = vunpack.c.l.bf16 %v3453
      %v3469 = vunpack.c.h.bf16 %v3453
      %v3470 = vunpack.c.l.bf16 %v3454
      %v3471 = vunpack.c.h.bf16 %v3454
      %v3472 = vunpack.c.l.bf16 %v3455
      %v3473 = vunpack.c.h.bf16 %v3455
      %v3474 = vunpack.c.l.bf16 %v3456
      %v3475 = vunpack.c.h.bf16 %v3456
      %v3476 = vunpack.c.l.bf16 %v3457
      %v3477 = vunpack.c.h.bf16 %v3457
      %v3478 = vunpack.c.l.bf16 %v3458
      %v3479 = vunpack.c.h.bf16 %v3458
      %v3480 = vunpack.c.l.bf16 %v3459
      %v3481 = vunpack.c.h.bf16 %v3459
      %v3482 = vunpack.c.l.bf16 %v3460
      %v3483 = vunpack.c.h.bf16 %v3460
      %v3484 = vunpack.c.l.bf16 %v3461
      %v3485 = vunpack.c.h.bf16 %v3461
      %v3486 = vunpack.c.l.bf16 %v3462
      %v3487 = vunpack.c.h.bf16 %v3462
      %v3488 = vunpack.c.l.bf16 %v3463
      %v3489 = vunpack.c.h.bf16 %v3463
      %v3490 = vunpack.c.l.bf16 %v3464
      %v3491 = vunpack.c.h.bf16 %v3464
      %v3492 = vunpack.c.l.bf16 %v3465
      %3520 = vrot.lane.b32.xlu0 %v3466, 22
      %v3521 = vpop.permute.xlu0 %3520
      %3522 = vrot.lane.b32.xlu0 %v3467, 22
      %v3523 = vpop.permute.xlu0 %3522
      %3524 = vrot.lane.b32.xlu0 %v3468, 22
      %v3525 = vpop.permute.xlu0 %3524
      %3526 = vrot.lane.b32.xlu0 %v3469, 22
      %v3527 = vpop.permute.xlu0 %3526
      %3528 = vrot.lane.b32.xlu0 %v3470, 22
      %v3529 = vpop.permute.xlu0 %3528
      %3530 = vrot.lane.b32.xlu0 %v3471, 22
      %v3531 = vpop.permute.xlu0 %3530
      %3532 = vrot.lane.b32.xlu0 %v3472, 22
      %v3533 = vpop.permute.xlu0 %3532
      %3534 = vrot.lane.b32.xlu0 %v3473, 22
      %v3535 = vpop.permute.xlu0 %3534
      %3536 = vrot.lane.b32.xlu0 %v3474, 22
      %v3537 = vpop.permute.xlu0 %3536
      %3538 = vrot.lane.b32.xlu0 %v3475, 22
      %v3539 = vpop.permute.xlu0 %3538
      %3540 = vrot.lane.b32.xlu0 %v3476, 22
      %v3541 = vpop.permute.xlu0 %3540
      %3542 = vrot.lane.b32.xlu0 %v3477, 22
      %v3543 = vpop.permute.xlu0 %3542
      %3544 = vrot.lane.b32.xlu0 %v3478, 22
      %v3545 = vpop.permute.xlu0 %3544
      %3546 = vrot.lane.b32.xlu0 %v3479, 22
      %v3547 = vpop.permute.xlu0 %3546
      %3548 = vrot.lane.b32.xlu0 %v3480, 22
      %v3549 = vpop.permute.xlu0 %3548
      %3550 = vrot.lane.b32.xlu0 %v3481, 22
      %v3551 = vpop.permute.xlu0 %3550
      %3552 = vrot.lane.b32.xlu0 %v3482, 22
      %v3553 = vpop.permute.xlu0 %3552
      %3554 = vrot.lane.b32.xlu0 %v3483, 22
      %v3555 = vpop.permute.xlu0 %3554
      %3556 = vrot.lane.b32.xlu0 %v3484, 22
      %v3557 = vpop.permute.xlu0 %3556
      %3558 = vrot.lane.b32.xlu0 %v3485, 22
      %v3559 = vpop.permute.xlu0 %3558
      %3560 = vrot.lane.b32.xlu0 %v3486, 22
      %v3561 = vpop.permute.xlu0 %3560
      %3562 = vrot.lane.b32.xlu0 %v3487, 22
      %v3563 = vpop.permute.xlu0 %3562
      %3564 = vrot.lane.b32.xlu0 %v3488, 22
      %v3565 = vpop.permute.xlu0 %3564
      %3566 = vrot.lane.b32.xlu0 %v3489, 22
      %v3567 = vpop.permute.xlu0 %3566
      %3568 = vrot.lane.b32.xlu0 %v3490, 22
      %v3569 = vpop.permute.xlu0 %3568
      %3570 = vrot.lane.b32.xlu0 %v3491, 22
      %v3571 = vpop.permute.xlu0 %3570
      %3572 = vrot.lane.b32.xlu0 %v3492, 22
      %v3573 = vpop.permute.xlu0 %3572
      %vm3574 = vcmask 179200
      %v3575 = vsel %vm3574, %v3521, %v3523
      %v3576 = vsel %vm3574, %v3523, %v3525
      %v3577 = vsel %vm3574, %v3525, %v3527
      %v3578 = vsel %vm3574, %v3527, %v3529
      %v3579 = vsel %vm3574, %v3529, %v3531
      %v3580 = vsel %vm3574, %v3531, %v3533
      %v3581 = vsel %vm3574, %v3533, %v3535
      %v3582 = vsel %vm3574, %v3535, %v3537
      %v3583 = vsel %vm3574, %v3537, %v3539
      %v3584 = vsel %vm3574, %v3539, %v3541
      %v3585 = vsel %vm3574, %v3541, %v3543
      %v3586 = vsel %vm3574, %v3543, %v3545
      %v3587 = vsel %vm3574, %v3545, %v3547
      %v3588 = vsel %vm3574, %v3547, %v3549
      %v3589 = vsel %vm3574, %v3549, %v3551
      %v3590 = vsel %vm3574, %v3551, %v3553
      %v3591 = vsel %vm3574, %v3553, %v3555
      %v3592 = vsel %vm3574, %v3555, %v3557
      %v3593 = vsel %vm3574, %v3557, %v3559
      %v3594 = vsel %vm3574, %v3559, %v3561
      %v3595 = vsel %vm3574, %v3561, %v3563
      %v3596 = vsel %vm3574, %v3563, %v3565
      %v3597 = vsel %vm3574, %v3565, %v3567
      %v3598 = vsel %vm3574, %v3567, %v3569
      %v3599 = vsel %vm3574, %v3569, %v3571
      %v3600 = vsel %vm3574, %v3571, %v3573
      %3627 = vst [vmem:[#allocation2 + $0xdd0] sm:$0xff] %v3575
      %3628 = vst [vmem:[#allocation2 + $0xdd8] sm:$0xff] %v3576
      %3629 = vst [vmem:[#allocation2 + $0xde0] sm:$0xff] %v3577
      %3630 = vst [vmem:[#allocation2 + $0xde8] sm:$0xff] %v3578
      %3631 = vst [vmem:[#allocation2 + $0xdf0] sm:$0xff] %v3579
      %3632 = vst [vmem:[#allocation2 + $0xdf8] sm:$0xff] %v3580
      %3633 = vst [vmem:[#allocation2 + $0xe00] sm:$0xff] %v3581
      %3634 = vst [vmem:[#allocation2 + $0xe08] sm:$0xff] %v3582
      %3635 = vst [vmem:[#allocation2 + $0xe10] sm:$0xff] %v3583
      %3636 = vst [vmem:[#allocation2 + $0xe18] sm:$0xff] %v3584
      %3637 = vst [vmem:[#allocation2 + $0xe20] sm:$0xff] %v3585
      %3638 = vst [vmem:[#allocation2 + $0xe28] sm:$0xff] %v3586
      %3639 = vst [vmem:[#allocation2 + $0xe30] sm:$0xff] %v3587
      %3640 = vst [vmem:[#allocation2 + $0xe38] sm:$0xff] %v3588
      %3641 = vst [vmem:[#allocation2 + $0xe40] sm:$0xff] %v3589
      %3642 = vst [vmem:[#allocation2 + $0xe48] sm:$0xff] %v3590
      %3643 = vst [vmem:[#allocation2 + $0xe50] sm:$0xff] %v3591
      %3644 = vst [vmem:[#allocation2 + $0xe58] sm:$0xff] %v3592
      %3645 = vst [vmem:[#allocation2 + $0xe60] sm:$0xff] %v3593
      %3646 = vst [vmem:[#allocation2 + $0xe68] sm:$0xff] %v3594
      %3647 = vst [vmem:[#allocation2 + $0xe70] sm:$0xff] %v3595
      %3648 = vst [vmem:[#allocation2 + $0xe78] sm:$0xff] %v3596
      %3649 = vst [vmem:[#allocation2 + $0xe80] sm:$0xff] %v3597
      %3650 = vst [vmem:[#allocation2 + $0xe88] sm:$0xff] %v3598
      %3651 = vst [vmem:[#allocation2 + $0xe90] sm:$0xff] %v3599
      %3652 = vst [vmem:[#allocation2 + $0xe98] sm:$0xff] %v3600
      %v3653 = vld [vmem:[%s165 + $0x14] sm:$0xff]
      %v3654 = vld [vmem:[%s165 + $0x1c] sm:$0xff]
      %v3655 = vld [vmem:[%s165 + $0x24] sm:$0xff]
      %v3656 = vld [vmem:[%s165 + $0x2c] sm:$0xff]
      %v3657 = vld [vmem:[%s165 + $0x34] sm:$0xff]
      %v3658 = vld [vmem:[%s165 + $0x3c] sm:$0xff]
      %v3659 = vld [vmem:[%s165 + $0x44] sm:$0xff]
      %v3660 = vld [vmem:[%s165 + $0x4c] sm:$0xff]
      %v3661 = vld [vmem:[%s165 + $0x54] sm:$0xff]
      %v3662 = vld [vmem:[%s165 + $0x5c] sm:$0xff]
      %v3663 = vld [vmem:[%s165 + $0x64] sm:$0xff]
      %v3664 = vld [vmem:[%s165 + $0x6c] sm:$0xff]
      %v3665 = vld [vmem:[%s165 + $0x74] sm:$0xff]
      %v3666 = vld [vmem:[%s165 + $0x7c] sm:$0xf]
      %v3667 = vunpack.c.l.bf16 %v3653
      %v3668 = vunpack.c.h.bf16 %v3653
      %v3669 = vunpack.c.l.bf16 %v3654
      %v3670 = vunpack.c.h.bf16 %v3654
      %v3671 = vunpack.c.l.bf16 %v3655
      %v3672 = vunpack.c.h.bf16 %v3655
      %v3673 = vunpack.c.l.bf16 %v3656
      %v3674 = vunpack.c.h.bf16 %v3656
      %v3675 = vunpack.c.l.bf16 %v3657
      %v3676 = vunpack.c.h.bf16 %v3657
      %v3677 = vunpack.c.l.bf16 %v3658
      %v3678 = vunpack.c.h.bf16 %v3658
      %v3679 = vunpack.c.l.bf16 %v3659
      %v3680 = vunpack.c.h.bf16 %v3659
      %v3681 = vunpack.c.l.bf16 %v3660
      %v3682 = vunpack.c.h.bf16 %v3660
      %v3683 = vunpack.c.l.bf16 %v3661
      %v3684 = vunpack.c.h.bf16 %v3661
      %v3685 = vunpack.c.l.bf16 %v3662
      %v3686 = vunpack.c.h.bf16 %v3662
      %v3687 = vunpack.c.l.bf16 %v3663
      %v3688 = vunpack.c.h.bf16 %v3663
      %v3689 = vunpack.c.l.bf16 %v3664
      %v3690 = vunpack.c.h.bf16 %v3664
      %v3691 = vunpack.c.l.bf16 %v3665
      %v3692 = vunpack.c.h.bf16 %v3665
      %v3693 = vunpack.c.l.bf16 %v3666
      %3721 = vrot.lane.b32.xlu0 %v3667, 120
      %v3722 = vpop.permute.xlu0 %3721
      %3723 = vrot.lane.b32.xlu0 %v3668, 120
      %v3724 = vpop.permute.xlu0 %3723
      %3725 = vrot.lane.b32.xlu0 %v3669, 120
      %v3726 = vpop.permute.xlu0 %3725
      %3727 = vrot.lane.b32.xlu0 %v3670, 120
      %v3728 = vpop.permute.xlu0 %3727
      %3729 = vrot.lane.b32.xlu0 %v3671, 120
      %v3730 = vpop.permute.xlu0 %3729
      %3731 = vrot.lane.b32.xlu0 %v3672, 120
      %v3732 = vpop.permute.xlu0 %3731
      %3733 = vrot.lane.b32.xlu0 %v3673, 120
      %v3734 = vpop.permute.xlu0 %3733
      %3735 = vrot.lane.b32.xlu0 %v3674, 120
      %v3736 = vpop.permute.xlu0 %3735
      %3737 = vrot.lane.b32.xlu0 %v3675, 120
      %v3738 = vpop.permute.xlu0 %3737
      %3739 = vrot.lane.b32.xlu0 %v3676, 120
      %v3740 = vpop.permute.xlu0 %3739
      %3741 = vrot.lane.b32.xlu0 %v3677, 120
      %v3742 = vpop.permute.xlu0 %3741
      %3743 = vrot.lane.b32.xlu0 %v3678, 120
      %v3744 = vpop.permute.xlu0 %3743
      %3745 = vrot.lane.b32.xlu0 %v3679, 120
      %v3746 = vpop.permute.xlu0 %3745
      %3747 = vrot.lane.b32.xlu0 %v3680, 120
      %v3748 = vpop.permute.xlu0 %3747
      %3749 = vrot.lane.b32.xlu0 %v3681, 120
      %v3750 = vpop.permute.xlu0 %3749
      %3751 = vrot.lane.b32.xlu0 %v3682, 120
      %v3752 = vpop.permute.xlu0 %3751
      %3753 = vrot.lane.b32.xlu0 %v3683, 120
      %v3754 = vpop.permute.xlu0 %3753
      %3755 = vrot.lane.b32.xlu0 %v3684, 120
      %v3756 = vpop.permute.xlu0 %3755
      %3757 = vrot.lane.b32.xlu0 %v3685, 120
      %v3758 = vpop.permute.xlu0 %3757
      %3759 = vrot.lane.b32.xlu0 %v3686, 120
      %v3760 = vpop.permute.xlu0 %3759
      %3761 = vrot.lane.b32.xlu0 %v3687, 120
      %v3762 = vpop.permute.xlu0 %3761
      %3763 = vrot.lane.b32.xlu0 %v3688, 120
      %v3764 = vpop.permute.xlu0 %3763
      %3765 = vrot.lane.b32.xlu0 %v3689, 120
      %v3766 = vpop.permute.xlu0 %3765
      %3767 = vrot.lane.b32.xlu0 %v3690, 120
      %v3768 = vpop.permute.xlu0 %3767
      %3769 = vrot.lane.b32.xlu0 %v3691, 120
      %v3770 = vpop.permute.xlu0 %3769
      %3771 = vrot.lane.b32.xlu0 %v3692, 120
      %v3772 = vpop.permute.xlu0 %3771
      %3773 = vrot.lane.b32.xlu0 %v3693, 120
      %v3774 = vpop.permute.xlu0 %3773
      %vm3775 = vcmask 982016
      %v3776 = vsel %vm3775, %v3722, %v3724
      %v3777 = vsel %vm3775, %v3724, %v3726
      %v3778 = vsel %vm3775, %v3726, %v3728
      %v3779 = vsel %vm3775, %v3728, %v3730
      %v3780 = vsel %vm3775, %v3730, %v3732
      %v3781 = vsel %vm3775, %v3732, %v3734
      %v3782 = vsel %vm3775, %v3734, %v3736
      %v3783 = vsel %vm3775, %v3736, %v3738
      %v3784 = vsel %vm3775, %v3738, %v3740
      %v3785 = vsel %vm3775, %v3740, %v3742
      %v3786 = vsel %vm3775, %v3742, %v3744
      %v3787 = vsel %vm3775, %v3744, %v3746
      %v3788 = vsel %vm3775, %v3746, %v3748
      %v3789 = vsel %vm3775, %v3748, %v3750
      %v3790 = vsel %vm3775, %v3750, %v3752
      %v3791 = vsel %vm3775, %v3752, %v3754
      %v3792 = vsel %vm3775, %v3754, %v3756
      %v3793 = vsel %vm3775, %v3756, %v3758
      %v3794 = vsel %vm3775, %v3758, %v3760
      %v3795 = vsel %vm3775, %v3760, %v3762
      %v3796 = vsel %vm3775, %v3762, %v3764
      %v3797 = vsel %vm3775, %v3764, %v3766
      %v3798 = vsel %vm3775, %v3766, %v3768
      %v3799 = vsel %vm3775, %v3768, %v3770
      %v3800 = vsel %vm3775, %v3770, %v3772
      %v3801 = vsel %vm3775, %v3772, %v3774
      %3828 = vst [vmem:[#allocation2 + $0xea0] sm:$0xff] %v3776
      %3829 = vst [vmem:[#allocation2 + $0xea8] sm:$0xff] %v3777
      %3830 = vst [vmem:[#allocation2 + $0xeb0] sm:$0xff] %v3778
      %3831 = vst [vmem:[#allocation2 + $0xeb8] sm:$0xff] %v3779
      %3832 = vst [vmem:[#allocation2 + $0xec0] sm:$0xff] %v3780
      %3833 = vst [vmem:[#allocation2 + $0xec8] sm:$0xff] %v3781
      %3834 = vst [vmem:[#allocation2 + $0xed0] sm:$0xff] %v3782
      %3835 = vst [vmem:[#allocation2 + $0xed8] sm:$0xff] %v3783
      %3836 = vst [vmem:[#allocation2 + $0xee0] sm:$0xff] %v3784
      %3837 = vst [vmem:[#allocation2 + $0xee8] sm:$0xff] %v3785
      %3838 = vst [vmem:[#allocation2 + $0xef0] sm:$0xff] %v3786
      %3839 = vst [vmem:[#allocation2 + $0xef8] sm:$0xff] %v3787
      %3840 = vst [vmem:[#allocation2 + $0xf00] sm:$0xff] %v3788
      %3841 = vst [vmem:[#allocation2 + $0xf08] sm:$0xff] %v3789
      %3842 = vst [vmem:[#allocation2 + $0xf10] sm:$0xff] %v3790
      %3843 = vst [vmem:[#allocation2 + $0xf18] sm:$0xff] %v3791
      %3844 = vst [vmem:[#allocation2 + $0xf20] sm:$0xff] %v3792
      %3845 = vst [vmem:[#allocation2 + $0xf28] sm:$0xff] %v3793
      %3846 = vst [vmem:[#allocation2 + $0xf30] sm:$0xff] %v3794
      %3847 = vst [vmem:[#allocation2 + $0xf38] sm:$0xff] %v3795
      %3848 = vst [vmem:[#allocation2 + $0xf40] sm:$0xff] %v3796
      %3849 = vst [vmem:[#allocation2 + $0xf48] sm:$0xff] %v3797
      %3850 = vst [vmem:[#allocation2 + $0xf50] sm:$0xff] %v3798
      %3851 = vst [vmem:[#allocation2 + $0xf58] sm:$0xff] %v3799
      %3852 = vst [vmem:[#allocation2 + $0xf60] sm:$0xff] %v3800
      %3853 = vst [vmem:[#allocation2 + $0xf68] sm:$0xff] %v3801
      %v3854 = vld [vmem:[%s165 + $0x14] sm:$0xff]
      %v3855 = vld [vmem:[%s165 + $0x1c] sm:$0xff]
      %v3856 = vld [vmem:[%s165 + $0x24] sm:$0xff]
      %v3857 = vld [vmem:[%s165 + $0x2c] sm:$0xff]
      %v3858 = vld [vmem:[%s165 + $0x34] sm:$0xff]
      %v3859 = vld [vmem:[%s165 + $0x3c] sm:$0xff]
      %v3860 = vld [vmem:[%s165 + $0x44] sm:$0xff]
      %v3861 = vld [vmem:[%s165 + $0x4c] sm:$0xff]
      %v3862 = vld [vmem:[%s165 + $0x54] sm:$0xff]
      %v3863 = vld [vmem:[%s165 + $0x5c] sm:$0xff]
      %v3864 = vld [vmem:[%s165 + $0x64] sm:$0xff]
      %v3865 = vld [vmem:[%s165 + $0x6c] sm:$0xff]
      %v3866 = vld [vmem:[%s165 + $0x74] sm:$0xff]
      %v3867 = vld [vmem:[%s165 + $0x7c] sm:$0xf]
      %v3868 = vunpack.c.l.bf16 %v3854
      %v3869 = vunpack.c.h.bf16 %v3854
      %v3870 = vunpack.c.l.bf16 %v3855
      %v3871 = vunpack.c.h.bf16 %v3855
      %v3872 = vunpack.c.l.bf16 %v3856
      %v3873 = vunpack.c.h.bf16 %v3856
      %v3874 = vunpack.c.l.bf16 %v3857
      %v3875 = vunpack.c.h.bf16 %v3857
      %v3876 = vunpack.c.l.bf16 %v3858
      %v3877 = vunpack.c.h.bf16 %v3858
      %v3878 = vunpack.c.l.bf16 %v3859
      %v3879 = vunpack.c.h.bf16 %v3859
      %v3880 = vunpack.c.l.bf16 %v3860
      %v3881 = vunpack.c.h.bf16 %v3860
      %v3882 = vunpack.c.l.bf16 %v3861
      %v3883 = vunpack.c.h.bf16 %v3861
      %v3884 = vunpack.c.l.bf16 %v3862
      %v3885 = vunpack.c.h.bf16 %v3862
      %v3886 = vunpack.c.l.bf16 %v3863
      %v3887 = vunpack.c.h.bf16 %v3863
      %v3888 = vunpack.c.l.bf16 %v3864
      %v3889 = vunpack.c.h.bf16 %v3864
      %v3890 = vunpack.c.l.bf16 %v3865
      %v3891 = vunpack.c.h.bf16 %v3865
      %v3892 = vunpack.c.l.bf16 %v3866
      %v3893 = vunpack.c.h.bf16 %v3866
      %v3894 = vunpack.c.l.bf16 %v3867
      %3922 = vrot.lane.b32.xlu0 %v3868, 119
      %v3923 = vpop.permute.xlu0 %3922
      %3924 = vrot.lane.b32.xlu0 %v3869, 119
      %v3925 = vpop.permute.xlu0 %3924
      %3926 = vrot.lane.b32.xlu0 %v3870, 119
      %v3927 = vpop.permute.xlu0 %3926
      %3928 = vrot.lane.b32.xlu0 %v3871, 119
      %v3929 = vpop.permute.xlu0 %3928
      %3930 = vrot.lane.b32.xlu0 %v3872, 119
      %v3931 = vpop.permute.xlu0 %3930
      %3932 = vrot.lane.b32.xlu0 %v3873, 119
      %v3933 = vpop.permute.xlu0 %3932
      %3934 = vrot.lane.b32.xlu0 %v3874, 119
      %v3935 = vpop.permute.xlu0 %3934
      %3936 = vrot.lane.b32.xlu0 %v3875, 119
      %v3937 = vpop.permute.xlu0 %3936
      %3938 = vrot.lane.b32.xlu0 %v3876, 119
      %v3939 = vpop.permute.xlu0 %3938
      %3940 = vrot.lane.b32.xlu0 %v3877, 119
      %v3941 = vpop.permute.xlu0 %3940
      %3942 = vrot.lane.b32.xlu0 %v3878, 119
      %v3943 = vpop.permute.xlu0 %3942
      %3944 = vrot.lane.b32.xlu0 %v3879, 119
      %v3945 = vpop.permute.xlu0 %3944
      %3946 = vrot.lane.b32.xlu0 %v3880, 119
      %v3947 = vpop.permute.xlu0 %3946
      %3948 = vrot.lane.b32.xlu0 %v3881, 119
      %v3949 = vpop.permute.xlu0 %3948
      %3950 = vrot.lane.b32.xlu0 %v3882, 119
      %v3951 = vpop.permute.xlu0 %3950
      %3952 = vrot.lane.b32.xlu0 %v3883, 119
      %v3953 = vpop.permute.xlu0 %3952
      %3954 = vrot.lane.b32.xlu0 %v3884, 119
      %v3955 = vpop.permute.xlu0 %3954
      %3956 = vrot.lane.b32.xlu0 %v3885, 119
      %v3957 = vpop.permute.xlu0 %3956
      %3958 = vrot.lane.b32.xlu0 %v3886, 119
      %v3959 = vpop.permute.xlu0 %3958
      %3960 = vrot.lane.b32.xlu0 %v3887, 119
      %v3961 = vpop.permute.xlu0 %3960
      %3962 = vrot.lane.b32.xlu0 %v3888, 119
      %v3963 = vpop.permute.xlu0 %3962
      %3964 = vrot.lane.b32.xlu0 %v3889, 119
      %v3965 = vpop.permute.xlu0 %3964
      %3966 = vrot.lane.b32.xlu0 %v3890, 119
      %v3967 = vpop.permute.xlu0 %3966
      %3968 = vrot.lane.b32.xlu0 %v3891, 119
      %v3969 = vpop.permute.xlu0 %3968
      %3970 = vrot.lane.b32.xlu0 %v3892, 119
      %v3971 = vpop.permute.xlu0 %3970
      %3972 = vrot.lane.b32.xlu0 %v3893, 119
      %v3973 = vpop.permute.xlu0 %3972
      %3974 = vrot.lane.b32.xlu0 %v3894, 119
      %v3975 = vpop.permute.xlu0 %3974
      %vm3976 = vcmask 973824
      %v3977 = vsel %vm3976, %v3923, %v3925
      %v3978 = vsel %vm3976, %v3925, %v3927
      %v3979 = vsel %vm3976, %v3927, %v3929
      %v3980 = vsel %vm3976, %v3929, %v3931
      %v3981 = vsel %vm3976, %v3931, %v3933
      %v3982 = vsel %vm3976, %v3933, %v3935
      %v3983 = vsel %vm3976, %v3935, %v3937
      %v3984 = vsel %vm3976, %v3937, %v3939
      %v3985 = vsel %vm3976, %v3939, %v3941
      %v3986 = vsel %vm3976, %v3941, %v3943
      %v3987 = vsel %vm3976, %v3943, %v3945
      %v3988 = vsel %vm3976, %v3945, %v3947
      %v3989 = vsel %vm3976, %v3947, %v3949
      %v3990 = vsel %vm3976, %v3949, %v3951
      %v3991 = vsel %vm3976, %v3951, %v3953
      %v3992 = vsel %vm3976, %v3953, %v3955
      %v3993 = vsel %vm3976, %v3955, %v3957
      %v3994 = vsel %vm3976, %v3957, %v3959
      %v3995 = vsel %vm3976, %v3959, %v3961
      %v3996 = vsel %vm3976, %v3961, %v3963
      %v3997 = vsel %vm3976, %v3963, %v3965
      %v3998 = vsel %vm3976, %v3965, %v3967
      %v3999 = vsel %vm3976, %v3967, %v3969
      %v4000 = vsel %vm3976, %v3969, %v3971
      %v4001 = vsel %vm3976, %v3971, %v3973
      %v4002 = vsel %vm3976, %v3973, %v3975
      %4029 = vst [vmem:[#allocation2 + $0xf70] sm:$0xff] %v3977
      %4030 = vst [vmem:[#allocation2 + $0xf78] sm:$0xff] %v3978
      %4031 = vst [vmem:[#allocation2 + $0xf80] sm:$0xff] %v3979
      %4032 = vst [vmem:[#allocation2 + $0xf88] sm:$0xff] %v3980
      %4033 = vst [vmem:[#allocation2 + $0xf90] sm:$0xff] %v3981
      %4034 = vst [vmem:[#allocation2 + $0xf98] sm:$0xff] %v3982
      %4035 = vst [vmem:[#allocation2 + $0xfa0] sm:$0xff] %v3983
      %4036 = vst [vmem:[#allocation2 + $0xfa8] sm:$0xff] %v3984
      %4037 = vst [vmem:[#allocation2 + $0xfb0] sm:$0xff] %v3985
      %4038 = vst [vmem:[#allocation2 + $0xfb8] sm:$0xff] %v3986
      %4039 = vst [vmem:[#allocation2 + $0xfc0] sm:$0xff] %v3987
      %4040 = vst [vmem:[#allocation2 + $0xfc8] sm:$0xff] %v3988
      %4041 = vst [vmem:[#allocation2 + $0xfd0] sm:$0xff] %v3989
      %4042 = vst [vmem:[#allocation2 + $0xfd8] sm:$0xff] %v3990
      %4043 = vst [vmem:[#allocation2 + $0xfe0] sm:$0xff] %v3991
      %4044 = vst [vmem:[#allocation2 + $0xfe8] sm:$0xff] %v3992
      %4045 = vst [vmem:[#allocation2 + $0xff0] sm:$0xff] %v3993
      %4046 = vst [vmem:[#allocation2 + $0xff8] sm:$0xff] %v3994
      %4047 = vst [vmem:[#allocation2 + $0x1000] sm:$0xff] %v3995
      %4048 = vst [vmem:[#allocation2 + $0x1008] sm:$0xff] %v3996
      %4049 = vst [vmem:[#allocation2 + $0x1010] sm:$0xff] %v3997
      %4050 = vst [vmem:[#allocation2 + $0x1018] sm:$0xff] %v3998
      %4051 = vst [vmem:[#allocation2 + $0x1020] sm:$0xff] %v3999
      %4052 = vst [vmem:[#allocation2 + $0x1028] sm:$0xff] %v4000
      %4053 = vst [vmem:[#allocation2 + $0x1030] sm:$0xff] %v4001
      %4054 = vst [vmem:[#allocation2 + $0x1038] sm:$0xff] %v4002
      %v4055 = vld [vmem:[%s165 + $0x14] sm:$0xff]
      %v4056 = vld [vmem:[%s165 + $0x1c] sm:$0xff]
      %v4057 = vld [vmem:[%s165 + $0x24] sm:$0xff]
      %v4058 = vld [vmem:[%s165 + $0x2c] sm:$0xff]
      %v4059 = vld [vmem:[%s165 + $0x34] sm:$0xff]
      %v4060 = vld [vmem:[%s165 + $0x3c] sm:$0xff]
      %v4061 = vld [vmem:[%s165 + $0x44] sm:$0xff]
      %v4062 = vld [vmem:[%s165 + $0x4c] sm:$0xff]
      %v4063 = vld [vmem:[%s165 + $0x54] sm:$0xff]
      %v4064 = vld [vmem:[%s165 + $0x5c] sm:$0xff]
      %v4065 = vld [vmem:[%s165 + $0x64] sm:$0xff]
      %v4066 = vld [vmem:[%s165 + $0x6c] sm:$0xff]
      %v4067 = vld [vmem:[%s165 + $0x74] sm:$0xff]
      %v4068 = vld [vmem:[%s165 + $0x7c] sm:$0xf]
      %v4069 = vunpack.c.l.bf16 %v4055
      %v4070 = vunpack.c.h.bf16 %v4055
      %v4071 = vunpack.c.l.bf16 %v4056
      %v4072 = vunpack.c.h.bf16 %v4056
      %v4073 = vunpack.c.l.bf16 %v4057
      %v4074 = vunpack.c.h.bf16 %v4057
      %v4075 = vunpack.c.l.bf16 %v4058
      %v4076 = vunpack.c.h.bf16 %v4058
      %v4077 = vunpack.c.l.bf16 %v4059
      %v4078 = vunpack.c.h.bf16 %v4059
      %v4079 = vunpack.c.l.bf16 %v4060
      %v4080 = vunpack.c.h.bf16 %v4060
      %v4081 = vunpack.c.l.bf16 %v4061
      %v4082 = vunpack.c.h.bf16 %v4061
      %v4083 = vunpack.c.l.bf16 %v4062
      %v4084 = vunpack.c.h.bf16 %v4062
      %v4085 = vunpack.c.l.bf16 %v4063
      %v4086 = vunpack.c.h.bf16 %v4063
      %v4087 = vunpack.c.l.bf16 %v4064
      %v4088 = vunpack.c.h.bf16 %v4064
      %v4089 = vunpack.c.l.bf16 %v4065
      %v4090 = vunpack.c.h.bf16 %v4065
      %v4091 = vunpack.c.l.bf16 %v4066
      %v4092 = vunpack.c.h.bf16 %v4066
      %v4093 = vunpack.c.l.bf16 %v4067
      %v4094 = vunpack.c.h.bf16 %v4067
      %v4095 = vunpack.c.l.bf16 %v4068
      %4123 = vrot.lane.b32.xlu0 %v4069, 118
      %v4124 = vpop.permute.xlu0 %4123
      %4125 = vrot.lane.b32.xlu0 %v4070, 118
      %v4126 = vpop.permute.xlu0 %4125
      %4127 = vrot.lane.b32.xlu0 %v4071, 118
      %v4128 = vpop.permute.xlu0 %4127
      %4129 = vrot.lane.b32.xlu0 %v4072, 118
      %v4130 = vpop.permute.xlu0 %4129
      %4131 = vrot.lane.b32.xlu0 %v4073, 118
      %v4132 = vpop.permute.xlu0 %4131
      %4133 = vrot.lane.b32.xlu0 %v4074, 118
      %v4134 = vpop.permute.xlu0 %4133
      %4135 = vrot.lane.b32.xlu0 %v4075, 118
      %v4136 = vpop.permute.xlu0 %4135
      %4137 = vrot.lane.b32.xlu0 %v4076, 118
      %v4138 = vpop.permute.xlu0 %4137
      %4139 = vrot.lane.b32.xlu0 %v4077, 118
      %v4140 = vpop.permute.xlu0 %4139
      %4141 = vrot.lane.b32.xlu0 %v4078, 118
      %v4142 = vpop.permute.xlu0 %4141
      %4143 = vrot.lane.b32.xlu0 %v4079, 118
      %v4144 = vpop.permute.xlu0 %4143
      %4145 = vrot.lane.b32.xlu0 %v4080, 118
      %v4146 = vpop.permute.xlu0 %4145
      %4147 = vrot.lane.b32.xlu0 %v4081, 118
      %v4148 = vpop.permute.xlu0 %4147
      %4149 = vrot.lane.b32.xlu0 %v4082, 118
      %v4150 = vpop.permute.xlu0 %4149
      %4151 = vrot.lane.b32.xlu0 %v4083, 118
      %v4152 = vpop.permute.xlu0 %4151
      %4153 = vrot.lane.b32.xlu0 %v4084, 118
      %v4154 = vpop.permute.xlu0 %4153
      %4155 = vrot.lane.b32.xlu0 %v4085, 118
      %v4156 = vpop.permute.xlu0 %4155
      %4157 = vrot.lane.b32.xlu0 %v4086, 118
      %v4158 = vpop.permute.xlu0 %4157
      %4159 = vrot.lane.b32.xlu0 %v4087, 118
      %v4160 = vpop.permute.xlu0 %4159
      %4161 = vrot.lane.b32.xlu0 %v4088, 118
      %v4162 = vpop.permute.xlu0 %4161
      %4163 = vrot.lane.b32.xlu0 %v4089, 118
      %v4164 = vpop.permute.xlu0 %4163
      %4165 = vrot.lane.b32.xlu0 %v4090, 118
      %v4166 = vpop.permute.xlu0 %4165
      %4167 = vrot.lane.b32.xlu0 %v4091, 118
      %v4168 = vpop.permute.xlu0 %4167
      %4169 = vrot.lane.b32.xlu0 %v4092, 118
      %v4170 = vpop.permute.xlu0 %4169
      %4171 = vrot.lane.b32.xlu0 %v4093, 118
      %v4172 = vpop.permute.xlu0 %4171
      %4173 = vrot.lane.b32.xlu0 %v4094, 118
      %v4174 = vpop.permute.xlu0 %4173
      %4175 = vrot.lane.b32.xlu0 %v4095, 118
      %v4176 = vpop.permute.xlu0 %4175
      %vm4177 = vcmask 965632
      %v4178 = vsel %vm4177, %v4124, %v4126
      %v4179 = vsel %vm4177, %v4126, %v4128
      %v4180 = vsel %vm4177, %v4128, %v4130
      %v4181 = vsel %vm4177, %v4130, %v4132
      %v4182 = vsel %vm4177, %v4132, %v4134
      %v4183 = vsel %vm4177, %v4134, %v4136
      %v4184 = vsel %vm4177, %v4136, %v4138
      %v4185 = vsel %vm4177, %v4138, %v4140
      %v4186 = vsel %vm4177, %v4140, %v4142
      %v4187 = vsel %vm4177, %v4142, %v4144
      %v4188 = vsel %vm4177, %v4144, %v4146
      %v4189 = vsel %vm4177, %v4146, %v4148
      %v4190 = vsel %vm4177, %v4148, %v4150
      %v4191 = vsel %vm4177, %v4150, %v4152
      %v4192 = vsel %vm4177, %v4152, %v4154
      %v4193 = vsel %vm4177, %v4154, %v4156
      %v4194 = vsel %vm4177, %v4156, %v4158
      %v4195 = vsel %vm4177, %v4158, %v4160
      %v4196 = vsel %vm4177, %v4160, %v4162
      %v4197 = vsel %vm4177, %v4162, %v4164
      %v4198 = vsel %vm4177, %v4164, %v4166
      %v4199 = vsel %vm4177, %v4166, %v4168
      %v4200 = vsel %vm4177, %v4168, %v4170
      %v4201 = vsel %vm4177, %v4170, %v4172
      %v4202 = vsel %vm4177, %v4172, %v4174
      %v4203 = vsel %vm4177, %v4174, %v4176
      %4230 = vst [vmem:[#allocation2 + $0x1040] sm:$0xff] %v4178
      %4231 = vst [vmem:[#allocation2 + $0x1048] sm:$0xff] %v4179
      %4232 = vst [vmem:[#allocation2 + $0x1050] sm:$0xff] %v4180
      %4233 = vst [vmem:[#allocation2 + $0x1058] sm:$0xff] %v4181
      %4234 = vst [vmem:[#allocation2 + $0x1060] sm:$0xff] %v4182
      %4235 = vst [vmem:[#allocation2 + $0x1068] sm:$0xff] %v4183
      %4236 = vst [vmem:[#allocation2 + $0x1070] sm:$0xff] %v4184
      %4237 = vst [vmem:[#allocation2 + $0x1078] sm:$0xff] %v4185
      %4238 = vst [vmem:[#allocation2 + $0x1080] sm:$0xff] %v4186
      %4239 = vst [vmem:[#allocation2 + $0x1088] sm:$0xff] %v4187
      %4240 = vst [vmem:[#allocation2 + $0x1090] sm:$0xff] %v4188
      %4241 = vst [vmem:[#allocation2 + $0x1098] sm:$0xff] %v4189
      %4242 = vst [vmem:[#allocation2 + $0x10a0] sm:$0xff] %v4190
      %4243 = vst [vmem:[#allocation2 + $0x10a8] sm:$0xff] %v4191
      %4244 = vst [vmem:[#allocation2 + $0x10b0] sm:$0xff] %v4192
      %4245 = vst [vmem:[#allocation2 + $0x10b8] sm:$0xff] %v4193
      %4246 = vst [vmem:[#allocation2 + $0x10c0] sm:$0xff] %v4194
      %4247 = vst [vmem:[#allocation2 + $0x10c8] sm:$0xff] %v4195
      %4248 = vst [vmem:[#allocation2 + $0x10d0] sm:$0xff] %v4196
      %4249 = vst [vmem:[#allocation2 + $0x10d8] sm:$0xff] %v4197
      %4250 = vst [vmem:[#allocation2 + $0x10e0] sm:$0xff] %v4198
      %4251 = vst [vmem:[#allocation2 + $0x10e8] sm:$0xff] %v4199
      %4252 = vst [vmem:[#allocation2 + $0x10f0] sm:$0xff] %v4200
      %4253 = vst [vmem:[#allocation2 + $0x10f8] sm:$0xff] %v4201
      %4254 = vst [vmem:[#allocation2 + $0x1100] sm:$0xff] %v4202
      %4255 = vst [vmem:[#allocation2 + $0x1108] sm:$0xff] %v4203
      %v4256 = vld [vmem:[%s165 + $0x14] sm:$0xff]
      %v4257 = vld [vmem:[%s165 + $0x1c] sm:$0xff]
      %v4258 = vld [vmem:[%s165 + $0x24] sm:$0xff]
      %v4259 = vld [vmem:[%s165 + $0x2c] sm:$0xff]
      %v4260 = vld [vmem:[%s165 + $0x34] sm:$0xff]
      %v4261 = vld [vmem:[%s165 + $0x3c] sm:$0xff]
      %v4262 = vld [vmem:[%s165 + $0x44] sm:$0xff]
      %v4263 = vld [vmem:[%s165 + $0x4c] sm:$0xff]
      %v4264 = vld [vmem:[%s165 + $0x54] sm:$0xff]
      %v4265 = vld [vmem:[%s165 + $0x5c] sm:$0xff]
      %v4266 = vld [vmem:[%s165 + $0x64] sm:$0xff]
      %v4267 = vld [vmem:[%s165 + $0x6c] sm:$0xff]
      %v4268 = vld [vmem:[%s165 + $0x74] sm:$0xff]
      %v4269 = vld [vmem:[%s165 + $0x7c] sm:$0xf]
      %v4270 = vunpack.c.l.bf16 %v4256
      %v4271 = vunpack.c.h.bf16 %v4256
      %v4272 = vunpack.c.l.bf16 %v4257
      %v4273 = vunpack.c.h.bf16 %v4257
      %v4274 = vunpack.c.l.bf16 %v4258
      %v4275 = vunpack.c.h.bf16 %v4258
      %v4276 = vunpack.c.l.bf16 %v4259
      %v4277 = vunpack.c.h.bf16 %v4259
      %v4278 = vunpack.c.l.bf16 %v4260
      %v4279 = vunpack.c.h.bf16 %v4260
      %v4280 = vunpack.c.l.bf16 %v4261
      %v4281 = vunpack.c.h.bf16 %v4261
      %v4282 = vunpack.c.l.bf16 %v4262
      %v4283 = vunpack.c.h.bf16 %v4262
      %v4284 = vunpack.c.l.bf16 %v4263
      %v4285 = vunpack.c.h.bf16 %v4263
      %v4286 = vunpack.c.l.bf16 %v4264
      %v4287 = vunpack.c.h.bf16 %v4264
      %v4288 = vunpack.c.l.bf16 %v4265
      %v4289 = vunpack.c.h.bf16 %v4265
      %v4290 = vunpack.c.l.bf16 %v4266
      %v4291 = vunpack.c.h.bf16 %v4266
      %v4292 = vunpack.c.l.bf16 %v4267
      %v4293 = vunpack.c.h.bf16 %v4267
      %v4294 = vunpack.c.l.bf16 %v4268
      %v4295 = vunpack.c.h.bf16 %v4268
      %v4296 = vunpack.c.l.bf16 %v4269
      %4324 = vrot.lane.b32.xlu0 %v4270, 102
      %v4325 = vpop.permute.xlu0 %4324
      %4326 = vrot.lane.b32.xlu0 %v4271, 102
      %v4327 = vpop.permute.xlu0 %4326
      %4328 = vrot.lane.b32.xlu0 %v4272, 102
      %v4329 = vpop.permute.xlu0 %4328
      %4330 = vrot.lane.b32.xlu0 %v4273, 102
      %v4331 = vpop.permute.xlu0 %4330
      %4332 = vrot.lane.b32.xlu0 %v4274, 102
      %v4333 = vpop.permute.xlu0 %4332
      %4334 = vrot.lane.b32.xlu0 %v4275, 102
      %v4335 = vpop.permute.xlu0 %4334
      %4336 = vrot.lane.b32.xlu0 %v4276, 102
      %v4337 = vpop.permute.xlu0 %4336
      %4338 = vrot.lane.b32.xlu0 %v4277, 102
      %v4339 = vpop.permute.xlu0 %4338
      %4340 = vrot.lane.b32.xlu0 %v4278, 102
      %v4341 = vpop.permute.xlu0 %4340
      %4342 = vrot.lane.b32.xlu0 %v4279, 102
      %v4343 = vpop.permute.xlu0 %4342
      %4344 = vrot.lane.b32.xlu0 %v4280, 102
      %v4345 = vpop.permute.xlu0 %4344
      %4346 = vrot.lane.b32.xlu0 %v4281, 102
      %v4347 = vpop.permute.xlu0 %4346
      %4348 = vrot.lane.b32.xlu0 %v4282, 102
      %v4349 = vpop.permute.xlu0 %4348
      %4350 = vrot.lane.b32.xlu0 %v4283, 102
      %v4351 = vpop.permute.xlu0 %4350
      %4352 = vrot.lane.b32.xlu0 %v4284, 102
      %v4353 = vpop.permute.xlu0 %4352
      %4354 = vrot.lane.b32.xlu0 %v4285, 102
      %v4355 = vpop.permute.xlu0 %4354
      %4356 = vrot.lane.b32.xlu0 %v4286, 102
      %v4357 = vpop.permute.xlu0 %4356
      %4358 = vrot.lane.b32.xlu0 %v4287, 102
      %v4359 = vpop.permute.xlu0 %4358
      %4360 = vrot.lane.b32.xlu0 %v4288, 102
      %v4361 = vpop.permute.xlu0 %4360
      %4362 = vrot.lane.b32.xlu0 %v4289, 102
      %v4363 = vpop.permute.xlu0 %4362
      %4364 = vrot.lane.b32.xlu0 %v4290, 102
      %v4365 = vpop.permute.xlu0 %4364
      %4366 = vrot.lane.b32.xlu0 %v4291, 102
      %v4367 = vpop.permute.xlu0 %4366
      %4368 = vrot.lane.b32.xlu0 %v4292, 102
      %v4369 = vpop.permute.xlu0 %4368
      %4370 = vrot.lane.b32.xlu0 %v4293, 102
      %v4371 = vpop.permute.xlu0 %4370
      %4372 = vrot.lane.b32.xlu0 %v4294, 102
      %v4373 = vpop.permute.xlu0 %4372
      %4374 = vrot.lane.b32.xlu0 %v4295, 102
      %v4375 = vpop.permute.xlu0 %4374
      %4376 = vrot.lane.b32.xlu0 %v4296, 102
      %v4377 = vpop.permute.xlu0 %4376
      %vm4378 = vcmask 834560
      %v4379 = vsel %vm4378, %v4325, %v4327
      %v4380 = vsel %vm4378, %v4327, %v4329
      %v4381 = vsel %vm4378, %v4329, %v4331
      %v4382 = vsel %vm4378, %v4331, %v4333
      %v4383 = vsel %vm4378, %v4333, %v4335
      %v4384 = vsel %vm4378, %v4335, %v4337
      %v4385 = vsel %vm4378, %v4337, %v4339
      %v4386 = vsel %vm4378, %v4339, %v4341
      %v4387 = vsel %vm4378, %v4341, %v4343
      %v4388 = vsel %vm4378, %v4343, %v4345
      %v4389 = vsel %vm4378, %v4345, %v4347
      %v4390 = vsel %vm4378, %v4347, %v4349
      %v4391 = vsel %vm4378, %v4349, %v4351
      %v4392 = vsel %vm4378, %v4351, %v4353
      %v4393 = vsel %vm4378, %v4353, %v4355
      %v4394 = vsel %vm4378, %v4355, %v4357
      %v4395 = vsel %vm4378, %v4357, %v4359
      %v4396 = vsel %vm4378, %v4359, %v4361
      %v4397 = vsel %vm4378, %v4361, %v4363
      %v4398 = vsel %vm4378, %v4363, %v4365
      %v4399 = vsel %vm4378, %v4365, %v4367
      %v4400 = vsel %vm4378, %v4367, %v4369
      %v4401 = vsel %vm4378, %v4369, %v4371
      %v4402 = vsel %vm4378, %v4371, %v4373
      %v4403 = vsel %vm4378, %v4373, %v4375
      %v4404 = vsel %vm4378, %v4375, %v4377
      %4431 = vst [vmem:[#allocation2 + $0x1110] sm:$0xff] %v4379
      %4432 = vst [vmem:[#allocation2 + $0x1118] sm:$0xff] %v4380
      %4433 = vst [vmem:[#allocation2 + $0x1120] sm:$0xff] %v4381
      %4434 = vst [vmem:[#allocation2 + $0x1128] sm:$0xff] %v4382
      %4435 = vst [vmem:[#allocation2 + $0x1130] sm:$0xff] %v4383
      %4436 = vst [vmem:[#allocation2 + $0x1138] sm:$0xff] %v4384
      %4437 = vst [vmem:[#allocation2 + $0x1140] sm:$0xff] %v4385
      %4438 = vst [vmem:[#allocation2 + $0x1148] sm:$0xff] %v4386
      %4439 = vst [vmem:[#allocation2 + $0x1150] sm:$0xff] %v4387
      %4440 = vst [vmem:[#allocation2 + $0x1158] sm:$0xff] %v4388
      %4441 = vst [vmem:[#allocation2 + $0x1160] sm:$0xff] %v4389
      %4442 = vst [vmem:[#allocation2 + $0x1168] sm:$0xff] %v4390
      %4443 = vst [vmem:[#allocation2 + $0x1170] sm:$0xff] %v4391
      %4444 = vst [vmem:[#allocation2 + $0x1178] sm:$0xff] %v4392
      %4445 = vst [vmem:[#allocation2 + $0x1180] sm:$0xff] %v4393
      %4446 = vst [vmem:[#allocation2 + $0x1188] sm:$0xff] %v4394
      %4447 = vst [vmem:[#allocation2 + $0x1190] sm:$0xff] %v4395
      %4448 = vst [vmem:[#allocation2 + $0x1198] sm:$0xff] %v4396
      %4449 = vst [vmem:[#allocation2 + $0x11a0] sm:$0xff] %v4397
      %4450 = vst [vmem:[#allocation2 + $0x11a8] sm:$0xff] %v4398
      %4451 = vst [vmem:[#allocation2 + $0x11b0] sm:$0xff] %v4399
      %4452 = vst [vmem:[#allocation2 + $0x11b8] sm:$0xff] %v4400
      %4453 = vst [vmem:[#allocation2 + $0x11c0] sm:$0xff] %v4401
      %4454 = vst [vmem:[#allocation2 + $0x11c8] sm:$0xff] %v4402
      %4455 = vst [vmem:[#allocation2 + $0x11d0] sm:$0xff] %v4403
      %4456 = vst [vmem:[#allocation2 + $0x11d8] sm:$0xff] %v4404
      %v4457 = vld [vmem:[%s165 + $0x14] sm:$0xff]
      %v4458 = vld [vmem:[%s165 + $0x1c] sm:$0xff]
      %v4459 = vld [vmem:[%s165 + $0x24] sm:$0xff]
      %v4460 = vld [vmem:[%s165 + $0x2c] sm:$0xff]
      %v4461 = vld [vmem:[%s165 + $0x34] sm:$0xff]
      %v4462 = vld [vmem:[%s165 + $0x3c] sm:$0xff]
      %v4463 = vld [vmem:[%s165 + $0x44] sm:$0xff]
      %v4464 = vld [vmem:[%s165 + $0x4c] sm:$0xff]
      %v4465 = vld [vmem:[%s165 + $0x54] sm:$0xff]
      %v4466 = vld [vmem:[%s165 + $0x5c] sm:$0xff]
      %v4467 = vld [vmem:[%s165 + $0x64] sm:$0xff]
      %v4468 = vld [vmem:[%s165 + $0x6c] sm:$0xff]
      %v4469 = vld [vmem:[%s165 + $0x74] sm:$0xff]
      %v4470 = vld [vmem:[%s165 + $0x7c] sm:$0xf]
      %v4471 = vunpack.c.l.bf16 %v4457
      %v4472 = vunpack.c.h.bf16 %v4457
      %v4473 = vunpack.c.l.bf16 %v4458
      %v4474 = vunpack.c.h.bf16 %v4458
      %v4475 = vunpack.c.l.bf16 %v4459
      %v4476 = vunpack.c.h.bf16 %v4459
      %v4477 = vunpack.c.l.bf16 %v4460
      %v4478 = vunpack.c.h.bf16 %v4460
      %v4479 = vunpack.c.l.bf16 %v4461
      %v4480 = vunpack.c.h.bf16 %v4461
      %v4481 = vunpack.c.l.bf16 %v4462
      %v4482 = vunpack.c.h.bf16 %v4462
      %v4483 = vunpack.c.l.bf16 %v4463
      %v4484 = vunpack.c.h.bf16 %v4463
      %v4485 = vunpack.c.l.bf16 %v4464
      %v4486 = vunpack.c.h.bf16 %v4464
      %v4487 = vunpack.c.l.bf16 %v4465
      %v4488 = vunpack.c.h.bf16 %v4465
      %v4489 = vunpack.c.l.bf16 %v4466
      %v4490 = vunpack.c.h.bf16 %v4466
      %v4491 = vunpack.c.l.bf16 %v4467
      %v4492 = vunpack.c.h.bf16 %v4467
      %v4493 = vunpack.c.l.bf16 %v4468
      %v4494 = vunpack.c.h.bf16 %v4468
      %v4495 = vunpack.c.l.bf16 %v4469
      %v4496 = vunpack.c.h.bf16 %v4469
      %v4497 = vunpack.c.l.bf16 %v4470
      %4525 = vrot.lane.b32.xlu0 %v4471, 101
      %v4526 = vpop.permute.xlu0 %4525
      %4527 = vrot.lane.b32.xlu0 %v4472, 101
      %v4528 = vpop.permute.xlu0 %4527
      %4529 = vrot.lane.b32.xlu0 %v4473, 101
      %v4530 = vpop.permute.xlu0 %4529
      %4531 = vrot.lane.b32.xlu0 %v4474, 101
      %v4532 = vpop.permute.xlu0 %4531
      %4533 = vrot.lane.b32.xlu0 %v4475, 101
      %v4534 = vpop.permute.xlu0 %4533
      %4535 = vrot.lane.b32.xlu0 %v4476, 101
      %v4536 = vpop.permute.xlu0 %4535
      %4537 = vrot.lane.b32.xlu0 %v4477, 101
      %v4538 = vpop.permute.xlu0 %4537
      %4539 = vrot.lane.b32.xlu0 %v4478, 101
      %v4540 = vpop.permute.xlu0 %4539
      %4541 = vrot.lane.b32.xlu0 %v4479, 101
      %v4542 = vpop.permute.xlu0 %4541
      %4543 = vrot.lane.b32.xlu0 %v4480, 101
      %v4544 = vpop.permute.xlu0 %4543
      %4545 = vrot.lane.b32.xlu0 %v4481, 101
      %v4546 = vpop.permute.xlu0 %4545
      %4547 = vrot.lane.b32.xlu0 %v4482, 101
      %v4548 = vpop.permute.xlu0 %4547
      %4549 = vrot.lane.b32.xlu0 %v4483, 101
      %v4550 = vpop.permute.xlu0 %4549
      %4551 = vrot.lane.b32.xlu0 %v4484, 101
      %v4552 = vpop.permute.xlu0 %4551
      %4553 = vrot.lane.b32.xlu0 %v4485, 101
      %v4554 = vpop.permute.xlu0 %4553
      %4555 = vrot.lane.b32.xlu0 %v4486, 101
      %v4556 = vpop.permute.xlu0 %4555
      %4557 = vrot.lane.b32.xlu0 %v4487, 101
      %v4558 = vpop.permute.xlu0 %4557
      %4559 = vrot.lane.b32.xlu0 %v4488, 101
      %v4560 = vpop.permute.xlu0 %4559
      %4561 = vrot.lane.b32.xlu0 %v4489, 101
      %v4562 = vpop.permute.xlu0 %4561
      %4563 = vrot.lane.b32.xlu0 %v4490, 101
      %v4564 = vpop.permute.xlu0 %4563
      %4565 = vrot.lane.b32.xlu0 %v4491, 101
      %v4566 = vpop.permute.xlu0 %4565
      %4567 = vrot.lane.b32.xlu0 %v4492, 101
      %v4568 = vpop.permute.xlu0 %4567
      %4569 = vrot.lane.b32.xlu0 %v4493, 101
      %v4570 = vpop.permute.xlu0 %4569
      %4571 = vrot.lane.b32.xlu0 %v4494, 101
      %v4572 = vpop.permute.xlu0 %4571
      %4573 = vrot.lane.b32.xlu0 %v4495, 101
      %v4574 = vpop.permute.xlu0 %4573
      %4575 = vrot.lane.b32.xlu0 %v4496, 101
      %v4576 = vpop.permute.xlu0 %4575
      %4577 = vrot.lane.b32.xlu0 %v4497, 101
      %v4578 = vpop.permute.xlu0 %4577
      %vm4579 = vcmask 826368
      %v4580 = vsel %vm4579, %v4526, %v4528
      %v4581 = vsel %vm4579, %v4528, %v4530
      %v4582 = vsel %vm4579, %v4530, %v4532
      %v4583 = vsel %vm4579, %v4532, %v4534
      %v4584 = vsel %vm4579, %v4534, %v4536
      %v4585 = vsel %vm4579, %v4536, %v4538
      %v4586 = vsel %vm4579, %v4538, %v4540
      %v4587 = vsel %vm4579, %v4540, %v4542
      %v4588 = vsel %vm4579, %v4542, %v4544
      %v4589 = vsel %vm4579, %v4544, %v4546
      %v4590 = vsel %vm4579, %v4546, %v4548
      %v4591 = vsel %vm4579, %v4548, %v4550
      %v4592 = vsel %vm4579, %v4550, %v4552
      %v4593 = vsel %vm4579, %v4552, %v4554
      %v4594 = vsel %vm4579, %v4554, %v4556
      %v4595 = vsel %vm4579, %v4556, %v4558
      %v4596 = vsel %vm4579, %v4558, %v4560
      %v4597 = vsel %vm4579, %v4560, %v4562
      %v4598 = vsel %vm4579, %v4562, %v4564
      %v4599 = vsel %vm4579, %v4564, %v4566
      %v4600 = vsel %vm4579, %v4566, %v4568
      %v4601 = vsel %vm4579, %v4568, %v4570
      %v4602 = vsel %vm4579, %v4570, %v4572
      %v4603 = vsel %vm4579, %v4572, %v4574
      %v4604 = vsel %vm4579, %v4574, %v4576
      %v4605 = vsel %vm4579, %v4576, %v4578
      %4632 = vst [vmem:[#allocation2 + $0x11e0] sm:$0xff] %v4580
      %4633 = vst [vmem:[#allocation2 + $0x11e8] sm:$0xff] %v4581
      %4634 = vst [vmem:[#allocation2 + $0x11f0] sm:$0xff] %v4582
      %4635 = vst [vmem:[#allocation2 + $0x11f8] sm:$0xff] %v4583
      %4636 = vst [vmem:[#allocation2 + $0x1200] sm:$0xff] %v4584
      %4637 = vst [vmem:[#allocation2 + $0x1208] sm:$0xff] %v4585
      %4638 = vst [vmem:[#allocation2 + $0x1210] sm:$0xff] %v4586
      %4639 = vst [vmem:[#allocation2 + $0x1218] sm:$0xff] %v4587
      %4640 = vst [vmem:[#allocation2 + $0x1220] sm:$0xff] %v4588
      %4641 = vst [vmem:[#allocation2 + $0x1228] sm:$0xff] %v4589
      %4642 = vst [vmem:[#allocation2 + $0x1230] sm:$0xff] %v4590
      %4643 = vst [vmem:[#allocation2 + $0x1238] sm:$0xff] %v4591
      %4644 = vst [vmem:[#allocation2 + $0x1240] sm:$0xff] %v4592
      %4645 = vst [vmem:[#allocation2 + $0x1248] sm:$0xff] %v4593
      %4646 = vst [vmem:[#allocation2 + $0x1250] sm:$0xff] %v4594
      %4647 = vst [vmem:[#allocation2 + $0x1258] sm:$0xff] %v4595
      %4648 = vst [vmem:[#allocation2 + $0x1260] sm:$0xff] %v4596
      %4649 = vst [vmem:[#allocation2 + $0x1268] sm:$0xff] %v4597
      %4650 = vst [vmem:[#allocation2 + $0x1270] sm:$0xff] %v4598
      %4651 = vst [vmem:[#allocation2 + $0x1278] sm:$0xff] %v4599
      %4652 = vst [vmem:[#allocation2 + $0x1280] sm:$0xff] %v4600
      %4653 = vst [vmem:[#allocation2 + $0x1288] sm:$0xff] %v4601
      %4654 = vst [vmem:[#allocation2 + $0x1290] sm:$0xff] %v4602
      %4655 = vst [vmem:[#allocation2 + $0x1298] sm:$0xff] %v4603
      %4656 = vst [vmem:[#allocation2 + $0x12a0] sm:$0xff] %v4604
      %4657 = vst [vmem:[#allocation2 + $0x12a8] sm:$0xff] %v4605
      %v4658 = vld [vmem:[%s165 + $0x14] sm:$0xff]
      %v4659 = vld [vmem:[%s165 + $0x1c] sm:$0xff]
      %v4660 = vld [vmem:[%s165 + $0x24] sm:$0xff]
      %v4661 = vld [vmem:[%s165 + $0x2c] sm:$0xff]
      %v4662 = vld [vmem:[%s165 + $0x34] sm:$0xff]
      %v4663 = vld [vmem:[%s165 + $0x3c] sm:$0xff]
      %v4664 = vld [vmem:[%s165 + $0x44] sm:$0xff]
      %v4665 = vld [vmem:[%s165 + $0x4c] sm:$0xff]
      %v4666 = vld [vmem:[%s165 + $0x54] sm:$0xff]
      %v4667 = vld [vmem:[%s165 + $0x5c] sm:$0xff]
      %v4668 = vld [vmem:[%s165 + $0x64] sm:$0xff]
      %v4669 = vld [vmem:[%s165 + $0x6c] sm:$0xff]
      %v4670 = vld [vmem:[%s165 + $0x74] sm:$0xff]
      %v4671 = vld [vmem:[%s165 + $0x7c] sm:$0xf]
      %v4672 = vunpack.c.l.bf16 %v4658
      %v4673 = vunpack.c.h.bf16 %v4658
      %v4674 = vunpack.c.l.bf16 %v4659
      %v4675 = vunpack.c.h.bf16 %v4659
      %v4676 = vunpack.c.l.bf16 %v4660
      %v4677 = vunpack.c.h.bf16 %v4660
      %v4678 = vunpack.c.l.bf16 %v4661
      %v4679 = vunpack.c.h.bf16 %v4661
      %v4680 = vunpack.c.l.bf16 %v4662
      %v4681 = vunpack.c.h.bf16 %v4662
      %v4682 = vunpack.c.l.bf16 %v4663
      %v4683 = vunpack.c.h.bf16 %v4663
      %v4684 = vunpack.c.l.bf16 %v4664
      %v4685 = vunpack.c.h.bf16 %v4664
      %v4686 = vunpack.c.l.bf16 %v4665
      %v4687 = vunpack.c.h.bf16 %v4665
      %v4688 = vunpack.c.l.bf16 %v4666
      %v4689 = vunpack.c.h.bf16 %v4666
      %v4690 = vunpack.c.l.bf16 %v4667
      %v4691 = vunpack.c.h.bf16 %v4667
      %v4692 = vunpack.c.l.bf16 %v4668
      %v4693 = vunpack.c.h.bf16 %v4668
      %v4694 = vunpack.c.l.bf16 %v4669
      %v4695 = vunpack.c.h.bf16 %v4669
      %v4696 = vunpack.c.l.bf16 %v4670
      %v4697 = vunpack.c.h.bf16 %v4670
      %v4698 = vunpack.c.l.bf16 %v4671
      %4726 = vrot.lane.b32.xlu0 %v4672, 100
      %v4727 = vpop.permute.xlu0 %4726
      %4728 = vrot.lane.b32.xlu0 %v4673, 100
      %v4729 = vpop.permute.xlu0 %4728
      %4730 = vrot.lane.b32.xlu0 %v4674, 100
      %v4731 = vpop.permute.xlu0 %4730
      %4732 = vrot.lane.b32.xlu0 %v4675, 100
      %v4733 = vpop.permute.xlu0 %4732
      %4734 = vrot.lane.b32.xlu0 %v4676, 100
      %v4735 = vpop.permute.xlu0 %4734
      %4736 = vrot.lane.b32.xlu0 %v4677, 100
      %v4737 = vpop.permute.xlu0 %4736
      %4738 = vrot.lane.b32.xlu0 %v4678, 100
      %v4739 = vpop.permute.xlu0 %4738
      %4740 = vrot.lane.b32.xlu0 %v4679, 100
      %v4741 = vpop.permute.xlu0 %4740
      %4742 = vrot.lane.b32.xlu0 %v4680, 100
      %v4743 = vpop.permute.xlu0 %4742
      %4744 = vrot.lane.b32.xlu0 %v4681, 100
      %v4745 = vpop.permute.xlu0 %4744
      %4746 = vrot.lane.b32.xlu0 %v4682, 100
      %v4747 = vpop.permute.xlu0 %4746
      %4748 = vrot.lane.b32.xlu0 %v4683, 100
      %v4749 = vpop.permute.xlu0 %4748
      %4750 = vrot.lane.b32.xlu0 %v4684, 100
      %v4751 = vpop.permute.xlu0 %4750
      %4752 = vrot.lane.b32.xlu0 %v4685, 100
      %v4753 = vpop.permute.xlu0 %4752
      %4754 = vrot.lane.b32.xlu0 %v4686, 100
      %v4755 = vpop.permute.xlu0 %4754
      %4756 = vrot.lane.b32.xlu0 %v4687, 100
      %v4757 = vpop.permute.xlu0 %4756
      %4758 = vrot.lane.b32.xlu0 %v4688, 100
      %v4759 = vpop.permute.xlu0 %4758
      %4760 = vrot.lane.b32.xlu0 %v4689, 100
      %v4761 = vpop.permute.xlu0 %4760
      %4762 = vrot.lane.b32.xlu0 %v4690, 100
      %v4763 = vpop.permute.xlu0 %4762
      %4764 = vrot.lane.b32.xlu0 %v4691, 100
      %v4765 = vpop.permute.xlu0 %4764
      %4766 = vrot.lane.b32.xlu0 %v4692, 100
      %v4767 = vpop.permute.xlu0 %4766
      %4768 = vrot.lane.b32.xlu0 %v4693, 100
      %v4769 = vpop.permute.xlu0 %4768
      %4770 = vrot.lane.b32.xlu0 %v4694, 100
      %v4771 = vpop.permute.xlu0 %4770
      %4772 = vrot.lane.b32.xlu0 %v4695, 100
      %v4773 = vpop.permute.xlu0 %4772
      %4774 = vrot.lane.b32.xlu0 %v4696, 100
      %v4775 = vpop.permute.xlu0 %4774
      %4776 = vrot.lane.b32.xlu0 %v4697, 100
      %v4777 = vpop.permute.xlu0 %4776
      %4778 = vrot.lane.b32.xlu0 %v4698, 100
      %v4779 = vpop.permute.xlu0 %4778
      %vm4780 = vcmask 818176
      %v4781 = vsel %vm4780, %v4727, %v4729
      %v4782 = vsel %vm4780, %v4729, %v4731
      %v4783 = vsel %vm4780, %v4731, %v4733
      %v4784 = vsel %vm4780, %v4733, %v4735
      %v4785 = vsel %vm4780, %v4735, %v4737
      %v4786 = vsel %vm4780, %v4737, %v4739
      %v4787 = vsel %vm4780, %v4739, %v4741
      %v4788 = vsel %vm4780, %v4741, %v4743
      %v4789 = vsel %vm4780, %v4743, %v4745
      %v4790 = vsel %vm4780, %v4745, %v4747
      %v4791 = vsel %vm4780, %v4747, %v4749
      %v4792 = vsel %vm4780, %v4749, %v4751
      %v4793 = vsel %vm4780, %v4751, %v4753
      %v4794 = vsel %vm4780, %v4753, %v4755
      %v4795 = vsel %vm4780, %v4755, %v4757
      %v4796 = vsel %vm4780, %v4757, %v4759
      %v4797 = vsel %vm4780, %v4759, %v4761
      %v4798 = vsel %vm4780, %v4761, %v4763
      %v4799 = vsel %vm4780, %v4763, %v4765
      %v4800 = vsel %vm4780, %v4765, %v4767
      %v4801 = vsel %vm4780, %v4767, %v4769
      %v4802 = vsel %vm4780, %v4769, %v4771
      %v4803 = vsel %vm4780, %v4771, %v4773
      %v4804 = vsel %vm4780, %v4773, %v4775
      %v4805 = vsel %vm4780, %v4775, %v4777
      %v4806 = vsel %vm4780, %v4777, %v4779
      %4833 = vst [vmem:[#allocation2 + $0x12b0] sm:$0xff] %v4781
      %4834 = vst [vmem:[#allocation2 + $0x12b8] sm:$0xff] %v4782
      %4835 = vst [vmem:[#allocation2 + $0x12c0] sm:$0xff] %v4783
      %4836 = vst [vmem:[#allocation2 + $0x12c8] sm:$0xff] %v4784
      %4837 = vst [vmem:[#allocation2 + $0x12d0] sm:$0xff] %v4785
      %4838 = vst [vmem:[#allocation2 + $0x12d8] sm:$0xff] %v4786
      %4839 = vst [vmem:[#allocation2 + $0x12e0] sm:$0xff] %v4787
      %4840 = vst [vmem:[#allocation2 + $0x12e8] sm:$0xff] %v4788
      %4841 = vst [vmem:[#allocation2 + $0x12f0] sm:$0xff] %v4789
      %4842 = vst [vmem:[#allocation2 + $0x12f8] sm:$0xff] %v4790
      %4843 = vst [vmem:[#allocation2 + $0x1300] sm:$0xff] %v4791
      %4844 = vst [vmem:[#allocation2 + $0x1308] sm:$0xff] %v4792
      %4845 = vst [vmem:[#allocation2 + $0x1310] sm:$0xff] %v4793
      %4846 = vst [vmem:[#allocation2 + $0x1318] sm:$0xff] %v4794
      %4847 = vst [vmem:[#allocation2 + $0x1320] sm:$0xff] %v4795
      %4848 = vst [vmem:[#allocation2 + $0x1328] sm:$0xff] %v4796
      %4849 = vst [vmem:[#allocation2 + $0x1330] sm:$0xff] %v4797
      %4850 = vst [vmem:[#allocation2 + $0x1338] sm:$0xff] %v4798
      %4851 = vst [vmem:[#allocation2 + $0x1340] sm:$0xff] %v4799
      %4852 = vst [vmem:[#allocation2 + $0x1348] sm:$0xff] %v4800
      %4853 = vst [vmem:[#allocation2 + $0x1350] sm:$0xff] %v4801
      %4854 = vst [vmem:[#allocation2 + $0x1358] sm:$0xff] %v4802
      %4855 = vst [vmem:[#allocation2 + $0x1360] sm:$0xff] %v4803
      %4856 = vst [vmem:[#allocation2 + $0x1368] sm:$0xff] %v4804
      %4857 = vst [vmem:[#allocation2 + $0x1370] sm:$0xff] %v4805
      %4858 = vst [vmem:[#allocation2 + $0x1378] sm:$0xff] %v4806
      %v4859 = vld [vmem:[%s165 + $0x14] sm:$0xff]
      %v4860 = vld [vmem:[%s165 + $0x1c] sm:$0xff]
      %v4861 = vld [vmem:[%s165 + $0x24] sm:$0xff]
      %v4862 = vld [vmem:[%s165 + $0x2c] sm:$0xff]
      %v4863 = vld [vmem:[%s165 + $0x34] sm:$0xff]
      %v4864 = vld [vmem:[%s165 + $0x3c] sm:$0xff]
      %v4865 = vld [vmem:[%s165 + $0x44] sm:$0xff]
      %v4866 = vld [vmem:[%s165 + $0x4c] sm:$0xff]
      %v4867 = vld [vmem:[%s165 + $0x54] sm:$0xff]
      %v4868 = vld [vmem:[%s165 + $0x5c] sm:$0xff]
      %v4869 = vld [vmem:[%s165 + $0x64] sm:$0xff]
      %v4870 = vld [vmem:[%s165 + $0x6c] sm:$0xff]
      %v4871 = vld [vmem:[%s165 + $0x74] sm:$0xff]
      %v4872 = vld [vmem:[%s165 + $0x7c] sm:$0xf]
      %v4873 = vunpack.c.l.bf16 %v4859
      %v4874 = vunpack.c.h.bf16 %v4859
      %v4875 = vunpack.c.l.bf16 %v4860
      %v4876 = vunpack.c.h.bf16 %v4860
      %v4877 = vunpack.c.l.bf16 %v4861
      %v4878 = vunpack.c.h.bf16 %v4861
      %v4879 = vunpack.c.l.bf16 %v4862
      %v4880 = vunpack.c.h.bf16 %v4862
      %v4881 = vunpack.c.l.bf16 %v4863
      %v4882 = vunpack.c.h.bf16 %v4863
      %v4883 = vunpack.c.l.bf16 %v4864
      %v4884 = vunpack.c.h.bf16 %v4864
      %v4885 = vunpack.c.l.bf16 %v4865
      %v4886 = vunpack.c.h.bf16 %v4865
      %v4887 = vunpack.c.l.bf16 %v4866
      %v4888 = vunpack.c.h.bf16 %v4866
      %v4889 = vunpack.c.l.bf16 %v4867
      %v4890 = vunpack.c.h.bf16 %v4867
      %v4891 = vunpack.c.l.bf16 %v4868
      %v4892 = vunpack.c.h.bf16 %v4868
      %v4893 = vunpack.c.l.bf16 %v4869
      %v4894 = vunpack.c.h.bf16 %v4869
      %v4895 = vunpack.c.l.bf16 %v4870
      %v4896 = vunpack.c.h.bf16 %v4870
      %v4897 = vunpack.c.l.bf16 %v4871
      %v4898 = vunpack.c.h.bf16 %v4871
      %v4899 = vunpack.c.l.bf16 %v4872
      %4927 = vrot.lane.b32.xlu0 %v4873, 84
      %v4928 = vpop.permute.xlu0 %4927
      %4929 = vrot.lane.b32.xlu0 %v4874, 84
      %v4930 = vpop.permute.xlu0 %4929
      %4931 = vrot.lane.b32.xlu0 %v4875, 84
      %v4932 = vpop.permute.xlu0 %4931
      %4933 = vrot.lane.b32.xlu0 %v4876, 84
      %v4934 = vpop.permute.xlu0 %4933
      %4935 = vrot.lane.b32.xlu0 %v4877, 84
      %v4936 = vpop.permute.xlu0 %4935
      %4937 = vrot.lane.b32.xlu0 %v4878, 84
      %v4938 = vpop.permute.xlu0 %4937
      %4939 = vrot.lane.b32.xlu0 %v4879, 84
      %v4940 = vpop.permute.xlu0 %4939
      %4941 = vrot.lane.b32.xlu0 %v4880, 84
      %v4942 = vpop.permute.xlu0 %4941
      %4943 = vrot.lane.b32.xlu0 %v4881, 84
      %v4944 = vpop.permute.xlu0 %4943
      %4945 = vrot.lane.b32.xlu0 %v4882, 84
      %v4946 = vpop.permute.xlu0 %4945
      %4947 = vrot.lane.b32.xlu0 %v4883, 84
      %v4948 = vpop.permute.xlu0 %4947
      %4949 = vrot.lane.b32.xlu0 %v4884, 84
      %v4950 = vpop.permute.xlu0 %4949
      %4951 = vrot.lane.b32.xlu0 %v4885, 84
      %v4952 = vpop.permute.xlu0 %4951
      %4953 = vrot.lane.b32.xlu0 %v4886, 84
      %v4954 = vpop.permute.xlu0 %4953
      %4955 = vrot.lane.b32.xlu0 %v4887, 84
      %v4956 = vpop.permute.xlu0 %4955
      %4957 = vrot.lane.b32.xlu0 %v4888, 84
      %v4958 = vpop.permute.xlu0 %4957
      %4959 = vrot.lane.b32.xlu0 %v4889, 84
      %v4960 = vpop.permute.xlu0 %4959
      %4961 = vrot.lane.b32.xlu0 %v4890, 84
      %v4962 = vpop.permute.xlu0 %4961
      %4963 = vrot.lane.b32.xlu0 %v4891, 84
      %v4964 = vpop.permute.xlu0 %4963
      %4965 = vrot.lane.b32.xlu0 %v4892, 84
      %v4966 = vpop.permute.xlu0 %4965
      %4967 = vrot.lane.b32.xlu0 %v4893, 84
      %v4968 = vpop.permute.xlu0 %4967
      %4969 = vrot.lane.b32.xlu0 %v4894, 84
      %v4970 = vpop.permute.xlu0 %4969
      %4971 = vrot.lane.b32.xlu0 %v4895, 84
      %v4972 = vpop.permute.xlu0 %4971
      %4973 = vrot.lane.b32.xlu0 %v4896, 84
      %v4974 = vpop.permute.xlu0 %4973
      %4975 = vrot.lane.b32.xlu0 %v4897, 84
      %v4976 = vpop.permute.xlu0 %4975
      %4977 = vrot.lane.b32.xlu0 %v4898, 84
      %v4978 = vpop.permute.xlu0 %4977
      %4979 = vrot.lane.b32.xlu0 %v4899, 84
      %v4980 = vpop.permute.xlu0 %4979
      %vm4981 = vcmask 687104
      %v4982 = vsel %vm4981, %v4928, %v4930
      %v4983 = vsel %vm4981, %v4930, %v4932
      %v4984 = vsel %vm4981, %v4932, %v4934
      %v4985 = vsel %vm4981, %v4934, %v4936
      %v4986 = vsel %vm4981, %v4936, %v4938
      %v4987 = vsel %vm4981, %v4938, %v4940
      %v4988 = vsel %vm4981, %v4940, %v4942
      %v4989 = vsel %vm4981, %v4942, %v4944
      %v4990 = vsel %vm4981, %v4944, %v4946
      %v4991 = vsel %vm4981, %v4946, %v4948
      %v4992 = vsel %vm4981, %v4948, %v4950
      %v4993 = vsel %vm4981, %v4950, %v4952
      %v4994 = vsel %vm4981, %v4952, %v4954
      %v4995 = vsel %vm4981, %v4954, %v4956
      %v4996 = vsel %vm4981, %v4956, %v4958
      %v4997 = vsel %vm4981, %v4958, %v4960
      %v4998 = vsel %vm4981, %v4960, %v4962
      %v4999 = vsel %vm4981, %v4962, %v4964
      %v5000 = vsel %vm4981, %v4964, %v4966
      %v5001 = vsel %vm4981, %v4966, %v4968
      %v5002 = vsel %vm4981, %v4968, %v4970
      %v5003 = vsel %vm4981, %v4970, %v4972
      %v5004 = vsel %vm4981, %v4972, %v4974
      %v5005 = vsel %vm4981, %v4974, %v4976
      %v5006 = vsel %vm4981, %v4976, %v4978
      %v5007 = vsel %vm4981, %v4978, %v4980
      %5034 = vst [vmem:[#allocation2 + $0x1380] sm:$0xff] %v4982
      %5035 = vst [vmem:[#allocation2 + $0x1388] sm:$0xff] %v4983
      %5036 = vst [vmem:[#allocation2 + $0x1390] sm:$0xff] %v4984
      %5037 = vst [vmem:[#allocation2 + $0x1398] sm:$0xff] %v4985
      %5038 = vst [vmem:[#allocation2 + $0x13a0] sm:$0xff] %v4986
      %5039 = vst [vmem:[#allocation2 + $0x13a8] sm:$0xff] %v4987
      %5040 = vst [vmem:[#allocation2 + $0x13b0] sm:$0xff] %v4988
      %5041 = vst [vmem:[#allocation2 + $0x13b8] sm:$0xff] %v4989
      %5042 = vst [vmem:[#allocation2 + $0x13c0] sm:$0xff] %v4990
      %5043 = vst [vmem:[#allocation2 + $0x13c8] sm:$0xff] %v4991
      %5044 = vst [vmem:[#allocation2 + $0x13d0] sm:$0xff] %v4992
      %5045 = vst [vmem:[#allocation2 + $0x13d8] sm:$0xff] %v4993
      %5046 = vst [vmem:[#allocation2 + $0x13e0] sm:$0xff] %v4994
      %5047 = vst [vmem:[#allocation2 + $0x13e8] sm:$0xff] %v4995
      %5048 = vst [vmem:[#allocation2 + $0x13f0] sm:$0xff] %v4996
      %5049 = vst [vmem:[#allocation2 + $0x13f8] sm:$0xff] %v4997
      %5050 = vst [vmem:[#allocation2 + $0x1400] sm:$0xff] %v4998
      %5051 = vst [vmem:[#allocation2 + $0x1408] sm:$0xff] %v4999
      %5052 = vst [vmem:[#allocation2 + $0x1410] sm:$0xff] %v5000
      %5053 = vst [vmem:[#allocation2 + $0x1418] sm:$0xff] %v5001
      %5054 = vst [vmem:[#allocation2 + $0x1420] sm:$0xff] %v5002
      %5055 = vst [vmem:[#allocation2 + $0x1428] sm:$0xff] %v5003
      %5056 = vst [vmem:[#allocation2 + $0x1430] sm:$0xff] %v5004
      %5057 = vst [vmem:[#allocation2 + $0x1438] sm:$0xff] %v5005
      %5058 = vst [vmem:[#allocation2 + $0x1440] sm:$0xff] %v5006
      %5059 = vst [vmem:[#allocation2 + $0x1448] sm:$0xff] %v5007
      %v5060 = vld [vmem:[%s165 + $0x14] sm:$0xff]
      %v5061 = vld [vmem:[%s165 + $0x1c] sm:$0xff]
      %v5062 = vld [vmem:[%s165 + $0x24] sm:$0xff]
      %v5063 = vld [vmem:[%s165 + $0x2c] sm:$0xff]
      %v5064 = vld [vmem:[%s165 + $0x34] sm:$0xff]
      %v5065 = vld [vmem:[%s165 + $0x3c] sm:$0xff]
      %v5066 = vld [vmem:[%s165 + $0x44] sm:$0xff]
      %v5067 = vld [vmem:[%s165 + $0x4c] sm:$0xff]
      %v5068 = vld [vmem:[%s165 + $0x54] sm:$0xff]
      %v5069 = vld [vmem:[%s165 + $0x5c] sm:$0xff]
      %v5070 = vld [vmem:[%s165 + $0x64] sm:$0xff]
      %v5071 = vld [vmem:[%s165 + $0x6c] sm:$0xff]
      %v5072 = vld [vmem:[%s165 + $0x74] sm:$0xff]
      %v5073 = vld [vmem:[%s165 + $0x7c] sm:$0xf]
      %v5074 = vunpack.c.l.bf16 %v5060
      %v5075 = vunpack.c.h.bf16 %v5060
      %v5076 = vunpack.c.l.bf16 %v5061
      %v5077 = vunpack.c.h.bf16 %v5061
      %v5078 = vunpack.c.l.bf16 %v5062
      %v5079 = vunpack.c.h.bf16 %v5062
      %v5080 = vunpack.c.l.bf16 %v5063
      %v5081 = vunpack.c.h.bf16 %v5063
      %v5082 = vunpack.c.l.bf16 %v5064
      %v5083 = vunpack.c.h.bf16 %v5064
      %v5084 = vunpack.c.l.bf16 %v5065
      %v5085 = vunpack.c.h.bf16 %v5065
      %v5086 = vunpack.c.l.bf16 %v5066
      %v5087 = vunpack.c.h.bf16 %v5066
      %v5088 = vunpack.c.l.bf16 %v5067
      %v5089 = vunpack.c.h.bf16 %v5067
      %v5090 = vunpack.c.l.bf16 %v5068
      %v5091 = vunpack.c.h.bf16 %v5068
      %v5092 = vunpack.c.l.bf16 %v5069
      %v5093 = vunpack.c.h.bf16 %v5069
      %v5094 = vunpack.c.l.bf16 %v5070
      %v5095 = vunpack.c.h.bf16 %v5070
      %v5096 = vunpack.c.l.bf16 %v5071
      %v5097 = vunpack.c.h.bf16 %v5071
      %v5098 = vunpack.c.l.bf16 %v5072
      %v5099 = vunpack.c.h.bf16 %v5072
      %v5100 = vunpack.c.l.bf16 %v5073
      %5128 = vrot.lane.b32.xlu0 %v5074, 83
      %v5129 = vpop.permute.xlu0 %5128
      %5130 = vrot.lane.b32.xlu0 %v5075, 83
      %v5131 = vpop.permute.xlu0 %5130
      %5132 = vrot.lane.b32.xlu0 %v5076, 83
      %v5133 = vpop.permute.xlu0 %5132
      %5134 = vrot.lane.b32.xlu0 %v5077, 83
      %v5135 = vpop.permute.xlu0 %5134
      %5136 = vrot.lane.b32.xlu0 %v5078, 83
      %v5137 = vpop.permute.xlu0 %5136
      %5138 = vrot.lane.b32.xlu0 %v5079, 83
      %v5139 = vpop.permute.xlu0 %5138
      %5140 = vrot.lane.b32.xlu0 %v5080, 83
      %v5141 = vpop.permute.xlu0 %5140
      %5142 = vrot.lane.b32.xlu0 %v5081, 83
      %v5143 = vpop.permute.xlu0 %5142
      %5144 = vrot.lane.b32.xlu0 %v5082, 83
      %v5145 = vpop.permute.xlu0 %5144
      %5146 = vrot.lane.b32.xlu0 %v5083, 83
      %v5147 = vpop.permute.xlu0 %5146
      %5148 = vrot.lane.b32.xlu0 %v5084, 83
      %v5149 = vpop.permute.xlu0 %5148
      %5150 = vrot.lane.b32.xlu0 %v5085, 83
      %v5151 = vpop.permute.xlu0 %5150
      %5152 = vrot.lane.b32.xlu0 %v5086, 83
      %v5153 = vpop.permute.xlu0 %5152
      %5154 = vrot.lane.b32.xlu0 %v5087, 83
      %v5155 = vpop.permute.xlu0 %5154
      %5156 = vrot.lane.b32.xlu0 %v5088, 83
      %v5157 = vpop.permute.xlu0 %5156
      %5158 = vrot.lane.b32.xlu0 %v5089, 83
      %v5159 = vpop.permute.xlu0 %5158
      %5160 = vrot.lane.b32.xlu0 %v5090, 83
      %v5161 = vpop.permute.xlu0 %5160
      %5162 = vrot.lane.b32.xlu0 %v5091, 83
      %v5163 = vpop.permute.xlu0 %5162
      %5164 = vrot.lane.b32.xlu0 %v5092, 83
      %v5165 = vpop.permute.xlu0 %5164
      %5166 = vrot.lane.b32.xlu0 %v5093, 83
      %v5167 = vpop.permute.xlu0 %5166
      %5168 = vrot.lane.b32.xlu0 %v5094, 83
      %v5169 = vpop.permute.xlu0 %5168
      %5170 = vrot.lane.b32.xlu0 %v5095, 83
      %v5171 = vpop.permute.xlu0 %5170
      %5172 = vrot.lane.b32.xlu0 %v5096, 83
      %v5173 = vpop.permute.xlu0 %5172
      %5174 = vrot.lane.b32.xlu0 %v5097, 83
      %v5175 = vpop.permute.xlu0 %5174
      %5176 = vrot.lane.b32.xlu0 %v5098, 83
      %v5177 = vpop.permute.xlu0 %5176
      %5178 = vrot.lane.b32.xlu0 %v5099, 83
      %v5179 = vpop.permute.xlu0 %5178
      %5180 = vrot.lane.b32.xlu0 %v5100, 83
      %v5181 = vpop.permute.xlu0 %5180
      %vm5182 = vcmask 678912
      %v5183 = vsel %vm5182, %v5129, %v5131
      %v5184 = vsel %vm5182, %v5131, %v5133
      %v5185 = vsel %vm5182, %v5133, %v5135
      %v5186 = vsel %vm5182, %v5135, %v5137
      %v5187 = vsel %vm5182, %v5137, %v5139
      %v5188 = vsel %vm5182, %v5139, %v5141
      %v5189 = vsel %vm5182, %v5141, %v5143
      %v5190 = vsel %vm5182, %v5143, %v5145
      %v5191 = vsel %vm5182, %v5145, %v5147
      %v5192 = vsel %vm5182, %v5147, %v5149
      %v5193 = vsel %vm5182, %v5149, %v5151
      %v5194 = vsel %vm5182, %v5151, %v5153
      %v5195 = vsel %vm5182, %v5153, %v5155
      %v5196 = vsel %vm5182, %v5155, %v5157
      %v5197 = vsel %vm5182, %v5157, %v5159
      %v5198 = vsel %vm5182, %v5159, %v5161
      %v5199 = vsel %vm5182, %v5161, %v5163
      %v5200 = vsel %vm5182, %v5163, %v5165
      %v5201 = vsel %vm5182, %v5165, %v5167
      %v5202 = vsel %vm5182, %v5167, %v5169
      %v5203 = vsel %vm5182, %v5169, %v5171
      %v5204 = vsel %vm5182, %v5171, %v5173
      %v5205 = vsel %vm5182, %v5173, %v5175
      %v5206 = vsel %vm5182, %v5175, %v5177
      %v5207 = vsel %vm5182, %v5177, %v5179
      %v5208 = vsel %vm5182, %v5179, %v5181
      %5235 = vst [vmem:[#allocation2 + $0x1450] sm:$0xff] %v5183
      %5236 = vst [vmem:[#allocation2 + $0x1458] sm:$0xff] %v5184
      %5237 = vst [vmem:[#allocation2 + $0x1460] sm:$0xff] %v5185
      %5238 = vst [vmem:[#allocation2 + $0x1468] sm:$0xff] %v5186
      %5239 = vst [vmem:[#allocation2 + $0x1470] sm:$0xff] %v5187
      %5240 = vst [vmem:[#allocation2 + $0x1478] sm:$0xff] %v5188
      %5241 = vst [vmem:[#allocation2 + $0x1480] sm:$0xff] %v5189
      %5242 = vst [vmem:[#allocation2 + $0x1488] sm:$0xff] %v5190
      %5243 = vst [vmem:[#allocation2 + $0x1490] sm:$0xff] %v5191
      %5244 = vst [vmem:[#allocation2 + $0x1498] sm:$0xff] %v5192
      %5245 = vst [vmem:[#allocation2 + $0x14a0] sm:$0xff] %v5193
      %5246 = vst [vmem:[#allocation2 + $0x14a8] sm:$0xff] %v5194
      %5247 = vst [vmem:[#allocation2 + $0x14b0] sm:$0xff] %v5195
      %5248 = vst [vmem:[#allocation2 + $0x14b8] sm:$0xff] %v5196
      %5249 = vst [vmem:[#allocation2 + $0x14c0] sm:$0xff] %v5197
      %5250 = vst [vmem:[#allocation2 + $0x14c8] sm:$0xff] %v5198
      %5251 = vst [vmem:[#allocation2 + $0x14d0] sm:$0xff] %v5199
      %5252 = vst [vmem:[#allocation2 + $0x14d8] sm:$0xff] %v5200
      %5253 = vst [vmem:[#allocation2 + $0x14e0] sm:$0xff] %v5201
      %5254 = vst [vmem:[#allocation2 + $0x14e8] sm:$0xff] %v5202
      %5255 = vst [vmem:[#allocation2 + $0x14f0] sm:$0xff] %v5203
      %5256 = vst [vmem:[#allocation2 + $0x14f8] sm:$0xff] %v5204
      %5257 = vst [vmem:[#allocation2 + $0x1500] sm:$0xff] %v5205
      %5258 = vst [vmem:[#allocation2 + $0x1508] sm:$0xff] %v5206
      %5259 = vst [vmem:[#allocation2 + $0x1510] sm:$0xff] %v5207
      %5260 = vst [vmem:[#allocation2 + $0x1518] sm:$0xff] %v5208
      %v5261 = vld [vmem:[%s165 + $0x14] sm:$0xff]
      %v5262 = vld [vmem:[%s165 + $0x1c] sm:$0xff]
      %v5263 = vld [vmem:[%s165 + $0x24] sm:$0xff]
      %v5264 = vld [vmem:[%s165 + $0x2c] sm:$0xff]
      %v5265 = vld [vmem:[%s165 + $0x34] sm:$0xff]
      %v5266 = vld [vmem:[%s165 + $0x3c] sm:$0xff]
      %v5267 = vld [vmem:[%s165 + $0x44] sm:$0xff]
      %v5268 = vld [vmem:[%s165 + $0x4c] sm:$0xff]
      %v5269 = vld [vmem:[%s165 + $0x54] sm:$0xff]
      %v5270 = vld [vmem:[%s165 + $0x5c] sm:$0xff]
      %v5271 = vld [vmem:[%s165 + $0x64] sm:$0xff]
      %v5272 = vld [vmem:[%s165 + $0x6c] sm:$0xff]
      %v5273 = vld [vmem:[%s165 + $0x74] sm:$0xff]
      %v5274 = vld [vmem:[%s165 + $0x7c] sm:$0xf]
      %v5275 = vunpack.c.l.bf16 %v5261
      %v5276 = vunpack.c.h.bf16 %v5261
      %v5277 = vunpack.c.l.bf16 %v5262
      %v5278 = vunpack.c.h.bf16 %v5262
      %v5279 = vunpack.c.l.bf16 %v5263
      %v5280 = vunpack.c.h.bf16 %v5263
      %v5281 = vunpack.c.l.bf16 %v5264
      %v5282 = vunpack.c.h.bf16 %v5264
      %v5283 = vunpack.c.l.bf16 %v5265
      %v5284 = vunpack.c.h.bf16 %v5265
      %v5285 = vunpack.c.l.bf16 %v5266
      %v5286 = vunpack.c.h.bf16 %v5266
      %v5287 = vunpack.c.l.bf16 %v5267
      %v5288 = vunpack.c.h.bf16 %v5267
      %v5289 = vunpack.c.l.bf16 %v5268
      %v5290 = vunpack.c.h.bf16 %v5268
      %v5291 = vunpack.c.l.bf16 %v5269
      %v5292 = vunpack.c.h.bf16 %v5269
      %v5293 = vunpack.c.l.bf16 %v5270
      %v5294 = vunpack.c.h.bf16 %v5270
      %v5295 = vunpack.c.l.bf16 %v5271
      %v5296 = vunpack.c.h.bf16 %v5271
      %v5297 = vunpack.c.l.bf16 %v5272
      %v5298 = vunpack.c.h.bf16 %v5272
      %v5299 = vunpack.c.l.bf16 %v5273
      %v5300 = vunpack.c.h.bf16 %v5273
      %v5301 = vunpack.c.l.bf16 %v5274
      %5329 = vrot.lane.b32.xlu0 %v5275, 82
      %v5330 = vpop.permute.xlu0 %5329
      %5331 = vrot.lane.b32.xlu0 %v5276, 82
      %v5332 = vpop.permute.xlu0 %5331
      %5333 = vrot.lane.b32.xlu0 %v5277, 82
      %v5334 = vpop.permute.xlu0 %5333
      %5335 = vrot.lane.b32.xlu0 %v5278, 82
      %v5336 = vpop.permute.xlu0 %5335
      %5337 = vrot.lane.b32.xlu0 %v5279, 82
      %v5338 = vpop.permute.xlu0 %5337
      %5339 = vrot.lane.b32.xlu0 %v5280, 82
      %v5340 = vpop.permute.xlu0 %5339
      %5341 = vrot.lane.b32.xlu0 %v5281, 82
      %v5342 = vpop.permute.xlu0 %5341
      %5343 = vrot.lane.b32.xlu0 %v5282, 82
      %v5344 = vpop.permute.xlu0 %5343
      %5345 = vrot.lane.b32.xlu0 %v5283, 82
      %v5346 = vpop.permute.xlu0 %5345
      %5347 = vrot.lane.b32.xlu0 %v5284, 82
      %v5348 = vpop.permute.xlu0 %5347
      %5349 = vrot.lane.b32.xlu0 %v5285, 82
      %v5350 = vpop.permute.xlu0 %5349
      %5351 = vrot.lane.b32.xlu0 %v5286, 82
      %v5352 = vpop.permute.xlu0 %5351
      %5353 = vrot.lane.b32.xlu0 %v5287, 82
      %v5354 = vpop.permute.xlu0 %5353
      %5355 = vrot.lane.b32.xlu0 %v5288, 82
      %v5356 = vpop.permute.xlu0 %5355
      %5357 = vrot.lane.b32.xlu0 %v5289, 82
      %v5358 = vpop.permute.xlu0 %5357
      %5359 = vrot.lane.b32.xlu0 %v5290, 82
      %v5360 = vpop.permute.xlu0 %5359
      %5361 = vrot.lane.b32.xlu0 %v5291, 82
      %v5362 = vpop.permute.xlu0 %5361
      %5363 = vrot.lane.b32.xlu0 %v5292, 82
      %v5364 = vpop.permute.xlu0 %5363
      %5365 = vrot.lane.b32.xlu0 %v5293, 82
      %v5366 = vpop.permute.xlu0 %5365
      %5367 = vrot.lane.b32.xlu0 %v5294, 82
      %v5368 = vpop.permute.xlu0 %5367
      %5369 = vrot.lane.b32.xlu0 %v5295, 82
      %v5370 = vpop.permute.xlu0 %5369
      %5371 = vrot.lane.b32.xlu0 %v5296, 82
      %v5372 = vpop.permute.xlu0 %5371
      %5373 = vrot.lane.b32.xlu0 %v5297, 82
      %v5374 = vpop.permute.xlu0 %5373
      %5375 = vrot.lane.b32.xlu0 %v5298, 82
      %v5376 = vpop.permute.xlu0 %5375
      %5377 = vrot.lane.b32.xlu0 %v5299, 82
      %v5378 = vpop.permute.xlu0 %5377
      %5379 = vrot.lane.b32.xlu0 %v5300, 82
      %v5380 = vpop.permute.xlu0 %5379
      %5381 = vrot.lane.b32.xlu0 %v5301, 82
      %v5382 = vpop.permute.xlu0 %5381
      %vm5383 = vcmask 670720
      %v5384 = vsel %vm5383, %v5330, %v5332
      %v5385 = vsel %vm5383, %v5332, %v5334
      %v5386 = vsel %vm5383, %v5334, %v5336
      %v5387 = vsel %vm5383, %v5336, %v5338
      %v5388 = vsel %vm5383, %v5338, %v5340
      %v5389 = vsel %vm5383, %v5340, %v5342
      %v5390 = vsel %vm5383, %v5342, %v5344
      %v5391 = vsel %vm5383, %v5344, %v5346
      %v5392 = vsel %vm5383, %v5346, %v5348
      %v5393 = vsel %vm5383, %v5348, %v5350
      %v5394 = vsel %vm5383, %v5350, %v5352
      %v5395 = vsel %vm5383, %v5352, %v5354
      %v5396 = vsel %vm5383, %v5354, %v5356
      %v5397 = vsel %vm5383, %v5356, %v5358
      %v5398 = vsel %vm5383, %v5358, %v5360
      %v5399 = vsel %vm5383, %v5360, %v5362
      %v5400 = vsel %vm5383, %v5362, %v5364
      %v5401 = vsel %vm5383, %v5364, %v5366
      %v5402 = vsel %vm5383, %v5366, %v5368
      %v5403 = vsel %vm5383, %v5368, %v5370
      %v5404 = vsel %vm5383, %v5370, %v5372
      %v5405 = vsel %vm5383, %v5372, %v5374
      %v5406 = vsel %vm5383, %v5374, %v5376
      %v5407 = vsel %vm5383, %v5376, %v5378
      %v5408 = vsel %vm5383, %v5378, %v5380
      %v5409 = vsel %vm5383, %v5380, %v5382
      %5436 = vst [vmem:[#allocation2 + $0x1520] sm:$0xff] %v5384
      %5437 = vst [vmem:[#allocation2 + $0x1528] sm:$0xff] %v5385
      %5438 = vst [vmem:[#allocation2 + $0x1530] sm:$0xff] %v5386
      %5439 = vst [vmem:[#allocation2 + $0x1538] sm:$0xff] %v5387
      %5440 = vst [vmem:[#allocation2 + $0x1540] sm:$0xff] %v5388
      %5441 = vst [vmem:[#allocation2 + $0x1548] sm:$0xff] %v5389
      %5442 = vst [vmem:[#allocation2 + $0x1550] sm:$0xff] %v5390
      %5443 = vst [vmem:[#allocation2 + $0x1558] sm:$0xff] %v5391
      %5444 = vst [vmem:[#allocation2 + $0x1560] sm:$0xff] %v5392
      %5445 = vst [vmem:[#allocation2 + $0x1568] sm:$0xff] %v5393
      %5446 = vst [vmem:[#allocation2 + $0x1570] sm:$0xff] %v5394
      %5447 = vst [vmem:[#allocation2 + $0x1578] sm:$0xff] %v5395
      %5448 = vst [vmem:[#allocation2 + $0x1580] sm:$0xff] %v5396
      %5449 = vst [vmem:[#allocation2 + $0x1588] sm:$0xff] %v5397
      %5450 = vst [vmem:[#allocation2 + $0x1590] sm:$0xff] %v5398
      %5451 = vst [vmem:[#allocation2 + $0x1598] sm:$0xff] %v5399
      %5452 = vst [vmem:[#allocation2 + $0x15a0] sm:$0xff] %v5400
      %5453 = vst [vmem:[#allocation2 + $0x15a8] sm:$0xff] %v5401
      %5454 = vst [vmem:[#allocation2 + $0x15b0] sm:$0xff] %v5402
      %5455 = vst [vmem:[#allocation2 + $0x15b8] sm:$0xff] %v5403
      %5456 = vst [vmem:[#allocation2 + $0x15c0] sm:$0xff] %v5404
      %5457 = vst [vmem:[#allocation2 + $0x15c8] sm:$0xff] %v5405
      %5458 = vst [vmem:[#allocation2 + $0x15d0] sm:$0xff] %v5406
      %5459 = vst [vmem:[#allocation2 + $0x15d8] sm:$0xff] %v5407
      %5460 = vst [vmem:[#allocation2 + $0x15e0] sm:$0xff] %v5408
      %5461 = vst [vmem:[#allocation2 + $0x15e8] sm:$0xff] %v5409
      %v5462 = vld [vmem:[%s0] sm:$0xff]
      %v5463 = vld [vmem:[%s0 + $0x8] sm:$0xff]
      %v5464 = vld [vmem:[#allocation2] sm:$0xff]
      %v5465 = vld [vmem:[#allocation2 + $0x8] sm:$0xff]
      %v5466 = vld [vmem:[#allocation2 + $0x10] sm:$0xff]
      %v5467 = vld [vmem:[#allocation2 + $0x18] sm:$0xff]
      %v5468 = vld [vmem:[#allocation2 + $0x20] sm:$0xff]
      %v5469 = vld [vmem:[#allocation2 + $0x28] sm:$0xff]
      %v5470 = vld [vmem:[#allocation2 + $0x30] sm:$0xff]
      %v5471 = vld [vmem:[#allocation2 + $0x38] sm:$0xff]
      %v5472 = vld [vmem:[#allocation2 + $0x40] sm:$0xff]
      %v5473 = vld [vmem:[#allocation2 + $0x48] sm:$0xff]
      %v5474 = vld [vmem:[#allocation2 + $0x50] sm:$0xff]
      %v5475 = vld [vmem:[#allocation2 + $0x58] sm:$0xff]
      %v5476 = vld [vmem:[#allocation2 + $0x60] sm:$0xff]
      %v5477 = vld [vmem:[#allocation2 + $0x68] sm:$0xff]
      %v5478 = vld [vmem:[#allocation2 + $0x70] sm:$0xff]
      %v5479 = vld [vmem:[#allocation2 + $0x78] sm:$0xff]
      %v5480 = vld [vmem:[#allocation2 + $0x80] sm:$0xff]
      %v5481 = vld [vmem:[#allocation2 + $0x88] sm:$0xff]
      %v5482 = vld [vmem:[#allocation2 + $0x90] sm:$0xff]
      %v5483 = vld [vmem:[#allocation2 + $0x98] sm:$0xff]
      %v5484 = vld [vmem:[#allocation2 + $0xa0] sm:$0xff]
      %v5485 = vld [vmem:[#allocation2 + $0xa8] sm:$0xff]
      %v5486 = vld [vmem:[#allocation2 + $0xb0] sm:$0xff]
      %v5487 = vld [vmem:[#allocation2 + $0xb8] sm:$0xff]
      %v5488 = vld [vmem:[#allocation2 + $0xc0] sm:$0xff]
      %v5489 = vld [vmem:[#allocation2 + $0xc8] sm:$0xff]
      %v5490 = vld [vmem:[#allocation2 + $0xd0] sm:$0xff]
      %v5491 = vld [vmem:[#allocation2 + $0xd8] sm:$0xff]
      %v5492 = vld [vmem:[#allocation2 + $0xe0] sm:$0xff]
      %v5493 = vld [vmem:[#allocation2 + $0xe8] sm:$0xff]
      %v5494 = vld [vmem:[#allocation2 + $0xf0] sm:$0xff]
      %v5495 = vld [vmem:[#allocation2 + $0xf8] sm:$0xff]
      %v5496 = vld [vmem:[#allocation2 + $0x100] sm:$0xff]
      %v5497 = vld [vmem:[#allocation2 + $0x108] sm:$0xff]
      %v5498 = vld [vmem:[#allocation2 + $0x110] sm:$0xff]
      %v5499 = vld [vmem:[#allocation2 + $0x118] sm:$0xff]
      %v5500 = vld [vmem:[#allocation2 + $0x120] sm:$0xff]
      %v5501 = vld [vmem:[#allocation2 + $0x128] sm:$0xff]
      %v5502 = vld [vmem:[#allocation2 + $0x130] sm:$0xff]
      %v5503 = vld [vmem:[#allocation2 + $0x138] sm:$0xff]
      %v5504 = vld [vmem:[#allocation2 + $0x140] sm:$0xff]
      %v5505 = vld [vmem:[#allocation2 + $0x148] sm:$0xff]
      %v5506 = vld [vmem:[#allocation2 + $0x150] sm:$0xff]
      %v5507 = vld [vmem:[#allocation2 + $0x158] sm:$0xff]
      %v5508 = vld [vmem:[#allocation2 + $0x160] sm:$0xff]
      %v5509 = vld [vmem:[#allocation2 + $0x168] sm:$0xff]
      %v5510 = vld [vmem:[#allocation2 + $0x170] sm:$0xff]
      %v5511 = vld [vmem:[#allocation2 + $0x178] sm:$0xff]
      %v5512 = vld [vmem:[#allocation2 + $0x180] sm:$0xff]
      %v5513 = vld [vmem:[#allocation2 + $0x188] sm:$0xff]
      %v5514 = vld [vmem:[#allocation2 + $0x190] sm:$0xff]
      %v5515 = vld [vmem:[#allocation2 + $0x198] sm:$0xff]
      %v5516 = vld [vmem:[#allocation2 + $0x1a0] sm:$0xff]
      %v5517 = vld [vmem:[#allocation2 + $0x1a8] sm:$0xff]
      %v5518 = vld [vmem:[#allocation2 + $0x1b0] sm:$0xff]
      %v5519 = vld [vmem:[#allocation2 + $0x1b8] sm:$0xff]
      %v5520 = vld [vmem:[#allocation2 + $0x1c0] sm:$0xff]
      %v5521 = vld [vmem:[#allocation2 + $0x1c8] sm:$0xff]
      %v5522 = vld [vmem:[#allocation2 + $0x1d0] sm:$0xff]
      %v5523 = vld [vmem:[#allocation2 + $0x1d8] sm:$0xff]
      %v5524 = vld [vmem:[#allocation2 + $0x1e0] sm:$0xff]
      %v5525 = vld [vmem:[#allocation2 + $0x1e8] sm:$0xff]
      %v5526 = vld [vmem:[#allocation2 + $0x1f0] sm:$0xff]
      %v5527 = vld [vmem:[#allocation2 + $0x1f8] sm:$0xff]
      %v5528 = vld [vmem:[#allocation2 + $0x200] sm:$0xff]
      %v5529 = vld [vmem:[#allocation2 + $0x208] sm:$0xff]
      %v5530 = vld [vmem:[#allocation2 + $0x210] sm:$0xff]
      %v5531 = vld [vmem:[#allocation2 + $0x218] sm:$0xff]
      %v5532 = vld [vmem:[#allocation2 + $0x220] sm:$0xff]
      %v5533 = vld [vmem:[#allocation2 + $0x228] sm:$0xff]
      %v5534 = vld [vmem:[#allocation2 + $0x230] sm:$0xff]
      %v5535 = vld [vmem:[#allocation2 + $0x238] sm:$0xff]
      %v5536 = vld [vmem:[#allocation2 + $0x240] sm:$0xff]
      %v5537 = vld [vmem:[#allocation2 + $0x248] sm:$0xff]
      %v5538 = vld [vmem:[#allocation2 + $0x250] sm:$0xff]
      %v5539 = vld [vmem:[#allocation2 + $0x258] sm:$0xff]
      %v5540 = vld [vmem:[#allocation2 + $0x260] sm:$0xff]
      %v5541 = vld [vmem:[#allocation2 + $0x268] sm:$0xff]
      %v5542 = vld [vmem:[#allocation2 + $0x270] sm:$0xff]
      %v5543 = vld [vmem:[#allocation2 + $0x278] sm:$0xff]
      %v5544 = vld [vmem:[#allocation2 + $0x280] sm:$0xff]
      %v5545 = vld [vmem:[#allocation2 + $0x288] sm:$0xff]
      %v5546 = vld [vmem:[#allocation2 + $0x290] sm:$0xff]
      %v5547 = vld [vmem:[#allocation2 + $0x298] sm:$0xff]
      %v5548 = vld [vmem:[#allocation2 + $0x2a0] sm:$0xff]
      %v5549 = vld [vmem:[#allocation2 + $0x2a8] sm:$0xff]
      %v5550 = vld [vmem:[#allocation2 + $0x2b0] sm:$0xff]
      %v5551 = vld [vmem:[#allocation2 + $0x2b8] sm:$0xff]
      %v5552 = vld [vmem:[#allocation2 + $0x2c0] sm:$0xff]
      %v5553 = vld [vmem:[#allocation2 + $0x2c8] sm:$0xff]
      %v5554 = vld [vmem:[#allocation2 + $0x2d0] sm:$0xff]
      %v5555 = vld [vmem:[#allocation2 + $0x2d8] sm:$0xff]
      %v5556 = vld [vmem:[#allocation2 + $0x2e0] sm:$0xff]
      %v5557 = vld [vmem:[#allocation2 + $0x2e8] sm:$0xff]
      %v5558 = vld [vmem:[#allocation2 + $0x2f0] sm:$0xff]
      %v5559 = vld [vmem:[#allocation2 + $0x2f8] sm:$0xff]
      %v5560 = vld [vmem:[#allocation2 + $0x300] sm:$0xff]
      %v5561 = vld [vmem:[#allocation2 + $0x308] sm:$0xff]
      %v5562 = vld [vmem:[#allocation2 + $0x310] sm:$0xff]
      %v5563 = vld [vmem:[#allocation2 + $0x318] sm:$0xff]
      %v5564 = vld [vmem:[#allocation2 + $0x320] sm:$0xff]
      %v5565 = vld [vmem:[#allocation2 + $0x328] sm:$0xff]
      %v5566 = vld [vmem:[#allocation2 + $0x330] sm:$0xff]
      %v5567 = vld [vmem:[#allocation2 + $0x338] sm:$0xff]
      %v5568 = vld [vmem:[#allocation2 + $0x340] sm:$0xff]
      %v5569 = vld [vmem:[#allocation2 + $0x348] sm:$0xff]
      %v5570 = vld [vmem:[#allocation2 + $0x350] sm:$0xff]
      %v5571 = vld [vmem:[#allocation2 + $0x358] sm:$0xff]
      %v5572 = vld [vmem:[#allocation2 + $0x360] sm:$0xff]
      %v5573 = vld [vmem:[#allocation2 + $0x368] sm:$0xff]
      %v5574 = vld [vmem:[#allocation2 + $0x370] sm:$0xff]
      %v5575 = vld [vmem:[#allocation2 + $0x378] sm:$0xff]
      %v5576 = vld [vmem:[#allocation2 + $0x380] sm:$0xff]
      %v5577 = vld [vmem:[#allocation2 + $0x388] sm:$0xff]
      %v5578 = vld [vmem:[#allocation2 + $0x390] sm:$0xff]
      %v5579 = vld [vmem:[#allocation2 + $0x398] sm:$0xff]
      %v5580 = vld [vmem:[#allocation2 + $0x3a0] sm:$0xff]
      %v5581 = vld [vmem:[#allocation2 + $0x3a8] sm:$0xff]
      %v5582 = vld [vmem:[#allocation2 + $0x3b0] sm:$0xff]
      %v5583 = vld [vmem:[#allocation2 + $0x3b8] sm:$0xff]
      %v5584 = vld [vmem:[#allocation2 + $0x3c0] sm:$0xff]
      %v5585 = vld [vmem:[#allocation2 + $0x3c8] sm:$0xff]
      %v5586 = vld [vmem:[#allocation2 + $0x3d0] sm:$0xff]
      %v5587 = vld [vmem:[#allocation2 + $0x3d8] sm:$0xff]
      %v5588 = vld [vmem:[#allocation2 + $0x3e0] sm:$0xff]
      %v5589 = vld [vmem:[#allocation2 + $0x3e8] sm:$0xff]
      %v5590 = vld [vmem:[#allocation2 + $0x3f0] sm:$0xff]
      %v5591 = vld [vmem:[#allocation2 + $0x3f8] sm:$0xff]
      %v5592 = vld [vmem:[#allocation2 + $0x400] sm:$0xff]
      %v5593 = vld [vmem:[#allocation2 + $0x408] sm:$0xff]
      %v5594 = vld [vmem:[#allocation2 + $0x410] sm:$0xff]
      %v5595 = vld [vmem:[#allocation2 + $0x418] sm:$0xff]
      %v5596 = vld [vmem:[#allocation2 + $0x420] sm:$0xff]
      %v5597 = vld [vmem:[#allocation2 + $0x428] sm:$0xff]
      %v5598 = vld [vmem:[#allocation2 + $0x430] sm:$0xff]
      %v5599 = vld [vmem:[#allocation2 + $0x438] sm:$0xff]
      %v5600 = vld [vmem:[#allocation2 + $0x440] sm:$0xff]
      %v5601 = vld [vmem:[#allocation2 + $0x448] sm:$0xff]
      %v5602 = vld [vmem:[#allocation2 + $0x450] sm:$0xff]
      %v5603 = vld [vmem:[#allocation2 + $0x458] sm:$0xff]
      %v5604 = vld [vmem:[#allocation2 + $0x460] sm:$0xff]
      %v5605 = vld [vmem:[#allocation2 + $0x468] sm:$0xff]
      %v5606 = vld [vmem:[#allocation2 + $0x470] sm:$0xff]
      %v5607 = vld [vmem:[#allocation2 + $0x478] sm:$0xff]
      %v5608 = vld [vmem:[#allocation2 + $0x480] sm:$0xff]
      %v5609 = vld [vmem:[#allocation2 + $0x488] sm:$0xff]
      %v5610 = vld [vmem:[#allocation2 + $0x490] sm:$0xff]
      %v5611 = vld [vmem:[#allocation2 + $0x498] sm:$0xff]
      %v5612 = vld [vmem:[#allocation2 + $0x4a0] sm:$0xff]
      %v5613 = vld [vmem:[#allocation2 + $0x4a8] sm:$0xff]
      %v5614 = vld [vmem:[#allocation2 + $0x4b0] sm:$0xff]
      %v5615 = vld [vmem:[#allocation2 + $0x4b8] sm:$0xff]
      %v5616 = vld [vmem:[#allocation2 + $0x4c0] sm:$0xff]
      %v5617 = vld [vmem:[#allocation2 + $0x4c8] sm:$0xff]
      %v5618 = vld [vmem:[#allocation2 + $0x4d0] sm:$0xff]
      %v5619 = vld [vmem:[#allocation2 + $0x4d8] sm:$0xff]
      %v5620 = vld [vmem:[#allocation2 + $0x4e0] sm:$0xff]
      %v5621 = vld [vmem:[#allocation2 + $0x4e8] sm:$0xff]
      %v5622 = vld [vmem:[#allocation2 + $0x4f0] sm:$0xff]
      %v5623 = vld [vmem:[#allocation2 + $0x4f8] sm:$0xff]
      %v5624 = vld [vmem:[#allocation2 + $0x500] sm:$0xff]
      %v5625 = vld [vmem:[#allocation2 + $0x508] sm:$0xff]
      %v5626 = vld [vmem:[#allocation2 + $0x510] sm:$0xff]
      %v5627 = vld [vmem:[#allocation2 + $0x518] sm:$0xff]
      %v5628 = vld [vmem:[#allocation2 + $0x520] sm:$0xff]
      %v5629 = vld [vmem:[#allocation2 + $0x528] sm:$0xff]
      %v5630 = vld [vmem:[#allocation2 + $0x530] sm:$0xff]
      %v5631 = vld [vmem:[#allocation2 + $0x538] sm:$0xff]
      %v5632 = vld [vmem:[#allocation2 + $0x540] sm:$0xff]
      %v5633 = vld [vmem:[#allocation2 + $0x548] sm:$0xff]
      %v5634 = vld [vmem:[#allocation2 + $0x550] sm:$0xff]
      %v5635 = vld [vmem:[#allocation2 + $0x558] sm:$0xff]
      %v5636 = vld [vmem:[#allocation2 + $0x560] sm:$0xff]
      %v5637 = vld [vmem:[#allocation2 + $0x568] sm:$0xff]
      %v5638 = vld [vmem:[#allocation2 + $0x570] sm:$0xff]
      %v5639 = vld [vmem:[#allocation2 + $0x578] sm:$0xff]
      %v5640 = vld [vmem:[#allocation2 + $0x580] sm:$0xff]
      %v5641 = vld [vmem:[#allocation2 + $0x588] sm:$0xff]
      %v5642 = vld [vmem:[#allocation2 + $0x590] sm:$0xff]
      %v5643 = vld [vmem:[#allocation2 + $0x598] sm:$0xff]
      %v5644 = vld [vmem:[#allocation2 + $0x5a0] sm:$0xff]
      %v5645 = vld [vmem:[#allocation2 + $0x5a8] sm:$0xff]
      %v5646 = vld [vmem:[#allocation2 + $0x5b0] sm:$0xff]
      %v5647 = vld [vmem:[#allocation2 + $0x5b8] sm:$0xff]
      %v5648 = vld [vmem:[#allocation2 + $0x5c0] sm:$0xff]
      %v5649 = vld [vmem:[#allocation2 + $0x5c8] sm:$0xff]
      %v5650 = vld [vmem:[#allocation2 + $0x5d0] sm:$0xff]
      %v5651 = vld [vmem:[#allocation2 + $0x5d8] sm:$0xff]
      %v5652 = vld [vmem:[#allocation2 + $0x5e0] sm:$0xff]
      %v5653 = vld [vmem:[#allocation2 + $0x5e8] sm:$0xff]
      %v5654 = vld [vmem:[#allocation2 + $0x5f0] sm:$0xff]
      %v5655 = vld [vmem:[#allocation2 + $0x5f8] sm:$0xff]
      %v5656 = vld [vmem:[#allocation2 + $0x600] sm:$0xff]
      %v5657 = vld [vmem:[#allocation2 + $0x608] sm:$0xff]
      %v5658 = vld [vmem:[#allocation2 + $0x610] sm:$0xff]
      %v5659 = vld [vmem:[#allocation2 + $0x618] sm:$0xff]
      %v5660 = vld [vmem:[#allocation2 + $0x620] sm:$0xff]
      %v5661 = vld [vmem:[#allocation2 + $0x628] sm:$0xff]
      %v5662 = vld [vmem:[#allocation2 + $0x630] sm:$0xff]
      %v5663 = vld [vmem:[#allocation2 + $0x638] sm:$0xff]
      %v5664 = vld [vmem:[#allocation2 + $0x640] sm:$0xff]
      %v5665 = vld [vmem:[#allocation2 + $0x648] sm:$0xff]
      %v5666 = vld [vmem:[#allocation2 + $0x650] sm:$0xff]
      %v5667 = vld [vmem:[#allocation2 + $0x658] sm:$0xff]
      %v5668 = vld [vmem:[#allocation2 + $0x660] sm:$0xff]
      %v5669 = vld [vmem:[#allocation2 + $0x668] sm:$0xff]
      %v5670 = vld [vmem:[#allocation2 + $0x670] sm:$0xff]
      %v5671 = vld [vmem:[#allocation2 + $0x678] sm:$0xff]
      %v5672 = vld [vmem:[#allocation2 + $0x680] sm:$0xff]
      %v5673 = vld [vmem:[#allocation2 + $0x688] sm:$0xff]
      %v5674 = vld [vmem:[#allocation2 + $0x690] sm:$0xff]
      %v5675 = vld [vmem:[#allocation2 + $0x698] sm:$0xff]
      %v5676 = vld [vmem:[#allocation2 + $0x6a0] sm:$0xff]
      %v5677 = vld [vmem:[#allocation2 + $0x6a8] sm:$0xff]
      %v5678 = vld [vmem:[#allocation2 + $0x6b0] sm:$0xff]
      %v5679 = vld [vmem:[#allocation2 + $0x6b8] sm:$0xff]
      %v5680 = vld [vmem:[#allocation2 + $0x6c0] sm:$0xff]
      %v5681 = vld [vmem:[#allocation2 + $0x6c8] sm:$0xff]
      %v5682 = vld [vmem:[#allocation2 + $0x6d0] sm:$0xff]
      %v5683 = vld [vmem:[#allocation2 + $0x6d8] sm:$0xff]
      %v5684 = vld [vmem:[#allocation2 + $0x6e0] sm:$0xff]
      %v5685 = vld [vmem:[#allocation2 + $0x6e8] sm:$0xff]
      %v5686 = vld [vmem:[#allocation2 + $0x6f0] sm:$0xff]
      %v5687 = vld [vmem:[#allocation2 + $0x6f8] sm:$0xff]
      %v5688 = vld [vmem:[#allocation2 + $0x700] sm:$0xff]
      %v5689 = vld [vmem:[#allocation2 + $0x708] sm:$0xff]
      %v5690 = vld [vmem:[#allocation2 + $0x710] sm:$0xff]
      %v5691 = vld [vmem:[#allocation2 + $0x718] sm:$0xff]
      %v5692 = vld [vmem:[#allocation2 + $0x720] sm:$0xff]
      %v5693 = vld [vmem:[#allocation2 + $0x728] sm:$0xff]
      %v5694 = vld [vmem:[#allocation2 + $0x730] sm:$0xff]
      %v5695 = vld [vmem:[#allocation2 + $0x738] sm:$0xff]
      %v5696 = vld [vmem:[#allocation2 + $0x740] sm:$0xff]
      %v5697 = vld [vmem:[#allocation2 + $0x748] sm:$0xff]
      %v5698 = vld [vmem:[#allocation2 + $0x750] sm:$0xff]
      %v5699 = vld [vmem:[#allocation2 + $0x758] sm:$0xff]
      %v5700 = vld [vmem:[#allocation2 + $0x760] sm:$0xff]
      %v5701 = vld [vmem:[#allocation2 + $0x768] sm:$0xff]
      %v5702 = vld [vmem:[#allocation2 + $0x770] sm:$0xff]
      %v5703 = vld [vmem:[#allocation2 + $0x778] sm:$0xff]
      %v5704 = vld [vmem:[#allocation2 + $0x780] sm:$0xff]
      %v5705 = vld [vmem:[#allocation2 + $0x788] sm:$0xff]
      %v5706 = vld [vmem:[#allocation2 + $0x790] sm:$0xff]
      %v5707 = vld [vmem:[#allocation2 + $0x798] sm:$0xff]
      %v5708 = vld [vmem:[#allocation2 + $0x7a0] sm:$0xff]
      %v5709 = vld [vmem:[#allocation2 + $0x7a8] sm:$0xff]
      %v5710 = vld [vmem:[#allocation2 + $0x7b0] sm:$0xff]
      %v5711 = vld [vmem:[#allocation2 + $0x7b8] sm:$0xff]
      %v5712 = vld [vmem:[#allocation2 + $0x7c0] sm:$0xff]
      %v5713 = vld [vmem:[#allocation2 + $0x7c8] sm:$0xff]
      %v5714 = vld [vmem:[#allocation2 + $0x7d0] sm:$0xff]
      %v5715 = vld [vmem:[#allocation2 + $0x7d8] sm:$0xff]
      %v5716 = vld [vmem:[#allocation2 + $0x7e0] sm:$0xff]
      %v5717 = vld [vmem:[#allocation2 + $0x7e8] sm:$0xff]
      %v5718 = vld [vmem:[#allocation2 + $0x7f0] sm:$0xff]
      %v5719 = vld [vmem:[#allocation2 + $0x7f8] sm:$0xff]
      %v5720 = vld [vmem:[#allocation2 + $0x800] sm:$0xff]
      %v5721 = vld [vmem:[#allocation2 + $0x808] sm:$0xff]
      %v5722 = vld [vmem:[#allocation2 + $0x810] sm:$0xff]
      %v5723 = vld [vmem:[#allocation2 + $0x818] sm:$0xff]
      %v5724 = vld [vmem:[#allocation2 + $0x820] sm:$0xff]
      %v5725 = vld [vmem:[#allocation2 + $0x828] sm:$0xff]
      %v5726 = vld [vmem:[#allocation2 + $0x830] sm:$0xff]
      %v5727 = vld [vmem:[#allocation2 + $0x838] sm:$0xff]
      %v5728 = vld [vmem:[#allocation2 + $0x840] sm:$0xff]
      %v5729 = vld [vmem:[#allocation2 + $0x848] sm:$0xff]
      %v5730 = vld [vmem:[#allocation2 + $0x850] sm:$0xff]
      %v5731 = vld [vmem:[#allocation2 + $0x858] sm:$0xff]
      %v5732 = vld [vmem:[#allocation2 + $0x860] sm:$0xff]
      %v5733 = vld [vmem:[#allocation2 + $0x868] sm:$0xff]
      %v5734 = vld [vmem:[#allocation2 + $0x870] sm:$0xff]
      %v5735 = vld [vmem:[#allocation2 + $0x878] sm:$0xff]
      %v5736 = vld [vmem:[#allocation2 + $0x880] sm:$0xff]
      %v5737 = vld [vmem:[#allocation2 + $0x888] sm:$0xff]
      %v5738 = vld [vmem:[#allocation2 + $0x890] sm:$0xff]
      %v5739 = vld [vmem:[#allocation2 + $0x898] sm:$0xff]
      %v5740 = vld [vmem:[#allocation2 + $0x8a0] sm:$0xff]
      %v5741 = vld [vmem:[#allocation2 + $0x8a8] sm:$0xff]
      %v5742 = vld [vmem:[#allocation2 + $0x8b0] sm:$0xff]
      %v5743 = vld [vmem:[#allocation2 + $0x8b8] sm:$0xff]
      %v5744 = vld [vmem:[#allocation2 + $0x8c0] sm:$0xff]
      %v5745 = vld [vmem:[#allocation2 + $0x8c8] sm:$0xff]
      %v5746 = vld [vmem:[#allocation2 + $0x8d0] sm:$0xff]
      %v5747 = vld [vmem:[#allocation2 + $0x8d8] sm:$0xff]
      %v5748 = vld [vmem:[#allocation2 + $0x8e0] sm:$0xff]
      %v5749 = vld [vmem:[#allocation2 + $0x8e8] sm:$0xff]
      %v5750 = vld [vmem:[#allocation2 + $0x8f0] sm:$0xff]
      %v5751 = vld [vmem:[#allocation2 + $0x8f8] sm:$0xff]
      %v5752 = vld [vmem:[#allocation2 + $0x900] sm:$0xff]
      %v5753 = vld [vmem:[#allocation2 + $0x908] sm:$0xff]
      %v5754 = vld [vmem:[#allocation2 + $0x910] sm:$0xff]
      %v5755 = vld [vmem:[#allocation2 + $0x918] sm:$0xff]
      %v5756 = vld [vmem:[#allocation2 + $0x920] sm:$0xff]
      %v5757 = vld [vmem:[#allocation2 + $0x928] sm:$0xff]
      %v5758 = vld [vmem:[#allocation2 + $0x930] sm:$0xff]
      %v5759 = vld [vmem:[#allocation2 + $0x938] sm:$0xff]
      %v5760 = vld [vmem:[#allocation2 + $0x940] sm:$0xff]
      %v5761 = vld [vmem:[#allocation2 + $0x948] sm:$0xff]
      %v5762 = vld [vmem:[#allocation2 + $0x950] sm:$0xff]
      %v5763 = vld [vmem:[#allocation2 + $0x958] sm:$0xff]
      %v5764 = vld [vmem:[#allocation2 + $0x960] sm:$0xff]
      %v5765 = vld [vmem:[#allocation2 + $0x968] sm:$0xff]
      %v5766 = vld [vmem:[#allocation2 + $0x970] sm:$0xff]
      %v5767 = vld [vmem:[#allocation2 + $0x978] sm:$0xff]
      %v5768 = vld [vmem:[#allocation2 + $0x980] sm:$0xff]
      %v5769 = vld [vmem:[#allocation2 + $0x988] sm:$0xff]
      %v5770 = vld [vmem:[#allocation2 + $0x990] sm:$0xff]
      %v5771 = vld [vmem:[#allocation2 + $0x998] sm:$0xff]
      %v5772 = vld [vmem:[#allocation2 + $0x9a0] sm:$0xff]
      %v5773 = vld [vmem:[#allocation2 + $0x9a8] sm:$0xff]
      %v5774 = vld [vmem:[#allocation2 + $0x9b0] sm:$0xff]
      %v5775 = vld [vmem:[#allocation2 + $0x9b8] sm:$0xff]
      %v5776 = vld [vmem:[#allocation2 + $0x9c0] sm:$0xff]
      %v5777 = vld [vmem:[#allocation2 + $0x9c8] sm:$0xff]
      %v5778 = vld [vmem:[#allocation2 + $0x9d0] sm:$0xff]
      %v5779 = vld [vmem:[#allocation2 + $0x9d8] sm:$0xff]
      %v5780 = vld [vmem:[#allocation2 + $0x9e0] sm:$0xff]
      %v5781 = vld [vmem:[#allocation2 + $0x9e8] sm:$0xff]
      %v5782 = vld [vmem:[#allocation2 + $0x9f0] sm:$0xff]
      %v5783 = vld [vmem:[#allocation2 + $0x9f8] sm:$0xff]
      %v5784 = vld [vmem:[#allocation2 + $0xa00] sm:$0xff]
      %v5785 = vld [vmem:[#allocation2 + $0xa08] sm:$0xff]
      %v5786 = vld [vmem:[#allocation2 + $0xa10] sm:$0xff]
      %v5787 = vld [vmem:[#allocation2 + $0xa18] sm:$0xff]
      %v5788 = vld [vmem:[#allocation2 + $0xa20] sm:$0xff]
      %v5789 = vld [vmem:[#allocation2 + $0xa28] sm:$0xff]
      %v5790 = vld [vmem:[#allocation2 + $0xa30] sm:$0xff]
      %v5791 = vld [vmem:[#allocation2 + $0xa38] sm:$0xff]
      %v5792 = vld [vmem:[#allocation2 + $0xa40] sm:$0xff]
      %v5793 = vld [vmem:[#allocation2 + $0xa48] sm:$0xff]
      %v5794 = vld [vmem:[#allocation2 + $0xa50] sm:$0xff]
      %v5795 = vld [vmem:[#allocation2 + $0xa58] sm:$0xff]
      %v5796 = vld [vmem:[#allocation2 + $0xa60] sm:$0xff]
      %v5797 = vld [vmem:[#allocation2 + $0xa68] sm:$0xff]
      %v5798 = vld [vmem:[#allocation2 + $0xa70] sm:$0xff]
      %v5799 = vld [vmem:[#allocation2 + $0xa78] sm:$0xff]
      %v5800 = vld [vmem:[#allocation2 + $0xa80] sm:$0xff]
      %v5801 = vld [vmem:[#allocation2 + $0xa88] sm:$0xff]
      %v5802 = vld [vmem:[#allocation2 + $0xa90] sm:$0xff]
      %v5803 = vld [vmem:[#allocation2 + $0xa98] sm:$0xff]
      %v5804 = vld [vmem:[#allocation2 + $0xaa0] sm:$0xff]
      %v5805 = vld [vmem:[#allocation2 + $0xaa8] sm:$0xff]
      %v5806 = vld [vmem:[#allocation2 + $0xab0] sm:$0xff]
      %v5807 = vld [vmem:[#allocation2 + $0xab8] sm:$0xff]
      %v5808 = vld [vmem:[#allocation2 + $0xac0] sm:$0xff]
      %v5809 = vld [vmem:[#allocation2 + $0xac8] sm:$0xff]
      %v5810 = vld [vmem:[#allocation2 + $0xad0] sm:$0xff]
      %v5811 = vld [vmem:[#allocation2 + $0xad8] sm:$0xff]
      %v5812 = vld [vmem:[#allocation2 + $0xae0] sm:$0xff]
      %v5813 = vld [vmem:[#allocation2 + $0xae8] sm:$0xff]
      %v5814 = vld [vmem:[#allocation2 + $0xaf0] sm:$0xff]
      %v5815 = vld [vmem:[#allocation2 + $0xaf8] sm:$0xff]
      %v5816 = vld [vmem:[#allocation2 + $0xb00] sm:$0xff]
      %v5817 = vld [vmem:[#allocation2 + $0xb08] sm:$0xff]
      %v5818 = vld [vmem:[#allocation2 + $0xb10] sm:$0xff]
      %v5819 = vld [vmem:[#allocation2 + $0xb18] sm:$0xff]
      %v5820 = vld [vmem:[#allocation2 + $0xb20] sm:$0xff]
      %v5821 = vld [vmem:[#allocation2 + $0xb28] sm:$0xff]
      %v5822 = vld [vmem:[#allocation2 + $0xb30] sm:$0xff]
      %v5823 = vld [vmem:[#allocation2 + $0xb38] sm:$0xff]
      %v5824 = vld [vmem:[#allocation2 + $0xb40] sm:$0xff]
      %v5825 = vld [vmem:[#allocation2 + $0xb48] sm:$0xff]
      %v5826 = vld [vmem:[#allocation2 + $0xb50] sm:$0xff]
      %v5827 = vld [vmem:[#allocation2 + $0xb58] sm:$0xff]
      %v5828 = vld [vmem:[#allocation2 + $0xb60] sm:$0xff]
      %v5829 = vld [vmem:[#allocation2 + $0xb68] sm:$0xff]
      %v5830 = vld [vmem:[#allocation2 + $0xb70] sm:$0xff]
      %v5831 = vld [vmem:[#allocation2 + $0xb78] sm:$0xff]
      %v5832 = vld [vmem:[#allocation2 + $0xb80] sm:$0xff]
      %v5833 = vld [vmem:[#allocation2 + $0xb88] sm:$0xff]
      %v5834 = vld [vmem:[#allocation2 + $0xb90] sm:$0xff]
      %v5835 = vld [vmem:[#allocation2 + $0xb98] sm:$0xff]
      %v5836 = vld [vmem:[#allocation2 + $0xba0] sm:$0xff]
      %v5837 = vld [vmem:[#allocation2 + $0xba8] sm:$0xff]
      %v5838 = vld [vmem:[#allocation2 + $0xbb0] sm:$0xff]
      %v5839 = vld [vmem:[#allocation2 + $0xbb8] sm:$0xff]
      %v5840 = vld [vmem:[#allocation2 + $0xbc0] sm:$0xff]
      %v5841 = vld [vmem:[#allocation2 + $0xbc8] sm:$0xff]
      %v5842 = vld [vmem:[#allocation2 + $0xbd0] sm:$0xff]
      %v5843 = vld [vmem:[#allocation2 + $0xbd8] sm:$0xff]
      %v5844 = vld [vmem:[#allocation2 + $0xbe0] sm:$0xff]
      %v5845 = vld [vmem:[#allocation2 + $0xbe8] sm:$0xff]
      %v5846 = vld [vmem:[#allocation2 + $0xbf0] sm:$0xff]
      %v5847 = vld [vmem:[#allocation2 + $0xbf8] sm:$0xff]
      %v5848 = vld [vmem:[#allocation2 + $0xc00] sm:$0xff]
      %v5849 = vld [vmem:[#allocation2 + $0xc08] sm:$0xff]
      %v5850 = vld [vmem:[#allocation2 + $0xc10] sm:$0xff]
      %v5851 = vld [vmem:[#allocation2 + $0xc18] sm:$0xff]
      %v5852 = vld [vmem:[#allocation2 + $0xc20] sm:$0xff]
      %v5853 = vld [vmem:[#allocation2 + $0xc28] sm:$0xff]
      %v5854 = vld [vmem:[#allocation2 + $0xc30] sm:$0xff]
      %v5855 = vld [vmem:[#allocation2 + $0xc38] sm:$0xff]
      %v5856 = vld [vmem:[#allocation2 + $0xc40] sm:$0xff]
      %v5857 = vld [vmem:[#allocation2 + $0xc48] sm:$0xff]
      %v5858 = vld [vmem:[#allocation2 + $0xc50] sm:$0xff]
      %v5859 = vld [vmem:[#allocation2 + $0xc58] sm:$0xff]
      %v5860 = vld [vmem:[#allocation2 + $0xc60] sm:$0xff]
      %v5861 = vld [vmem:[#allocation2 + $0xc68] sm:$0xff]
      %v5862 = vld [vmem:[#allocation2 + $0xc70] sm:$0xff]
      %v5863 = vld [vmem:[#allocation2 + $0xc78] sm:$0xff]
      %v5864 = vld [vmem:[#allocation2 + $0xc80] sm:$0xff]
      %v5865 = vld [vmem:[#allocation2 + $0xc88] sm:$0xff]
      %v5866 = vld [vmem:[#allocation2 + $0xc90] sm:$0xff]
      %v5867 = vld [vmem:[#allocation2 + $0xc98] sm:$0xff]
      %v5868 = vld [vmem:[#allocation2 + $0xca0] sm:$0xff]
      %v5869 = vld [vmem:[#allocation2 + $0xca8] sm:$0xff]
      %v5870 = vld [vmem:[#allocation2 + $0xcb0] sm:$0xff]
      %v5871 = vld [vmem:[#allocation2 + $0xcb8] sm:$0xff]
      %v5872 = vld [vmem:[#allocation2 + $0xcc0] sm:$0xff]
      %v5873 = vld [vmem:[#allocation2 + $0xcc8] sm:$0xff]
      %v5874 = vld [vmem:[#allocation2 + $0xcd0] sm:$0xff]
      %v5875 = vld [vmem:[#allocation2 + $0xcd8] sm:$0xff]
      %v5876 = vld [vmem:[#allocation2 + $0xce0] sm:$0xff]
      %v5877 = vld [vmem:[#allocation2 + $0xce8] sm:$0xff]
      %v5878 = vld [vmem:[#allocation2 + $0xcf0] sm:$0xff]
      %v5879 = vld [vmem:[#allocation2 + $0xcf8] sm:$0xff]
      %v5880 = vld [vmem:[#allocation2 + $0xd00] sm:$0xff]
      %v5881 = vld [vmem:[#allocation2 + $0xd08] sm:$0xff]
      %v5882 = vld [vmem:[#allocation2 + $0xd10] sm:$0xff]
      %v5883 = vld [vmem:[#allocation2 + $0xd18] sm:$0xff]
      %v5884 = vld [vmem:[#allocation2 + $0xd20] sm:$0xff]
      %v5885 = vld [vmem:[#allocation2 + $0xd28] sm:$0xff]
      %v5886 = vld [vmem:[#allocation2 + $0xd30] sm:$0xff]
      %v5887 = vld [vmem:[#allocation2 + $0xd38] sm:$0xff]
      %v5888 = vld [vmem:[#allocation2 + $0xd40] sm:$0xff]
      %v5889 = vld [vmem:[#allocation2 + $0xd48] sm:$0xff]
      %v5890 = vld [vmem:[#allocation2 + $0xd50] sm:$0xff]
      %v5891 = vld [vmem:[#allocation2 + $0xd58] sm:$0xff]
      %v5892 = vld [vmem:[#allocation2 + $0xd60] sm:$0xff]
      %v5893 = vld [vmem:[#allocation2 + $0xd68] sm:$0xff]
      %v5894 = vld [vmem:[#allocation2 + $0xd70] sm:$0xff]
      %v5895 = vld [vmem:[#allocation2 + $0xd78] sm:$0xff]
      %v5896 = vld [vmem:[#allocation2 + $0xd80] sm:$0xff]
      %v5897 = vld [vmem:[#allocation2 + $0xd88] sm:$0xff]
      %v5898 = vld [vmem:[#allocation2 + $0xd90] sm:$0xff]
      %v5899 = vld [vmem:[#allocation2 + $0xd98] sm:$0xff]
      %v5900 = vld [vmem:[#allocation2 + $0xda0] sm:$0xff]
      %v5901 = vld [vmem:[#allocation2 + $0xda8] sm:$0xff]
      %v5902 = vld [vmem:[#allocation2 + $0xdb0] sm:$0xff]
      %v5903 = vld [vmem:[#allocation2 + $0xdb8] sm:$0xff]
      %v5904 = vld [vmem:[#allocation2 + $0xdc0] sm:$0xff]
      %v5905 = vld [vmem:[#allocation2 + $0xdc8] sm:$0xff]
      %v5906 = vld [vmem:[#allocation2 + $0xdd0] sm:$0xff]
      %v5907 = vld [vmem:[#allocation2 + $0xdd8] sm:$0xff]
      %v5908 = vld [vmem:[#allocation2 + $0xde0] sm:$0xff]
      %v5909 = vld [vmem:[#allocation2 + $0xde8] sm:$0xff]
      %v5910 = vld [vmem:[#allocation2 + $0xdf0] sm:$0xff]
      %v5911 = vld [vmem:[#allocation2 + $0xdf8] sm:$0xff]
      %v5912 = vld [vmem:[#allocation2 + $0xe00] sm:$0xff]
      %v5913 = vld [vmem:[#allocation2 + $0xe08] sm:$0xff]
      %v5914 = vld [vmem:[#allocation2 + $0xe10] sm:$0xff]
      %v5915 = vld [vmem:[#allocation2 + $0xe18] sm:$0xff]
      %v5916 = vld [vmem:[#allocation2 + $0xe20] sm:$0xff]
      %v5917 = vld [vmem:[#allocation2 + $0xe28] sm:$0xff]
      %v5918 = vld [vmem:[#allocation2 + $0xe30] sm:$0xff]
      %v5919 = vld [vmem:[#allocation2 + $0xe38] sm:$0xff]
      %v5920 = vld [vmem:[#allocation2 + $0xe40] sm:$0xff]
      %v5921 = vld [vmem:[#allocation2 + $0xe48] sm:$0xff]
      %v5922 = vld [vmem:[#allocation2 + $0xe50] sm:$0xff]
      %v5923 = vld [vmem:[#allocation2 + $0xe58] sm:$0xff]
      %v5924 = vld [vmem:[#allocation2 + $0xe60] sm:$0xff]
      %v5925 = vld [vmem:[#allocation2 + $0xe68] sm:$0xff]
      %v5926 = vld [vmem:[#allocation2 + $0xe70] sm:$0xff]
      %v5927 = vld [vmem:[#allocation2 + $0xe78] sm:$0xff]
      %v5928 = vld [vmem:[#allocation2 + $0xe80] sm:$0xff]
      %v5929 = vld [vmem:[#allocation2 + $0xe88] sm:$0xff]
      %v5930 = vld [vmem:[#allocation2 + $0xe90] sm:$0xff]
      %v5931 = vld [vmem:[#allocation2 + $0xe98] sm:$0xff]
      %v5932 = vld [vmem:[#allocation2 + $0xea0] sm:$0xff]
      %v5933 = vld [vmem:[#allocation2 + $0xea8] sm:$0xff]
      %v5934 = vld [vmem:[#allocation2 + $0xeb0] sm:$0xff]
      %v5935 = vld [vmem:[#allocation2 + $0xeb8] sm:$0xff]
      %v5936 = vld [vmem:[#allocation2 + $0xec0] sm:$0xff]
      %v5937 = vld [vmem:[#allocation2 + $0xec8] sm:$0xff]
      %v5938 = vld [vmem:[#allocation2 + $0xed0] sm:$0xff]
      %v5939 = vld [vmem:[#allocation2 + $0xed8] sm:$0xff]
      %v5940 = vld [vmem:[#allocation2 + $0xee0] sm:$0xff]
      %v5941 = vld [vmem:[#allocation2 + $0xee8] sm:$0xff]
      %v5942 = vld [vmem:[#allocation2 + $0xef0] sm:$0xff]
      %v5943 = vld [vmem:[#allocation2 + $0xef8] sm:$0xff]
      %v5944 = vld [vmem:[#allocation2 + $0xf00] sm:$0xff]
      %v5945 = vld [vmem:[#allocation2 + $0xf08] sm:$0xff]
      %v5946 = vld [vmem:[#allocation2 + $0xf10] sm:$0xff]
      %v5947 = vld [vmem:[#allocation2 + $0xf18] sm:$0xff]
      %v5948 = vld [vmem:[#allocation2 + $0xf20] sm:$0xff]
      %v5949 = vld [vmem:[#allocation2 + $0xf28] sm:$0xff]
      %v5950 = vld [vmem:[#allocation2 + $0xf30] sm:$0xff]
      %v5951 = vld [vmem:[#allocation2 + $0xf38] sm:$0xff]
      %v5952 = vld [vmem:[#allocation2 + $0xf40] sm:$0xff]
      %v5953 = vld [vmem:[#allocation2 + $0xf48] sm:$0xff]
      %v5954 = vld [vmem:[#allocation2 + $0xf50] sm:$0xff]
      %v5955 = vld [vmem:[#allocation2 + $0xf58] sm:$0xff]
      %v5956 = vld [vmem:[#allocation2 + $0xf60] sm:$0xff]
      %v5957 = vld [vmem:[#allocation2 + $0xf68] sm:$0xff]
      %v5958 = vld [vmem:[#allocation2 + $0xf70] sm:$0xff]
      %v5959 = vld [vmem:[#allocation2 + $0xf78] sm:$0xff]
      %v5960 = vld [vmem:[#allocation2 + $0xf80] sm:$0xff]
      %v5961 = vld [vmem:[#allocation2 + $0xf88] sm:$0xff]
      %v5962 = vld [vmem:[#allocation2 + $0xf90] sm:$0xff]
      %v5963 = vld [vmem:[#allocation2 + $0xf98] sm:$0xff]
      %v5964 = vld [vmem:[#allocation2 + $0xfa0] sm:$0xff]
      %v5965 = vld [vmem:[#allocation2 + $0xfa8] sm:$0xff]
      %v5966 = vld [vmem:[#allocation2 + $0xfb0] sm:$0xff]
      %v5967 = vld [vmem:[#allocation2 + $0xfb8] sm:$0xff]
      %v5968 = vld [vmem:[#allocation2 + $0xfc0] sm:$0xff]
      %v5969 = vld [vmem:[#allocation2 + $0xfc8] sm:$0xff]
      %v5970 = vld [vmem:[#allocation2 + $0xfd0] sm:$0xff]
      %v5971 = vld [vmem:[#allocation2 + $0xfd8] sm:$0xff]
      %v5972 = vld [vmem:[#allocation2 + $0xfe0] sm:$0xff]
      %v5973 = vld [vmem:[#allocation2 + $0xfe8] sm:$0xff]
      %v5974 = vld [vmem:[#allocation2 + $0xff0] sm:$0xff]
      %v5975 = vld [vmem:[#allocation2 + $0xff8] sm:$0xff]
      %v5976 = vld [vmem:[#allocation2 + $0x1000] sm:$0xff]
      %v5977 = vld [vmem:[#allocation2 + $0x1008] sm:$0xff]
      %v5978 = vld [vmem:[#allocation2 + $0x1010] sm:$0xff]
      %v5979 = vld [vmem:[#allocation2 + $0x1018] sm:$0xff]
      %v5980 = vld [vmem:[#allocation2 + $0x1020] sm:$0xff]
      %v5981 = vld [vmem:[#allocation2 + $0x1028] sm:$0xff]
      %v5982 = vld [vmem:[#allocation2 + $0x1030] sm:$0xff]
      %v5983 = vld [vmem:[#allocation2 + $0x1038] sm:$0xff]
      %v5984 = vld [vmem:[#allocation2 + $0x1040] sm:$0xff]
      %v5985 = vld [vmem:[#allocation2 + $0x1048] sm:$0xff]
      %v5986 = vld [vmem:[#allocation2 + $0x1050] sm:$0xff]
      %v5987 = vld [vmem:[#allocation2 + $0x1058] sm:$0xff]
      %v5988 = vld [vmem:[#allocation2 + $0x1060] sm:$0xff]
      %v5989 = vld [vmem:[#allocation2 + $0x1068] sm:$0xff]
      %v5990 = vld [vmem:[#allocation2 + $0x1070] sm:$0xff]
      %v5991 = vld [vmem:[#allocation2 + $0x1078] sm:$0xff]
      %v5992 = vld [vmem:[#allocation2 + $0x1080] sm:$0xff]
      %v5993 = vld [vmem:[#allocation2 + $0x1088] sm:$0xff]
      %v5994 = vld [vmem:[#allocation2 + $0x1090] sm:$0xff]
      %v5995 = vld [vmem:[#allocation2 + $0x1098] sm:$0xff]
      %v5996 = vld [vmem:[#allocation2 + $0x10a0] sm:$0xff]
      %v5997 = vld [vmem:[#allocation2 + $0x10a8] sm:$0xff]
      %v5998 = vld [vmem:[#allocation2 + $0x10b0] sm:$0xff]
      %v5999 = vld [vmem:[#allocation2 + $0x10b8] sm:$0xff]
      %v6000 = vld [vmem:[#allocation2 + $0x10c0] sm:$0xff]
      %v6001 = vld [vmem:[#allocation2 + $0x10c8] sm:$0xff]
      %v6002 = vld [vmem:[#allocation2 + $0x10d0] sm:$0xff]
      %v6003 = vld [vmem:[#allocation2 + $0x10d8] sm:$0xff]
      %v6004 = vld [vmem:[#allocation2 + $0x10e0] sm:$0xff]
      %v6005 = vld [vmem:[#allocation2 + $0x10e8] sm:$0xff]
      %v6006 = vld [vmem:[#allocation2 + $0x10f0] sm:$0xff]
      %v6007 = vld [vmem:[#allocation2 + $0x10f8] sm:$0xff]
      %v6008 = vld [vmem:[#allocation2 + $0x1100] sm:$0xff]
      %v6009 = vld [vmem:[#allocation2 + $0x1108] sm:$0xff]
      %v6010 = vld [vmem:[#allocation2 + $0x1110] sm:$0xff]
      %v6011 = vld [vmem:[#allocation2 + $0x1118] sm:$0xff]
      %v6012 = vld [vmem:[#allocation2 + $0x1120] sm:$0xff]
      %v6013 = vld [vmem:[#allocation2 + $0x1128] sm:$0xff]
      %v6014 = vld [vmem:[#allocation2 + $0x1130] sm:$0xff]
      %v6015 = vld [vmem:[#allocation2 + $0x1138] sm:$0xff]
      %v6016 = vld [vmem:[#allocation2 + $0x1140] sm:$0xff]
      %v6017 = vld [vmem:[#allocation2 + $0x1148] sm:$0xff]
      %v6018 = vld [vmem:[#allocation2 + $0x1150] sm:$0xff]
      %v6019 = vld [vmem:[#allocation2 + $0x1158] sm:$0xff]
      %v6020 = vld [vmem:[#allocation2 + $0x1160] sm:$0xff]
      %v6021 = vld [vmem:[#allocation2 + $0x1168] sm:$0xff]
      %v6022 = vld [vmem:[#allocation2 + $0x1170] sm:$0xff]
      %v6023 = vld [vmem:[#allocation2 + $0x1178] sm:$0xff]
      %v6024 = vld [vmem:[#allocation2 + $0x1180] sm:$0xff]
      %v6025 = vld [vmem:[#allocation2 + $0x1188] sm:$0xff]
      %v6026 = vld [vmem:[#allocation2 + $0x1190] sm:$0xff]
      %v6027 = vld [vmem:[#allocation2 + $0x1198] sm:$0xff]
      %v6028 = vld [vmem:[#allocation2 + $0x11a0] sm:$0xff]
      %v6029 = vld [vmem:[#allocation2 + $0x11a8] sm:$0xff]
      %v6030 = vld [vmem:[#allocation2 + $0x11b0] sm:$0xff]
      %v6031 = vld [vmem:[#allocation2 + $0x11b8] sm:$0xff]
      %v6032 = vld [vmem:[#allocation2 + $0x11c0] sm:$0xff]
      %v6033 = vld [vmem:[#allocation2 + $0x11c8] sm:$0xff]
      %v6034 = vld [vmem:[#allocation2 + $0x11d0] sm:$0xff]
      %v6035 = vld [vmem:[#allocation2 + $0x11d8] sm:$0xff]
      %v6036 = vld [vmem:[#allocation2 + $0x11e0] sm:$0xff]
      %v6037 = vld [vmem:[#allocation2 + $0x11e8] sm:$0xff]
      %v6038 = vld [vmem:[#allocation2 + $0x11f0] sm:$0xff]
      %v6039 = vld [vmem:[#allocation2 + $0x11f8] sm:$0xff]
      %v6040 = vld [vmem:[#allocation2 + $0x1200] sm:$0xff]
      %v6041 = vld [vmem:[#allocation2 + $0x1208] sm:$0xff]
      %v6042 = vld [vmem:[#allocation2 + $0x1210] sm:$0xff]
      %v6043 = vld [vmem:[#allocation2 + $0x1218] sm:$0xff]
      %v6044 = vld [vmem:[#allocation2 + $0x1220] sm:$0xff]
      %v6045 = vld [vmem:[#allocation2 + $0x1228] sm:$0xff]
      %v6046 = vld [vmem:[#allocation2 + $0x1230] sm:$0xff]
      %v6047 = vld [vmem:[#allocation2 + $0x1238] sm:$0xff]
      %v6048 = vld [vmem:[#allocation2 + $0x1240] sm:$0xff]
      %v6049 = vld [vmem:[#allocation2 + $0x1248] sm:$0xff]
      %v6050 = vld [vmem:[#allocation2 + $0x1250] sm:$0xff]
      %v6051 = vld [vmem:[#allocation2 + $0x1258] sm:$0xff]
      %v6052 = vld [vmem:[#allocation2 + $0x1260] sm:$0xff]
      %v6053 = vld [vmem:[#allocation2 + $0x1268] sm:$0xff]
      %v6054 = vld [vmem:[#allocation2 + $0x1270] sm:$0xff]
      %v6055 = vld [vmem:[#allocation2 + $0x1278] sm:$0xff]
      %v6056 = vld [vmem:[#allocation2 + $0x1280] sm:$0xff]
      %v6057 = vld [vmem:[#allocation2 + $0x1288] sm:$0xff]
      %v6058 = vld [vmem:[#allocation2 + $0x1290] sm:$0xff]
      %v6059 = vld [vmem:[#allocation2 + $0x1298] sm:$0xff]
      %v6060 = vld [vmem:[#allocation2 + $0x12a0] sm:$0xff]
      %v6061 = vld [vmem:[#allocation2 + $0x12a8] sm:$0xff]
      %v6062 = vld [vmem:[#allocation2 + $0x12b0] sm:$0xff]
      %v6063 = vld [vmem:[#allocation2 + $0x12b8] sm:$0xff]
      %v6064 = vld [vmem:[#allocation2 + $0x12c0] sm:$0xff]
      %v6065 = vld [vmem:[#allocation2 + $0x12c8] sm:$0xff]
      %v6066 = vld [vmem:[#allocation2 + $0x12d0] sm:$0xff]
      %v6067 = vld [vmem:[#allocation2 + $0x12d8] sm:$0xff]
      %v6068 = vld [vmem:[#allocation2 + $0x12e0] sm:$0xff]
      %v6069 = vld [vmem:[#allocation2 + $0x12e8] sm:$0xff]
      %v6070 = vld [vmem:[#allocation2 + $0x12f0] sm:$0xff]
      %v6071 = vld [vmem:[#allocation2 + $0x12f8] sm:$0xff]
      %v6072 = vld [vmem:[#allocation2 + $0x1300] sm:$0xff]
      %v6073 = vld [vmem:[#allocation2 + $0x1308] sm:$0xff]
      %v6074 = vld [vmem:[#allocation2 + $0x1310] sm:$0xff]
      %v6075 = vld [vmem:[#allocation2 + $0x1318] sm:$0xff]
      %v6076 = vld [vmem:[#allocation2 + $0x1320] sm:$0xff]
      %v6077 = vld [vmem:[#allocation2 + $0x1328] sm:$0xff]
      %v6078 = vld [vmem:[#allocation2 + $0x1330] sm:$0xff]
      %v6079 = vld [vmem:[#allocation2 + $0x1338] sm:$0xff]
      %v6080 = vld [vmem:[#allocation2 + $0x1340] sm:$0xff]
      %v6081 = vld [vmem:[#allocation2 + $0x1348] sm:$0xff]
      %v6082 = vld [vmem:[#allocation2 + $0x1350] sm:$0xff]
      %v6083 = vld [vmem:[#allocation2 + $0x1358] sm:$0xff]
      %v6084 = vld [vmem:[#allocation2 + $0x1360] sm:$0xff]
      %v6085 = vld [vmem:[#allocation2 + $0x1368] sm:$0xff]
      %v6086 = vld [vmem:[#allocation2 + $0x1370] sm:$0xff]
      %v6087 = vld [vmem:[#allocation2 + $0x1378] sm:$0xff]
      %v6088 = vld [vmem:[#allocation2 + $0x1380] sm:$0xff]
      %v6089 = vld [vmem:[#allocation2 + $0x1388] sm:$0xff]
      %v6090 = vld [vmem:[#allocation2 + $0x1390] sm:$0xff]
      %v6091 = vld [vmem:[#allocation2 + $0x1398] sm:$0xff]
      %v6092 = vld [vmem:[#allocation2 + $0x13a0] sm:$0xff]
      %v6093 = vld [vmem:[#allocation2 + $0x13a8] sm:$0xff]
      %v6094 = vld [vmem:[#allocation2 + $0x13b0] sm:$0xff]
      %v6095 = vld [vmem:[#allocation2 + $0x13b8] sm:$0xff]
      %v6096 = vld [vmem:[#allocation2 + $0x13c0] sm:$0xff]
      %v6097 = vld [vmem:[#allocation2 + $0x13c8] sm:$0xff]
      %v6098 = vld [vmem:[#allocation2 + $0x13d0] sm:$0xff]
      %v6099 = vld [vmem:[#allocation2 + $0x13d8] sm:$0xff]
      %v6100 = vld [vmem:[#allocation2 + $0x13e0] sm:$0xff]
      %v6101 = vld [vmem:[#allocation2 + $0x13e8] sm:$0xff]
      %v6102 = vld [vmem:[#allocation2 + $0x13f0] sm:$0xff]
      %v6103 = vld [vmem:[#allocation2 + $0x13f8] sm:$0xff]
      %v6104 = vld [vmem:[#allocation2 + $0x1400] sm:$0xff]
      %v6105 = vld [vmem:[#allocation2 + $0x1408] sm:$0xff]
      %v6106 = vld [vmem:[#allocation2 + $0x1410] sm:$0xff]
      %v6107 = vld [vmem:[#allocation2 + $0x1418] sm:$0xff]
      %v6108 = vld [vmem:[#allocation2 + $0x1420] sm:$0xff]
      %v6109 = vld [vmem:[#allocation2 + $0x1428] sm:$0xff]
      %v6110 = vld [vmem:[#allocation2 + $0x1430] sm:$0xff]
      %v6111 = vld [vmem:[#allocation2 + $0x1438] sm:$0xff]
      %v6112 = vld [vmem:[#allocation2 + $0x1440] sm:$0xff]
      %v6113 = vld [vmem:[#allocation2 + $0x1448] sm:$0xff]
      %v6114 = vld [vmem:[#allocation2 + $0x1450] sm:$0xff]
      %v6115 = vld [vmem:[#allocation2 + $0x1458] sm:$0xff]
      %v6116 = vld [vmem:[#allocation2 + $0x1460] sm:$0xff]
      %v6117 = vld [vmem:[#allocation2 + $0x1468] sm:$0xff]
      %v6118 = vld [vmem:[#allocation2 + $0x1470] sm:$0xff]
      %v6119 = vld [vmem:[#allocation2 + $0x1478] sm:$0xff]
      %v6120 = vld [vmem:[#allocation2 + $0x1480] sm:$0xff]
      %v6121 = vld [vmem:[#allocation2 + $0x1488] sm:$0xff]
      %v6122 = vld [vmem:[#allocation2 + $0x1490] sm:$0xff]
      %v6123 = vld [vmem:[#allocation2 + $0x1498] sm:$0xff]
      %v6124 = vld [vmem:[#allocation2 + $0x14a0] sm:$0xff]
      %v6125 = vld [vmem:[#allocation2 + $0x14a8] sm:$0xff]
      %v6126 = vld [vmem:[#allocation2 + $0x14b0] sm:$0xff]
      %v6127 = vld [vmem:[#allocation2 + $0x14b8] sm:$0xff]
      %v6128 = vld [vmem:[#allocation2 + $0x14c0] sm:$0xff]
      %v6129 = vld [vmem:[#allocation2 + $0x14c8] sm:$0xff]
      %v6130 = vld [vmem:[#allocation2 + $0x14d0] sm:$0xff]
      %v6131 = vld [vmem:[#allocation2 + $0x14d8] sm:$0xff]
      %v6132 = vld [vmem:[#allocation2 + $0x14e0] sm:$0xff]
      %v6133 = vld [vmem:[#allocation2 + $0x14e8] sm:$0xff]
      %v6134 = vld [vmem:[#allocation2 + $0x14f0] sm:$0xff]
      %v6135 = vld [vmem:[#allocation2 + $0x14f8] sm:$0xff]
      %v6136 = vld [vmem:[#allocation2 + $0x1500] sm:$0xff]
      %v6137 = vld [vmem:[#allocation2 + $0x1508] sm:$0xff]
      %v6138 = vld [vmem:[#allocation2 + $0x1510] sm:$0xff]
      %v6139 = vld [vmem:[#allocation2 + $0x1518] sm:$0xff]
      %v6140 = vld [vmem:[#allocation2 + $0x1520] sm:$0xff]
      %v6141 = vld [vmem:[#allocation2 + $0x1528] sm:$0xff]
      %v6142 = vld [vmem:[#allocation2 + $0x1530] sm:$0xff]
      %v6143 = vld [vmem:[#allocation2 + $0x1538] sm:$0xff]
      %v6144 = vld [vmem:[#allocation2 + $0x1540] sm:$0xff]
      %v6145 = vld [vmem:[#allocation2 + $0x1548] sm:$0xff]
      %v6146 = vld [vmem:[#allocation2 + $0x1550] sm:$0xff]
      %v6147 = vld [vmem:[#allocation2 + $0x1558] sm:$0xff]
      %v6148 = vld [vmem:[#allocation2 + $0x1560] sm:$0xff]
      %v6149 = vld [vmem:[#allocation2 + $0x1568] sm:$0xff]
      %v6150 = vld [vmem:[#allocation2 + $0x1570] sm:$0xff]
      %v6151 = vld [vmem:[#allocation2 + $0x1578] sm:$0xff]
      %v6152 = vld [vmem:[#allocation2 + $0x1580] sm:$0xff]
      %v6153 = vld [vmem:[#allocation2 + $0x1588] sm:$0xff]
      %v6154 = vld [vmem:[#allocation2 + $0x1590] sm:$0xff]
      %v6155 = vld [vmem:[#allocation2 + $0x1598] sm:$0xff]
      %v6156 = vld [vmem:[#allocation2 + $0x15a0] sm:$0xff]
      %v6157 = vld [vmem:[#allocation2 + $0x15a8] sm:$0xff]
      %v6158 = vld [vmem:[#allocation2 + $0x15b0] sm:$0xff]
      %v6159 = vld [vmem:[#allocation2 + $0x15b8] sm:$0xff]
      %v6160 = vld [vmem:[#allocation2 + $0x15c0] sm:$0xff]
      %v6161 = vld [vmem:[#allocation2 + $0x15c8] sm:$0xff]
      %v6162 = vld [vmem:[#allocation2 + $0x15d0] sm:$0xff]
      %v6163 = vld [vmem:[#allocation2 + $0x15d8] sm:$0xff]
      %v6164 = vld [vmem:[#allocation2 + $0x15e0] sm:$0xff]
      %v6165 = vld [vmem:[#allocation2 + $0x15e8] sm:$0xff]
      %v6166 = vld [vmem:[%s1] sm:$0xff]
      %6168 = vset.pattern.permute.xlu0 0
      %6169 = vperm.xlu0 %6168, %v6166
      %v6170 = vpop.permute.xlu0 %6169
      %vm6172 = vcmask 719872
      %v6174 = vsel %vm6172, %v5463, 0
      %6176 = vmatprep.subr.mxu0 %v5465
      %6177 = vmatpush1.msra.mxu0 %v5464
      %6178 = vmatprep.subr.mxu0 %v5491
      %6179 = vmatpush1.msra.mxu0 %v5490
      %6180 = vmatprep.subr.mxu0 %v5517
      %6181 = vmatpush1.msra.mxu0 %v5516
      %6182 = vmatprep.subr.mxu0 %v5543
      %6183 = vmatpush1.msra.mxu0 %v5542
      %6184 = vmatprep.subr.mxu0 %v5569
      %6185 = vmatpush1.msra.mxu0 %v5568
      %6186 = vmatprep.subr.mxu0 %v5595
      %6187 = vmatpush1.msra.mxu0 %v5594
      %6188 = vmatprep.subr.mxu0 %v5621
      %6189 = vmatpush1.msra.mxu0 %v5620
      %6190 = vmatprep.subr.mxu0 %v5647
      %6191 = vmatpush1.msra.mxu0 %v5646
      %6192 = vmatprep.subr.mxu0 %v5673
      %6193 = vmatpush1.msra.mxu0 %v5672
      %6194 = vmatprep.subr.mxu0 %v5699
      %6195 = vmatpush1.msra.mxu0 %v5698
      %6196 = vmatprep.subr.mxu0 %v5725
      %6197 = vmatpush1.msra.mxu0 %v5724
      %6198 = vmatprep.subr.mxu0 %v5751
      %6199 = vmatpush1.msra.mxu0 %v5750
      %6200 = vmatprep.subr.mxu0 %v5777
      %6201 = vmatpush1.msra.mxu0 %v5776
      %6202 = vmatprep.subr.mxu0 %v5803
      %6203 = vmatpush1.msra.mxu0 %v5802
      %6204 = vmatprep.subr.mxu0 %v5829
      %6205 = vmatpush1.msra.mxu0 %v5828
      %6206 = vmatprep.subr.mxu0 %v5855
      %6207 = vmatpush1.msra.mxu0 %v5854
      %6208 = vmatprep.subr.mxu0 %v5881
      %6209 = vmatpush1.msra.mxu0 %v5880
      %6210 = vmatprep.subr.mxu0 %v5907
      %6211 = vmatpush1.msra.mxu0 %v5906
      %6212 = vmatprep.subr.mxu0 %v5933
      %6213 = vmatpush1.msra.mxu0 %v5932
      %6214 = vmatprep.subr.mxu0 %v5959
      %6215 = vmatpush1.msra.mxu0 %v5958
      %6216 = vmatprep.subr.mxu0 %v5985
      %6217 = vmatpush1.msra.mxu0 %v5984
      %6218 = vmatprep.subr.mxu0 %v6011
      %6219 = vmatpush1.msra.mxu0 %v6010
      %6220 = vmatprep.subr.mxu0 %v6037
      %6221 = vmatpush1.msra.mxu0 %v6036
      %6222 = vmatprep.subr.mxu0 %v6063
      %6223 = vmatpush1.msra.mxu0 %v6062
      %6224 = vmatprep.subr.mxu0 %v6089
      %6225 = vmatpush1.msra.mxu0 %v6088
      %6226 = vmatprep.subr.mxu0 %v6115
      %6227 = vmatpush1.msra.mxu0 %v6114
      %6228 = vmatprep.subr.mxu0 %v6141
      %6229 = vmatpush1.msra.mxu0 %v6140
      %6230 = vmatprep.subr.mxu0 0.0
      %6231 = vmatpush1.msra.mxu0 0.0
      %6232 = vmatprep.subr.mxu0 0.0
      %6233 = vmatpush1.msra.mxu0 0.0
      %6234 = vmatprep.subr.mxu0 0.0
      %6235 = vmatpush1.msra.mxu0 0.0
      %6236 = vmatprep.subr.mxu0 0.0
      %6237 = vmatpush1.msra.mxu0 0.0
      %6238 = vmatprep.subr.mxu0 0.0
      %6239 = vmatpush1.msra.mxu0 0.0
      %6240 = vmatprep.mubr.f32.mxu0 %v6174
      %6241 = vmatmul.mubr.f32.gmra.mrb[0].mxu0 %v5462
      %v6242 = vpop.f32.mrb[0].mxu0
      %v6243 = vadd.f32 %v6170, %v6242
      %v6244 = vpop.f32.mrb[0].mxu0
      %v6245 = vadd.f32 %v6170, %v6244
      %6246 = vdwg.mxu0
      %6247 = vmatprep.subr.mxu0 %v5467
      %6248 = vmatpush1.msra.mxu0 %v5466
      %6249 = vmatprep.subr.mxu0 %v5493
      %6250 = vmatpush1.msra.mxu0 %v5492
      %6251 = vmatprep.subr.mxu0 %v5519
      %6252 = vmatpush1.msra.mxu0 %v5518
      %6253 = vmatprep.subr.mxu0 %v5545
      %6254 = vmatpush1.msra.mxu0 %v5544
      %6255 = vmatprep.subr.mxu0 %v5571
      %6256 = vmatpush1.msra.mxu0 %v5570
      %6257 = vmatprep.subr.mxu0 %v5597
      %6258 = vmatpush1.msra.mxu0 %v5596
      %6259 = vmatprep.subr.mxu0 %v5623
      %6260 = vmatpush1.msra.mxu0 %v5622
      %6261 = vmatprep.subr.mxu0 %v5649
      %6262 = vmatpush1.msra.mxu0 %v5648
      %6263 = vmatprep.subr.mxu0 %v5675
      %6264 = vmatpush1.msra.mxu0 %v5674
      %6265 = vmatprep.subr.mxu0 %v5701
      %6266 = vmatpush1.msra.mxu0 %v5700
      %6267 = vmatprep.subr.mxu0 %v5727
      %6268 = vmatpush1.msra.mxu0 %v5726
      %6269 = vmatprep.subr.mxu0 %v5753
      %6270 = vmatpush1.msra.mxu0 %v5752
      %6271 = vmatprep.subr.mxu0 %v5779
      %6272 = vmatpush1.msra.mxu0 %v5778
      %6273 = vmatprep.subr.mxu0 %v5805
      %6274 = vmatpush1.msra.mxu0 %v5804
      %6275 = vmatprep.subr.mxu0 %v5831
      %6276 = vmatpush1.msra.mxu0 %v5830
      %6277 = vmatprep.subr.mxu0 %v5857
      %6278 = vmatpush1.msra.mxu0 %v5856
      %6279 = vmatprep.subr.mxu0 %v5883
      %6280 = vmatpush1.msra.mxu0 %v5882
      %6281 = vmatprep.subr.mxu0 %v5909
      %6282 = vmatpush1.msra.mxu0 %v5908
      %6283 = vmatprep.subr.mxu0 %v5935
      %6284 = vmatpush1.msra.mxu0 %v5934
      %6285 = vmatprep.subr.mxu0 %v5961
      %6286 = vmatpush1.msra.mxu0 %v5960
      %6287 = vmatprep.subr.mxu0 %v5987
      %6288 = vmatpush1.msra.mxu0 %v5986
      %6289 = vmatprep.subr.mxu0 %v6013
      %6290 = vmatpush1.msra.mxu0 %v6012
      %6291 = vmatprep.subr.mxu0 %v6039
      %6292 = vmatpush1.msra.mxu0 %v6038
      %6293 = vmatprep.subr.mxu0 %v6065
      %6294 = vmatpush1.msra.mxu0 %v6064
      %6295 = vmatprep.subr.mxu0 %v6091
      %6296 = vmatpush1.msra.mxu0 %v6090
      %6297 = vmatprep.subr.mxu0 %v6117
      %6298 = vmatpush1.msra.mxu0 %v6116
      %6299 = vmatprep.subr.mxu0 %v6143
      %6300 = vmatpush1.msra.mxu0 %v6142
      %6301 = vmatprep.subr.mxu0 0.0
      %6302 = vmatpush1.msra.mxu0 0.0
      %6303 = vmatprep.subr.mxu0 0.0
      %6304 = vmatpush1.msra.mxu0 0.0
      %6305 = vmatprep.subr.mxu0 0.0
      %6306 = vmatpush1.msra.mxu0 0.0
      %6307 = vmatprep.subr.mxu0 0.0
      %6308 = vmatpush1.msra.mxu0 0.0
      %6309 = vmatprep.subr.mxu0 0.0
      %6310 = vmatpush1.msra.mxu0 0.0
      %6311 = vmatprep.mubr.f32.mxu0 %v6174
      %6312 = vmatmul.mubr.f32.gmra.mrb[0].mxu0 %v5462
      %v6313 = vpop.f32.mrb[0].mxu0
      %v6314 = vadd.f32 %v6170, %v6313
      %v6315 = vpop.f32.mrb[0].mxu0
      %v6316 = vadd.f32 %v6170, %v6315
      %6317 = vdwg.mxu0
      %6318 = vmatprep.subr.mxu0 %v5469
      %6319 = vmatpush1.msra.mxu0 %v5468
      %6320 = vmatprep.subr.mxu0 %v5495
      %6321 = vmatpush1.msra.mxu0 %v5494
      %6322 = vmatprep.subr.mxu0 %v5521
      %6323 = vmatpush1.msra.mxu0 %v5520
      %6324 = vmatprep.subr.mxu0 %v5547
      %6325 = vmatpush1.msra.mxu0 %v5546
      %6326 = vmatprep.subr.mxu0 %v5573
      %6327 = vmatpush1.msra.mxu0 %v5572
      %6328 = vmatprep.subr.mxu0 %v5599
      %6329 = vmatpush1.msra.mxu0 %v5598
      %6330 = vmatprep.subr.mxu0 %v5625
      %6331 = vmatpush1.msra.mxu0 %v5624
      %6332 = vmatprep.subr.mxu0 %v5651
      %6333 = vmatpush1.msra.mxu0 %v5650
      %6334 = vmatprep.subr.mxu0 %v5677
      %6335 = vmatpush1.msra.mxu0 %v5676
      %6336 = vmatprep.subr.mxu0 %v5703
      %6337 = vmatpush1.msra.mxu0 %v5702
      %6338 = vmatprep.subr.mxu0 %v5729
      %6339 = vmatpush1.msra.mxu0 %v5728
      %6340 = vmatprep.subr.mxu0 %v5755
      %6341 = vmatpush1.msra.mxu0 %v5754
      %6342 = vmatprep.subr.mxu0 %v5781
      %6343 = vmatpush1.msra.mxu0 %v5780
      %6344 = vmatprep.subr.mxu0 %v5807
      %6345 = vmatpush1.msra.mxu0 %v5806
      %6346 = vmatprep.subr.mxu0 %v5833
      %6347 = vmatpush1.msra.mxu0 %v5832
      %6348 = vmatprep.subr.mxu0 %v5859
      %6349 = vmatpush1.msra.mxu0 %v5858
      %6350 = vmatprep.subr.mxu0 %v5885
      %6351 = vmatpush1.msra.mxu0 %v5884
      %6352 = vmatprep.subr.mxu0 %v5911
      %6353 = vmatpush1.msra.mxu0 %v5910
      %6354 = vmatprep.subr.mxu0 %v5937
      %6355 = vmatpush1.msra.mxu0 %v5936
      %6356 = vmatprep.subr.mxu0 %v5963
      %6357 = vmatpush1.msra.mxu0 %v5962
      %6358 = vmatprep.subr.mxu0 %v5989
      %6359 = vmatpush1.msra.mxu0 %v5988
      %6360 = vmatprep.subr.mxu0 %v6015
      %6361 = vmatpush1.msra.mxu0 %v6014
      %6362 = vmatprep.subr.mxu0 %v6041
      %6363 = vmatpush1.msra.mxu0 %v6040
      %6364 = vmatprep.subr.mxu0 %v6067
      %6365 = vmatpush1.msra.mxu0 %v6066
      %6366 = vmatprep.subr.mxu0 %v6093
      %6367 = vmatpush1.msra.mxu0 %v6092
      %6368 = vmatprep.subr.mxu0 %v6119
      %6369 = vmatpush1.msra.mxu0 %v6118
      %6370 = vmatprep.subr.mxu0 %v6145
      %6371 = vmatpush1.msra.mxu0 %v6144
      %6372 = vmatprep.subr.mxu0 0.0
      %6373 = vmatpush1.msra.mxu0 0.0
      %6374 = vmatprep.subr.mxu0 0.0
      %6375 = vmatpush1.msra.mxu0 0.0
      %6376 = vmatprep.subr.mxu0 0.0
      %6377 = vmatpush1.msra.mxu0 0.0
      %6378 = vmatprep.subr.mxu0 0.0
      %6379 = vmatpush1.msra.mxu0 0.0
      %6380 = vmatprep.subr.mxu0 0.0
      %6381 = vmatpush1.msra.mxu0 0.0
      %6382 = vmatprep.mubr.f32.mxu0 %v6174
      %6383 = vmatmul.mubr.f32.gmra.mrb[0].mxu0 %v5462
      %v6384 = vpop.f32.mrb[0].mxu0
      %v6385 = vadd.f32 %v6170, %v6384
      %v6386 = vpop.f32.mrb[0].mxu0
      %v6387 = vadd.f32 %v6170, %v6386
      %6388 = vdwg.mxu0
      %6389 = vmatprep.subr.mxu0 %v5471
      %6390 = vmatpush1.msra.mxu0 %v5470
      %6391 = vmatprep.subr.mxu0 %v5497
      %6392 = vmatpush1.msra.mxu0 %v5496
      %6393 = vmatprep.subr.mxu0 %v5523
      %6394 = vmatpush1.msra.mxu0 %v5522
      %6395 = vmatprep.subr.mxu0 %v5549
      %6396 = vmatpush1.msra.mxu0 %v5548
      %6397 = vmatprep.subr.mxu0 %v5575
      %6398 = vmatpush1.msra.mxu0 %v5574
      %6399 = vmatprep.subr.mxu0 %v5601
      %6400 = vmatpush1.msra.mxu0 %v5600
      %6401 = vmatprep.subr.mxu0 %v5627
      %6402 = vmatpush1.msra.mxu0 %v5626
      %6403 = vmatprep.subr.mxu0 %v5653
      %6404 = vmatpush1.msra.mxu0 %v5652
      %6405 = vmatprep.subr.mxu0 %v5679
      %6406 = vmatpush1.msra.mxu0 %v5678
      %6407 = vmatprep.subr.mxu0 %v5705
      %6408 = vmatpush1.msra.mxu0 %v5704
      %6409 = vmatprep.subr.mxu0 %v5731
      %6410 = vmatpush1.msra.mxu0 %v5730
      %6411 = vmatprep.subr.mxu0 %v5757
      %6412 = vmatpush1.msra.mxu0 %v5756
      %6413 = vmatprep.subr.mxu0 %v5783
      %6414 = vmatpush1.msra.mxu0 %v5782
      %6415 = vmatprep.subr.mxu0 %v5809
      %6416 = vmatpush1.msra.mxu0 %v5808
      %6417 = vmatprep.subr.mxu0 %v5835
      %6418 = vmatpush1.msra.mxu0 %v5834
      %6419 = vmatprep.subr.mxu0 %v5861
      %6420 = vmatpush1.msra.mxu0 %v5860
      %6421 = vmatprep.subr.mxu0 %v5887
      %6422 = vmatpush1.msra.mxu0 %v5886
      %6423 = vmatprep.subr.mxu0 %v5913
      %6424 = vmatpush1.msra.mxu0 %v5912
      %6425 = vmatprep.subr.mxu0 %v5939
      %6426 = vmatpush1.msra.mxu0 %v5938
      %6427 = vmatprep.subr.mxu0 %v5965
      %6428 = vmatpush1.msra.mxu0 %v5964
      %6429 = vmatprep.subr.mxu0 %v5991
      %6430 = vmatpush1.msra.mxu0 %v5990
      %6431 = vmatprep.subr.mxu0 %v6017
      %6432 = vmatpush1.msra.mxu0 %v6016
      %6433 = vmatprep.subr.mxu0 %v6043
      %6434 = vmatpush1.msra.mxu0 %v6042
      %6435 = vmatprep.subr.mxu0 %v6069
      %6436 = vmatpush1.msra.mxu0 %v6068
      %6437 = vmatprep.subr.mxu0 %v6095
      %6438 = vmatpush1.msra.mxu0 %v6094
      %6439 = vmatprep.subr.mxu0 %v6121
      %6440 = vmatpush1.msra.mxu0 %v6120
      %6441 = vmatprep.subr.mxu0 %v6147
      %6442 = vmatpush1.msra.mxu0 %v6146
      %6443 = vmatprep.subr.mxu0 0.0
      %6444 = vmatpush1.msra.mxu0 0.0
      %6445 = vmatprep.subr.mxu0 0.0
      %6446 = vmatpush1.msra.mxu0 0.0
      %6447 = vmatprep.subr.mxu0 0.0
      %6448 = vmatpush1.msra.mxu0 0.0
      %6449 = vmatprep.subr.mxu0 0.0
      %6450 = vmatpush1.msra.mxu0 0.0
      %6451 = vmatprep.subr.mxu0 0.0
      %6452 = vmatpush1.msra.mxu0 0.0
      %6453 = vmatprep.mubr.f32.mxu0 %v6174
      %6454 = vmatmul.mubr.f32.gmra.mrb[0].mxu0 %v5462
      %v6455 = vpop.f32.mrb[0].mxu0
      %v6456 = vadd.f32 %v6170, %v6455
      %v6457 = vpop.f32.mrb[0].mxu0
      %v6458 = vadd.f32 %v6170, %v6457
      %6459 = vdwg.mxu0
      %6460 = vmatprep.subr.mxu0 %v5473
      %6461 = vmatpush1.msra.mxu0 %v5472
      %6462 = vmatprep.subr.mxu0 %v5499
      %6463 = vmatpush1.msra.mxu0 %v5498
      %6464 = vmatprep.subr.mxu0 %v5525
      %6465 = vmatpush1.msra.mxu0 %v5524
      %6466 = vmatprep.subr.mxu0 %v5551
      %6467 = vmatpush1.msra.mxu0 %v5550
      %6468 = vmatprep.subr.mxu0 %v5577
      %6469 = vmatpush1.msra.mxu0 %v5576
      %6470 = vmatprep.subr.mxu0 %v5603
      %6471 = vmatpush1.msra.mxu0 %v5602
      %6472 = vmatprep.subr.mxu0 %v5629
      %6473 = vmatpush1.msra.mxu0 %v5628
      %6474 = vmatprep.subr.mxu0 %v5655
      %6475 = vmatpush1.msra.mxu0 %v5654
      %6476 = vmatprep.subr.mxu0 %v5681
      %6477 = vmatpush1.msra.mxu0 %v5680
      %6478 = vmatprep.subr.mxu0 %v5707
      %6479 = vmatpush1.msra.mxu0 %v5706
      %6480 = vmatprep.subr.mxu0 %v5733
      %6481 = vmatpush1.msra.mxu0 %v5732
      %6482 = vmatprep.subr.mxu0 %v5759
      %6483 = vmatpush1.msra.mxu0 %v5758
      %6484 = vmatprep.subr.mxu0 %v5785
      %6485 = vmatpush1.msra.mxu0 %v5784
      %6486 = vmatprep.subr.mxu0 %v5811
      %6487 = vmatpush1.msra.mxu0 %v5810
      %6488 = vmatprep.subr.mxu0 %v5837
      %6489 = vmatpush1.msra.mxu0 %v5836
      %6490 = vmatprep.subr.mxu0 %v5863
      %6491 = vmatpush1.msra.mxu0 %v5862
      %6492 = vmatprep.subr.mxu0 %v5889
      %6493 = vmatpush1.msra.mxu0 %v5888
      %6494 = vmatprep.subr.mxu0 %v5915
      %6495 = vmatpush1.msra.mxu0 %v5914
      %6496 = vmatprep.subr.mxu0 %v5941
      %6497 = vmatpush1.msra.mxu0 %v5940
      %6498 = vmatprep.subr.mxu0 %v5967
      %6499 = vmatpush1.msra.mxu0 %v5966
      %6500 = vmatprep.subr.mxu0 %v5993
      %6501 = vmatpush1.msra.mxu0 %v5992
      %6502 = vmatprep.subr.mxu0 %v6019
      %6503 = vmatpush1.msra.mxu0 %v6018
      %6504 = vmatprep.subr.mxu0 %v6045
      %6505 = vmatpush1.msra.mxu0 %v6044
      %6506 = vmatprep.subr.mxu0 %v6071
      %6507 = vmatpush1.msra.mxu0 %v6070
      %6508 = vmatprep.subr.mxu0 %v6097
      %6509 = vmatpush1.msra.mxu0 %v6096
      %6510 = vmatprep.subr.mxu0 %v6123
      %6511 = vmatpush1.msra.mxu0 %v6122
      %6512 = vmatprep.subr.mxu0 %v6149
      %6513 = vmatpush1.msra.mxu0 %v6148
      %6514 = vmatprep.subr.mxu0 0.0
      %6515 = vmatpush1.msra.mxu0 0.0
      %6516 = vmatprep.subr.mxu0 0.0
      %6517 = vmatpush1.msra.mxu0 0.0
      %6518 = vmatprep.subr.mxu0 0.0
      %6519 = vmatpush1.msra.mxu0 0.0
      %6520 = vmatprep.subr.mxu0 0.0
      %6521 = vmatpush1.msra.mxu0 0.0
      %6522 = vmatprep.subr.mxu0 0.0
      %6523 = vmatpush1.msra.mxu0 0.0
      %6524 = vmatprep.mubr.f32.mxu0 %v6174
      %6525 = vmatmul.mubr.f32.gmra.mrb[0].mxu0 %v5462
      %v6526 = vpop.f32.mrb[0].mxu0
      %v6527 = vadd.f32 %v6170, %v6526
      %v6528 = vpop.f32.mrb[0].mxu0
      %v6529 = vadd.f32 %v6170, %v6528
      %6530 = vdwg.mxu0
      %6531 = vmatprep.subr.mxu0 %v5475
      %6532 = vmatpush1.msra.mxu0 %v5474
      %6533 = vmatprep.subr.mxu0 %v5501
      %6534 = vmatpush1.msra.mxu0 %v5500
      %6535 = vmatprep.subr.mxu0 %v5527
      %6536 = vmatpush1.msra.mxu0 %v5526
      %6537 = vmatprep.subr.mxu0 %v5553
      %6538 = vmatpush1.msra.mxu0 %v5552
      %6539 = vmatprep.subr.mxu0 %v5579
      %6540 = vmatpush1.msra.mxu0 %v5578
      %6541 = vmatprep.subr.mxu0 %v5605
      %6542 = vmatpush1.msra.mxu0 %v5604
      %6543 = vmatprep.subr.mxu0 %v5631
      %6544 = vmatpush1.msra.mxu0 %v5630
      %6545 = vmatprep.subr.mxu0 %v5657
      %6546 = vmatpush1.msra.mxu0 %v5656
      %6547 = vmatprep.subr.mxu0 %v5683
      %6548 = vmatpush1.msra.mxu0 %v5682
      %6549 = vmatprep.subr.mxu0 %v5709
      %6550 = vmatpush1.msra.mxu0 %v5708
      %6551 = vmatprep.subr.mxu0 %v5735
      %6552 = vmatpush1.msra.mxu0 %v5734
      %6553 = vmatprep.subr.mxu0 %v5761
      %6554 = vmatpush1.msra.mxu0 %v5760
      %6555 = vmatprep.subr.mxu0 %v5787
      %6556 = vmatpush1.msra.mxu0 %v5786
      %6557 = vmatprep.subr.mxu0 %v5813
      %6558 = vmatpush1.msra.mxu0 %v5812
      %6559 = vmatprep.subr.mxu0 %v5839
      %6560 = vmatpush1.msra.mxu0 %v5838
      %6561 = vmatprep.subr.mxu0 %v5865
      %6562 = vmatpush1.msra.mxu0 %v5864
      %6563 = vmatprep.subr.mxu0 %v5891
      %6564 = vmatpush1.msra.mxu0 %v5890
      %6565 = vmatprep.subr.mxu0 %v5917
      %6566 = vmatpush1.msra.mxu0 %v5916
      %6567 = vmatprep.subr.mxu0 %v5943
      %6568 = vmatpush1.msra.mxu0 %v5942
      %6569 = vmatprep.subr.mxu0 %v5969
      %6570 = vmatpush1.msra.mxu0 %v5968
      %6571 = vmatprep.subr.mxu0 %v5995
      %6572 = vmatpush1.msra.mxu0 %v5994
      %6573 = vmatprep.subr.mxu0 %v6021
      %6574 = vmatpush1.msra.mxu0 %v6020
      %6575 = vmatprep.subr.mxu0 %v6047
      %6576 = vmatpush1.msra.mxu0 %v6046
      %6577 = vmatprep.subr.mxu0 %v6073
      %6578 = vmatpush1.msra.mxu0 %v6072
      %6579 = vmatprep.subr.mxu0 %v6099
      %6580 = vmatpush1.msra.mxu0 %v6098
      %6581 = vmatprep.subr.mxu0 %v6125
      %6582 = vmatpush1.msra.mxu0 %v6124
      %6583 = vmatprep.subr.mxu0 %v6151
      %6584 = vmatpush1.msra.mxu0 %v6150
      %6585 = vmatprep.subr.mxu0 0.0
      %6586 = vmatpush1.msra.mxu0 0.0
      %6587 = vmatprep.subr.mxu0 0.0
      %6588 = vmatpush1.msra.mxu0 0.0
      %6589 = vmatprep.subr.mxu0 0.0
      %6590 = vmatpush1.msra.mxu0 0.0
      %6591 = vmatprep.subr.mxu0 0.0
      %6592 = vmatpush1.msra.mxu0 0.0
      %6593 = vmatprep.subr.mxu0 0.0
      %6594 = vmatpush1.msra.mxu0 0.0
      %6595 = vmatprep.mubr.f32.mxu0 %v6174
      %6596 = vmatmul.mubr.f32.gmra.mrb[0].mxu0 %v5462
      %v6597 = vpop.f32.mrb[0].mxu0
      %v6598 = vadd.f32 %v6170, %v6597
      %v6599 = vpop.f32.mrb[0].mxu0
      %v6600 = vadd.f32 %v6170, %v6599
      %6601 = vdwg.mxu0
      %6602 = vmatprep.subr.mxu0 %v5477
      %6603 = vmatpush1.msra.mxu0 %v5476
      %6604 = vmatprep.subr.mxu0 %v5503
      %6605 = vmatpush1.msra.mxu0 %v5502
      %6606 = vmatprep.subr.mxu0 %v5529
      %6607 = vmatpush1.msra.mxu0 %v5528
      %6608 = vmatprep.subr.mxu0 %v5555
      %6609 = vmatpush1.msra.mxu0 %v5554
      %6610 = vmatprep.subr.mxu0 %v5581
      %6611 = vmatpush1.msra.mxu0 %v5580
      %6612 = vmatprep.subr.mxu0 %v5607
      %6613 = vmatpush1.msra.mxu0 %v5606
      %6614 = vmatprep.subr.mxu0 %v5633
      %6615 = vmatpush1.msra.mxu0 %v5632
      %6616 = vmatprep.subr.mxu0 %v5659
      %6617 = vmatpush1.msra.mxu0 %v5658
      %6618 = vmatprep.subr.mxu0 %v5685
      %6619 = vmatpush1.msra.mxu0 %v5684
      %6620 = vmatprep.subr.mxu0 %v5711
      %6621 = vmatpush1.msra.mxu0 %v5710
      %6622 = vmatprep.subr.mxu0 %v5737
      %6623 = vmatpush1.msra.mxu0 %v5736
      %6624 = vmatprep.subr.mxu0 %v5763
      %6625 = vmatpush1.msra.mxu0 %v5762
      %6626 = vmatprep.subr.mxu0 %v5789
      %6627 = vmatpush1.msra.mxu0 %v5788
      %6628 = vmatprep.subr.mxu0 %v5815
      %6629 = vmatpush1.msra.mxu0 %v5814
      %6630 = vmatprep.subr.mxu0 %v5841
      %6631 = vmatpush1.msra.mxu0 %v5840
      %6632 = vmatprep.subr.mxu0 %v5867
      %6633 = vmatpush1.msra.mxu0 %v5866
      %6634 = vmatprep.subr.mxu0 %v5893
      %6635 = vmatpush1.msra.mxu0 %v5892
      %6636 = vmatprep.subr.mxu0 %v5919
      %6637 = vmatpush1.msra.mxu0 %v5918
      %6638 = vmatprep.subr.mxu0 %v5945
      %6639 = vmatpush1.msra.mxu0 %v5944
      %6640 = vmatprep.subr.mxu0 %v5971
      %6641 = vmatpush1.msra.mxu0 %v5970
      %6642 = vmatprep.subr.mxu0 %v5997
      %6643 = vmatpush1.msra.mxu0 %v5996
      %6644 = vmatprep.subr.mxu0 %v6023
      %6645 = vmatpush1.msra.mxu0 %v6022
      %6646 = vmatprep.subr.mxu0 %v6049
      %6647 = vmatpush1.msra.mxu0 %v6048
      %6648 = vmatprep.subr.mxu0 %v6075
      %6649 = vmatpush1.msra.mxu0 %v6074
      %6650 = vmatprep.subr.mxu0 %v6101
      %6651 = vmatpush1.msra.mxu0 %v6100
      %6652 = vmatprep.subr.mxu0 %v6127
      %6653 = vmatpush1.msra.mxu0 %v6126
      %6654 = vmatprep.subr.mxu0 %v6153
      %6655 = vmatpush1.msra.mxu0 %v6152
      %6656 = vmatprep.subr.mxu0 0.0
      %6657 = vmatpush1.msra.mxu0 0.0
      %6658 = vmatprep.subr.mxu0 0.0
      %6659 = vmatpush1.msra.mxu0 0.0
      %6660 = vmatprep.subr.mxu0 0.0
      %6661 = vmatpush1.msra.mxu0 0.0
      %6662 = vmatprep.subr.mxu0 0.0
      %6663 = vmatpush1.msra.mxu0 0.0
      %6664 = vmatprep.subr.mxu0 0.0
      %6665 = vmatpush1.msra.mxu0 0.0
      %6666 = vmatprep.mubr.f32.mxu0 %v6174
      %6667 = vmatmul.mubr.f32.gmra.mrb[0].mxu0 %v5462
      %v6668 = vpop.f32.mrb[0].mxu0
      %v6669 = vadd.f32 %v6170, %v6668
      %v6670 = vpop.f32.mrb[0].mxu0
      %v6671 = vadd.f32 %v6170, %v6670
      %6672 = vdwg.mxu0
      %6673 = vmatprep.subr.mxu0 %v5479
      %6674 = vmatpush1.msra.mxu0 %v5478
      %6675 = vmatprep.subr.mxu0 %v5505
      %6676 = vmatpush1.msra.mxu0 %v5504
      %6677 = vmatprep.subr.mxu0 %v5531
      %6678 = vmatpush1.msra.mxu0 %v5530
      %6679 = vmatprep.subr.mxu0 %v5557
      %6680 = vmatpush1.msra.mxu0 %v5556
      %6681 = vmatprep.subr.mxu0 %v5583
      %6682 = vmatpush1.msra.mxu0 %v5582
      %6683 = vmatprep.subr.mxu0 %v5609
      %6684 = vmatpush1.msra.mxu0 %v5608
      %6685 = vmatprep.subr.mxu0 %v5635
      %6686 = vmatpush1.msra.mxu0 %v5634
      %6687 = vmatprep.subr.mxu0 %v5661
      %6688 = vmatpush1.msra.mxu0 %v5660
      %6689 = vmatprep.subr.mxu0 %v5687
      %6690 = vmatpush1.msra.mxu0 %v5686
      %6691 = vmatprep.subr.mxu0 %v5713
      %6692 = vmatpush1.msra.mxu0 %v5712
      %6693 = vmatprep.subr.mxu0 %v5739
      %6694 = vmatpush1.msra.mxu0 %v5738
      %6695 = vmatprep.subr.mxu0 %v5765
      %6696 = vmatpush1.msra.mxu0 %v5764
      %6697 = vmatprep.subr.mxu0 %v5791
      %6698 = vmatpush1.msra.mxu0 %v5790
      %6699 = vmatprep.subr.mxu0 %v5817
      %6700 = vmatpush1.msra.mxu0 %v5816
      %6701 = vmatprep.subr.mxu0 %v5843
      %6702 = vmatpush1.msra.mxu0 %v5842
      %6703 = vmatprep.subr.mxu0 %v5869
      %6704 = vmatpush1.msra.mxu0 %v5868
      %6705 = vmatprep.subr.mxu0 %v5895
      %6706 = vmatpush1.msra.mxu0 %v5894
      %6707 = vmatprep.subr.mxu0 %v5921
      %6708 = vmatpush1.msra.mxu0 %v5920
      %6709 = vmatprep.subr.mxu0 %v5947
      %6710 = vmatpush1.msra.mxu0 %v5946
      %6711 = vmatprep.subr.mxu0 %v5973
      %6712 = vmatpush1.msra.mxu0 %v5972
      %6713 = vmatprep.subr.mxu0 %v5999
      %6714 = vmatpush1.msra.mxu0 %v5998
      %6715 = vmatprep.subr.mxu0 %v6025
      %6716 = vmatpush1.msra.mxu0 %v6024
      %6717 = vmatprep.subr.mxu0 %v6051
      %6718 = vmatpush1.msra.mxu0 %v6050
      %6719 = vmatprep.subr.mxu0 %v6077
      %6720 = vmatpush1.msra.mxu0 %v6076
      %6721 = vmatprep.subr.mxu0 %v6103
      %6722 = vmatpush1.msra.mxu0 %v6102
      %6723 = vmatprep.subr.mxu0 %v6129
      %6724 = vmatpush1.msra.mxu0 %v6128
      %6725 = vmatprep.subr.mxu0 %v6155
      %6726 = vmatpush1.msra.mxu0 %v6154
      %6727 = vmatprep.subr.mxu0 0.0
      %6728 = vmatpush1.msra.mxu0 0.0
      %6729 = vmatprep.subr.mxu0 0.0
      %6730 = vmatpush1.msra.mxu0 0.0
      %6731 = vmatprep.subr.mxu0 0.0
      %6732 = vmatpush1.msra.mxu0 0.0
      %6733 = vmatprep.subr.mxu0 0.0
      %6734 = vmatpush1.msra.mxu0 0.0
      %6735 = vmatprep.subr.mxu0 0.0
      %6736 = vmatpush1.msra.mxu0 0.0
      %6737 = vmatprep.mubr.f32.mxu0 %v6174
      %6738 = vmatmul.mubr.f32.gmra.mrb[0].mxu0 %v5462
      %v6739 = vpop.f32.mrb[0].mxu0
      %v6740 = vadd.f32 %v6170, %v6739
      %v6741 = vpop.f32.mrb[0].mxu0
      %v6742 = vadd.f32 %v6170, %v6741
      %6743 = vdwg.mxu0
      %6744 = vmatprep.subr.mxu0 %v5481
      %6745 = vmatpush1.msra.mxu0 %v5480
      %6746 = vmatprep.subr.mxu0 %v5507
      %6747 = vmatpush1.msra.mxu0 %v5506
      %6748 = vmatprep.subr.mxu0 %v5533
      %6749 = vmatpush1.msra.mxu0 %v5532
      %6750 = vmatprep.subr.mxu0 %v5559
      %6751 = vmatpush1.msra.mxu0 %v5558
      %6752 = vmatprep.subr.mxu0 %v5585
      %6753 = vmatpush1.msra.mxu0 %v5584
      %6754 = vmatprep.subr.mxu0 %v5611
      %6755 = vmatpush1.msra.mxu0 %v5610
      %6756 = vmatprep.subr.mxu0 %v5637
      %6757 = vmatpush1.msra.mxu0 %v5636
      %6758 = vmatprep.subr.mxu0 %v5663
      %6759 = vmatpush1.msra.mxu0 %v5662
      %6760 = vmatprep.subr.mxu0 %v5689
      %6761 = vmatpush1.msra.mxu0 %v5688
      %6762 = vmatprep.subr.mxu0 %v5715
      %6763 = vmatpush1.msra.mxu0 %v5714
      %6764 = vmatprep.subr.mxu0 %v5741
      %6765 = vmatpush1.msra.mxu0 %v5740
      %6766 = vmatprep.subr.mxu0 %v5767
      %6767 = vmatpush1.msra.mxu0 %v5766
      %6768 = vmatprep.subr.mxu0 %v5793
      %6769 = vmatpush1.msra.mxu0 %v5792
      %6770 = vmatprep.subr.mxu0 %v5819
      %6771 = vmatpush1.msra.mxu0 %v5818
      %6772 = vmatprep.subr.mxu0 %v5845
      %6773 = vmatpush1.msra.mxu0 %v5844
      %6774 = vmatprep.subr.mxu0 %v5871
      %6775 = vmatpush1.msra.mxu0 %v5870
      %6776 = vmatprep.subr.mxu0 %v5897
      %6777 = vmatpush1.msra.mxu0 %v5896
      %6778 = vmatprep.subr.mxu0 %v5923
      %6779 = vmatpush1.msra.mxu0 %v5922
      %6780 = vmatprep.subr.mxu0 %v5949
      %6781 = vmatpush1.msra.mxu0 %v5948
      %6782 = vmatprep.subr.mxu0 %v5975
      %6783 = vmatpush1.msra.mxu0 %v5974
      %6784 = vmatprep.subr.mxu0 %v6001
      %6785 = vmatpush1.msra.mxu0 %v6000
      %6786 = vmatprep.subr.mxu0 %v6027
      %6787 = vmatpush1.msra.mxu0 %v6026
      %6788 = vmatprep.subr.mxu0 %v6053
      %6789 = vmatpush1.msra.mxu0 %v6052
      %6790 = vmatprep.subr.mxu0 %v6079
      %6791 = vmatpush1.msra.mxu0 %v6078
      %6792 = vmatprep.subr.mxu0 %v6105
      %6793 = vmatpush1.msra.mxu0 %v6104
      %6794 = vmatprep.subr.mxu0 %v6131
      %6795 = vmatpush1.msra.mxu0 %v6130
      %6796 = vmatprep.subr.mxu0 %v6157
      %6797 = vmatpush1.msra.mxu0 %v6156
      %6798 = vmatprep.subr.mxu0 0.0
      %6799 = vmatpush1.msra.mxu0 0.0
      %6800 = vmatprep.subr.mxu0 0.0
      %6801 = vmatpush1.msra.mxu0 0.0
      %6802 = vmatprep.subr.mxu0 0.0
      %6803 = vmatpush1.msra.mxu0 0.0
      %6804 = vmatprep.subr.mxu0 0.0
      %6805 = vmatpush1.msra.mxu0 0.0
      %6806 = vmatprep.subr.mxu0 0.0
      %6807 = vmatpush1.msra.mxu0 0.0
      %6808 = vmatprep.mubr.f32.mxu0 %v6174
      %6809 = vmatmul.mubr.f32.gmra.mrb[0].mxu0 %v5462
      %v6810 = vpop.f32.mrb[0].mxu0
      %v6811 = vadd.f32 %v6170, %v6810
      %v6812 = vpop.f32.mrb[0].mxu0
      %v6813 = vadd.f32 %v6170, %v6812
      %6814 = vdwg.mxu0
      %6815 = vmatprep.subr.mxu0 %v5483
      %6816 = vmatpush1.msra.mxu0 %v5482
      %6817 = vmatprep.subr.mxu0 %v5509
      %6818 = vmatpush1.msra.mxu0 %v5508
      %6819 = vmatprep.subr.mxu0 %v5535
      %6820 = vmatpush1.msra.mxu0 %v5534
      %6821 = vmatprep.subr.mxu0 %v5561
      %6822 = vmatpush1.msra.mxu0 %v5560
      %6823 = vmatprep.subr.mxu0 %v5587
      %6824 = vmatpush1.msra.mxu0 %v5586
      %6825 = vmatprep.subr.mxu0 %v5613
      %6826 = vmatpush1.msra.mxu0 %v5612
      %6827 = vmatprep.subr.mxu0 %v5639
      %6828 = vmatpush1.msra.mxu0 %v5638
      %6829 = vmatprep.subr.mxu0 %v5665
      %6830 = vmatpush1.msra.mxu0 %v5664
      %6831 = vmatprep.subr.mxu0 %v5691
      %6832 = vmatpush1.msra.mxu0 %v5690
      %6833 = vmatprep.subr.mxu0 %v5717
      %6834 = vmatpush1.msra.mxu0 %v5716
      %6835 = vmatprep.subr.mxu0 %v5743
      %6836 = vmatpush1.msra.mxu0 %v5742
      %6837 = vmatprep.subr.mxu0 %v5769
      %6838 = vmatpush1.msra.mxu0 %v5768
      %6839 = vmatprep.subr.mxu0 %v5795
      %6840 = vmatpush1.msra.mxu0 %v5794
      %6841 = vmatprep.subr.mxu0 %v5821
      %6842 = vmatpush1.msra.mxu0 %v5820
      %6843 = vmatprep.subr.mxu0 %v5847
      %6844 = vmatpush1.msra.mxu0 %v5846
      %6845 = vmatprep.subr.mxu0 %v5873
      %6846 = vmatpush1.msra.mxu0 %v5872
      %6847 = vmatprep.subr.mxu0 %v5899
      %6848 = vmatpush1.msra.mxu0 %v5898
      %6849 = vmatprep.subr.mxu0 %v5925
      %6850 = vmatpush1.msra.mxu0 %v5924
      %6851 = vmatprep.subr.mxu0 %v5951
      %6852 = vmatpush1.msra.mxu0 %v5950
      %6853 = vmatprep.subr.mxu0 %v5977
      %6854 = vmatpush1.msra.mxu0 %v5976
      %6855 = vmatprep.subr.mxu0 %v6003
      %6856 = vmatpush1.msra.mxu0 %v6002
      %6857 = vmatprep.subr.mxu0 %v6029
      %6858 = vmatpush1.msra.mxu0 %v6028
      %6859 = vmatprep.subr.mxu0 %v6055
      %6860 = vmatpush1.msra.mxu0 %v6054
      %6861 = vmatprep.subr.mxu0 %v6081
      %6862 = vmatpush1.msra.mxu0 %v6080
      %6863 = vmatprep.subr.mxu0 %v6107
      %6864 = vmatpush1.msra.mxu0 %v6106
      %6865 = vmatprep.subr.mxu0 %v6133
      %6866 = vmatpush1.msra.mxu0 %v6132
      %6867 = vmatprep.subr.mxu0 %v6159
      %6868 = vmatpush1.msra.mxu0 %v6158
      %6869 = vmatprep.subr.mxu0 0.0
      %6870 = vmatpush1.msra.mxu0 0.0
      %6871 = vmatprep.subr.mxu0 0.0
      %6872 = vmatpush1.msra.mxu0 0.0
      %6873 = vmatprep.subr.mxu0 0.0
      %6874 = vmatpush1.msra.mxu0 0.0
      %6875 = vmatprep.subr.mxu0 0.0
      %6876 = vmatpush1.msra.mxu0 0.0
      %6877 = vmatprep.subr.mxu0 0.0
      %6878 = vmatpush1.msra.mxu0 0.0
      %6879 = vmatprep.mubr.f32.mxu0 %v6174
      %6880 = vmatmul.mubr.f32.gmra.mrb[0].mxu0 %v5462
      %v6881 = vpop.f32.mrb[0].mxu0
      %v6882 = vadd.f32 %v6170, %v6881
      %v6883 = vpop.f32.mrb[0].mxu0
      %v6884 = vadd.f32 %v6170, %v6883
      %6885 = vdwg.mxu0
      %6886 = vmatprep.subr.mxu0 %v5485
      %6887 = vmatpush1.msra.mxu0 %v5484
      %6888 = vmatprep.subr.mxu0 %v5511
      %6889 = vmatpush1.msra.mxu0 %v5510
      %6890 = vmatprep.subr.mxu0 %v5537
      %6891 = vmatpush1.msra.mxu0 %v5536
      %6892 = vmatprep.subr.mxu0 %v5563
      %6893 = vmatpush1.msra.mxu0 %v5562
      %6894 = vmatprep.subr.mxu0 %v5589
      %6895 = vmatpush1.msra.mxu0 %v5588
      %6896 = vmatprep.subr.mxu0 %v5615
      %6897 = vmatpush1.msra.mxu0 %v5614
      %6898 = vmatprep.subr.mxu0 %v5641
      %6899 = vmatpush1.msra.mxu0 %v5640
      %6900 = vmatprep.subr.mxu0 %v5667
      %6901 = vmatpush1.msra.mxu0 %v5666
      %6902 = vmatprep.subr.mxu0 %v5693
      %6903 = vmatpush1.msra.mxu0 %v5692
      %6904 = vmatprep.subr.mxu0 %v5719
      %6905 = vmatpush1.msra.mxu0 %v5718
      %6906 = vmatprep.subr.mxu0 %v5745
      %6907 = vmatpush1.msra.mxu0 %v5744
      %6908 = vmatprep.subr.mxu0 %v5771
      %6909 = vmatpush1.msra.mxu0 %v5770
      %6910 = vmatprep.subr.mxu0 %v5797
      %6911 = vmatpush1.msra.mxu0 %v5796
      %6912 = vmatprep.subr.mxu0 %v5823
      %6913 = vmatpush1.msra.mxu0 %v5822
      %6914 = vmatprep.subr.mxu0 %v5849
      %6915 = vmatpush1.msra.mxu0 %v5848
      %6916 = vmatprep.subr.mxu0 %v5875
      %6917 = vmatpush1.msra.mxu0 %v5874
      %6918 = vmatprep.subr.mxu0 %v5901
      %6919 = vmatpush1.msra.mxu0 %v5900
      %6920 = vmatprep.subr.mxu0 %v5927
      %6921 = vmatpush1.msra.mxu0 %v5926
      %6922 = vmatprep.subr.mxu0 %v5953
      %6923 = vmatpush1.msra.mxu0 %v5952
      %6924 = vmatprep.subr.mxu0 %v5979
      %6925 = vmatpush1.msra.mxu0 %v5978
      %6926 = vmatprep.subr.mxu0 %v6005
      %6927 = vmatpush1.msra.mxu0 %v6004
      %6928 = vmatprep.subr.mxu0 %v6031
      %6929 = vmatpush1.msra.mxu0 %v6030
      %6930 = vmatprep.subr.mxu0 %v6057
      %6931 = vmatpush1.msra.mxu0 %v6056
      %6932 = vmatprep.subr.mxu0 %v6083
      %6933 = vmatpush1.msra.mxu0 %v6082
      %6934 = vmatprep.subr.mxu0 %v6109
      %6935 = vmatpush1.msra.mxu0 %v6108
      %6936 = vmatprep.subr.mxu0 %v6135
      %6937 = vmatpush1.msra.mxu0 %v6134
      %6938 = vmatprep.subr.mxu0 %v6161
      %6939 = vmatpush1.msra.mxu0 %v6160
      %6940 = vmatprep.subr.mxu0 0.0
      %6941 = vmatpush1.msra.mxu0 0.0
      %6942 = vmatprep.subr.mxu0 0.0
      %6943 = vmatpush1.msra.mxu0 0.0
      %6944 = vmatprep.subr.mxu0 0.0
      %6945 = vmatpush1.msra.mxu0 0.0
      %6946 = vmatprep.subr.mxu0 0.0
      %6947 = vmatpush1.msra.mxu0 0.0
      %6948 = vmatprep.subr.mxu0 0.0
      %6949 = vmatpush1.msra.mxu0 0.0
      %6950 = vmatprep.mubr.f32.mxu0 %v6174
      %6951 = vmatmul.mubr.f32.gmra.mrb[0].mxu0 %v5462
      %v6952 = vpop.f32.mrb[0].mxu0
      %v6953 = vadd.f32 %v6170, %v6952
      %v6954 = vpop.f32.mrb[0].mxu0
      %v6955 = vadd.f32 %v6170, %v6954
      %6956 = vdwg.mxu0
      %6957 = vmatprep.subr.mxu0 %v5487
      %6958 = vmatpush1.msra.mxu0 %v5486
      %6959 = vmatprep.subr.mxu0 %v5513
      %6960 = vmatpush1.msra.mxu0 %v5512
      %6961 = vmatprep.subr.mxu0 %v5539
      %6962 = vmatpush1.msra.mxu0 %v5538
      %6963 = vmatprep.subr.mxu0 %v5565
      %6964 = vmatpush1.msra.mxu0 %v5564
      %6965 = vmatprep.subr.mxu0 %v5591
      %6966 = vmatpush1.msra.mxu0 %v5590
      %6967 = vmatprep.subr.mxu0 %v5617
      %6968 = vmatpush1.msra.mxu0 %v5616
      %6969 = vmatprep.subr.mxu0 %v5643
      %6970 = vmatpush1.msra.mxu0 %v5642
      %6971 = vmatprep.subr.mxu0 %v5669
      %6972 = vmatpush1.msra.mxu0 %v5668
      %6973 = vmatprep.subr.mxu0 %v5695
      %6974 = vmatpush1.msra.mxu0 %v5694
      %6975 = vmatprep.subr.mxu0 %v5721
      %6976 = vmatpush1.msra.mxu0 %v5720
      %6977 = vmatprep.subr.mxu0 %v5747
      %6978 = vmatpush1.msra.mxu0 %v5746
      %6979 = vmatprep.subr.mxu0 %v5773
      %6980 = vmatpush1.msra.mxu0 %v5772
      %6981 = vmatprep.subr.mxu0 %v5799
      %6982 = vmatpush1.msra.mxu0 %v5798
      %6983 = vmatprep.subr.mxu0 %v5825
      %6984 = vmatpush1.msra.mxu0 %v5824
      %6985 = vmatprep.subr.mxu0 %v5851
      %6986 = vmatpush1.msra.mxu0 %v5850
      %6987 = vmatprep.subr.mxu0 %v5877
      %6988 = vmatpush1.msra.mxu0 %v5876
      %6989 = vmatprep.subr.mxu0 %v5903
      %6990 = vmatpush1.msra.mxu0 %v5902
      %6991 = vmatprep.subr.mxu0 %v5929
      %6992 = vmatpush1.msra.mxu0 %v5928
      %6993 = vmatprep.subr.mxu0 %v5955
      %6994 = vmatpush1.msra.mxu0 %v5954
      %6995 = vmatprep.subr.mxu0 %v5981
      %6996 = vmatpush1.msra.mxu0 %v5980
      %6997 = vmatprep.subr.mxu0 %v6007
      %6998 = vmatpush1.msra.mxu0 %v6006
      %6999 = vmatprep.subr.mxu0 %v6033
      %7000 = vmatpush1.msra.mxu0 %v6032
      %7001 = vmatprep.subr.mxu0 %v6059
      %7002 = vmatpush1.msra.mxu0 %v6058
      %7003 = vmatprep.subr.mxu0 %v6085
      %7004 = vmatpush1.msra.mxu0 %v6084
      %7005 = vmatprep.subr.mxu0 %v6111
      %7006 = vmatpush1.msra.mxu0 %v6110
      %7007 = vmatprep.subr.mxu0 %v6137
      %7008 = vmatpush1.msra.mxu0 %v6136
      %7009 = vmatprep.subr.mxu0 %v6163
      %7010 = vmatpush1.msra.mxu0 %v6162
      %7011 = vmatprep.subr.mxu0 0.0
      %7012 = vmatpush1.msra.mxu0 0.0
      %7013 = vmatprep.subr.mxu0 0.0
      %7014 = vmatpush1.msra.mxu0 0.0
      %7015 = vmatprep.subr.mxu0 0.0
      %7016 = vmatpush1.msra.mxu0 0.0
      %7017 = vmatprep.subr.mxu0 0.0
      %7018 = vmatpush1.msra.mxu0 0.0
      %7019 = vmatprep.subr.mxu0 0.0
      %7020 = vmatpush1.msra.mxu0 0.0
      %7021 = vmatprep.mubr.f32.mxu0 %v6174
      %7022 = vmatmul.mubr.f32.gmra.mrb[0].mxu0 %v5462
      %v7023 = vpop.f32.mrb[0].mxu0
      %v7024 = vadd.f32 %v6170, %v7023
      %v7025 = vpop.f32.mrb[0].mxu0
      %v7026 = vadd.f32 %v6170, %v7025
      %7027 = vdwg.mxu0
      %7028 = vmatprep.subr.mxu0 %v5489
      %7029 = vmatpush1.msra.mxu0 %v5488
      %7030 = vmatprep.subr.mxu0 %v5515
      %7031 = vmatpush1.msra.mxu0 %v5514
      %7032 = vmatprep.subr.mxu0 %v5541
      %7033 = vmatpush1.msra.mxu0 %v5540
      %7034 = vmatprep.subr.mxu0 %v5567
      %7035 = vmatpush1.msra.mxu0 %v5566
      %7036 = vmatprep.subr.mxu0 %v5593
      %7037 = vmatpush1.msra.mxu0 %v5592
      %7038 = vmatprep.subr.mxu0 %v5619
      %7039 = vmatpush1.msra.mxu0 %v5618
      %7040 = vmatprep.subr.mxu0 %v5645
      %7041 = vmatpush1.msra.mxu0 %v5644
      %7042 = vmatprep.subr.mxu0 %v5671
      %7043 = vmatpush1.msra.mxu0 %v5670
      %7044 = vmatprep.subr.mxu0 %v5697
      %7045 = vmatpush1.msra.mxu0 %v5696
      %7046 = vmatprep.subr.mxu0 %v5723
      %7047 = vmatpush1.msra.mxu0 %v5722
      %7048 = vmatprep.subr.mxu0 %v5749
      %7049 = vmatpush1.msra.mxu0 %v5748
      %7050 = vmatprep.subr.mxu0 %v5775
      %7051 = vmatpush1.msra.mxu0 %v5774
      %7052 = vmatprep.subr.mxu0 %v5801
      %7053 = vmatpush1.msra.mxu0 %v5800
      %7054 = vmatprep.subr.mxu0 %v5827
      %7055 = vmatpush1.msra.mxu0 %v5826
      %7056 = vmatprep.subr.mxu0 %v5853
      %7057 = vmatpush1.msra.mxu0 %v5852
      %7058 = vmatprep.subr.mxu0 %v5879
      %7059 = vmatpush1.msra.mxu0 %v5878
      %7060 = vmatprep.subr.mxu0 %v5905
      %7061 = vmatpush1.msra.mxu0 %v5904
      %7062 = vmatprep.subr.mxu0 %v5931
      %7063 = vmatpush1.msra.mxu0 %v5930
      %7064 = vmatprep.subr.mxu0 %v5957
      %7065 = vmatpush1.msra.mxu0 %v5956
      %7066 = vmatprep.subr.mxu0 %v5983
      %7067 = vmatpush1.msra.mxu0 %v5982
      %7068 = vmatprep.subr.mxu0 %v6009
      %7069 = vmatpush1.msra.mxu0 %v6008
      %7070 = vmatprep.subr.mxu0 %v6035
      %7071 = vmatpush1.msra.mxu0 %v6034
      %7072 = vmatprep.subr.mxu0 %v6061
      %7073 = vmatpush1.msra.mxu0 %v6060
      %7074 = vmatprep.subr.mxu0 %v6087
      %7075 = vmatpush1.msra.mxu0 %v6086
      %7076 = vmatprep.subr.mxu0 %v6113
      %7077 = vmatpush1.msra.mxu0 %v6112
      %7078 = vmatprep.subr.mxu0 %v6139
      %7079 = vmatpush1.msra.mxu0 %v6138
      %7080 = vmatprep.subr.mxu0 %v6165
      %7081 = vmatpush1.msra.mxu0 %v6164
      %7082 = vmatprep.subr.mxu0 0.0
      %7083 = vmatpush1.msra.mxu0 0.0
      %7084 = vmatprep.subr.mxu0 0.0
      %7085 = vmatpush1.msra.mxu0 0.0
      %7086 = vmatprep.subr.mxu0 0.0
      %7087 = vmatpush1.msra.mxu0 0.0
      %7088 = vmatprep.subr.mxu0 0.0
      %7089 = vmatpush1.msra.mxu0 0.0
      %7090 = vmatprep.subr.mxu0 0.0
      %7091 = vmatpush1.msra.mxu0 0.0
      %7092 = vmatprep.mubr.f32.mxu0 %v6174
      %7093 = vmatmul.mubr.f32.gmra.mrb[0].mxu0 %v5462
      %v7094 = vpop.f32.mrb[0].mxu0
      %v7095 = vadd.f32 %v6170, %v7094
      %v7096 = vpop.f32.mrb[0].mxu0
      %v7097 = vadd.f32 %v6170, %v7096
      %7098 = vdwg.mxu0
      %vm7099 = vcmp.gt.f32.partialorder %v6243, 0.0
      %vm7100 = vcmp.gt.f32.partialorder %v6245, 0.0
      %vm7101 = vcmp.gt.f32.partialorder %v6314, 0.0
      %vm7102 = vcmp.gt.f32.partialorder %v6316, 0.0
      %vm7103 = vcmp.gt.f32.partialorder %v6385, 0.0
      %vm7104 = vcmp.gt.f32.partialorder %v6387, 0.0
      %vm7105 = vcmp.gt.f32.partialorder %v6456, 0.0
      %vm7106 = vcmp.gt.f32.partialorder %v6458, 0.0
      %vm7107 = vcmp.gt.f32.partialorder %v6527, 0.0
      %vm7108 = vcmp.gt.f32.partialorder %v6529, 0.0
      %vm7109 = vcmp.gt.f32.partialorder %v6598, 0.0
      %vm7110 = vcmp.gt.f32.partialorder %v6600, 0.0
      %vm7111 = vcmp.gt.f32.partialorder %v6669, 0.0
      %vm7112 = vcmp.gt.f32.partialorder %v6671, 0.0
      %vm7113 = vcmp.gt.f32.partialorder %v6740, 0.0
      %vm7114 = vcmp.gt.f32.partialorder %v6742, 0.0
      %vm7115 = vcmp.gt.f32.partialorder %v6811, 0.0
      %vm7116 = vcmp.gt.f32.partialorder %v6813, 0.0
      %vm7117 = vcmp.gt.f32.partialorder %v6882, 0.0
      %vm7118 = vcmp.gt.f32.partialorder %v6884, 0.0
      %vm7119 = vcmp.gt.f32.partialorder %v6953, 0.0
      %vm7120 = vcmp.gt.f32.partialorder %v6955, 0.0
      %vm7121 = vcmp.gt.f32.partialorder %v7024, 0.0
      %vm7122 = vcmp.gt.f32.partialorder %v7026, 0.0
      %vm7123 = vcmp.gt.f32.partialorder %v7095, 0.0
      %vm7124 = vcmp.gt.f32.partialorder %v7097, 0.0
      %v7125 = vmul.f32 %v6243, 0.01
      %v7126 = vmul.f32 %v6245, 0.01
      %v7127 = vmul.f32 %v6314, 0.01
      %v7128 = vmul.f32 %v6316, 0.01
      %v7129 = vmul.f32 %v6385, 0.01
      %v7130 = vmul.f32 %v6387, 0.01
      %v7131 = vmul.f32 %v6456, 0.01
      %v7132 = vmul.f32 %v6458, 0.01
      %v7133 = vmul.f32 %v6527, 0.01
      %v7134 = vmul.f32 %v6529, 0.01
      %v7135 = vmul.f32 %v6598, 0.01
      %v7136 = vmul.f32 %v6600, 0.01
      %v7137 = vmul.f32 %v6669, 0.01
      %v7138 = vmul.f32 %v6671, 0.01
      %v7139 = vmul.f32 %v6740, 0.01
      %v7140 = vmul.f32 %v6742, 0.01
      %v7141 = vmul.f32 %v6811, 0.01
      %v7142 = vmul.f32 %v6813, 0.01
      %v7143 = vmul.f32 %v6882, 0.01
      %v7144 = vmul.f32 %v6884, 0.01
      %v7145 = vmul.f32 %v6953, 0.01
      %v7146 = vmul.f32 %v6955, 0.01
      %v7147 = vmul.f32 %v7024, 0.01
      %v7148 = vmul.f32 %v7026, 0.01
      %v7149 = vmul.f32 %v7095, 0.01
      %v7150 = vmul.f32 %v7097, 0.01
      %v7151 = vsel %vm7099, %v6243, %v7125
      %v7152 = vsel %vm7100, %v6245, %v7126
      %v7153 = vsel %vm7101, %v6314, %v7127
      %v7154 = vsel %vm7102, %v6316, %v7128
      %v7155 = vsel %vm7103, %v6385, %v7129
      %v7156 = vsel %vm7104, %v6387, %v7130
      %v7157 = vsel %vm7105, %v6456, %v7131
      %v7158 = vsel %vm7106, %v6458, %v7132
      %v7159 = vsel %vm7107, %v6527, %v7133
      %v7160 = vsel %vm7108, %v6529, %v7134
      %v7161 = vsel %vm7109, %v6598, %v7135
      %v7162 = vsel %vm7110, %v6600, %v7136
      %v7163 = vsel %vm7111, %v6669, %v7137
      %v7164 = vsel %vm7112, %v6671, %v7138
      %v7165 = vsel %vm7113, %v6740, %v7139
      %v7166 = vsel %vm7114, %v6742, %v7140
      %v7167 = vsel %vm7115, %v6811, %v7141
      %v7168 = vsel %vm7116, %v6813, %v7142
      %v7169 = vsel %vm7117, %v6882, %v7143
      %v7170 = vsel %vm7118, %v6884, %v7144
      %v7171 = vsel %vm7119, %v6953, %v7145
      %v7172 = vsel %vm7120, %v6955, %v7146
      %v7173 = vsel %vm7121, %v7024, %v7147
      %v7174 = vsel %vm7122, %v7026, %v7148
      %v7175 = vsel %vm7123, %v7095, %v7149
      %v7176 = vsel %vm7124, %v7097, %v7150
      %v7177 = vpack.c.bf16 %v7151, %v7151
      %v7178 = vpack.c.bf16 %v7152, %v7152
      %v7179 = vpack.c.bf16 %v7153, %v7153
      %v7180 = vpack.c.bf16 %v7154, %v7154
      %v7181 = vpack.c.bf16 %v7155, %v7155
      %v7182 = vpack.c.bf16 %v7156, %v7156
      %v7183 = vpack.c.bf16 %v7157, %v7157
      %v7184 = vpack.c.bf16 %v7158, %v7158
      %v7185 = vpack.c.bf16 %v7159, %v7159
      %v7186 = vpack.c.bf16 %v7160, %v7160
      %v7187 = vpack.c.bf16 %v7161, %v7161
      %v7188 = vpack.c.bf16 %v7162, %v7162
      %v7189 = vpack.c.bf16 %v7163, %v7163
      %v7190 = vpack.c.bf16 %v7164, %v7164
      %v7191 = vpack.c.bf16 %v7165, %v7165
      %v7192 = vpack.c.bf16 %v7166, %v7166
      %v7193 = vpack.c.bf16 %v7167, %v7167
      %v7194 = vpack.c.bf16 %v7168, %v7168
      %v7195 = vpack.c.bf16 %v7169, %v7169
      %v7196 = vpack.c.bf16 %v7170, %v7170
      %v7197 = vpack.c.bf16 %v7171, %v7171
      %v7198 = vpack.c.bf16 %v7172, %v7172
      %v7199 = vpack.c.bf16 %v7173, %v7173
      %v7200 = vpack.c.bf16 %v7174, %v7174
      %v7201 = vpack.c.bf16 %v7175, %v7175
      %v7202 = vpack.c.bf16 %v7176, %v7176
      %v7229 = vunpack.c.l.b16 %v7177
      %v7230 = vunpack.c.l.b16 %v7178
      %v7231 = vunpack.c.l.b16 %v7179
      %v7232 = vunpack.c.l.b16 %v7180
      %v7233 = vunpack.c.l.b16 %v7181
      %v7234 = vunpack.c.l.b16 %v7182
      %v7235 = vunpack.c.l.b16 %v7183
      %v7236 = vunpack.c.l.b16 %v7184
      %v7237 = vunpack.c.l.b16 %v7185
      %v7238 = vunpack.c.l.b16 %v7186
      %v7239 = vunpack.c.l.b16 %v7187
      %v7240 = vunpack.c.l.b16 %v7188
      %v7241 = vunpack.c.l.b16 %v7189
      %v7242 = vunpack.c.l.b16 %v7190
      %v7243 = vunpack.c.l.b16 %v7191
      %v7244 = vunpack.c.l.b16 %v7192
      %v7245 = vunpack.c.l.b16 %v7193
      %v7246 = vunpack.c.l.b16 %v7194
      %v7247 = vunpack.c.l.b16 %v7195
      %v7248 = vunpack.c.l.b16 %v7196
      %v7249 = vunpack.c.l.b16 %v7197
      %v7250 = vunpack.c.l.b16 %v7198
      %v7251 = vunpack.c.l.b16 %v7199
      %v7252 = vunpack.c.l.b16 %v7200
      %v7253 = vunpack.c.l.b16 %v7201
      %v7254 = vunpack.c.l.b16 %v7202
      %v7255 = vpack.c.b16 %v7230, %v7229
      %v7256 = vpack.c.b16 %v7232, %v7231
      %v7257 = vpack.c.b16 %v7234, %v7233
      %v7258 = vpack.c.b16 %v7236, %v7235
      %v7259 = vpack.c.b16 %v7238, %v7237
      %v7260 = vpack.c.b16 %v7240, %v7239
      %v7261 = vpack.c.b16 %v7242, %v7241
      %v7262 = vpack.c.b16 %v7244, %v7243
      %v7263 = vpack.c.b16 %v7246, %v7245
      %v7264 = vpack.c.b16 %v7248, %v7247
      %v7265 = vpack.c.b16 %v7250, %v7249
      %v7266 = vpack.c.b16 %v7252, %v7251
      %v7267 = vpack.c.b16 %v7254, %v7253
      %7281 = vst [vmem:[%s170] sm:$0xff] %v7255
      %7282 = vst [vmem:[%s170 + $0x8] sm:$0xff] %v7256
      %7283 = vst [vmem:[%s170 + $0x10] sm:$0xff] %v7257
      %7284 = vst [vmem:[%s170 + $0x18] sm:$0xff] %v7258
      %7285 = vst [vmem:[%s170 + $0x20] sm:$0xff] %v7259
      %7286 = vst [vmem:[%s170 + $0x28] sm:$0xff] %v7260
      %7287 = vst [vmem:[%s170 + $0x30] sm:$0xff] %v7261
      %7288 = vst [vmem:[%s170 + $0x38] sm:$0xff] %v7262
      %7289 = vst [vmem:[%s170 + $0x40] sm:$0xff] %v7263
      %7290 = vst [vmem:[%s170 + $0x48] sm:$0xff] %v7264
      %7291 = vst [vmem:[%s170 + $0x50] sm:$0xff] %v7265
      %7292 = vst [vmem:[%s170 + $0x58] sm:$0xff] %v7266
      %7293 = vst [vmem:[%s170 + $0x60] sm:$0xff] %v7267
      %p7294 = scmp.lt.s32.totalorder %s14, 1
      %s7295 = scalar_select %p7294, %s14, 1
      %s7296 = smul.addr %s7295, 26
      %s7297 = smul.addr %s7296, 4
      %s7298 = scalar_lea.vmem %s3, %s7297
      // Predicated region
      $region33: #{_lambda_.2} parent=31 // pred_check
        %p7299 = pneg %p100
      $region34: #{_lambda_.2} parent=31 // pred_check_branch
        %7301 = sbr.rel (%p7299) target = $region36
      $region35: #{_lambda_.2} parent=31 // pred_region
        _
      $region36: #{_lambda_.2} parent=31 // pred_fallthru
        _
    $region32: #{_lambda_.2} parent=5 // pred_fallthru
      _
    %p7302 = scmp.le.s32.totalorder 2, %s9
    // Predicated region
    $region37: #{_lambda_.2} parent=5 // pred_check
      %p7303 = pneg %p7302
    $region38: #{_lambda_.2} parent=5 // pred_check_branch
      %7305 = sbr.rel (%p7303) target = $region40
    $region39: #{_lambda_.2} parent=5 // pred_region
      %s7306 = ssub.s32 %s9, 2
      // Predicated region
      $region41: #{_lambda_.2} parent=39 // pred_check
        %p7307 = pneg %p106
      $region42: #{_lambda_.2} parent=39 // pred_check_branch
        %7309 = sbr.rel (%p7307) target = $region44
      $region43: #{_lambda_.2} parent=39 // pred_region
        %p7310 = scmp.lt.s32.totalorder %s15, 1
        %s7311 = scalar_select %p7310, %s15, 1
        %s7312 = smul.addr %s7311, 26
        %s7313 = smul.addr %s7312, 4
        %s7314 = scalar_lea.vmem %s3, %s7313
      $region44: #{_lambda_.2} parent=39 // pred_fallthru
        _
    $region40: #{_lambda_.2} parent=5 // pred_fallthru
      _
  $region6: #{_lambda_.2} parent=0 // loop_footer
    %s13 = sadd.s32 1, %s9
  $region7: #{_lambda_.2} parent=0 // loop_footer_branch
    %8 = sbr.rel target = $region3
  $region8: #{_lambda_.2} parent=0 // loop_exit
    _

// kernel: _lambda_.3
$region0: #{_lambda_.3}
  #allocation0 [shape = 'u32[]', space=smem, size = 0x4, offset = 0x4, fixed_abs, tag = 'smem constant byte address 0x4 - core index']
  #allocation1 [shape = 'u32[144,128]{1,0:T(1,128)}', space=vmem, size = 0x12000, scoped, tag = 'internal scratch']
  #allocation2 [shape = 'f32[216,512]{1,0:T(8,128)}', space=vmem, size = 0x6c000, scoped, tag = 'scratch operand']
  %s0 = inlined_call_operand.vmem [shape: f32[16,216], index: 0, kind: input, shape index: {}]
  %s1 = inlined_call_operand.vmem [shape: f32[16,1], index: 1, kind: input, shape index: {}]
  %s2 = inlined_call_operand.vmem [shape: bf16[2,8,8,640], index: 2, kind: input, shape index: {}]
  %s3 = inlined_call_operand.vmem [shape: f32[2,16,512], index: 3, kind: output, shape index: {}]
  %s4 = sld [smem:[#allocation0]]
  $region45: #{_lambda_.3} parent=0
    _
  %s6 = ssub.s32 1, %s4
  %s7 = scalar_select 0, %s6, %s4
  loop: start=0, step=1, limit=4
  $region2: #{_lambda_.3} parent=0 // loop_pre_header
    _
  $region3: #{_lambda_.3} parent=0 // loop_header
    %s9 = sphi 0, %s13
    %p10 = scmp.ge.s32.totalorder %s9, 4
    %s17 = sphi 0, %s17
    %s19 = sphi 0, %s17
    %s20 = sphi 0, %s19
    %s34 = sphi 0, %s20
    %s38 = sphi 0, %s38
    %s40 = sphi 0, %s38
    %s41 = sphi 0, %s40
    %s55 = sphi 0, %s41
    %s61 = sphi 0, %s63
    %s64 = sphi 0, %s61
    %s65 = sphi 0, %s64
    %s81 = sphi 0, %s65
    %s87 = sphi 0, %s89
    %s90 = sphi 0, %s87
    %s91 = sphi 0, %s90
    %s107 = sphi 0, %s91
  $region4: #{_lambda_.3} parent=0 // loop_header_branch
    %12 = sbr.rel (%p10) target = $region8
  $region5: #{_lambda_.3} parent=0 // loop_body
    %s14 = ssub.s32 %s9, 1
    %s15 = ssub.s32 %s9, 2
    %s16 = sadd.s32 %s9, 1
    %s18 = sadd.s32 %s17, 1
    %p21 = scmp.eq.s32.totalorder %s9, 1
    %p22 = scmp.ne.s32.totalorder %s17, %s19
    %p23 = scmp.eq.s32.totalorder %s9, 0
    %p24 = por %p22, %p23
    %p25 = scmp.ne.s32.totalorder %s17, %s19
    %p26 = scmp.eq.s32.totalorder %s14, 1
    %p27 = por %p25, %p26
    %p28 = scmp.ne.s32.totalorder %s19, %s20
    %p29 = scmp.eq.s32.totalorder %s14, 0
    %p30 = por %p28, %p29
    %p31 = scmp.ne.s32.totalorder %s19, %s20
    %p32 = scmp.eq.s32.totalorder %s15, 1
    %p33 = por %p31, %p32
    %p35 = scmp.ne.s32.totalorder %s20, %s34
    %p36 = scmp.eq.s32.totalorder %s15, 0
    %p37 = por %p35, %p36
    %s39 = sadd.s32 %s38, 1
    %p42 = scmp.eq.s32.totalorder %s9, 1
    %p43 = scmp.ne.s32.totalorder %s38, %s40
    %p44 = scmp.eq.s32.totalorder %s9, 0
    %p45 = por %p43, %p44
    %p46 = scmp.ne.s32.totalorder %s38, %s40
    %p47 = scmp.eq.s32.totalorder %s14, 1
    %p48 = por %p46, %p47
    %p49 = scmp.ne.s32.totalorder %s40, %s41
    %p50 = scmp.eq.s32.totalorder %s14, 0
    %p51 = por %p49, %p50
    %p52 = scmp.ne.s32.totalorder %s40, %s41
    %p53 = scmp.eq.s32.totalorder %s15, 1
    %p54 = por %p52, %p53
    %p56 = scmp.ne.s32.totalorder %s41, %s55
    %p57 = scmp.eq.s32.totalorder %s15, 0
    %p58 = por %p56, %p57
    %s59 = ssub.s32 %s9, %s16
    %p60 = scmp.eq.s32.totalorder %s59, 0
    %s62 = sadd.s32 %s61, 1
    %s63 = scalar_select %p60, %s61, %s62
    %p66 = pneg %p60
    %p67 = scmp.eq.s32.totalorder %s9, 1
    %p68 = por %p66, %p67
    %p69 = scmp.ne.s32.totalorder %s61, %s64
    %p70 = scmp.eq.s32.totalorder %s9, 0
    %p71 = por %p69, %p70
    %p72 = scmp.ne.s32.totalorder %s61, %s64
    %p73 = scmp.eq.s32.totalorder %s14, 1
    %p74 = por %p72, %p73
    %p75 = scmp.ne.s32.totalorder %s64, %s65
    %p76 = scmp.eq.s32.totalorder %s14, 0
    %p77 = por %p75, %p76
    %p78 = scmp.ne.s32.totalorder %s64, %s65
    %p79 = scmp.eq.s32.totalorder %s15, 1
    %p80 = por %p78, %p79
    %p82 = scmp.ne.s32.totalorder %s65, %s81
    %p83 = scmp.eq.s32.totalorder %s15, 0
    %p84 = por %p82, %p83
    %s85 = ssub.s32 %s9, %s16
    %p86 = scmp.eq.s32.totalorder %s85, 0
    %s88 = sadd.s32 %s87, 1
    %s89 = scalar_select %p86, %s87, %s88
    %p92 = pneg %p86
    %p93 = scmp.eq.s32.totalorder %s9, 1
    %p94 = por %p92, %p93
    %p95 = scmp.ne.s32.totalorder %s87, %s90
    %p96 = scmp.eq.s32.totalorder %s9, 0
    %p97 = por %p95, %p96
    %p98 = scmp.ne.s32.totalorder %s87, %s90
    %p99 = scmp.eq.s32.totalorder %s14, 1
    %p100 = por %p98, %p99
    %p101 = scmp.ne.s32.totalorder %s90, %s91
    %p102 = scmp.eq.s32.totalorder %s14, 0
    %p103 = por %p101, %p102
    %p104 = scmp.ne.s32.totalorder %s90, %s91
    %p105 = scmp.eq.s32.totalorder %s15, 1
    %p106 = por %p104, %p105
    %p108 = scmp.ne.s32.totalorder %s91, %s107
    %p109 = scmp.eq.s32.totalorder %s15, 0
    %p110 = por %p108, %p109
    %p111 = scmp.le.s32.totalorder 1, %s9
    %p112 = scmp.lt.s32.totalorder %s9, 3
    %p113 = pnand %p111, %p112
    %p114 = pneg %p113
    // Predicated region
    $region9: #{_lambda_.3} parent=5 // pred_check
      _
    $region10: #{_lambda_.3} parent=5 // pred_check_branch
      %116 = sbr.rel (%p113) target = $region12
    $region11: #{_lambda_.3} parent=5 // pred_region
      %s117 = ssub.s32 %s9, 1
      // Predicated region
      $region13: #{_lambda_.3} parent=11 // pred_check
        %p118 = pneg %p30
      $region14: #{_lambda_.3} parent=11 // pred_check_branch
        %120 = sbr.rel (%p118) target = $region16
      $region15: #{_lambda_.3} parent=11 // pred_region
        _
      $region16: #{_lambda_.3} parent=11 // pred_fallthru
        _
      // Predicated region
      $region17: #{_lambda_.3} parent=11 // pred_check
        %p121 = pneg %p51
      $region18: #{_lambda_.3} parent=11 // pred_check_branch
        %123 = sbr.rel (%p121) target = $region20
      $region19: #{_lambda_.3} parent=11 // pred_region
        _
      $region20: #{_lambda_.3} parent=11 // pred_fallthru
        _
    $region12: #{_lambda_.3} parent=5 // pred_fallthru
      _
    %p124 = scmp.lt.s32.totalorder %s9, 2
    // Predicated region
    $region21: #{_lambda_.3} parent=5 // pred_check
      %p125 = pneg %p124
    $region22: #{_lambda_.3} parent=5 // pred_check_branch
      %127 = sbr.rel (%p125) target = $region24
    $region23: #{_lambda_.3} parent=5 // pred_region
      // Predicated region
      $region25: #{_lambda_.3} parent=23 // pred_check
        %p128 = pneg %p71
      $region26: #{_lambda_.3} parent=23 // pred_check_branch
        %130 = sbr.rel (%p128) target = $region28
      $region27: #{_lambda_.3} parent=23 // pred_region
        %p131 = scmp.lt.s32.totalorder %s9, 1
        %s132 = scalar_select %p131, %s9, 1
        %s133 = smul.addr %s132, 40
        %s134 = smul.addr %s133, 4
        %s135 = scalar_lea.vmem %s2, %s134
      $region28: #{_lambda_.3} parent=23 // pred_fallthru
        _
    $region24: #{_lambda_.3} parent=5 // pred_fallthru
      _
    %p136 = scmp.le.s32.totalorder 1, %s9
    %p137 = scmp.lt.s32.totalorder %s9, 3
    %p138 = pnand %p136, %p137
    %p139 = pneg %p138
    // Predicated region
    $region29: #{_lambda_.3} parent=5 // pred_check
      _
    $region30: #{_lambda_.3} parent=5 // pred_check_branch
      %141 = sbr.rel (%p138) target = $region32
    $region31: #{_lambda_.3} parent=5 // pred_region
      %s142 = ssub.s32 %s9, 1
      %p143 = pneg %p30
      %p144 = pneg %p27
      %p145 = pneg %p51
      %p146 = pneg %p48
      %p147 = scmp.lt.s32.totalorder %s14, 1
      %s148 = scalar_select %p147, %s14, 1
      %s149 = smul.addr %s148, 40
      %s150 = smul.addr %s149, 4
      %s151 = scalar_lea.vmem %s2, %s150
      %p152 = pneg %p77
      %p153 = pneg %p74
      %p154 = pneg %p103
      %p155 = pneg %p100
      %p156 = scmp.lt.s32.totalorder %s14, 1
      %s157 = scalar_select %p156, %s14, 1
      %s158 = smul.addr %s157, 8
      %s159 = smul.addr %s158, 8
      %s160 = scalar_lea.vmem %s3, %s159
      %p161 = scmp.lt.s32.totalorder %s14, 1
      %s162 = scalar_select %p161, %s14, 1
      %s163 = smul.addr %s162, 40
      %s164 = smul.addr %s163, 4
      %s165 = scalar_lea.vmem %s2, %s164
      %p166 = scmp.lt.s32.totalorder %s14, 1
      %s167 = scalar_select %p166, %s14, 1
      %s168 = smul.addr %s167, 8
      %s169 = smul.addr %s168, 8
      %s170 = scalar_lea.vmem %s3, %s169
      %v171 = vld [vmem:[%s165] sm:$0xff]
      %v172 = vld [vmem:[%s165 + $0x8] sm:$0xff]
      %v173 = vunpack.c.l.bf16 %v171
      %v174 = vunpack.c.h.bf16 %v171
      %v175 = vunpack.c.l.bf16 %v172
      %v176 = vunpack.c.h.bf16 %v172
      %177 = vst [vmem:[#allocation2] sm:$0xff] %v173
      %178 = vst [vmem:[#allocation2 + $0x8] sm:$0xff] %v174
      %179 = vst [vmem:[#allocation2 + $0x10] sm:$0xff] %v175
      %180 = vst [vmem:[#allocation2 + $0x18] sm:$0xff] %v176
      %s181 = scalar_lea.vmem %s165, 20
      %v182 = vld [vmem:[%s181] sm:$0xff]
      %v183 = vld [vmem:[%s181 + $0x8] sm:$0xff]
      %v184 = vunpack.c.l.bf16 %v182
      %v185 = vunpack.c.h.bf16 %v182
      %v186 = vunpack.c.l.bf16 %v183
      %v187 = vunpack.c.h.bf16 %v183
      %188 = vst [vmem:[#allocation2 + $0x20] sm:$0xff] %v184
      %189 = vst [vmem:[#allocation2 + $0x28] sm:$0xff] %v185
      %190 = vst [vmem:[#allocation2 + $0x30] sm:$0xff] %v186
      %191 = vst [vmem:[#allocation2 + $0x38] sm:$0xff] %v187
      %v192 = vld [vmem:[%s165] sm:$0xff]
      %v193 = vld [vmem:[%s165 + $0x8] sm:$0xff]
      %v194 = vld [vmem:[%s165 + $0x10] sm:$0xf]
      %v195 = vunpack.c.l.bf16 %v192
      %v196 = vunpack.c.h.bf16 %v192
      %v197 = vunpack.c.l.bf16 %v193
      %v198 = vunpack.c.h.bf16 %v193
      %v199 = vunpack.c.l.bf16 %v194
      %205 = vrot.lane.b32.xlu0 %v195, 127
      %v206 = vpop.permute.xlu0 %205
      %207 = vrot.lane.b32.xlu0 %v196, 127
      %v208 = vpop.permute.xlu0 %207
      %209 = vrot.lane.b32.xlu0 %v197, 127
      %v210 = vpop.permute.xlu0 %209
      %211 = vrot.lane.b32.xlu0 %v198, 127
      %v212 = vpop.permute.xlu0 %211
      %213 = vrot.lane.b32.xlu0 %v199, 127
      %v214 = vpop.permute.xlu0 %213
      %vm215 = vcmask 1039360
      %v216 = vsel %vm215, %v206, %v208
      %v217 = vsel %vm215, %v208, %v210
      %v218 = vsel %vm215, %v210, %v212
      %v219 = vsel %vm215, %v212, %v214
      %224 = vst [vmem:[#allocation2 + $0x40] sm:$0xff] %v216
      %225 = vst [vmem:[#allocation2 + $0x48] sm:$0xff] %v217
      %226 = vst [vmem:[#allocation2 + $0x50] sm:$0xff] %v218
      %227 = vst [vmem:[#allocation2 + $0x58] sm:$0xff] %v219
      %s228 = scalar_lea.vmem %s165, 40
      %v229 = vld [vmem:[%s228] sm:$0xff]
      %v230 = vld [vmem:[%s228 + $0x8] sm:$0xff]
      %v231 = vunpack.c.l.bf16 %v229
      %v232 = vunpack.c.h.bf16 %v229
      %v233 = vunpack.c.l.bf16 %v230
      %v234 = vunpack.c.h.bf16 %v230
      %235 = vst [vmem:[#allocation2 + $0x60] sm:$0xff] %v231
      %236 = vst [vmem:[#allocation2 + $0x68] sm:$0xff] %v232
      %237 = vst [vmem:[#allocation2 + $0x70] sm:$0xff] %v233
      %238 = vst [vmem:[#allocation2 + $0x78] sm:$0xff] %v234
      %s239 = scalar_lea.vmem %s165, 60
      %v240 = vld [vmem:[%s239] sm:$0xff]
      %v241 = vld [vmem:[%s239 + $0x8] sm:$0xff]
      %v242 = vunpack.c.l.bf16 %v240
      %v243 = vunpack.c.h.bf16 %v240
      %v244 = vunpack.c.l.bf16 %v241
      %v245 = vunpack.c.h.bf16 %v241
      %246 = vst [vmem:[#allocation2 + $0x80] sm:$0xff] %v242
      %247 = vst [vmem:[#allocation2 + $0x88] sm:$0xff] %v243
      %248 = vst [vmem:[#allocation2 + $0x90] sm:$0xff] %v244
      %249 = vst [vmem:[#allocation2 + $0x98] sm:$0xff] %v245
      %v250 = vld [vmem:[%s228] sm:$0xff]
      %v251 = vld [vmem:[%s228 + $0x8] sm:$0xff]
      %v252 = vld [vmem:[%s228 + $0x10] sm:$0xf]
      %v253 = vunpack.c.l.bf16 %v250
      %v254 = vunpack.c.h.bf16 %v250
      %v255 = vunpack.c.l.bf16 %v251
      %v256 = vunpack.c.h.bf16 %v251
      %v257 = vunpack.c.l.bf16 %v252
      %263 = vrot.lane.b32.xlu0 %v253, 127
      %v264 = vpop.permute.xlu0 %263
      %265 = vrot.lane.b32.xlu0 %v254, 127
      %v266 = vpop.permute.xlu0 %265
      %267 = vrot.lane.b32.xlu0 %v255, 127
      %v268 = vpop.permute.xlu0 %267
      %269 = vrot.lane.b32.xlu0 %v256, 127
      %v270 = vpop.permute.xlu0 %269
      %271 = vrot.lane.b32.xlu0 %v257, 127
      %v272 = vpop.permute.xlu0 %271
      %v273 = vsel %vm215, %v264, %v266
      %v274 = vsel %vm215, %v266, %v268
      %v275 = vsel %vm215, %v268, %v270
      %v276 = vsel %vm215, %v270, %v272
      %281 = vst [vmem:[#allocation2 + $0xa0] sm:$0xff] %v273
      %282 = vst [vmem:[#allocation2 + $0xa8] sm:$0xff] %v274
      %283 = vst [vmem:[#allocation2 + $0xb0] sm:$0xff] %v275
      %284 = vst [vmem:[#allocation2 + $0xb8] sm:$0xff] %v276
      %v285 = vld [vmem:[%s165] sm:$0xff]
      %v286 = vld [vmem:[%s165 + $0x8] sm:$0xff]
      %v287 = vld [vmem:[%s165 + $0x10] sm:$0xf]
      %v288 = vunpack.c.l.bf16 %v285
      %v289 = vunpack.c.h.bf16 %v285
      %v290 = vunpack.c.l.bf16 %v286
      %v291 = vunpack.c.h.bf16 %v286
      %v292 = vunpack.c.l.bf16 %v287
      %298 = vrot.lane.b32.xlu0 %v288, 119
      %v299 = vpop.permute.xlu0 %298
      %300 = vrot.lane.b32.xlu0 %v289, 119
      %v301 = vpop.permute.xlu0 %300
      %302 = vrot.lane.b32.xlu0 %v290, 119
      %v303 = vpop.permute.xlu0 %302
      %304 = vrot.lane.b32.xlu0 %v291, 119
      %v305 = vpop.permute.xlu0 %304
      %306 = vrot.lane.b32.xlu0 %v292, 119
      %v307 = vpop.permute.xlu0 %306
      %vm308 = vcmask 973824
      %v309 = vsel %vm308, %v299, %v301
      %v310 = vsel %vm308, %v301, %v303
      %v311 = vsel %vm308, %v303, %v305
      %v312 = vsel %vm308, %v305, %v307
      %317 = vst [vmem:[#allocation2 + $0xc0] sm:$0xff] %v309
      %318 = vst [vmem:[#allocation2 + $0xc8] sm:$0xff] %v310
      %319 = vst [vmem:[#allocation2 + $0xd0] sm:$0xff] %v311
      %320 = vst [vmem:[#allocation2 + $0xd8] sm:$0xff] %v312
      %v321 = vld [vmem:[%s181] sm:$0xff]
      %v322 = vld [vmem:[%s181 + $0x8] sm:$0xff]
      %v323 = vld [vmem:[%s181 + $0x10] sm:$0xf]
      %v324 = vunpack.c.l.bf16 %v321
      %v325 = vunpack.c.h.bf16 %v321
      %v326 = vunpack.c.l.bf16 %v322
      %v327 = vunpack.c.h.bf16 %v322
      %v328 = vunpack.c.l.bf16 %v323
      %334 = vrot.lane.b32.xlu0 %v324, 119
      %v335 = vpop.permute.xlu0 %334
      %336 = vrot.lane.b32.xlu0 %v325, 119
      %v337 = vpop.permute.xlu0 %336
      %338 = vrot.lane.b32.xlu0 %v326, 119
      %v339 = vpop.permute.xlu0 %338
      %340 = vrot.lane.b32.xlu0 %v327, 119
      %v341 = vpop.permute.xlu0 %340
      %342 = vrot.lane.b32.xlu0 %v328, 119
      %v343 = vpop.permute.xlu0 %342
      %v344 = vsel %vm308, %v335, %v337
      %v345 = vsel %vm308, %v337, %v339
      %v346 = vsel %vm308, %v339, %v341
      %v347 = vsel %vm308, %v341, %v343
      %352 = vst [vmem:[#allocation2 + $0xe0] sm:$0xff] %v344
      %353 = vst [vmem:[#allocation2 + $0xe8] sm:$0xff] %v345
      %354 = vst [vmem:[#allocation2 + $0xf0] sm:$0xff] %v346
      %355 = vst [vmem:[#allocation2 + $0xf8] sm:$0xff] %v347
      %v356 = vld [vmem:[%s165] sm:$0xff]
      %v357 = vld [vmem:[%s165 + $0x8] sm:$0xff]
      %v358 = vld [vmem:[%s165 + $0x10] sm:$0xf]
      %v359 = vunpack.c.l.bf16 %v356
      %v360 = vunpack.c.h.bf16 %v356
      %v361 = vunpack.c.l.bf16 %v357
      %v362 = vunpack.c.h.bf16 %v357
      %v363 = vunpack.c.l.bf16 %v358
      %369 = vrot.lane.b32.xlu0 %v359, 118
      %v370 = vpop.permute.xlu0 %369
      %371 = vrot.lane.b32.xlu0 %v360, 118
      %v372 = vpop.permute.xlu0 %371
      %373 = vrot.lane.b32.xlu0 %v361, 118
      %v374 = vpop.permute.xlu0 %373
      %375 = vrot.lane.b32.xlu0 %v362, 118
      %v376 = vpop.permute.xlu0 %375
      %377 = vrot.lane.b32.xlu0 %v363, 118
      %v378 = vpop.permute.xlu0 %377
      %vm379 = vcmask 965632
      %v380 = vsel %vm379, %v370, %v372
      %v381 = vsel %vm379, %v372, %v374
      %v382 = vsel %vm379, %v374, %v376
      %v383 = vsel %vm379, %v376, %v378
      %388 = vst [vmem:[#allocation2 + $0x100] sm:$0xff] %v380
      %389 = vst [vmem:[#allocation2 + $0x108] sm:$0xff] %v381
      %390 = vst [vmem:[#allocation2 + $0x110] sm:$0xff] %v382
      %391 = vst [vmem:[#allocation2 + $0x118] sm:$0xff] %v383
      %s392 = scalar_lea.vmem %s165, 80
      %v393 = vld [vmem:[%s392] sm:$0xff]
      %v394 = vld [vmem:[%s392 + $0x8] sm:$0xff]
      %v395 = vunpack.c.l.bf16 %v393
      %v396 = vunpack.c.h.bf16 %v393
      %v397 = vunpack.c.l.bf16 %v394
      %v398 = vunpack.c.h.bf16 %v394
      %399 = vst [vmem:[#allocation2 + $0x120] sm:$0xff] %v395
      %400 = vst [vmem:[#allocation2 + $0x128] sm:$0xff] %v396
      %401 = vst [vmem:[#allocation2 + $0x130] sm:$0xff] %v397
      %402 = vst [vmem:[#allocation2 + $0x138] sm:$0xff] %v398
      %s403 = scalar_lea.vmem %s165, 100
      %v404 = vld [vmem:[%s403] sm:$0xff]
      %v405 = vld [vmem:[%s403 + $0x8] sm:$0xff]
      %v406 = vunpack.c.l.bf16 %v404
      %v407 = vunpack.c.h.bf16 %v404
      %v408 = vunpack.c.l.bf16 %v405
      %v409 = vunpack.c.h.bf16 %v405
      %410 = vst [vmem:[#allocation2 + $0x140] sm:$0xff] %v406
      %411 = vst [vmem:[#allocation2 + $0x148] sm:$0xff] %v407
      %412 = vst [vmem:[#allocation2 + $0x150] sm:$0xff] %v408
      %413 = vst [vmem:[#allocation2 + $0x158] sm:$0xff] %v409
      %v414 = vld [vmem:[%s392] sm:$0xff]
      %v415 = vld [vmem:[%s392 + $0x8] sm:$0xff]
      %v416 = vld [vmem:[%s392 + $0x10] sm:$0xf]
      %v417 = vunpack.c.l.bf16 %v414
      %v418 = vunpack.c.h.bf16 %v414
      %v419 = vunpack.c.l.bf16 %v415
      %v420 = vunpack.c.h.bf16 %v415
      %v421 = vunpack.c.l.bf16 %v416
      %427 = vrot.lane.b32.xlu0 %v417, 127
      %v428 = vpop.permute.xlu0 %427
      %429 = vrot.lane.b32.xlu0 %v418, 127
      %v430 = vpop.permute.xlu0 %429
      %431 = vrot.lane.b32.xlu0 %v419, 127
      %v432 = vpop.permute.xlu0 %431
      %433 = vrot.lane.b32.xlu0 %v420, 127
      %v434 = vpop.permute.xlu0 %433
      %435 = vrot.lane.b32.xlu0 %v421, 127
      %v436 = vpop.permute.xlu0 %435
      %v437 = vsel %vm215, %v428, %v430
      %v438 = vsel %vm215, %v430, %v432
      %v439 = vsel %vm215, %v432, %v434
      %v440 = vsel %vm215, %v434, %v436
      %445 = vst [vmem:[#allocation2 + $0x160] sm:$0xff] %v437
      %446 = vst [vmem:[#allocation2 + $0x168] sm:$0xff] %v438
      %447 = vst [vmem:[#allocation2 + $0x170] sm:$0xff] %v439
      %448 = vst [vmem:[#allocation2 + $0x178] sm:$0xff] %v440
      %s449 = scalar_lea.vmem %s165, 120
      %v450 = vld [vmem:[%s449] sm:$0xff]
      %v451 = vld [vmem:[%s449 + $0x8] sm:$0xff]
      %v452 = vunpack.c.l.bf16 %v450
      %v453 = vunpack.c.h.bf16 %v450
      %v454 = vunpack.c.l.bf16 %v451
      %v455 = vunpack.c.h.bf16 %v451
      %456 = vst [vmem:[#allocation2 + $0x180] sm:$0xff] %v452
      %457 = vst [vmem:[#allocation2 + $0x188] sm:$0xff] %v453
      %458 = vst [vmem:[#allocation2 + $0x190] sm:$0xff] %v454
      %459 = vst [vmem:[#allocation2 + $0x198] sm:$0xff] %v455
      %s460 = scalar_lea.vmem %s165, 140
      %v461 = vld [vmem:[%s460] sm:$0xff]
      %v462 = vld [vmem:[%s460 + $0x8] sm:$0xff]
      %v463 = vunpack.c.l.bf16 %v461
      %v464 = vunpack.c.h.bf16 %v461
      %v465 = vunpack.c.l.bf16 %v462
      %v466 = vunpack.c.h.bf16 %v462
      %467 = vst [vmem:[#allocation2 + $0x1a0] sm:$0xff] %v463
      %468 = vst [vmem:[#allocation2 + $0x1a8] sm:$0xff] %v464
      %469 = vst [vmem:[#allocation2 + $0x1b0] sm:$0xff] %v465
      %470 = vst [vmem:[#allocation2 + $0x1b8] sm:$0xff] %v466
      %v471 = vld [vmem:[%s449] sm:$0xff]
      %v472 = vld [vmem:[%s449 + $0x8] sm:$0xff]
      %v473 = vld [vmem:[%s449 + $0x10] sm:$0xf]
      %v474 = vunpack.c.l.bf16 %v471
      %v475 = vunpack.c.h.bf16 %v471
      %v476 = vunpack.c.l.bf16 %v472
      %v477 = vunpack.c.h.bf16 %v472
      %v478 = vunpack.c.l.bf16 %v473
      %484 = vrot.lane.b32.xlu0 %v474, 127
      %v485 = vpop.permute.xlu0 %484
      %486 = vrot.lane.b32.xlu0 %v475, 127
      %v487 = vpop.permute.xlu0 %486
      %488 = vrot.lane.b32.xlu0 %v476, 127
      %v489 = vpop.permute.xlu0 %488
      %490 = vrot.lane.b32.xlu0 %v477, 127
      %v491 = vpop.permute.xlu0 %490
      %492 = vrot.lane.b32.xlu0 %v478, 127
      %v493 = vpop.permute.xlu0 %492
      %v494 = vsel %vm215, %v485, %v487
      %v495 = vsel %vm215, %v487, %v489
      %v496 = vsel %vm215, %v489, %v491
      %v497 = vsel %vm215, %v491, %v493
      %502 = vst [vmem:[#allocation2 + $0x1c0] sm:$0xff] %v494
      %503 = vst [vmem:[#allocation2 + $0x1c8] sm:$0xff] %v495
      %504 = vst [vmem:[#allocation2 + $0x1d0] sm:$0xff] %v496
      %505 = vst [vmem:[#allocation2 + $0x1d8] sm:$0xff] %v497
      %v506 = vld [vmem:[%s392] sm:$0xff]
      %v507 = vld [vmem:[%s392 + $0x8] sm:$0xff]
      %v508 = vld [vmem:[%s392 + $0x10] sm:$0xf]
      %v509 = vunpack.c.l.bf16 %v506
      %v510 = vunpack.c.h.bf16 %v506
      %v511 = vunpack.c.l.bf16 %v507
      %v512 = vunpack.c.h.bf16 %v507
      %v513 = vunpack.c.l.bf16 %v508
      %519 = vrot.lane.b32.xlu0 %v509, 119
      %v520 = vpop.permute.xlu0 %519
      %521 = vrot.lane.b32.xlu0 %v510, 119
      %v522 = vpop.permute.xlu0 %521
      %523 = vrot.lane.b32.xlu0 %v511, 119
      %v524 = vpop.permute.xlu0 %523
      %525 = vrot.lane.b32.xlu0 %v512, 119
      %v526 = vpop.permute.xlu0 %525
      %527 = vrot.lane.b32.xlu0 %v513, 119
      %v528 = vpop.permute.xlu0 %527
      %v529 = vsel %vm308, %v520, %v522
      %v530 = vsel %vm308, %v522, %v524
      %v531 = vsel %vm308, %v524, %v526
      %v532 = vsel %vm308, %v526, %v528
      %537 = vst [vmem:[#allocation2 + $0x1e0] sm:$0xff] %v529
      %538 = vst [vmem:[#allocation2 + $0x1e8] sm:$0xff] %v530
      %539 = vst [vmem:[#allocation2 + $0x1f0] sm:$0xff] %v531
      %540 = vst [vmem:[#allocation2 + $0x1f8] sm:$0xff] %v532
      %v541 = vld [vmem:[%s403] sm:$0xff]
      %v542 = vld [vmem:[%s403 + $0x8] sm:$0xff]
      %v543 = vld [vmem:[%s403 + $0x10] sm:$0xf]
      %v544 = vunpack.c.l.bf16 %v541
      %v545 = vunpack.c.h.bf16 %v541
      %v546 = vunpack.c.l.bf16 %v542
      %v547 = vunpack.c.h.bf16 %v542
      %v548 = vunpack.c.l.bf16 %v543
      %554 = vrot.lane.b32.xlu0 %v544, 119
      %v555 = vpop.permute.xlu0 %554
      %556 = vrot.lane.b32.xlu0 %v545, 119
      %v557 = vpop.permute.xlu0 %556
      %558 = vrot.lane.b32.xlu0 %v546, 119
      %v559 = vpop.permute.xlu0 %558
      %560 = vrot.lane.b32.xlu0 %v547, 119
      %v561 = vpop.permute.xlu0 %560
      %562 = vrot.lane.b32.xlu0 %v548, 119
      %v563 = vpop.permute.xlu0 %562
      %v564 = vsel %vm308, %v555, %v557
      %v565 = vsel %vm308, %v557, %v559
      %v566 = vsel %vm308, %v559, %v561
      %v567 = vsel %vm308, %v561, %v563
      %572 = vst [vmem:[#allocation2 + $0x200] sm:$0xff] %v564
      %573 = vst [vmem:[#allocation2 + $0x208] sm:$0xff] %v565
      %574 = vst [vmem:[#allocation2 + $0x210] sm:$0xff] %v566
      %575 = vst [vmem:[#allocation2 + $0x218] sm:$0xff] %v567
      %v576 = vld [vmem:[%s392] sm:$0xff]
      %v577 = vld [vmem:[%s392 + $0x8] sm:$0xff]
      %v578 = vld [vmem:[%s392 + $0x10] sm:$0xf]
      %v579 = vunpack.c.l.bf16 %v576
      %v580 = vunpack.c.h.bf16 %v576
      %v581 = vunpack.c.l.bf16 %v577
      %v582 = vunpack.c.h.bf16 %v577
      %v583 = vunpack.c.l.bf16 %v578
      %589 = vrot.lane.b32.xlu0 %v579, 118
      %v590 = vpop.permute.xlu0 %589
      %591 = vrot.lane.b32.xlu0 %v580, 118
      %v592 = vpop.permute.xlu0 %591
      %593 = vrot.lane.b32.xlu0 %v581, 118
      %v594 = vpop.permute.xlu0 %593
      %595 = vrot.lane.b32.xlu0 %v582, 118
      %v596 = vpop.permute.xlu0 %595
      %597 = vrot.lane.b32.xlu0 %v583, 118
      %v598 = vpop.permute.xlu0 %597
      %v599 = vsel %vm379, %v590, %v592
      %v600 = vsel %vm379, %v592, %v594
      %v601 = vsel %vm379, %v594, %v596
      %v602 = vsel %vm379, %v596, %v598
      %607 = vst [vmem:[#allocation2 + $0x220] sm:$0xff] %v599
      %608 = vst [vmem:[#allocation2 + $0x228] sm:$0xff] %v600
      %609 = vst [vmem:[#allocation2 + $0x230] sm:$0xff] %v601
      %610 = vst [vmem:[#allocation2 + $0x238] sm:$0xff] %v602
      %v611 = vld [vmem:[%s165] sm:$0xff]
      %v612 = vld [vmem:[%s165 + $0x8] sm:$0xff]
      %v613 = vld [vmem:[%s165 + $0x10] sm:$0xf]
      %v614 = vunpack.c.l.bf16 %v611
      %v615 = vunpack.c.h.bf16 %v611
      %v616 = vunpack.c.l.bf16 %v612
      %v617 = vunpack.c.h.bf16 %v612
      %v618 = vunpack.c.l.bf16 %v613
      %624 = vrot.lane.b32.xlu0 %v614, 47
      %v625 = vpop.permute.xlu0 %624
      %626 = vrot.lane.b32.xlu0 %v615, 47
      %v627 = vpop.permute.xlu0 %626
      %628 = vrot.lane.b32.xlu0 %v616, 47
      %v629 = vpop.permute.xlu0 %628
      %630 = vrot.lane.b32.xlu0 %v617, 47
      %v631 = vpop.permute.xlu0 %630
      %632 = vrot.lane.b32.xlu0 %v618, 47
      %v633 = vpop.permute.xlu0 %632
      %vm634 = vcmask 384000
      %v635 = vsel %vm634, %v625, %v627
      %v636 = vsel %vm634, %v627, %v629
      %v637 = vsel %vm634, %v629, %v631
      %v638 = vsel %vm634, %v631, %v633
      %643 = vst [vmem:[#allocation2 + $0x240] sm:$0xff] %v635
      %644 = vst [vmem:[#allocation2 + $0x248] sm:$0xff] %v636
      %645 = vst [vmem:[#allocation2 + $0x250] sm:$0xff] %v637
      %646 = vst [vmem:[#allocation2 + $0x258] sm:$0xff] %v638
      %v647 = vld [vmem:[%s181] sm:$0xff]
      %v648 = vld [vmem:[%s181 + $0x8] sm:$0xff]
      %v649 = vld [vmem:[%s181 + $0x10] sm:$0xf]
      %v650 = vunpack.c.l.bf16 %v647
      %v651 = vunpack.c.h.bf16 %v647
      %v652 = vunpack.c.l.bf16 %v648
      %v653 = vunpack.c.h.bf16 %v648
      %v654 = vunpack.c.l.bf16 %v649
      %660 = vrot.lane.b32.xlu0 %v650, 47
      %v661 = vpop.permute.xlu0 %660
      %662 = vrot.lane.b32.xlu0 %v651, 47
      %v663 = vpop.permute.xlu0 %662
      %664 = vrot.lane.b32.xlu0 %v652, 47
      %v665 = vpop.permute.xlu0 %664
      %666 = vrot.lane.b32.xlu0 %v653, 47
      %v667 = vpop.permute.xlu0 %666
      %668 = vrot.lane.b32.xlu0 %v654, 47
      %v669 = vpop.permute.xlu0 %668
      %v670 = vsel %vm634, %v661, %v663
      %v671 = vsel %vm634, %v663, %v665
      %v672 = vsel %vm634, %v665, %v667
      %v673 = vsel %vm634, %v667, %v669
      %678 = vst [vmem:[#allocation2 + $0x260] sm:$0xff] %v670
      %679 = vst [vmem:[#allocation2 + $0x268] sm:$0xff] %v671
      %680 = vst [vmem:[#allocation2 + $0x270] sm:$0xff] %v672
      %681 = vst [vmem:[#allocation2 + $0x278] sm:$0xff] %v673
      %v682 = vld [vmem:[%s165] sm:$0xff]
      %v683 = vld [vmem:[%s165 + $0x8] sm:$0xff]
      %v684 = vld [vmem:[%s165 + $0x10] sm:$0xf]
      %v685 = vunpack.c.l.bf16 %v682
      %v686 = vunpack.c.h.bf16 %v682
      %v687 = vunpack.c.l.bf16 %v683
      %v688 = vunpack.c.h.bf16 %v683
      %v689 = vunpack.c.l.bf16 %v684
      %695 = vrot.lane.b32.xlu0 %v685, 46
      %v696 = vpop.permute.xlu0 %695
      %697 = vrot.lane.b32.xlu0 %v686, 46
      %v698 = vpop.permute.xlu0 %697
      %699 = vrot.lane.b32.xlu0 %v687, 46
      %v700 = vpop.permute.xlu0 %699
      %701 = vrot.lane.b32.xlu0 %v688, 46
      %v702 = vpop.permute.xlu0 %701
      %703 = vrot.lane.b32.xlu0 %v689, 46
      %v704 = vpop.permute.xlu0 %703
      %vm705 = vcmask 375808
      %v706 = vsel %vm705, %v696, %v698
      %v707 = vsel %vm705, %v698, %v700
      %v708 = vsel %vm705, %v700, %v702
      %v709 = vsel %vm705, %v702, %v704
      %714 = vst [vmem:[#allocation2 + $0x280] sm:$0xff] %v706
      %715 = vst [vmem:[#allocation2 + $0x288] sm:$0xff] %v707
      %716 = vst [vmem:[#allocation2 + $0x290] sm:$0xff] %v708
      %717 = vst [vmem:[#allocation2 + $0x298] sm:$0xff] %v709
      %v718 = vld [vmem:[%s228] sm:$0xff]
      %v719 = vld [vmem:[%s228 + $0x8] sm:$0xff]
      %v720 = vld [vmem:[%s228 + $0x10] sm:$0xf]
      %v721 = vunpack.c.l.bf16 %v718
      %v722 = vunpack.c.h.bf16 %v718
      %v723 = vunpack.c.l.bf16 %v719
      %v724 = vunpack.c.h.bf16 %v719
      %v725 = vunpack.c.l.bf16 %v720
      %731 = vrot.lane.b32.xlu0 %v721, 47
      %v732 = vpop.permute.xlu0 %731
      %733 = vrot.lane.b32.xlu0 %v722, 47
      %v734 = vpop.permute.xlu0 %733
      %735 = vrot.lane.b32.xlu0 %v723, 47
      %v736 = vpop.permute.xlu0 %735
      %737 = vrot.lane.b32.xlu0 %v724, 47
      %v738 = vpop.permute.xlu0 %737
      %739 = vrot.lane.b32.xlu0 %v725, 47
      %v740 = vpop.permute.xlu0 %739
      %v741 = vsel %vm634, %v732, %v734
      %v742 = vsel %vm634, %v734, %v736
      %v743 = vsel %vm634, %v736, %v738
      %v744 = vsel %vm634, %v738, %v740
      %749 = vst [vmem:[#allocation2 + $0x2a0] sm:$0xff] %v741
      %750 = vst [vmem:[#allocation2 + $0x2a8] sm:$0xff] %v742
      %751 = vst [vmem:[#allocation2 + $0x2b0] sm:$0xff] %v743
      %752 = vst [vmem:[#allocation2 + $0x2b8] sm:$0xff] %v744
      %v753 = vld [vmem:[%s239] sm:$0xff]
      %v754 = vld [vmem:[%s239 + $0x8] sm:$0xff]
      %v755 = vld [vmem:[%s239 + $0x10] sm:$0xf]
      %v756 = vunpack.c.l.bf16 %v753
      %v757 = vunpack.c.h.bf16 %v753
      %v758 = vunpack.c.l.bf16 %v754
      %v759 = vunpack.c.h.bf16 %v754
      %v760 = vunpack.c.l.bf16 %v755
      %766 = vrot.lane.b32.xlu0 %v756, 47
      %v767 = vpop.permute.xlu0 %766
      %768 = vrot.lane.b32.xlu0 %v757, 47
      %v769 = vpop.permute.xlu0 %768
      %770 = vrot.lane.b32.xlu0 %v758, 47
      %v771 = vpop.permute.xlu0 %770
      %772 = vrot.lane.b32.xlu0 %v759, 47
      %v773 = vpop.permute.xlu0 %772
      %774 = vrot.lane.b32.xlu0 %v760, 47
      %v775 = vpop.permute.xlu0 %774
      %v776 = vsel %vm634, %v767, %v769
      %v777 = vsel %vm634, %v769, %v771
      %v778 = vsel %vm634, %v771, %v773
      %v779 = vsel %vm634, %v773, %v775
      %784 = vst [vmem:[#allocation2 + $0x2c0] sm:$0xff] %v776
      %785 = vst [vmem:[#allocation2 + $0x2c8] sm:$0xff] %v777
      %786 = vst [vmem:[#allocation2 + $0x2d0] sm:$0xff] %v778
      %787 = vst [vmem:[#allocation2 + $0x2d8] sm:$0xff] %v779
      %v788 = vld [vmem:[%s228] sm:$0xff]
      %v789 = vld [vmem:[%s228 + $0x8] sm:$0xff]
      %v790 = vld [vmem:[%s228 + $0x10] sm:$0xf]
      %v791 = vunpack.c.l.bf16 %v788
      %v792 = vunpack.c.h.bf16 %v788
      %v793 = vunpack.c.l.bf16 %v789
      %v794 = vunpack.c.h.bf16 %v789
      %v795 = vunpack.c.l.bf16 %v790
      %801 = vrot.lane.b32.xlu0 %v791, 46
      %v802 = vpop.permute.xlu0 %801
      %803 = vrot.lane.b32.xlu0 %v792, 46
      %v804 = vpop.permute.xlu0 %803
      %805 = vrot.lane.b32.xlu0 %v793, 46
      %v806 = vpop.permute.xlu0 %805
      %807 = vrot.lane.b32.xlu0 %v794, 46
      %v808 = vpop.permute.xlu0 %807
      %809 = vrot.lane.b32.xlu0 %v795, 46
      %v810 = vpop.permute.xlu0 %809
      %v811 = vsel %vm705, %v802, %v804
      %v812 = vsel %vm705, %v804, %v806
      %v813 = vsel %vm705, %v806, %v808
      %v814 = vsel %vm705, %v808, %v810
      %819 = vst [vmem:[#allocation2 + $0x2e0] sm:$0xff] %v811
      %820 = vst [vmem:[#allocation2 + $0x2e8] sm:$0xff] %v812
      %821 = vst [vmem:[#allocation2 + $0x2f0] sm:$0xff] %v813
      %822 = vst [vmem:[#allocation2 + $0x2f8] sm:$0xff] %v814
      %v823 = vld [vmem:[%s165] sm:$0xff]
      %v824 = vld [vmem:[%s165 + $0x8] sm:$0xff]
      %v825 = vld [vmem:[%s165 + $0x10] sm:$0xf]
      %v826 = vunpack.c.l.bf16 %v823
      %v827 = vunpack.c.h.bf16 %v823
      %v828 = vunpack.c.l.bf16 %v824
      %v829 = vunpack.c.h.bf16 %v824
      %v830 = vunpack.c.l.bf16 %v825
      %836 = vrot.lane.b32.xlu0 %v826, 38
      %v837 = vpop.permute.xlu0 %836
      %838 = vrot.lane.b32.xlu0 %v827, 38
      %v839 = vpop.permute.xlu0 %838
      %840 = vrot.lane.b32.xlu0 %v828, 38
      %v841 = vpop.permute.xlu0 %840
      %842 = vrot.lane.b32.xlu0 %v829, 38
      %v843 = vpop.permute.xlu0 %842
      %844 = vrot.lane.b32.xlu0 %v830, 38
      %v845 = vpop.permute.xlu0 %844
      %vm846 = vcmask 310272
      %v847 = vsel %vm846, %v837, %v839
      %v848 = vsel %vm846, %v839, %v841
      %v849 = vsel %vm846, %v841, %v843
      %v850 = vsel %vm846, %v843, %v845
      %855 = vst [vmem:[#allocation2 + $0x300] sm:$0xff] %v847
      %856 = vst [vmem:[#allocation2 + $0x308] sm:$0xff] %v848
      %857 = vst [vmem:[#allocation2 + $0x310] sm:$0xff] %v849
      %858 = vst [vmem:[#allocation2 + $0x318] sm:$0xff] %v850
      %v859 = vld [vmem:[%s181] sm:$0xff]
      %v860 = vld [vmem:[%s181 + $0x8] sm:$0xff]
      %v861 = vld [vmem:[%s181 + $0x10] sm:$0xf]
      %v862 = vunpack.c.l.bf16 %v859
      %v863 = vunpack.c.h.bf16 %v859
      %v864 = vunpack.c.l.bf16 %v860
      %v865 = vunpack.c.h.bf16 %v860
      %v866 = vunpack.c.l.bf16 %v861
      %872 = vrot.lane.b32.xlu0 %v862, 38
      %v873 = vpop.permute.xlu0 %872
      %874 = vrot.lane.b32.xlu0 %v863, 38
      %v875 = vpop.permute.xlu0 %874
      %876 = vrot.lane.b32.xlu0 %v864, 38
      %v877 = vpop.permute.xlu0 %876
      %878 = vrot.lane.b32.xlu0 %v865, 38
      %v879 = vpop.permute.xlu0 %878
      %880 = vrot.lane.b32.xlu0 %v866, 38
      %v881 = vpop.permute.xlu0 %880
      %v882 = vsel %vm846, %v873, %v875
      %v883 = vsel %vm846, %v875, %v877
      %v884 = vsel %vm846, %v877, %v879
      %v885 = vsel %vm846, %v879, %v881
      %890 = vst [vmem:[#allocation2 + $0x320] sm:$0xff] %v882
      %891 = vst [vmem:[#allocation2 + $0x328] sm:$0xff] %v883
      %892 = vst [vmem:[#allocation2 + $0x330] sm:$0xff] %v884
      %893 = vst [vmem:[#allocation2 + $0x338] sm:$0xff] %v885
      %v894 = vld [vmem:[%s165] sm:$0xff]
      %v895 = vld [vmem:[%s165 + $0x8] sm:$0xff]
      %v896 = vld [vmem:[%s165 + $0x10] sm:$0xf]
      %v897 = vunpack.c.l.bf16 %v894
      %v898 = vunpack.c.h.bf16 %v894
      %v899 = vunpack.c.l.bf16 %v895
      %v900 = vunpack.c.h.bf16 %v895
      %v901 = vunpack.c.l.bf16 %v896
      %907 = vrot.lane.b32.xlu0 %v897, 37
      %v908 = vpop.permute.xlu0 %907
      %909 = vrot.lane.b32.xlu0 %v898, 37
      %v910 = vpop.permute.xlu0 %909
      %911 = vrot.lane.b32.xlu0 %v899, 37
      %v912 = vpop.permute.xlu0 %911
      %913 = vrot.lane.b32.xlu0 %v900, 37
      %v914 = vpop.permute.xlu0 %913
      %915 = vrot.lane.b32.xlu0 %v901, 37
      %v916 = vpop.permute.xlu0 %915
      %vm917 = vcmask 302080
      %v918 = vsel %vm917, %v908, %v910
      %v919 = vsel %vm917, %v910, %v912
      %v920 = vsel %vm917, %v912, %v914
      %v921 = vsel %vm917, %v914, %v916
      %926 = vst [vmem:[#allocation2 + $0x340] sm:$0xff] %v918
      %927 = vst [vmem:[#allocation2 + $0x348] sm:$0xff] %v919
      %928 = vst [vmem:[#allocation2 + $0x350] sm:$0xff] %v920
      %929 = vst [vmem:[#allocation2 + $0x358] sm:$0xff] %v921
      %v930 = vld [vmem:[%s0] sm:$0xff]
      %v931 = vld [vmem:[%s0 + $0x8] sm:$0xff]
      %v932 = vld [vmem:[%s0 + $0x10] sm:$0xff]
      %v933 = vld [vmem:[%s0 + $0x18] sm:$0xff]
      %v934 = vld [vmem:[#allocation2] sm:$0xff]
      %v935 = vld [vmem:[#allocation2 + $0x8] sm:$0xff]
      %v936 = vld [vmem:[#allocation2 + $0x10] sm:$0xff]
      %v937 = vld [vmem:[#allocation2 + $0x18] sm:$0xff]
      %v938 = vld [vmem:[#allocation2 + $0x20] sm:$0xff]
      %v939 = vld [vmem:[#allocation2 + $0x28] sm:$0xff]
      %v940 = vld [vmem:[#allocation2 + $0x30] sm:$0xff]
      %v941 = vld [vmem:[#allocation2 + $0x38] sm:$0xff]
      %v942 = vld [vmem:[#allocation2 + $0x40] sm:$0xff]
      %v943 = vld [vmem:[#allocation2 + $0x48] sm:$0xff]
      %v944 = vld [vmem:[#allocation2 + $0x50] sm:$0xff]
      %v945 = vld [vmem:[#allocation2 + $0x58] sm:$0xff]
      %v946 = vld [vmem:[#allocation2 + $0x60] sm:$0xff]
      %v947 = vld [vmem:[#allocation2 + $0x68] sm:$0xff]
      %v948 = vld [vmem:[#allocation2 + $0x70] sm:$0xff]
      %v949 = vld [vmem:[#allocation2 + $0x78] sm:$0xff]
      %v950 = vld [vmem:[#allocation2 + $0x80] sm:$0xff]
      %v951 = vld [vmem:[#allocation2 + $0x88] sm:$0xff]
      %v952 = vld [vmem:[#allocation2 + $0x90] sm:$0xff]
      %v953 = vld [vmem:[#allocation2 + $0x98] sm:$0xff]
      %v954 = vld [vmem:[#allocation2 + $0xa0] sm:$0xff]
      %v955 = vld [vmem:[#allocation2 + $0xa8] sm:$0xff]
      %v956 = vld [vmem:[#allocation2 + $0xb0] sm:$0xff]
      %v957 = vld [vmem:[#allocation2 + $0xb8] sm:$0xff]
      %v958 = vld [vmem:[#allocation2 + $0xc0] sm:$0xff]
      %v959 = vld [vmem:[#allocation2 + $0xc8] sm:$0xff]
      %v960 = vld [vmem:[#allocation2 + $0xd0] sm:$0xff]
      %v961 = vld [vmem:[#allocation2 + $0xd8] sm:$0xff]
      %v962 = vld [vmem:[#allocation2 + $0xe0] sm:$0xff]
      %v963 = vld [vmem:[#allocation2 + $0xe8] sm:$0xff]
      %v964 = vld [vmem:[#allocation2 + $0xf0] sm:$0xff]
      %v965 = vld [vmem:[#allocation2 + $0xf8] sm:$0xff]
      %v966 = vld [vmem:[#allocation2 + $0x100] sm:$0xff]
      %v967 = vld [vmem:[#allocation2 + $0x108] sm:$0xff]
      %v968 = vld [vmem:[#allocation2 + $0x110] sm:$0xff]
      %v969 = vld [vmem:[#allocation2 + $0x118] sm:$0xff]
      %v970 = vld [vmem:[#allocation2 + $0x120] sm:$0xff]
      %v971 = vld [vmem:[#allocation2 + $0x128] sm:$0xff]
      %v972 = vld [vmem:[#allocation2 + $0x130] sm:$0xff]
      %v973 = vld [vmem:[#allocation2 + $0x138] sm:$0xff]
      %v974 = vld [vmem:[#allocation2 + $0x140] sm:$0xff]
      %v975 = vld [vmem:[#allocation2 + $0x148] sm:$0xff]
      %v976 = vld [vmem:[#allocation2 + $0x150] sm:$0xff]
      %v977 = vld [vmem:[#allocation2 + $0x158] sm:$0xff]
      %v978 = vld [vmem:[#allocation2 + $0x160] sm:$0xff]
      %v979 = vld [vmem:[#allocation2 + $0x168] sm:$0xff]
      %v980 = vld [vmem:[#allocation2 + $0x170] sm:$0xff]
      %v981 = vld [vmem:[#allocation2 + $0x178] sm:$0xff]
      %v982 = vld [vmem:[#allocation2 + $0x180] sm:$0xff]
      %v983 = vld [vmem:[#allocation2 + $0x188] sm:$0xff]
      %v984 = vld [vmem:[#allocation2 + $0x190] sm:$0xff]
      %v985 = vld [vmem:[#allocation2 + $0x198] sm:$0xff]
      %v986 = vld [vmem:[#allocation2 + $0x1a0] sm:$0xff]
      %v987 = vld [vmem:[#allocation2 + $0x1a8] sm:$0xff]
      %v988 = vld [vmem:[#allocation2 + $0x1b0] sm:$0xff]
      %v989 = vld [vmem:[#allocation2 + $0x1b8] sm:$0xff]
      %v990 = vld [vmem:[#allocation2 + $0x1c0] sm:$0xff]
      %v991 = vld [vmem:[#allocation2 + $0x1c8] sm:$0xff]
      %v992 = vld [vmem:[#allocation2 + $0x1d0] sm:$0xff]
      %v993 = vld [vmem:[#allocation2 + $0x1d8] sm:$0xff]
      %v994 = vld [vmem:[#allocation2 + $0x1e0] sm:$0xff]
      %v995 = vld [vmem:[#allocation2 + $0x1e8] sm:$0xff]
      %v996 = vld [vmem:[#allocation2 + $0x1f0] sm:$0xff]
      %v997 = vld [vmem:[#allocation2 + $0x1f8] sm:$0xff]
      %v998 = vld [vmem:[#allocation2 + $0x200] sm:$0xff]
      %v999 = vld [vmem:[#allocation2 + $0x208] sm:$0xff]
      %v1000 = vld [vmem:[#allocation2 + $0x210] sm:$0xff]
      %v1001 = vld [vmem:[#allocation2 + $0x218] sm:$0xff]
      %v1002 = vld [vmem:[#allocation2 + $0x220] sm:$0xff]
      %v1003 = vld [vmem:[#allocation2 + $0x228] sm:$0xff]
      %v1004 = vld [vmem:[#allocation2 + $0x230] sm:$0xff]
      %v1005 = vld [vmem:[#allocation2 + $0x238] sm:$0xff]
      %v1006 = vld [vmem:[#allocation2 + $0x240] sm:$0xff]
      %v1007 = vld [vmem:[#allocation2 + $0x248] sm:$0xff]
      %v1008 = vld [vmem:[#allocation2 + $0x250] sm:$0xff]
      %v1009 = vld [vmem:[#allocation2 + $0x258] sm:$0xff]
      %v1010 = vld [vmem:[#allocation2 + $0x260] sm:$0xff]
      %v1011 = vld [vmem:[#allocation2 + $0x268] sm:$0xff]
      %v1012 = vld [vmem:[#allocation2 + $0x270] sm:$0xff]
      %v1013 = vld [vmem:[#allocation2 + $0x278] sm:$0xff]
      %v1014 = vld [vmem:[#allocation2 + $0x280] sm:$0xff]
      %v1015 = vld [vmem:[#allocation2 + $0x288] sm:$0xff]
      %v1016 = vld [vmem:[#allocation2 + $0x290] sm:$0xff]
      %v1017 = vld [vmem:[#allocation2 + $0x298] sm:$0xff]
      %v1018 = vld [vmem:[#allocation2 + $0x2a0] sm:$0xff]
      %v1019 = vld [vmem:[#allocation2 + $0x2a8] sm:$0xff]
      %v1020 = vld [vmem:[#allocation2 + $0x2b0] sm:$0xff]
      %v1021 = vld [vmem:[#allocation2 + $0x2b8] sm:$0xff]
      %v1022 = vld [vmem:[#allocation2 + $0x2c0] sm:$0xff]
      %v1023 = vld [vmem:[#allocation2 + $0x2c8] sm:$0xff]
      %v1024 = vld [vmem:[#allocation2 + $0x2d0] sm:$0xff]
      %v1025 = vld [vmem:[#allocation2 + $0x2d8] sm:$0xff]
      %v1026 = vld [vmem:[#allocation2 + $0x2e0] sm:$0xff]
      %v1027 = vld [vmem:[#allocation2 + $0x2e8] sm:$0xff]
      %v1028 = vld [vmem:[#allocation2 + $0x2f0] sm:$0xff]
      %v1029 = vld [vmem:[#allocation2 + $0x2f8] sm:$0xff]
      %v1030 = vld [vmem:[#allocation2 + $0x300] sm:$0xff]
      %v1031 = vld [vmem:[#allocation2 + $0x308] sm:$0xff]
      %v1032 = vld [vmem:[#allocation2 + $0x310] sm:$0xff]
      %v1033 = vld [vmem:[#allocation2 + $0x318] sm:$0xff]
      %v1034 = vld [vmem:[#allocation2 + $0x320] sm:$0xff]
      %v1035 = vld [vmem:[#allocation2 + $0x328] sm:$0xff]
      %v1036 = vld [vmem:[#allocation2 + $0x330] sm:$0xff]
      %v1037 = vld [vmem:[#allocation2 + $0x338] sm:$0xff]
      %v1038 = vld [vmem:[#allocation2 + $0x340] sm:$0xff]
      %v1039 = vld [vmem:[#allocation2 + $0x348] sm:$0xff]
      %v1040 = vld [vmem:[#allocation2 + $0x350] sm:$0xff]
      %v1041 = vld [vmem:[#allocation2 + $0x358] sm:$0xff]
      %v1042 = vld [vmem:[%s1] sm:$0xff]
      %v1043 = vld [vmem:[%s1 + $0x8] sm:$0xff]
      %1045 = vset.pattern.permute.xlu0 0
      %1046 = vperm.xlu0 %1045, %v1042
      %v1047 = vpop.permute.xlu0 %1046
      %1050 = vset.pattern.permute.xlu0 0
      %1051 = vperm.xlu0 %1050, %v1043
      %v1052 = vpop.permute.xlu0 %1051
      %vm1054 = vcmask 719872
      %v1056 = vsel %vm1054, %v931, 0
      %v1059 = vsel %vm1054, %v933, 0
      %1061 = vmatprep.subr.mxu0 %v935
      %1062 = vmatpush1.msra.mxu0 %v934
      %1063 = vmatprep.subr.mxu0 %v939
      %1064 = vmatpush1.msra.mxu0 %v938
      %1065 = vmatprep.subr.mxu0 %v943
      %1066 = vmatpush1.msra.mxu0 %v942
      %1067 = vmatprep.subr.mxu0 %v947
      %1068 = vmatpush1.msra.mxu0 %v946
      %1069 = vmatprep.subr.mxu0 %v951
      %1070 = vmatpush1.msra.mxu0 %v950
      %1071 = vmatprep.subr.mxu0 %v955
      %1072 = vmatpush1.msra.mxu0 %v954
      %1073 = vmatprep.subr.mxu0 %v959
      %1074 = vmatpush1.msra.mxu0 %v958
      %1075 = vmatprep.subr.mxu0 %v963
      %1076 = vmatpush1.msra.mxu0 %v962
      %1077 = vmatprep.subr.mxu0 %v967
      %1078 = vmatpush1.msra.mxu0 %v966
      %1079 = vmatprep.subr.mxu0 %v971
      %1080 = vmatpush1.msra.mxu0 %v970
      %1081 = vmatprep.subr.mxu0 %v975
      %1082 = vmatpush1.msra.mxu0 %v974
      %1083 = vmatprep.subr.mxu0 %v979
      %1084 = vmatpush1.msra.mxu0 %v978
      %1085 = vmatprep.subr.mxu0 %v983
      %1086 = vmatpush1.msra.mxu0 %v982
      %1087 = vmatprep.subr.mxu0 %v987
      %1088 = vmatpush1.msra.mxu0 %v986
      %1089 = vmatprep.subr.mxu0 %v991
      %1090 = vmatpush1.msra.mxu0 %v990
      %1091 = vmatprep.subr.mxu0 %v995
      %1092 = vmatpush1.msra.mxu0 %v994
      %1093 = vmatprep.subr.mxu0 %v999
      %1094 = vmatpush1.msra.mxu0 %v998
      %1095 = vmatprep.subr.mxu0 %v1003
      %1096 = vmatpush1.msra.mxu0 %v1002
      %1097 = vmatprep.subr.mxu0 %v1007
      %1098 = vmatpush1.msra.mxu0 %v1006
      %1099 = vmatprep.subr.mxu0 %v1011
      %1100 = vmatpush1.msra.mxu0 %v1010
      %1101 = vmatprep.subr.mxu0 %v1015
      %1102 = vmatpush1.msra.mxu0 %v1014
      %1103 = vmatprep.subr.mxu0 %v1019
      %1104 = vmatpush1.msra.mxu0 %v1018
      %1105 = vmatprep.subr.mxu0 %v1023
      %1106 = vmatpush1.msra.mxu0 %v1022
      %1107 = vmatprep.subr.mxu0 %v1027
      %1108 = vmatpush1.msra.mxu0 %v1026
      %1109 = vmatprep.subr.mxu0 %v1031
      %1110 = vmatpush1.msra.mxu0 %v1030
      %1111 = vmatprep.subr.mxu0 %v1035
      %1112 = vmatpush1.msra.mxu0 %v1034
      %1113 = vmatprep.subr.mxu0 %v1039
      %1114 = vmatpush1.msra.mxu0 %v1038
      %1115 = vmatprep.subr.mxu0 0.0
      %1116 = vmatpush1.msra.mxu0 0.0
      %1117 = vmatprep.subr.mxu0 0.0
      %1118 = vmatpush1.msra.mxu0 0.0
      %1119 = vmatprep.subr.mxu0 0.0
      %1120 = vmatpush1.msra.mxu0 0.0
      %1121 = vmatprep.subr.mxu0 0.0
      %1122 = vmatpush1.msra.mxu0 0.0
      %1123 = vmatprep.subr.mxu0 0.0
      %1124 = vmatpush1.msra.mxu0 0.0
      %1125 = vmatprep.mubr.f32.mxu0 %v1056
      %1126 = vmatmul.mubr.f32.gmra.mrb[0].mxu0 %v930
      %v1127 = vpop.f32.mrb[0].mxu0
      %v1128 = vadd.f32 %v1047, %v1127
      %v1129 = vpop.f32.mrb[0].mxu0
      %v1130 = vadd.f32 %v1047, %v1129
      %1131 = vmatprep.mubr.f32.mxu0 %v1059
      %1132 = vmatmul.mubr.f32.gmra.mrb[0].mxu0 %v932
      %v1133 = vpop.f32.mrb[0].mxu0
      %v1134 = vadd.f32 %v1052, %v1133
      %v1135 = vpop.f32.mrb[0].mxu0
      %v1136 = vadd.f32 %v1052, %v1135
      %1137 = vdwg.mxu0
      %1138 = vmatprep.subr.mxu0 %v937
      %1139 = vmatpush1.msra.mxu0 %v936
      %1140 = vmatprep.subr.mxu0 %v941
      %1141 = vmatpush1.msra.mxu0 %v940
      %1142 = vmatprep.subr.mxu0 %v945
      %1143 = vmatpush1.msra.mxu0 %v944
      %1144 = vmatprep.subr.mxu0 %v949
      %1145 = vmatpush1.msra.mxu0 %v948
      %1146 = vmatprep.subr.mxu0 %v953
      %1147 = vmatpush1.msra.mxu0 %v952
      %1148 = vmatprep.subr.mxu0 %v957
      %1149 = vmatpush1.msra.mxu0 %v956
      %1150 = vmatprep.subr.mxu0 %v961
      %1151 = vmatpush1.msra.mxu0 %v960
      %1152 = vmatprep.subr.mxu0 %v965
      %1153 = vmatpush1.msra.mxu0 %v964
      %1154 = vmatprep.subr.mxu0 %v969
      %1155 = vmatpush1.msra.mxu0 %v968
      %1156 = vmatprep.subr.mxu0 %v973
      %1157 = vmatpush1.msra.mxu0 %v972
      %1158 = vmatprep.subr.mxu0 %v977
      %1159 = vmatpush1.msra.mxu0 %v976
      %1160 = vmatprep.subr.mxu0 %v981
      %1161 = vmatpush1.msra.mxu0 %v980
      %1162 = vmatprep.subr.mxu0 %v985
      %1163 = vmatpush1.msra.mxu0 %v984
      %1164 = vmatprep.subr.mxu0 %v989
      %1165 = vmatpush1.msra.mxu0 %v988
      %1166 = vmatprep.subr.mxu0 %v993
      %1167 = vmatpush1.msra.mxu0 %v992
      %1168 = vmatprep.subr.mxu0 %v997
      %1169 = vmatpush1.msra.mxu0 %v996
      %1170 = vmatprep.subr.mxu0 %v1001
      %1171 = vmatpush1.msra.mxu0 %v1000
      %1172 = vmatprep.subr.mxu0 %v1005
      %1173 = vmatpush1.msra.mxu0 %v1004
      %1174 = vmatprep.subr.mxu0 %v1009
      %1175 = vmatpush1.msra.mxu0 %v1008
      %1176 = vmatprep.subr.mxu0 %v1013
      %1177 = vmatpush1.msra.mxu0 %v1012
      %1178 = vmatprep.subr.mxu0 %v1017
      %1179 = vmatpush1.msra.mxu0 %v1016
      %1180 = vmatprep.subr.mxu0 %v1021
      %1181 = vmatpush1.msra.mxu0 %v1020
      %1182 = vmatprep.subr.mxu0 %v1025
      %1183 = vmatpush1.msra.mxu0 %v1024
      %1184 = vmatprep.subr.mxu0 %v1029
      %1185 = vmatpush1.msra.mxu0 %v1028
      %1186 = vmatprep.subr.mxu0 %v1033
      %1187 = vmatpush1.msra.mxu0 %v1032
      %1188 = vmatprep.subr.mxu0 %v1037
      %1189 = vmatpush1.msra.mxu0 %v1036
      %1190 = vmatprep.subr.mxu0 %v1041
      %1191 = vmatpush1.msra.mxu0 %v1040
      %1192 = vmatprep.subr.mxu0 0.0
      %1193 = vmatpush1.msra.mxu0 0.0
      %1194 = vmatprep.subr.mxu0 0.0
      %1195 = vmatpush1.msra.mxu0 0.0
      %1196 = vmatprep.subr.mxu0 0.0
      %1197 = vmatpush1.msra.mxu0 0.0
      %1198 = vmatprep.subr.mxu0 0.0
      %1199 = vmatpush1.msra.mxu0 0.0
      %1200 = vmatprep.subr.mxu0 0.0
      %1201 = vmatpush1.msra.mxu0 0.0
      %1202 = vmatprep.mubr.f32.mxu0 %v1056
      %1203 = vmatmul.mubr.f32.gmra.mrb[0].mxu0 %v930
      %v1204 = vpop.f32.mrb[0].mxu0
      %v1205 = vadd.f32 %v1047, %v1204
      %v1206 = vpop.f32.mrb[0].mxu0
      %v1207 = vadd.f32 %v1047, %v1206
      %1208 = vmatprep.mubr.f32.mxu0 %v1059
      %1209 = vmatmul.mubr.f32.gmra.mrb[0].mxu0 %v932
      %v1210 = vpop.f32.mrb[0].mxu0
      %v1211 = vadd.f32 %v1052, %v1210
      %v1212 = vpop.f32.mrb[0].mxu0
      %v1213 = vadd.f32 %v1052, %v1212
      %1214 = vdwg.mxu0
      %vm1215 = vcmp.gt.f32.partialorder %v1128, 0.0
      %vm1216 = vcmp.gt.f32.partialorder %v1130, 0.0
      %vm1217 = vcmp.gt.f32.partialorder %v1205, 0.0
      %vm1218 = vcmp.gt.f32.partialorder %v1207, 0.0
      %vm1219 = vcmp.gt.f32.partialorder %v1134, 0.0
      %vm1220 = vcmp.gt.f32.partialorder %v1136, 0.0
      %vm1221 = vcmp.gt.f32.partialorder %v1211, 0.0
      %vm1222 = vcmp.gt.f32.partialorder %v1213, 0.0
      %v1223 = vmul.f32 %v1128, 0.01
      %v1224 = vmul.f32 %v1130, 0.01
      %v1225 = vmul.f32 %v1205, 0.01
      %v1226 = vmul.f32 %v1207, 0.01
      %v1227 = vmul.f32 %v1134, 0.01
      %v1228 = vmul.f32 %v1136, 0.01
      %v1229 = vmul.f32 %v1211, 0.01
      %v1230 = vmul.f32 %v1213, 0.01
      %v1231 = vsel %vm1215, %v1128, %v1223
      %v1232 = vsel %vm1216, %v1130, %v1224
      %v1233 = vsel %vm1217, %v1205, %v1225
      %v1234 = vsel %vm1218, %v1207, %v1226
      %v1235 = vsel %vm1219, %v1134, %v1227
      %v1236 = vsel %vm1220, %v1136, %v1228
      %v1237 = vsel %vm1221, %v1211, %v1229
      %v1238 = vsel %vm1222, %v1213, %v1230
      %1239 = vst [vmem:[%s170] sm:$0xff] %v1231
      %1240 = vst [vmem:[%s170 + $0x8] sm:$0xff] %v1232
      %1241 = vst [vmem:[%s170 + $0x10] sm:$0xff] %v1233
      %1242 = vst [vmem:[%s170 + $0x18] sm:$0xff] %v1234
      %1243 = vst [vmem:[%s170 + $0x20] sm:$0xff] %v1235
      %1244 = vst [vmem:[%s170 + $0x28] sm:$0xff] %v1236
      %1245 = vst [vmem:[%s170 + $0x30] sm:$0xff] %v1237
      %1246 = vst [vmem:[%s170 + $0x38] sm:$0xff] %v1238
      %p1247 = scmp.lt.s32.totalorder %s14, 1
      %s1248 = scalar_select %p1247, %s14, 1
      %s1249 = smul.addr %s1248, 8
      %s1250 = smul.addr %s1249, 8
      %s1251 = scalar_lea.vmem %s3, %s1250
      // Predicated region
      $region33: #{_lambda_.3} parent=31 // pred_check
        %p1252 = pneg %p100
      $region34: #{_lambda_.3} parent=31 // pred_check_branch
        %1254 = sbr.rel (%p1252) target = $region36
      $region35: #{_lambda_.3} parent=31 // pred_region
        _
      $region36: #{_lambda_.3} parent=31 // pred_fallthru
        _
    $region32: #{_lambda_.3} parent=5 // pred_fallthru
      _
    %p1255 = scmp.le.s32.totalorder 2, %s9
    // Predicated region
    $region37: #{_lambda_.3} parent=5 // pred_check
      %p1256 = pneg %p1255
    $region38: #{_lambda_.3} parent=5 // pred_check_branch
      %1258 = sbr.rel (%p1256) target = $region40
    $region39: #{_lambda_.3} parent=5 // pred_region
      %s1259 = ssub.s32 %s9, 2
      // Predicated region
      $region41: #{_lambda_.3} parent=39 // pred_check
        %p1260 = pneg %p106
      $region42: #{_lambda_.3} parent=39 // pred_check_branch
        %1262 = sbr.rel (%p1260) target = $region44
      $region43: #{_lambda_.3} parent=39 // pred_region
        %p1263 = scmp.lt.s32.totalorder %s15, 1
        %s1264 = scalar_select %p1263, %s15, 1
        %s1265 = smul.addr %s1264, 8
        %s1266 = smul.addr %s1265, 8
        %s1267 = scalar_lea.vmem %s3, %s1266
      $region44: #{_lambda_.3} parent=39 // pred_fallthru
        _
    $region40: #{_lambda_.3} parent=5 // pred_fallthru
      _
  $region6: #{_lambda_.3} parent=0 // loop_footer
    %s13 = sadd.s32 1, %s9
  $region7: #{_lambda_.3} parent=0 // loop_footer_branch
    %8 = sbr.rel target = $region3
  $region8: #{_lambda_.3} parent=0 // loop_exit
    _

</llo_original>
